<compile_context>
chip_gen: v7x
topology: tpu7x:2x2x1
jax: 0.10.0
libtpu: 0.0.40
codegen_flags: <defaults>
</compile_context>

<pallas_src>
import jax
import jax.numpy as jnp
from jax import lax
from jax.experimental import pallas as pl
from jax.experimental.pallas import tpu as pltpu


_ROWS = 8         # output-tile sublanes per grid step (one f32 sublane tile)
_MAX_LANES = 512  # output-tile lanes per grid step -> up to 8*512 = 4096 samples/step


def _d_cgan_kernel(seq_ref, cond_ref, w1s_ref, w1c_ref, b1_ref, w2_ref, b2_ref, o_ref):
    # seq_ref : (rows*lanes, seq_size)   batch tile of `sequence` (caller dtype)
    # cond_ref: (rows*lanes, cond_size)  batch tile of `condition`
    # w1s_ref : (latent, seq_size)       l1 weight cols for the sequence part
    # w1c_ref : (latent, cond_size)      l1 weight cols for the condition part
    # b1_ref  : (latent, 1)              l1 bias (column)
    # w2_ref  : (latent, 1)              l2 weight (column)
    # b2_ref  : (1,)   [SMEM]            l2 bias scalar
    # o_ref   : (rows, lanes)            lane-dense output tile; row r, lane c holds
    #                                    sample r*lanes + c of this grid step.
    rows, lanes = o_ref.shape
    f32 = jnp.float32
    hi = lax.Precision.HIGHEST

    # Hoist the (tiny) resident parameters out of the chunk loop.
    w1s = w1s_ref[...]
    w1c = w1c_ref[...]
    b1 = b1_ref[...]
    w2 = w2_ref[...]
    b2 = b2_ref[0]

    # Static unroll: `lanes` samples per chunk, one lane-dense output row per chunk.
    for r in range(rows):
        xs = seq_ref[pl.ds(r * lanes, lanes), :].astype(f32)    # (lanes, seq_size)
        xc = cond_ref[pl.ds(r * lanes, lanes), :].astype(f32)   # (lanes, cond_size)

        # Fused concat, batch-on-lanes:  h^T = W1_seq @ xs^T + W1_cond @ xc^T + b1
        # (result (latent, lanes): batch runs along the 128-lane axis).
        h = (jnp.dot(w1s, xs.T, precision=hi, preferred_element_type=f32)
             + jnp.dot(w1c, xc.T, precision=hi, preferred_element_type=f32)
             + b1)
        h = jnp.maximum(h, 0.0)                                 # ReLU

        # l2 (output dim == 1): sublane-broadcast multiply + sublane reduce (VPU/XLU).
        z = jnp.sum(h * w2, axis=0, keepdims=True) + b2         # (1, lanes)
        o_ref[pl.ds(r, 1), :] = jax.nn.sigmoid(z).astype(o_ref.dtype)


def prepare_d_cgan_params(w1, b1, w2, b2, seq_size):
    """One-time parameter plumbing, hoisted out of the per-call hot path.

    w1: (latent, total), b1: (latent,), w2: (1, latent), b2: (1,)  (nn.Linear layout).
    """
    latent = w1.shape[0]
    w1 = w1.astype(jnp.float32)
    return {
        "w1_seq": w1[:, :seq_size],                              # (latent, seq_size)
        "w1_cond": w1[:, seq_size:],                             # (latent, cond_size)
        "b1_col": b1.reshape(latent, 1).astype(jnp.float32),     # (latent, 1)
        "w2_col": w2.reshape(latent, 1).astype(jnp.float32),     # (latent, 1)
        "b2": b2.reshape(1).astype(jnp.float32),                 # (1,)  -> SMEM
    }


def _choose_tiling(batch):
    """Pick (rows, lanes) of the per-step output tile (rows*lanes samples per step)."""
    if batch <= _ROWS * 128:
        return _ROWS, 128                       # minimum (8, 128) output tile
    # Prefer >= 2 grid steps so both v7x TensorCores get work, cap the tile so the
    # lane-padded (step, feat) input blocks stay inside the explicit VMEM budget.
    lanes_for_two_steps = -(-batch // (2 * _ROWS))
    lanes = -(-lanes_for_two_steps // 128) * 128
    return _ROWS, max(128, min(_MAX_LANES, lanes))


def d_cgan_forward(sequence, condition, params):
    """sequence: (B, seq_size), condition: (B, cond_size). Returns (B, 1) probabilities."""
    batch, seq_size = sequence.shape
    cond_size = condition.shape[1]
    latent = params["w2_col"].shape[0]

    rows, lanes = _choose_tiling(batch)
    step = rows * lanes                          # samples per grid step
    nsteps = -(-batch // step)
    padded = nsteps * step
    if padded != batch:
        # Pad the batch up to a block multiple (zeros; tail rows are sliced off below).
        sequence = jnp.pad(sequence, ((0, padded - batch), (0, 0)))
        condition = jnp.pad(condition, ((0, padded - batch), (0, 0)))

    # VMEM budget: each (step, feat) input block pads its last dim to 128 lanes in VMEM,
    # so it costs step*512 B (f32); 2 inputs x double-buffered at step=4096 is ~8.4 MB.
    # 32 MiB leaves ample headroom and is safe on v5e/v6e (128 MiB) and v7x (64 MiB).
    vmem_limit = 32 * 1024 * 1024

    out2d = pl.pallas_call(
        _d_cgan_kernel,
        out_shape=jax.ShapeDtypeStruct((nsteps * rows, lanes), jnp.float32),
        grid=(nsteps,),
        in_specs=[
            pl.BlockSpec((step, seq_size), lambda i: (i, 0)),
            pl.BlockSpec((step, cond_size), lambda i: (i, 0)),
            pl.BlockSpec((latent, seq_size), lambda i: (0, 0)),   # tiny resident weights
            pl.BlockSpec((latent, cond_size), lambda i: (0, 0)),
            pl.BlockSpec((latent, 1), lambda i: (0, 0)),
            pl.BlockSpec((latent, 1), lambda i: (0, 0)),
            pl.BlockSpec(memory_space=pltpu.MemorySpace.SMEM),    # b2 scalar in SMEM
        ],
        out_specs=pl.BlockSpec((rows, lanes), lambda i: (i, 0)),  # lane-dense output tile
        compiler_params=pltpu.CompilerParams(
            dimension_semantics=("parallel",),    # batch axis shards across v7x's 2 TCs
            vmem_limit_bytes=vmem_limit,
        ),
        cost_estimate=pl.CostEstimate(
            flops=2 * padded * (seq_size + cond_size + 1) * latent,
            transcendentals=padded,
            bytes_accessed=padded * (seq_size + cond_size + 1) * 4,
        ),
    )(sequence, condition, params["w1_seq"], params["w1_cond"],
      params["b1_col"], params["w2_col"], params["b2"])

    # (nsteps*rows, lanes) row-major flatten == batch order; free reshape, drop padding.
    return out2d.reshape(-1, 1)[:batch]


def reference_forward(sequence, condition, w1, b1, w2, b2):
    hi = lax.Precision.HIGHEST
    x = jnp.concatenate([sequence, condition], axis=1)
    h = jnp.maximum(jnp.dot(x, w1.T, precision=hi) + b1, 0.0)
    return jax.nn.sigmoid(jnp.dot(h, w2.T, precision=hi) + b2)


if __name__ == "__main__":
    # Small shapes consistent with the module's forward:
    # seq_size=8, condition_size=4 -> total=12, latent = int(12 * 0.5) = 6
    batch = 2
    seq_size = 8
    condition_size = 4
    total_size = seq_size + condition_size
    latent_size = int(total_size * 0.5)

    key = jax.random.PRNGKey(0)
    k_seq, k_cond, k_w1, k_b1, k_w2, k_b2, k_big = jax.random.split(key, 7)

    sequence = jax.random.normal(k_seq, (batch, seq_size), dtype=jnp.float32)
    condition = jax.random.normal(k_cond, (batch, condition_size), dtype=jnp.float32)

    # Deterministic parameters (nn.Linear shape conventions).
    w1 = jax.random.normal(k_w1, (latent_size, total_size), dtype=jnp.float32) * 0.1
    b1 = jax.random.normal(k_b1, (latent_size,), dtype=jnp.float32) * 0.1
    w2 = jax.random.normal(k_w2, (1, latent_size), dtype=jnp.float32) * 0.1
    b2 = jax.random.normal(k_b2, (1,), dtype=jnp.float32) * 0.1

    params = prepare_d_cgan_params(w1, b1, w2, b2, seq_size)

    # --- small-batch path (single grid step, batch padded up to one (8,128) tile) ---
    out = jax.block_until_ready(d_cgan_forward(sequence, condition, params))
    ref = reference_forward(sequence, condition, w1, b1, w2, b2)
    assert out.shape == (batch, 1), out.shape
    assert jnp.allclose(out, ref, atol=1e-5, rtol=1e-5), (out, ref)

    # --- larger, ragged batch: multi-step grid, batch padding, lane-dense output ---
    big_b = 4100
    kb_seq, kb_cond = jax.random.split(k_big)
    seq_big = jax.random.normal(kb_seq, (big_b, seq_size), dtype=jnp.float32)
    cond_big = jax.random.normal(kb_cond, (big_b, condition_size), dtype=jnp.float32)
    out_big = jax.block_until_ready(d_cgan_forward(seq_big, cond_big, params))
    ref_big = reference_forward(seq_big, cond_big, w1, b1, w2, b2)
    assert out_big.shape == (big_b, 1), out_big.shape
    assert jnp.allclose(out_big, ref_big, atol=1e-5, rtol=1e-5)

    print("KERNEL_OK")
</pallas_src>

<mosaic_0001>
module attributes {stable_mosaic.version = 11 : i64} {
  func.func @_d_cgan_kernel(%arg0: i32, %arg1: memref<1024x8xf32, #tpu.memory_space<vmem>>, %arg2: memref<1024x4xf32, #tpu.memory_space<vmem>>, %arg3: memref<6x8xf32, #tpu.memory_space<vmem>>, %arg4: memref<6x4xf32, #tpu.memory_space<vmem>>, %arg5: memref<6x1xf32, #tpu.memory_space<vmem>>, %arg6: memref<6x1xf32, #tpu.memory_space<vmem>>, %arg7: memref<1xf32, #tpu.memory_space<smem>>, %arg8: memref<8x128xf32, #tpu.memory_space<vmem>>) attributes {dimension_semantics = [#tpu.dimension_semantics<parallel>], iteration_bounds = array<i64: 1>, scalar_prefetch = 0 : i64, scratch_operands = 0 : i64, tpu.core_type = #tpu.core_type<tc>, window_params = [{transform_indices = @transform_0, window_bounds = array<i64: 1024, 8>}, {transform_indices = @transform_1, window_bounds = array<i64: 1024, 4>}, {pipeline_mode = #tpu.pipeline_mode<synchronous>, transform_indices = @transform_2, window_bounds = array<i64: 6, 8>}, {pipeline_mode = #tpu.pipeline_mode<synchronous>, transform_indices = @transform_3, window_bounds = array<i64: 6, 4>}, {pipeline_mode = #tpu.pipeline_mode<synchronous>, transform_indices = @transform_4, window_bounds = array<i64: 6, 1>}, {pipeline_mode = #tpu.pipeline_mode<synchronous>, transform_indices = @transform_5, window_bounds = array<i64: 6, 1>}, {transform_indices = @transform_6, window_bounds = array<i64: 1>}, {transform_indices = @transform_7, window_bounds = array<i64: 8, 128>}]} {
    %c0 = arith.constant 0 : index
    %c0_0 = arith.constant 0 : index
    %0 = vector.load %arg3[%c0, %c0_0] : memref<6x8xf32, #tpu.memory_space<vmem>>, vector<6x8xf32>
    %c0_1 = arith.constant 0 : index
    %c0_2 = arith.constant 0 : index
    %1 = vector.load %arg4[%c0_1, %c0_2] : memref<6x4xf32, #tpu.memory_space<vmem>>, vector<6x4xf32>
    %c0_3 = arith.constant 0 : index
    %c0_4 = arith.constant 0 : index
    %2 = vector.load %arg5[%c0_3, %c0_4] : memref<6x1xf32, #tpu.memory_space<vmem>>, vector<6x1xf32>
    %c0_5 = arith.constant 0 : index
    %c0_6 = arith.constant 0 : index
    %3 = vector.load %arg6[%c0_5, %c0_6] : memref<6x1xf32, #tpu.memory_space<vmem>>, vector<6x1xf32>
    %c0_7 = arith.constant 0 : index
    %4 = memref.load %arg7[%c0_7] : memref<1xf32, #tpu.memory_space<smem>>
    %c0_8 = arith.constant 0 : index
    %c0_9 = arith.constant 0 : index
    %5 = vector.load %arg1[%c0_8, %c0_9] : memref<1024x8xf32, #tpu.memory_space<vmem>>, vector<128x8xf32>
    %c0_10 = arith.constant 0 : index
    %c0_11 = arith.constant 0 : index
    %6 = vector.load %arg2[%c0_10, %c0_11] : memref<1024x4xf32, #tpu.memory_space<vmem>>, vector<128x4xf32>
    %7 = tpu.transpose %5, [1, 0] : vector<128x8xf32> -> vector<8x128xf32>
    %cst = arith.constant dense<0.000000e+00> : vector<6x128xf32>
    %8 = tpu.matmul %0, %7, %cst {dimension_numbers = #tpu.dot_dimension_numbers<[1], [0], [0], [1], [0, 0, 1, 1], [], []>, precision = #tpu.contract_precision<fp32>} : vector<6x8xf32>, vector<8x128xf32>, vector<6x128xf32> -> vector<6x128xf32>
    %9 = tpu.transpose %6, [1, 0] : vector<128x4xf32> -> vector<4x128xf32>
    %cst_12 = arith.constant dense<0.000000e+00> : vector<6x128xf32>
    %10 = tpu.matmul %1, %9, %cst_12 {dimension_numbers = #tpu.dot_dimension_numbers<[1], [0], [0], [1], [0, 0, 1, 1], [], []>, precision = #tpu.contract_precision<fp32>} : vector<6x4xf32>, vector<4x128xf32>, vector<6x128xf32> -> vector<6x128xf32>
    %11 = arith.addf %8, %10 : vector<6x128xf32>
    %12 = vector.broadcast %2 : vector<6x1xf32> to vector<6x128xf32>
    %13 = arith.addf %11, %12 : vector<6x128xf32>
    %cst_13 = arith.constant 0.000000e+00 : f32
    %14 = vector.broadcast %cst_13 : f32 to vector<6x128xf32>
    %15 = arith.maximumf %13, %14 : vector<6x128xf32>
    %16 = vector.broadcast %3 : vector<6x1xf32> to vector<6x128xf32>
    %17 = arith.mulf %15, %16 : vector<6x128xf32>
    %cst_14 = arith.constant dense<0.000000e+00> : vector<128xf32>
    %18 = vector.multi_reduction <add>, %17, %cst_14 [0] : vector<6x128xf32> to vector<128xf32>
    %19 = vector.shape_cast %18 : vector<128xf32> to vector<1x128xf32>
    %20 = vector.broadcast %4 : f32 to vector<1x128xf32>
    %21 = arith.addf %19, %20 : vector<1x128xf32>
    %22 = arith.negf %21 : vector<1x128xf32>
    %23 = math.exp %22 : vector<1x128xf32>
    %cst_15 = arith.constant 1.000000e+00 : f32
    %24 = vector.broadcast %cst_15 : f32 to vector<1x128xf32>
    %25 = arith.addf %24, %23 : vector<1x128xf32>
    %26 = arith.divf %24, %25 : vector<1x128xf32>
    %c0_16 = arith.constant 0 : index
    %c0_17 = arith.constant 0 : index
    %27 = vector.load %arg8[%c0_16, %c0_17] : memref<8x128xf32, #tpu.memory_space<vmem>>, vector<1x128xf32>
    tpu.vector_store %arg8[%c0_16, %c0_17], %26 {strides = array<i32>} : memref<8x128xf32, #tpu.memory_space<vmem>>, vector<1x128xf32>,
    %c128 = arith.constant 128 : index
    %c0_18 = arith.constant 0 : index
    %28 = vector.load %arg1[%c128, %c0_18] : memref<1024x8xf32, #tpu.memory_space<vmem>>, vector<128x8xf32>
    %c128_19 = arith.constant 128 : index
    %c0_20 = arith.constant 0 : index
    %29 = vector.load %arg2[%c128_19, %c0_20] : memref<1024x4xf32, #tpu.memory_space<vmem>>, vector<128x4xf32>
    %30 = tpu.transpose %28, [1, 0] : vector<128x8xf32> -> vector<8x128xf32>
    %cst_21 = arith.constant dense<0.000000e+00> : vector<6x128xf32>
    %31 = tpu.matmul %0, %30, %cst_21 {dimension_numbers = #tpu.dot_dimension_numbers<[1], [0], [0], [1], [0, 0, 1, 1], [], []>, precision = #tpu.contract_precision<fp32>} : vector<6x8xf32>, vector<8x128xf32>, vector<6x128xf32> -> vector<6x128xf32>
    %32 = tpu.transpose %29, [1, 0] : vector<128x4xf32> -> vector<4x128xf32>
    %cst_22 = arith.constant dense<0.000000e+00> : vector<6x128xf32>
    %33 = tpu.matmul %1, %32, %cst_22 {dimension_numbers = #tpu.dot_dimension_numbers<[1], [0], [0], [1], [0, 0, 1, 1], [], []>, precision = #tpu.contract_precision<fp32>} : vector<6x4xf32>, vector<4x128xf32>, vector<6x128xf32> -> vector<6x128xf32>
    %34 = arith.addf %31, %33 : vector<6x128xf32>
    %35 = vector.broadcast %2 : vector<6x1xf32> to vector<6x128xf32>
    %36 = arith.addf %34, %35 : vector<6x128xf32>
    %cst_23 = arith.constant 0.000000e+00 : f32
    %37 = vector.broadcast %cst_23 : f32 to vector<6x128xf32>
    %38 = arith.maximumf %36, %37 : vector<6x128xf32>
    %39 = vector.broadcast %3 : vector<6x1xf32> to vector<6x128xf32>
    %40 = arith.mulf %38, %39 : vector<6x128xf32>
    %cst_24 = arith.constant dense<0.000000e+00> : vector<128xf32>
    %41 = vector.multi_reduction <add>, %40, %cst_24 [0] : vector<6x128xf32> to vector<128xf32>
    %42 = vector.shape_cast %41 : vector<128xf32> to vector<1x128xf32>
    %43 = vector.broadcast %4 : f32 to vector<1x128xf32>
    %44 = arith.addf %42, %43 : vector<1x128xf32>
    %45 = arith.negf %44 : vector<1x128xf32>
    %46 = math.exp %45 : vector<1x128xf32>
    %cst_25 = arith.constant 1.000000e+00 : f32
    %47 = vector.broadcast %cst_25 : f32 to vector<1x128xf32>
    %48 = arith.addf %47, %46 : vector<1x128xf32>
    %49 = arith.divf %47, %48 : vector<1x128xf32>
    %c1 = arith.constant 1 : index
    %c0_26 = arith.constant 0 : index
    %50 = vector.load %arg8[%c1, %c0_26] : memref<8x128xf32, #tpu.memory_space<vmem>>, vector<1x128xf32>
    tpu.vector_store %arg8[%c1, %c0_26], %49 {strides = array<i32>} : memref<8x128xf32, #tpu.memory_space<vmem>>, vector<1x128xf32>,
    %c256 = arith.constant 256 : index
    %c0_27 = arith.constant 0 : index
    %51 = vector.load %arg1[%c256, %c0_27] : memref<1024x8xf32, #tpu.memory_space<vmem>>, vector<128x8xf32>
    %c256_28 = arith.constant 256 : index
    %c0_29 = arith.constant 0 : index
    %52 = vector.load %arg2[%c256_28, %c0_29] : memref<1024x4xf32, #tpu.memory_space<vmem>>, vector<128x4xf32>
    %53 = tpu.transpose %51, [1, 0] : vector<128x8xf32> -> vector<8x128xf32>
    %cst_30 = arith.constant dense<0.000000e+00> : vector<6x128xf32>
    %54 = tpu.matmul %0, %53, %cst_30 {dimension_numbers = #tpu.dot_dimension_numbers<[1], [0], [0], [1], [0, 0, 1, 1], [], []>, precision = #tpu.contract_precision<fp32>} : vector<6x8xf32>, vector<8x128xf32>, vector<6x128xf32> -> vector<6x128xf32>
    %55 = tpu.transpose %52, [1, 0] : vector<128x4xf32> -> vector<4x128xf32>
    %cst_31 = arith.constant dense<0.000000e+00> : vector<6x128xf32>
    %56 = tpu.matmul %1, %55, %cst_31 {dimension_numbers = #tpu.dot_dimension_numbers<[1], [0], [0], [1], [0, 0, 1, 1], [], []>, precision = #tpu.contract_precision<fp32>} : vector<6x4xf32>, vector<4x128xf32>, vector<6x128xf32> -> vector<6x128xf32>
    %57 = arith.addf %54, %56 : vector<6x128xf32>
    %58 = vector.broadcast %2 : vector<6x1xf32> to vector<6x128xf32>
    %59 = arith.addf %57, %58 : vector<6x128xf32>
    %cst_32 = arith.constant 0.000000e+00 : f32
    %60 = vector.broadcast %cst_32 : f32 to vector<6x128xf32>
    %61 = arith.maximumf %59, %60 : vector<6x128xf32>
    %62 = vector.broadcast %3 : vector<6x1xf32> to vector<6x128xf32>
    %63 = arith.mulf %61, %62 : vector<6x128xf32>
    %cst_33 = arith.constant dense<0.000000e+00> : vector<128xf32>
    %64 = vector.multi_reduction <add>, %63, %cst_33 [0] : vector<6x128xf32> to vector<128xf32>
    %65 = vector.shape_cast %64 : vector<128xf32> to vector<1x128xf32>
    %66 = vector.broadcast %4 : f32 to vector<1x128xf32>
    %67 = arith.addf %65, %66 : vector<1x128xf32>
    %68 = arith.negf %67 : vector<1x128xf32>
    %69 = math.exp %68 : vector<1x128xf32>
    %cst_34 = arith.constant 1.000000e+00 : f32
    %70 = vector.broadcast %cst_34 : f32 to vector<1x128xf32>
    %71 = arith.addf %70, %69 : vector<1x128xf32>
    %72 = arith.divf %70, %71 : vector<1x128xf32>
    %c2 = arith.constant 2 : index
    %c0_35 = arith.constant 0 : index
    %73 = vector.load %arg8[%c2, %c0_35] : memref<8x128xf32, #tpu.memory_space<vmem>>, vector<1x128xf32>
    tpu.vector_store %arg8[%c2, %c0_35], %72 {strides = array<i32>} : memref<8x128xf32, #tpu.memory_space<vmem>>, vector<1x128xf32>,
    %c384 = arith.constant 384 : index
    %c0_36 = arith.constant 0 : index
    %74 = vector.load %arg1[%c384, %c0_36] : memref<1024x8xf32, #tpu.memory_space<vmem>>, vector<128x8xf32>
    %c384_37 = arith.constant 384 : index
    %c0_38 = arith.constant 0 : index
    %75 = vector.load %arg2[%c384_37, %c0_38] : memref<1024x4xf32, #tpu.memory_space<vmem>>, vector<128x4xf32>
    %76 = tpu.transpose %74, [1, 0] : vector<128x8xf32> -> vector<8x128xf32>
    %cst_39 = arith.constant dense<0.000000e+00> : vector<6x128xf32>
    %77 = tpu.matmul %0, %76, %cst_39 {dimension_numbers = #tpu.dot_dimension_numbers<[1], [0], [0], [1], [0, 0, 1, 1], [], []>, precision = #tpu.contract_precision<fp32>} : vector<6x8xf32>, vector<8x128xf32>, vector<6x128xf32> -> vector<6x128xf32>
    %78 = tpu.transpose %75, [1, 0] : vector<128x4xf32> -> vector<4x128xf32>
    %cst_40 = arith.constant dense<0.000000e+00> : vector<6x128xf32>
    %79 = tpu.matmul %1, %78, %cst_40 {dimension_numbers = #tpu.dot_dimension_numbers<[1], [0], [0], [1], [0, 0, 1, 1], [], []>, precision = #tpu.contract_precision<fp32>} : vector<6x4xf32>, vector<4x128xf32>, vector<6x128xf32> -> vector<6x128xf32>
    %80 = arith.addf %77, %79 : vector<6x128xf32>
    %81 = vector.broadcast %2 : vector<6x1xf32> to vector<6x128xf32>
    %82 = arith.addf %80, %81 : vector<6x128xf32>
    %cst_41 = arith.constant 0.000000e+00 : f32
    %83 = vector.broadcast %cst_41 : f32 to vector<6x128xf32>
    %84 = arith.maximumf %82, %83 : vector<6x128xf32>
    %85 = vector.broadcast %3 : vector<6x1xf32> to vector<6x128xf32>
    %86 = arith.mulf %84, %85 : vector<6x128xf32>
    %cst_42 = arith.constant dense<0.000000e+00> : vector<128xf32>
    %87 = vector.multi_reduction <add>, %86, %cst_42 [0] : vector<6x128xf32> to vector<128xf32>
    %88 = vector.shape_cast %87 : vector<128xf32> to vector<1x128xf32>
    %89 = vector.broadcast %4 : f32 to vector<1x128xf32>
    %90 = arith.addf %88, %89 : vector<1x128xf32>
    %91 = arith.negf %90 : vector<1x128xf32>
    %92 = math.exp %91 : vector<1x128xf32>
    %cst_43 = arith.constant 1.000000e+00 : f32
    %93 = vector.broadcast %cst_43 : f32 to vector<1x128xf32>
    %94 = arith.addf %93, %92 : vector<1x128xf32>
    %95 = arith.divf %93, %94 : vector<1x128xf32>
    %c3 = arith.constant 3 : index
    %c0_44 = arith.constant 0 : index
    %96 = vector.load %arg8[%c3, %c0_44] : memref<8x128xf32, #tpu.memory_space<vmem>>, vector<1x128xf32>
    tpu.vector_store %arg8[%c3, %c0_44], %95 {strides = array<i32>} : memref<8x128xf32, #tpu.memory_space<vmem>>, vector<1x128xf32>,
    %c512 = arith.constant 512 : index
    %c0_45 = arith.constant 0 : index
    %97 = vector.load %arg1[%c512, %c0_45] : memref<1024x8xf32, #tpu.memory_space<vmem>>, vector<128x8xf32>
    %c512_46 = arith.constant 512 : index
    %c0_47 = arith.constant 0 : index
    %98 = vector.load %arg2[%c512_46, %c0_47] : memref<1024x4xf32, #tpu.memory_space<vmem>>, vector<128x4xf32>
    %99 = tpu.transpose %97, [1, 0] : vector<128x8xf32> -> vector<8x128xf32>
    %cst_48 = arith.constant dense<0.000000e+00> : vector<6x128xf32>
    %100 = tpu.matmul %0, %99, %cst_48 {dimension_numbers = #tpu.dot_dimension_numbers<[1], [0], [0], [1], [0, 0, 1, 1], [], []>, precision = #tpu.contract_precision<fp32>} : vector<6x8xf32>, vector<8x128xf32>, vector<6x128xf32> -> vector<6x128xf32>
    %101 = tpu.transpose %98, [1, 0] : vector<128x4xf32> -> vector<4x128xf32>
    %cst_49 = arith.constant dense<0.000000e+00> : vector<6x128xf32>
    %102 = tpu.matmul %1, %101, %cst_49 {dimension_numbers = #tpu.dot_dimension_numbers<[1], [0], [0], [1], [0, 0, 1, 1], [], []>, precision = #tpu.contract_precision<fp32>} : vector<6x4xf32>, vector<4x128xf32>, vector<6x128xf32> -> vector<6x128xf32>
    %103 = arith.addf %100, %102 : vector<6x128xf32>
    %104 = vector.broadcast %2 : vector<6x1xf32> to vector<6x128xf32>
    %105 = arith.addf %103, %104 : vector<6x128xf32>
    %cst_50 = arith.constant 0.000000e+00 : f32
    %106 = vector.broadcast %cst_50 : f32 to vector<6x128xf32>
    %107 = arith.maximumf %105, %106 : vector<6x128xf32>
    %108 = vector.broadcast %3 : vector<6x1xf32> to vector<6x128xf32>
    %109 = arith.mulf %107, %108 : vector<6x128xf32>
    %cst_51 = arith.constant dense<0.000000e+00> : vector<128xf32>
    %110 = vector.multi_reduction <add>, %109, %cst_51 [0] : vector<6x128xf32> to vector<128xf32>
    %111 = vector.shape_cast %110 : vector<128xf32> to vector<1x128xf32>
    %112 = vector.broadcast %4 : f32 to vector<1x128xf32>
    %113 = arith.addf %111, %112 : vector<1x128xf32>
    %114 = arith.negf %113 : vector<1x128xf32>
    %115 = math.exp %114 : vector<1x128xf32>
    %cst_52 = arith.constant 1.000000e+00 : f32
    %116 = vector.broadcast %cst_52 : f32 to vector<1x128xf32>
    %117 = arith.addf %116, %115 : vector<1x128xf32>
    %118 = arith.divf %116, %117 : vector<1x128xf32>
    %c4 = arith.constant 4 : index
    %c0_53 = arith.constant 0 : index
    %119 = vector.load %arg8[%c4, %c0_53] : memref<8x128xf32, #tpu.memory_space<vmem>>, vector<1x128xf32>
    tpu.vector_store %arg8[%c4, %c0_53], %118 {strides = array<i32>} : memref<8x128xf32, #tpu.memory_space<vmem>>, vector<1x128xf32>,
    %c640 = arith.constant 640 : index
    %c0_54 = arith.constant 0 : index
    %120 = vector.load %arg1[%c640, %c0_54] : memref<1024x8xf32, #tpu.memory_space<vmem>>, vector<128x8xf32>
    %c640_55 = arith.constant 640 : index
    %c0_56 = arith.constant 0 : index
    %121 = vector.load %arg2[%c640_55, %c0_56] : memref<1024x4xf32, #tpu.memory_space<vmem>>, vector<128x4xf32>
    %122 = tpu.transpose %120, [1, 0] : vector<128x8xf32> -> vector<8x128xf32>
    %cst_57 = arith.constant dense<0.000000e+00> : vector<6x128xf32>
    %123 = tpu.matmul %0, %122, %cst_57 {dimension_numbers = #tpu.dot_dimension_numbers<[1], [0], [0], [1], [0, 0, 1, 1], [], []>, precision = #tpu.contract_precision<fp32>} : vector<6x8xf32>, vector<8x128xf32>, vector<6x128xf32> -> vector<6x128xf32>
    %124 = tpu.transpose %121, [1, 0] : vector<128x4xf32> -> vector<4x128xf32>
    %cst_58 = arith.constant dense<0.000000e+00> : vector<6x128xf32>
    %125 = tpu.matmul %1, %124, %cst_58 {dimension_numbers = #tpu.dot_dimension_numbers<[1], [0], [0], [1], [0, 0, 1, 1], [], []>, precision = #tpu.contract_precision<fp32>} : vector<6x4xf32>, vector<4x128xf32>, vector<6x128xf32> -> vector<6x128xf32>
    %126 = arith.addf %123, %125 : vector<6x128xf32>
    %127 = vector.broadcast %2 : vector<6x1xf32> to vector<6x128xf32>
    %128 = arith.addf %126, %127 : vector<6x128xf32>
    %cst_59 = arith.constant 0.000000e+00 : f32
    %129 = vector.broadcast %cst_59 : f32 to vector<6x128xf32>
    %130 = arith.maximumf %128, %129 : vector<6x128xf32>
    %131 = vector.broadcast %3 : vector<6x1xf32> to vector<6x128xf32>
    %132 = arith.mulf %130, %131 : vector<6x128xf32>
    %cst_60 = arith.constant dense<0.000000e+00> : vector<128xf32>
    %133 = vector.multi_reduction <add>, %132, %cst_60 [0] : vector<6x128xf32> to vector<128xf32>
    %134 = vector.shape_cast %133 : vector<128xf32> to vector<1x128xf32>
    %135 = vector.broadcast %4 : f32 to vector<1x128xf32>
    %136 = arith.addf %134, %135 : vector<1x128xf32>
    %137 = arith.negf %136 : vector<1x128xf32>
    %138 = math.exp %137 : vector<1x128xf32>
    %cst_61 = arith.constant 1.000000e+00 : f32
    %139 = vector.broadcast %cst_61 : f32 to vector<1x128xf32>
    %140 = arith.addf %139, %138 : vector<1x128xf32>
    %141 = arith.divf %139, %140 : vector<1x128xf32>
    %c5 = arith.constant 5 : index
    %c0_62 = arith.constant 0 : index
    %142 = vector.load %arg8[%c5, %c0_62] : memref<8x128xf32, #tpu.memory_space<vmem>>, vector<1x128xf32>
    tpu.vector_store %arg8[%c5, %c0_62], %141 {strides = array<i32>} : memref<8x128xf32, #tpu.memory_space<vmem>>, vector<1x128xf32>,
    %c768 = arith.constant 768 : index
    %c0_63 = arith.constant 0 : index
    %143 = vector.load %arg1[%c768, %c0_63] : memref<1024x8xf32, #tpu.memory_space<vmem>>, vector<128x8xf32>
    %c768_64 = arith.constant 768 : index
    %c0_65 = arith.constant 0 : index
    %144 = vector.load %arg2[%c768_64, %c0_65] : memref<1024x4xf32, #tpu.memory_space<vmem>>, vector<128x4xf32>
    %145 = tpu.transpose %143, [1, 0] : vector<128x8xf32> -> vector<8x128xf32>
    %cst_66 = arith.constant dense<0.000000e+00> : vector<6x128xf32>
    %146 = tpu.matmul %0, %145, %cst_66 {dimension_numbers = #tpu.dot_dimension_numbers<[1], [0], [0], [1], [0, 0, 1, 1], [], []>, precision = #tpu.contract_precision<fp32>} : vector<6x8xf32>, vector<8x128xf32>, vector<6x128xf32> -> vector<6x128xf32>
    %147 = tpu.transpose %144, [1, 0] : vector<128x4xf32> -> vector<4x128xf32>
    %cst_67 = arith.constant dense<0.000000e+00> : vector<6x128xf32>
    %148 = tpu.matmul %1, %147, %cst_67 {dimension_numbers = #tpu.dot_dimension_numbers<[1], [0], [0], [1], [0, 0, 1, 1], [], []>, precision = #tpu.contract_precision<fp32>} : vector<6x4xf32>, vector<4x128xf32>, vector<6x128xf32> -> vector<6x128xf32>
    %149 = arith.addf %146, %148 : vector<6x128xf32>
    %150 = vector.broadcast %2 : vector<6x1xf32> to vector<6x128xf32>
    %151 = arith.addf %149, %150 : vector<6x128xf32>
    %cst_68 = arith.constant 0.000000e+00 : f32
    %152 = vector.broadcast %cst_68 : f32 to vector<6x128xf32>
    %153 = arith.maximumf %151, %152 : vector<6x128xf32>
    %154 = vector.broadcast %3 : vector<6x1xf32> to vector<6x128xf32>
    %155 = arith.mulf %153, %154 : vector<6x128xf32>
    %cst_69 = arith.constant dense<0.000000e+00> : vector<128xf32>
    %156 = vector.multi_reduction <add>, %155, %cst_69 [0] : vector<6x128xf32> to vector<128xf32>
    %157 = vector.shape_cast %156 : vector<128xf32> to vector<1x128xf32>
    %158 = vector.broadcast %4 : f32 to vector<1x128xf32>
    %159 = arith.addf %157, %158 : vector<1x128xf32>
    %160 = arith.negf %159 : vector<1x128xf32>
    %161 = math.exp %160 : vector<1x128xf32>
    %cst_70 = arith.constant 1.000000e+00 : f32
    %162 = vector.broadcast %cst_70 : f32 to vector<1x128xf32>
    %163 = arith.addf %162, %161 : vector<1x128xf32>
    %164 = arith.divf %162, %163 : vector<1x128xf32>
    %c6 = arith.constant 6 : index
    %c0_71 = arith.constant 0 : index
    %165 = vector.load %arg8[%c6, %c0_71] : memref<8x128xf32, #tpu.memory_space<vmem>>, vector<1x128xf32>
    tpu.vector_store %arg8[%c6, %c0_71], %164 {strides = array<i32>} : memref<8x128xf32, #tpu.memory_space<vmem>>, vector<1x128xf32>,
    %c896 = arith.constant 896 : index
    %c0_72 = arith.constant 0 : index
    %166 = vector.load %arg1[%c896, %c0_72] : memref<1024x8xf32, #tpu.memory_space<vmem>>, vector<128x8xf32>
    %c896_73 = arith.constant 896 : index
    %c0_74 = arith.constant 0 : index
    %167 = vector.load %arg2[%c896_73, %c0_74] : memref<1024x4xf32, #tpu.memory_space<vmem>>, vector<128x4xf32>
    %168 = tpu.transpose %166, [1, 0] : vector<128x8xf32> -> vector<8x128xf32>
    %cst_75 = arith.constant dense<0.000000e+00> : vector<6x128xf32>
    %169 = tpu.matmul %0, %168, %cst_75 {dimension_numbers = #tpu.dot_dimension_numbers<[1], [0], [0], [1], [0, 0, 1, 1], [], []>, precision = #tpu.contract_precision<fp32>} : vector<6x8xf32>, vector<8x128xf32>, vector<6x128xf32> -> vector<6x128xf32>
    %170 = tpu.transpose %167, [1, 0] : vector<128x4xf32> -> vector<4x128xf32>
    %cst_76 = arith.constant dense<0.000000e+00> : vector<6x128xf32>
    %171 = tpu.matmul %1, %170, %cst_76 {dimension_numbers = #tpu.dot_dimension_numbers<[1], [0], [0], [1], [0, 0, 1, 1], [], []>, precision = #tpu.contract_precision<fp32>} : vector<6x4xf32>, vector<4x128xf32>, vector<6x128xf32> -> vector<6x128xf32>
    %172 = arith.addf %169, %171 : vector<6x128xf32>
    %173 = vector.broadcast %2 : vector<6x1xf32> to vector<6x128xf32>
    %174 = arith.addf %172, %173 : vector<6x128xf32>
    %cst_77 = arith.constant 0.000000e+00 : f32
    %175 = vector.broadcast %cst_77 : f32 to vector<6x128xf32>
    %176 = arith.maximumf %174, %175 : vector<6x128xf32>
    %177 = vector.broadcast %3 : vector<6x1xf32> to vector<6x128xf32>
    %178 = arith.mulf %176, %177 : vector<6x128xf32>
    %cst_78 = arith.constant dense<0.000000e+00> : vector<128xf32>
    %179 = vector.multi_reduction <add>, %178, %cst_78 [0] : vector<6x128xf32> to vector<128xf32>
    %180 = vector.shape_cast %179 : vector<128xf32> to vector<1x128xf32>
    %181 = vector.broadcast %4 : f32 to vector<1x128xf32>
    %182 = arith.addf %180, %181 : vector<1x128xf32>
    %183 = arith.negf %182 : vector<1x128xf32>
    %184 = math.exp %183 : vector<1x128xf32>
    %cst_79 = arith.constant 1.000000e+00 : f32
    %185 = vector.broadcast %cst_79 : f32 to vector<1x128xf32>
    %186 = arith.addf %185, %184 : vector<1x128xf32>
    %187 = arith.divf %185, %186 : vector<1x128xf32>
    %c7 = arith.constant 7 : index
    %c0_80 = arith.constant 0 : index
    %188 = vector.load %arg8[%c7, %c0_80] : memref<8x128xf32, #tpu.memory_space<vmem>>, vector<1x128xf32>
    tpu.vector_store %arg8[%c7, %c0_80], %187 {strides = array<i32>} : memref<8x128xf32, #tpu.memory_space<vmem>>, vector<1x128xf32>,
    return
  }
  func.func @transform_0(%arg0: i32) -> (i32, i32) {
    %c0_i32 = arith.constant 0 : i32
    %c0_i32_0 = arith.constant 0 : i32
    return %arg0, %c0_i32 : i32, i32
  }
  func.func @transform_1(%arg0: i32) -> (i32, i32) {
    %c0_i32 = arith.constant 0 : i32
    %c0_i32_0 = arith.constant 0 : i32
    return %arg0, %c0_i32 : i32, i32
  }
  func.func @transform_2(%arg0: i32) -> (i32, i32) {
    %c0_i32 = arith.constant 0 : i32
    %c0_i32_0 = arith.constant 0 : i32
    %c0_i32_1 = arith.constant 0 : i32
    return %c0_i32, %c0_i32_0 : i32, i32
  }
  func.func @transform_3(%arg0: i32) -> (i32, i32) {
    %c0_i32 = arith.constant 0 : i32
    %c0_i32_0 = arith.constant 0 : i32
    %c0_i32_1 = arith.constant 0 : i32
    return %c0_i32, %c0_i32_0 : i32, i32
  }
  func.func @transform_4(%arg0: i32) -> (i32, i32) {
    %c0_i32 = arith.constant 0 : i32
    %c0_i32_0 = arith.constant 0 : i32
    %c0_i32_1 = arith.constant 0 : i32
    return %c0_i32, %c0_i32_0 : i32, i32
  }
  func.func @transform_5(%arg0: i32) -> (i32, i32) {
    %c0_i32 = arith.constant 0 : i32
    %c0_i32_0 = arith.constant 0 : i32
    %c0_i32_1 = arith.constant 0 : i32
    return %c0_i32, %c0_i32_0 : i32, i32
  }
  func.func @transform_6(%arg0: i32) -> i32 {
    %c0_i32 = arith.constant 0 : i32
    %c0_i32_0 = arith.constant 0 : i32
    return %c0_i32 : i32
  }
  func.func @transform_7(%arg0: i32) -> (i32, i32) {
    %c0_i32 = arith.constant 0 : i32
    %c0_i32_0 = arith.constant 0 : i32
    return %arg0, %c0_i32 : i32, i32
  }
}

</mosaic_0001>

<llo_original>
// kernel: tpu_custom_call.1
$region0: #{tpu_custom_call.1}
  #allocation0 [shape = 'u32[]', space=smem, size = 0x4, offset = 0x4, fixed_abs, tag = 'smem constant byte address 0x4 - core index']
  #allocation1 [shape = 'u32[144,128]{1,0:T(1,128)}', space=vmem, size = 0x12000, scoped, tag = 'internal scratch']
  #allocation2 [shape = 'f32[1]{0:T(128)S(6)}', space=smem, size = 0x200, scoped, tag = 'scoped memory for tpu_custom_call.1']
  %s0 = inlined_call_operand.vmem [shape: f32[1024,8], index: 0, kind: input, shape index: {}]
  %s1 = inlined_call_operand.vmem [shape: f32[1024,4], index: 1, kind: input, shape index: {}]
  %s2 = inlined_call_operand.vmem [shape: f32[6,8], index: 2, kind: input, shape index: {}]
  %s3 = inlined_call_operand.vmem [shape: f32[6,4], index: 3, kind: input, shape index: {}]
  %s4 = inlined_call_operand.vmem [shape: f32[6,1], index: 4, kind: input, shape index: {}]
  %s5 = inlined_call_operand.vmem [shape: f32[6,1], index: 5, kind: input, shape index: {}]
  %s6 = inlined_call_operand.<no memory space> [shape: f32[1], index: 6, kind: input, shape index: {}]
  %s7 = inlined_call_operand.hbm [shape: f32[8,128], index: 7, kind: output, shape index: {}]
  %s8 = sld [smem:[#allocation0]]
  $region38: #{tpu_custom_call.1} parent=0
    _
  %s10 = ssub.s32 1, %s8
  %s11 = scalar_select 0, %s10, %s8
  %12 = sst [smem:[#allocation2]] %s6
  $region1: #{tpu_custom_call.1} parent=0
    #allocation3 [shape = 'u8[4096]{0}', space=vmem, size = 0x1000, scoped, tag = 'output window, operand 0, single buffered']
    #allocation4 [shape = 's32[1]{0}', space=sflag, size = 0x4, scoped, tag = 'scoped memory for tpu_custom_call.1']
    %13 = vsyncpa [#allocation4], 0
    // Predicated region
    $region2: #{tpu_custom_call.1} parent=1 // pred_check
      _
    $region3: #{tpu_custom_call.1} parent=1 // pred_check_branch
      %15 = sbr.rel (0) target = $region5
    $region4: #{tpu_custom_call.1} parent=1 // pred_region
      _
    $region5: #{tpu_custom_call.1} parent=1 // pred_fallthru
      _
    // Predicated region
    $region6: #{tpu_custom_call.1} parent=1 // pred_check
      _
    $region7: #{tpu_custom_call.1} parent=1 // pred_check_branch
      %17 = sbr.rel (0) target = $region9
    $region8: #{tpu_custom_call.1} parent=1 // pred_region
      _
    $region9: #{tpu_custom_call.1} parent=1 // pred_fallthru
      _
    // Predicated region
    $region10: #{tpu_custom_call.1} parent=1 // pred_check
      _
    $region11: #{tpu_custom_call.1} parent=1 // pred_check_branch
      %19 = sbr.rel (0) target = $region13
    $region12: #{tpu_custom_call.1} parent=1 // pred_region
      _
    $region13: #{tpu_custom_call.1} parent=1 // pred_fallthru
      _
    // Predicated region
    $region14: #{tpu_custom_call.1} parent=1 // pred_check
      _
    $region15: #{tpu_custom_call.1} parent=1 // pred_check_branch
      %21 = sbr.rel (0) target = $region17
    $region16: #{tpu_custom_call.1} parent=1 // pred_region
      _
    $region17: #{tpu_custom_call.1} parent=1 // pred_fallthru
      _
    // Predicated region
    $region18: #{tpu_custom_call.1} parent=1 // pred_check
      _
    $region19: #{tpu_custom_call.1} parent=1 // pred_check_branch
      %23 = sbr.rel (0) target = $region21
    $region20: #{tpu_custom_call.1} parent=1 // pred_region
      _
    $region21: #{tpu_custom_call.1} parent=1 // pred_fallthru
      _
    // Predicated region
    $region22: #{tpu_custom_call.1} parent=1 // pred_check
      _
    $region23: #{tpu_custom_call.1} parent=1 // pred_check_branch
      %25 = sbr.rel (0) target = $region25
    $region24: #{tpu_custom_call.1} parent=1 // pred_region
      _
    $region25: #{tpu_custom_call.1} parent=1 // pred_fallthru
      _
    // Predicated region
    $region26: #{tpu_custom_call.1} parent=1 // pred_check
      _
    $region27: #{tpu_custom_call.1} parent=1 // pred_check_branch
      %27 = sbr.rel (0) target = $region29
    $region28: #{tpu_custom_call.1} parent=1 // pred_region
      _
    $region29: #{tpu_custom_call.1} parent=1 // pred_fallthru
      _
    %v28 = vld [vmem:[%s2] sm:$0x3f]
    %v29 = vld [vmem:[%s3] sm:$0x3f]
    %v30 = vld [vmem:[%s4] sm:$0x3f]
    %v31 = vld [vmem:[%s5] sm:$0x3f]
    %s32 = sld [smem:[#allocation2]]
    %v33 = vld [vmem:[%s0] sm:$0xff]
    %v34 = vld [vmem:[%s0 + $0x8] sm:$0xff]
    %v35 = vld [vmem:[%s0 + $0x10] sm:$0xff]
    %v36 = vld [vmem:[%s0 + $0x18] sm:$0xff]
    %v37 = vld [vmem:[%s0 + $0x20] sm:$0xff]
    %v38 = vld [vmem:[%s0 + $0x28] sm:$0xff]
    %v39 = vld [vmem:[%s0 + $0x30] sm:$0xff]
    %v40 = vld [vmem:[%s0 + $0x38] sm:$0xff]
    %v41 = vld [vmem:[%s0 + $0x40] sm:$0xff]
    %v42 = vld [vmem:[%s0 + $0x48] sm:$0xff]
    %v43 = vld [vmem:[%s0 + $0x50] sm:$0xff]
    %v44 = vld [vmem:[%s0 + $0x58] sm:$0xff]
    %v45 = vld [vmem:[%s0 + $0x60] sm:$0xff]
    %v46 = vld [vmem:[%s0 + $0x68] sm:$0xff]
    %v47 = vld [vmem:[%s0 + $0x70] sm:$0xff]
    %v48 = vld [vmem:[%s0 + $0x78] sm:$0xff]
    %v49 = vld [vmem:[%s1] sm:$0xff]
    %v50 = vld [vmem:[%s1 + $0x8] sm:$0xff]
    %v51 = vld [vmem:[%s1 + $0x10] sm:$0xff]
    %v52 = vld [vmem:[%s1 + $0x18] sm:$0xff]
    %v53 = vld [vmem:[%s1 + $0x20] sm:$0xff]
    %v54 = vld [vmem:[%s1 + $0x28] sm:$0xff]
    %v55 = vld [vmem:[%s1 + $0x30] sm:$0xff]
    %v56 = vld [vmem:[%s1 + $0x38] sm:$0xff]
    %v57 = vld [vmem:[%s1 + $0x40] sm:$0xff]
    %v58 = vld [vmem:[%s1 + $0x48] sm:$0xff]
    %v59 = vld [vmem:[%s1 + $0x50] sm:$0xff]
    %v60 = vld [vmem:[%s1 + $0x58] sm:$0xff]
    %v61 = vld [vmem:[%s1 + $0x60] sm:$0xff]
    %v62 = vld [vmem:[%s1 + $0x68] sm:$0xff]
    %v63 = vld [vmem:[%s1 + $0x70] sm:$0xff]
    %v64 = vld [vmem:[%s1 + $0x78] sm:$0xff]
    %vm65 = vcmask 31744
    %v67 = vsel %vm65, %v29, 0
    %v70 = vsel %vm65, %v49, 0
    %v73 = vsel %vm65, %v50, 0
    %v76 = vsel %vm65, %v51, 0
    %v79 = vsel %vm65, %v52, 0
    %v82 = vsel %vm65, %v53, 0
    %v85 = vsel %vm65, %v54, 0
    %v88 = vsel %vm65, %v55, 0
    %v91 = vsel %vm65, %v56, 0
    %v94 = vsel %vm65, %v57, 0
    %v97 = vsel %vm65, %v58, 0
    %v100 = vsel %vm65, %v59, 0
    %v103 = vsel %vm65, %v60, 0
    %v106 = vsel %vm65, %v61, 0
    %v109 = vsel %vm65, %v62, 0
    %v112 = vsel %vm65, %v63, 0
    %v115 = vsel %vm65, %v64, 0
    %117 = vmatprep.subr.mxu0 0.0
    %v118 = vand.u32 %v70, 4294901760
    %119 = vmatpush1.xpose.msra.mxu0 %v118
    %120 = vmatprep.subr.mxu0 0.0
    %v121 = vand.u32 %v73, 4294901760
    %122 = vmatpush1.xpose.msra.mxu0 %v121
    %123 = vmatprep.subr.mxu0 0.0
    %v124 = vand.u32 %v76, 4294901760
    %125 = vmatpush1.xpose.msra.mxu0 %v124
    %126 = vmatprep.subr.mxu0 0.0
    %v127 = vand.u32 %v79, 4294901760
    %128 = vmatpush1.xpose.msra.mxu0 %v127
    %129 = vmatprep.subr.mxu0 0.0
    %v130 = vand.u32 %v82, 4294901760
    %131 = vmatpush1.xpose.msra.mxu0 %v130
    %132 = vmatprep.subr.mxu0 0.0
    %v133 = vand.u32 %v85, 4294901760
    %134 = vmatpush1.xpose.msra.mxu0 %v133
    %135 = vmatprep.subr.mxu0 0.0
    %v136 = vand.u32 %v88, 4294901760
    %137 = vmatpush1.xpose.msra.mxu0 %v136
    %138 = vmatprep.subr.mxu0 0.0
    %v139 = vand.u32 %v91, 4294901760
    %140 = vmatpush1.xpose.msra.mxu0 %v139
    %141 = vmatprep.subr.mxu0 0.0
    %v142 = vand.u32 %v94, 4294901760
    %143 = vmatpush1.xpose.msra.mxu0 %v142
    %144 = vmatprep.subr.mxu0 0.0
    %v145 = vand.u32 %v97, 4294901760
    %146 = vmatpush1.xpose.msra.mxu0 %v145
    %147 = vmatprep.subr.mxu0 0.0
    %v148 = vand.u32 %v100, 4294901760
    %149 = vmatpush1.xpose.msra.mxu0 %v148
    %150 = vmatprep.subr.mxu0 0.0
    %v151 = vand.u32 %v103, 4294901760
    %152 = vmatpush1.xpose.msra.mxu0 %v151
    %153 = vmatprep.subr.mxu0 0.0
    %v154 = vand.u32 %v106, 4294901760
    %155 = vmatpush1.xpose.msra.mxu0 %v154
    %156 = vmatprep.subr.mxu0 0.0
    %v157 = vand.u32 %v109, 4294901760
    %158 = vmatpush1.xpose.msra.mxu0 %v157
    %159 = vmatprep.subr.mxu0 0.0
    %v160 = vand.u32 %v112, 4294901760
    %161 = vmatpush1.xpose.msra.mxu0 %v160
    %162 = vmatprep.subr.mxu0 0.0
    %v163 = vand.u32 %v115, 4294901760
    %164 = vmatpush1.xpose.msra.mxu0 %v163
    %165 = vmatprep.subr.mxu0 0.0
    %166 = vmatpush1.xpose.msra.mxu0 0.0
    %167 = vmatprep.subr.mxu0 0.0
    %168 = vmatpush1.xpose.msra.mxu0 0.0
    %169 = vmatprep.subr.mxu0 0.0
    %170 = vmatpush1.xpose.msra.mxu0 0.0
    %171 = vmatprep.subr.mxu0 0.0
    %172 = vmatpush1.xpose.msra.mxu0 0.0
    %173 = vmatprep.subr.mxu0 0.0
    %174 = vmatpush1.xpose.msra.mxu0 0.0
    %175 = vmatprep.subr.mxu0 0.0
    %176 = vmatpush1.xpose.msra.mxu0 0.0
    %177 = vmatprep.subr.mxu0 0.0
    %178 = vmatpush1.xpose.msra.mxu0 0.0
    %179 = vmatprep.subr.mxu0 0.0
    %180 = vmatpush1.xpose.msra.mxu0 0.0
    %181 = vmatprep.subr.mxu0 0.0
    %182 = vmatpush1.xpose.msra.mxu0 0.0
    %183 = vmatprep.subr.mxu0 0.0
    %184 = vmatpush1.xpose.msra.mxu0 0.0
    %185 = vmatprep.subr.mxu0 0.0
    %186 = vmatpush1.xpose.msra.mxu0 0.0
    %187 = vmatprep.subr.mxu0 0.0
    %188 = vmatpush1.xpose.msra.mxu0 0.0
    %189 = vmatprep.subr.mxu0 0.0
    %190 = vmatpush1.xpose.msra.mxu0 0.0
    %191 = vmatprep.subr.mxu0 0.0
    %192 = vmatpush1.xpose.msra.mxu0 0.0
    %193 = vmatprep.subr.mxu0 0.0
    %194 = vmatpush1.xpose.msra.mxu0 0.0
    %195 = vmatprep.subr.mxu0 0.0
    %196 = vmatpush1.xpose.msra.mxu0 0.0
    %197 = vmatprep.mubr.f32.mxu0 0.0
    %v198 = vand.u32 %v67, 4294901760
    %v199 = vsub.f32 %v67, %v198
    %v200 = vand.u32 %v199, 4294901760
    %v201 = vsub.f32 %v199, %v200
    %v202 = vand.u32 %v201, 4294901760
    %203 = vmatmul.mubr.f32.gmra.mrb[0].mxu0 %v202
    %v204 = vpop.f32.mrb[0].mxu0
    %v205 = vadd.f32 0.0, %v204
    %v206 = vpop.f32.mrb[0].mxu0
    %207 = vdwg.mxu0
    %208 = vmatprep.subr.mxu0 0.0
    %v209 = vand.u32 %v70, 4294901760
    %v210 = vsub.f32 %v70, %v209
    %v211 = vand.u32 %v210, 4294901760
    %v212 = vsub.f32 %v210, %v211
    %v213 = vand.u32 %v212, 4294901760
    %214 = vmatpush1.xpose.msra.mxu0 %v213
    %215 = vmatprep.subr.mxu0 0.0
    %v216 = vand.u32 %v73, 4294901760
    %v217 = vsub.f32 %v73, %v216
    %v218 = vand.u32 %v217, 4294901760
    %v219 = vsub.f32 %v217, %v218
    %v220 = vand.u32 %v219, 4294901760
    %221 = vmatpush1.xpose.msra.mxu0 %v220
    %222 = vmatprep.subr.mxu0 0.0
    %v223 = vand.u32 %v76, 4294901760
    %v224 = vsub.f32 %v76, %v223
    %v225 = vand.u32 %v224, 4294901760
    %v226 = vsub.f32 %v224, %v225
    %v227 = vand.u32 %v226, 4294901760
    %228 = vmatpush1.xpose.msra.mxu0 %v227
    %229 = vmatprep.subr.mxu0 0.0
    %v230 = vand.u32 %v79, 4294901760
    %v231 = vsub.f32 %v79, %v230
    %v232 = vand.u32 %v231, 4294901760
    %v233 = vsub.f32 %v231, %v232
    %v234 = vand.u32 %v233, 4294901760
    %235 = vmatpush1.xpose.msra.mxu0 %v234
    %236 = vmatprep.subr.mxu0 0.0
    %v237 = vand.u32 %v82, 4294901760
    %v238 = vsub.f32 %v82, %v237
    %v239 = vand.u32 %v238, 4294901760
    %v240 = vsub.f32 %v238, %v239
    %v241 = vand.u32 %v240, 4294901760
    %242 = vmatpush1.xpose.msra.mxu0 %v241
    %243 = vmatprep.subr.mxu0 0.0
    %v244 = vand.u32 %v85, 4294901760
    %v245 = vsub.f32 %v85, %v244
    %v246 = vand.u32 %v245, 4294901760
    %v247 = vsub.f32 %v245, %v246
    %v248 = vand.u32 %v247, 4294901760
    %249 = vmatpush1.xpose.msra.mxu0 %v248
    %250 = vmatprep.subr.mxu0 0.0
    %v251 = vand.u32 %v88, 4294901760
    %v252 = vsub.f32 %v88, %v251
    %v253 = vand.u32 %v252, 4294901760
    %v254 = vsub.f32 %v252, %v253
    %v255 = vand.u32 %v254, 4294901760
    %256 = vmatpush1.xpose.msra.mxu0 %v255
    %257 = vmatprep.subr.mxu0 0.0
    %v258 = vand.u32 %v91, 4294901760
    %v259 = vsub.f32 %v91, %v258
    %v260 = vand.u32 %v259, 4294901760
    %v261 = vsub.f32 %v259, %v260
    %v262 = vand.u32 %v261, 4294901760
    %263 = vmatpush1.xpose.msra.mxu0 %v262
    %264 = vmatprep.subr.mxu0 0.0
    %v265 = vand.u32 %v94, 4294901760
    %v266 = vsub.f32 %v94, %v265
    %v267 = vand.u32 %v266, 4294901760
    %v268 = vsub.f32 %v266, %v267
    %v269 = vand.u32 %v268, 4294901760
    %270 = vmatpush1.xpose.msra.mxu0 %v269
    %271 = vmatprep.subr.mxu0 0.0
    %v272 = vand.u32 %v97, 4294901760
    %v273 = vsub.f32 %v97, %v272
    %v274 = vand.u32 %v273, 4294901760
    %v275 = vsub.f32 %v273, %v274
    %v276 = vand.u32 %v275, 4294901760
    %277 = vmatpush1.xpose.msra.mxu0 %v276
    %278 = vmatprep.subr.mxu0 0.0
    %v279 = vand.u32 %v100, 4294901760
    %v280 = vsub.f32 %v100, %v279
    %v281 = vand.u32 %v280, 4294901760
    %v282 = vsub.f32 %v280, %v281
    %v283 = vand.u32 %v282, 4294901760
    %284 = vmatpush1.xpose.msra.mxu0 %v283
    %285 = vmatprep.subr.mxu0 0.0
    %v286 = vand.u32 %v103, 4294901760
    %v287 = vsub.f32 %v103, %v286
    %v288 = vand.u32 %v287, 4294901760
    %v289 = vsub.f32 %v287, %v288
    %v290 = vand.u32 %v289, 4294901760
    %291 = vmatpush1.xpose.msra.mxu0 %v290
    %292 = vmatprep.subr.mxu0 0.0
    %v293 = vand.u32 %v106, 4294901760
    %v294 = vsub.f32 %v106, %v293
    %v295 = vand.u32 %v294, 4294901760
    %v296 = vsub.f32 %v294, %v295
    %v297 = vand.u32 %v296, 4294901760
    %298 = vmatpush1.xpose.msra.mxu0 %v297
    %299 = vmatprep.subr.mxu0 0.0
    %v300 = vand.u32 %v109, 4294901760
    %v301 = vsub.f32 %v109, %v300
    %v302 = vand.u32 %v301, 4294901760
    %v303 = vsub.f32 %v301, %v302
    %v304 = vand.u32 %v303, 4294901760
    %305 = vmatpush1.xpose.msra.mxu0 %v304
    %306 = vmatprep.subr.mxu0 0.0
    %v307 = vand.u32 %v112, 4294901760
    %v308 = vsub.f32 %v112, %v307
    %v309 = vand.u32 %v308, 4294901760
    %v310 = vsub.f32 %v308, %v309
    %v311 = vand.u32 %v310, 4294901760
    %312 = vmatpush1.xpose.msra.mxu0 %v311
    %313 = vmatprep.subr.mxu0 0.0
    %v314 = vand.u32 %v115, 4294901760
    %v315 = vsub.f32 %v115, %v314
    %v316 = vand.u32 %v315, 4294901760
    %v317 = vsub.f32 %v315, %v316
    %v318 = vand.u32 %v317, 4294901760
    %319 = vmatpush1.xpose.msra.mxu0 %v318
    %320 = vmatprep.subr.mxu0 0.0
    %321 = vmatpush1.xpose.msra.mxu0 0.0
    %322 = vmatprep.subr.mxu0 0.0
    %323 = vmatpush1.xpose.msra.mxu0 0.0
    %324 = vmatprep.subr.mxu0 0.0
    %325 = vmatpush1.xpose.msra.mxu0 0.0
    %326 = vmatprep.subr.mxu0 0.0
    %327 = vmatpush1.xpose.msra.mxu0 0.0
    %328 = vmatprep.subr.mxu0 0.0
    %329 = vmatpush1.xpose.msra.mxu0 0.0
    %330 = vmatprep.subr.mxu0 0.0
    %331 = vmatpush1.xpose.msra.mxu0 0.0
    %332 = vmatprep.subr.mxu0 0.0
    %333 = vmatpush1.xpose.msra.mxu0 0.0
    %334 = vmatprep.subr.mxu0 0.0
    %335 = vmatpush1.xpose.msra.mxu0 0.0
    %336 = vmatprep.subr.mxu0 0.0
    %337 = vmatpush1.xpose.msra.mxu0 0.0
    %338 = vmatprep.subr.mxu0 0.0
    %339 = vmatpush1.xpose.msra.mxu0 0.0
    %340 = vmatprep.subr.mxu0 0.0
    %341 = vmatpush1.xpose.msra.mxu0 0.0
    %342 = vmatprep.subr.mxu0 0.0
    %343 = vmatpush1.xpose.msra.mxu0 0.0
    %344 = vmatprep.subr.mxu0 0.0
    %345 = vmatpush1.xpose.msra.mxu0 0.0
    %346 = vmatprep.subr.mxu0 0.0
    %347 = vmatpush1.xpose.msra.mxu0 0.0
    %348 = vmatprep.subr.mxu0 0.0
    %349 = vmatpush1.xpose.msra.mxu0 0.0
    %350 = vmatprep.subr.mxu0 0.0
    %351 = vmatpush1.xpose.msra.mxu0 0.0
    %352 = vmatprep.mubr.f32.mxu0 0.0
    %v353 = vand.u32 %v67, 4294901760
    %354 = vmatmul.mubr.f32.gmra.mrb[0].mxu0 %v353
    %v355 = vpop.f32.mrb[0].mxu0
    %v356 = vadd.f32 %v205, %v355
    %v357 = vpop.f32.mrb[0].mxu0
    %358 = vdwg.mxu0
    %359 = vmatprep.subr.mxu0 0.0
    %v360 = vand.u32 %v70, 4294901760
    %v361 = vsub.f32 %v70, %v360
    %362 = vmatpush1.xpose.msra.mxu0 %v361
    %363 = vmatprep.subr.mxu0 0.0
    %v364 = vand.u32 %v73, 4294901760
    %v365 = vsub.f32 %v73, %v364
    %366 = vmatpush1.xpose.msra.mxu0 %v365
    %367 = vmatprep.subr.mxu0 0.0
    %v368 = vand.u32 %v76, 4294901760
    %v369 = vsub.f32 %v76, %v368
    %370 = vmatpush1.xpose.msra.mxu0 %v369
    %371 = vmatprep.subr.mxu0 0.0
    %v372 = vand.u32 %v79, 4294901760
    %v373 = vsub.f32 %v79, %v372
    %374 = vmatpush1.xpose.msra.mxu0 %v373
    %375 = vmatprep.subr.mxu0 0.0
    %v376 = vand.u32 %v82, 4294901760
    %v377 = vsub.f32 %v82, %v376
    %378 = vmatpush1.xpose.msra.mxu0 %v377
    %379 = vmatprep.subr.mxu0 0.0
    %v380 = vand.u32 %v85, 4294901760
    %v381 = vsub.f32 %v85, %v380
    %382 = vmatpush1.xpose.msra.mxu0 %v381
    %383 = vmatprep.subr.mxu0 0.0
    %v384 = vand.u32 %v88, 4294901760
    %v385 = vsub.f32 %v88, %v384
    %386 = vmatpush1.xpose.msra.mxu0 %v385
    %387 = vmatprep.subr.mxu0 0.0
    %v388 = vand.u32 %v91, 4294901760
    %v389 = vsub.f32 %v91, %v388
    %390 = vmatpush1.xpose.msra.mxu0 %v389
    %391 = vmatprep.subr.mxu0 0.0
    %v392 = vand.u32 %v94, 4294901760
    %v393 = vsub.f32 %v94, %v392
    %394 = vmatpush1.xpose.msra.mxu0 %v393
    %395 = vmatprep.subr.mxu0 0.0
    %v396 = vand.u32 %v97, 4294901760
    %v397 = vsub.f32 %v97, %v396
    %398 = vmatpush1.xpose.msra.mxu0 %v397
    %399 = vmatprep.subr.mxu0 0.0
    %v400 = vand.u32 %v100, 4294901760
    %v401 = vsub.f32 %v100, %v400
    %402 = vmatpush1.xpose.msra.mxu0 %v401
    %403 = vmatprep.subr.mxu0 0.0
    %v404 = vand.u32 %v103, 4294901760
    %v405 = vsub.f32 %v103, %v404
    %406 = vmatpush1.xpose.msra.mxu0 %v405
    %407 = vmatprep.subr.mxu0 0.0
    %v408 = vand.u32 %v106, 4294901760
    %v409 = vsub.f32 %v106, %v408
    %410 = vmatpush1.xpose.msra.mxu0 %v409
    %411 = vmatprep.subr.mxu0 0.0
    %v412 = vand.u32 %v109, 4294901760
    %v413 = vsub.f32 %v109, %v412
    %414 = vmatpush1.xpose.msra.mxu0 %v413
    %415 = vmatprep.subr.mxu0 0.0
    %v416 = vand.u32 %v112, 4294901760
    %v417 = vsub.f32 %v112, %v416
    %418 = vmatpush1.xpose.msra.mxu0 %v417
    %419 = vmatprep.subr.mxu0 0.0
    %v420 = vand.u32 %v115, 4294901760
    %v421 = vsub.f32 %v115, %v420
    %422 = vmatpush1.xpose.msra.mxu0 %v421
    %423 = vmatprep.subr.mxu0 0.0
    %424 = vmatpush1.xpose.msra.mxu0 0.0
    %425 = vmatprep.subr.mxu0 0.0
    %426 = vmatpush1.xpose.msra.mxu0 0.0
    %427 = vmatprep.subr.mxu0 0.0
    %428 = vmatpush1.xpose.msra.mxu0 0.0
    %429 = vmatprep.subr.mxu0 0.0
    %430 = vmatpush1.xpose.msra.mxu0 0.0
    %431 = vmatprep.subr.mxu0 0.0
    %432 = vmatpush1.xpose.msra.mxu0 0.0
    %433 = vmatprep.subr.mxu0 0.0
    %434 = vmatpush1.xpose.msra.mxu0 0.0
    %435 = vmatprep.subr.mxu0 0.0
    %436 = vmatpush1.xpose.msra.mxu0 0.0
    %437 = vmatprep.subr.mxu0 0.0
    %438 = vmatpush1.xpose.msra.mxu0 0.0
    %439 = vmatprep.subr.mxu0 0.0
    %440 = vmatpush1.xpose.msra.mxu0 0.0
    %441 = vmatprep.subr.mxu0 0.0
    %442 = vmatpush1.xpose.msra.mxu0 0.0
    %443 = vmatprep.subr.mxu0 0.0
    %444 = vmatpush1.xpose.msra.mxu0 0.0
    %445 = vmatprep.subr.mxu0 0.0
    %446 = vmatpush1.xpose.msra.mxu0 0.0
    %447 = vmatprep.subr.mxu0 0.0
    %448 = vmatpush1.xpose.msra.mxu0 0.0
    %449 = vmatprep.subr.mxu0 0.0
    %450 = vmatpush1.xpose.msra.mxu0 0.0
    %451 = vmatprep.subr.mxu0 0.0
    %452 = vmatpush1.xpose.msra.mxu0 0.0
    %453 = vmatprep.subr.mxu0 0.0
    %454 = vmatpush1.xpose.msra.mxu0 0.0
    %455 = vmatprep.mubr.f32.mxu0 0.0
    %v456 = vand.u32 %v67, 4294901760
    %v457 = vsub.f32 %v67, %v456
    %458 = vmatmul.mubr.f32.gmra.mrb[0].mxu0 %v457
    %v459 = vpop.f32.mrb[0].mxu0
    %v460 = vadd.f32 %v356, %v459
    %v461 = vpop.f32.mrb[0].mxu0
    %462 = vdwg.mxu0
    %463 = vmatprep.subr.mxu0 0.0
    %v464 = vand.u32 %v70, 4294901760
    %465 = vmatpush1.xpose.msra.mxu0 %v464
    %466 = vmatprep.subr.mxu0 0.0
    %v467 = vand.u32 %v73, 4294901760
    %468 = vmatpush1.xpose.msra.mxu0 %v467
    %469 = vmatprep.subr.mxu0 0.0
    %v470 = vand.u32 %v76, 4294901760
    %471 = vmatpush1.xpose.msra.mxu0 %v470
    %472 = vmatprep.subr.mxu0 0.0
    %v473 = vand.u32 %v79, 4294901760
    %474 = vmatpush1.xpose.msra.mxu0 %v473
    %475 = vmatprep.subr.mxu0 0.0
    %v476 = vand.u32 %v82, 4294901760
    %477 = vmatpush1.xpose.msra.mxu0 %v476
    %478 = vmatprep.subr.mxu0 0.0
    %v479 = vand.u32 %v85, 4294901760
    %480 = vmatpush1.xpose.msra.mxu0 %v479
    %481 = vmatprep.subr.mxu0 0.0
    %v482 = vand.u32 %v88, 4294901760
    %483 = vmatpush1.xpose.msra.mxu0 %v482
    %484 = vmatprep.subr.mxu0 0.0
    %v485 = vand.u32 %v91, 4294901760
    %486 = vmatpush1.xpose.msra.mxu0 %v485
    %487 = vmatprep.subr.mxu0 0.0
    %v488 = vand.u32 %v94, 4294901760
    %489 = vmatpush1.xpose.msra.mxu0 %v488
    %490 = vmatprep.subr.mxu0 0.0
    %v491 = vand.u32 %v97, 4294901760
    %492 = vmatpush1.xpose.msra.mxu0 %v491
    %493 = vmatprep.subr.mxu0 0.0
    %v494 = vand.u32 %v100, 4294901760
    %495 = vmatpush1.xpose.msra.mxu0 %v494
    %496 = vmatprep.subr.mxu0 0.0
    %v497 = vand.u32 %v103, 4294901760
    %498 = vmatpush1.xpose.msra.mxu0 %v497
    %499 = vmatprep.subr.mxu0 0.0
    %v500 = vand.u32 %v106, 4294901760
    %501 = vmatpush1.xpose.msra.mxu0 %v500
    %502 = vmatprep.subr.mxu0 0.0
    %v503 = vand.u32 %v109, 4294901760
    %504 = vmatpush1.xpose.msra.mxu0 %v503
    %505 = vmatprep.subr.mxu0 0.0
    %v506 = vand.u32 %v112, 4294901760
    %507 = vmatpush1.xpose.msra.mxu0 %v506
    %508 = vmatprep.subr.mxu0 0.0
    %v509 = vand.u32 %v115, 4294901760
    %510 = vmatpush1.xpose.msra.mxu0 %v509
    %511 = vmatprep.subr.mxu0 0.0
    %512 = vmatpush1.xpose.msra.mxu0 0.0
    %513 = vmatprep.subr.mxu0 0.0
    %514 = vmatpush1.xpose.msra.mxu0 0.0
    %515 = vmatprep.subr.mxu0 0.0
    %516 = vmatpush1.xpose.msra.mxu0 0.0
    %517 = vmatprep.subr.mxu0 0.0
    %518 = vmatpush1.xpose.msra.mxu0 0.0
    %519 = vmatprep.subr.mxu0 0.0
    %520 = vmatpush1.xpose.msra.mxu0 0.0
    %521 = vmatprep.subr.mxu0 0.0
    %522 = vmatpush1.xpose.msra.mxu0 0.0
    %523 = vmatprep.subr.mxu0 0.0
    %524 = vmatpush1.xpose.msra.mxu0 0.0
    %525 = vmatprep.subr.mxu0 0.0
    %526 = vmatpush1.xpose.msra.mxu0 0.0
    %527 = vmatprep.subr.mxu0 0.0
    %528 = vmatpush1.xpose.msra.mxu0 0.0
    %529 = vmatprep.subr.mxu0 0.0
    %530 = vmatpush1.xpose.msra.mxu0 0.0
    %531 = vmatprep.subr.mxu0 0.0
    %532 = vmatpush1.xpose.msra.mxu0 0.0
    %533 = vmatprep.subr.mxu0 0.0
    %534 = vmatpush1.xpose.msra.mxu0 0.0
    %535 = vmatprep.subr.mxu0 0.0
    %536 = vmatpush1.xpose.msra.mxu0 0.0
    %537 = vmatprep.subr.mxu0 0.0
    %538 = vmatpush1.xpose.msra.mxu0 0.0
    %539 = vmatprep.subr.mxu0 0.0
    %540 = vmatpush1.xpose.msra.mxu0 0.0
    %541 = vmatprep.subr.mxu0 0.0
    %542 = vmatpush1.xpose.msra.mxu0 0.0
    %543 = vmatprep.mubr.f32.mxu0 0.0
    %v544 = vand.u32 %v67, 4294901760
    %v545 = vsub.f32 %v67, %v544
    %v546 = vand.u32 %v545, 4294901760
    %547 = vmatmul.mubr.f32.gmra.mrb[0].mxu0 %v546
    %v548 = vpop.f32.mrb[0].mxu0
    %v549 = vadd.f32 %v460, %v548
    %v550 = vpop.f32.mrb[0].mxu0
    %551 = vdwg.mxu0
    %552 = vmatprep.subr.mxu0 0.0
    %v553 = vand.u32 %v70, 4294901760
    %v554 = vsub.f32 %v70, %v553
    %v555 = vand.u32 %v554, 4294901760
    %556 = vmatpush1.xpose.msra.mxu0 %v555
    %557 = vmatprep.subr.mxu0 0.0
    %v558 = vand.u32 %v73, 4294901760
    %v559 = vsub.f32 %v73, %v558
    %v560 = vand.u32 %v559, 4294901760
    %561 = vmatpush1.xpose.msra.mxu0 %v560
    %562 = vmatprep.subr.mxu0 0.0
    %v563 = vand.u32 %v76, 4294901760
    %v564 = vsub.f32 %v76, %v563
    %v565 = vand.u32 %v564, 4294901760
    %566 = vmatpush1.xpose.msra.mxu0 %v565
    %567 = vmatprep.subr.mxu0 0.0
    %v568 = vand.u32 %v79, 4294901760
    %v569 = vsub.f32 %v79, %v568
    %v570 = vand.u32 %v569, 4294901760
    %571 = vmatpush1.xpose.msra.mxu0 %v570
    %572 = vmatprep.subr.mxu0 0.0
    %v573 = vand.u32 %v82, 4294901760
    %v574 = vsub.f32 %v82, %v573
    %v575 = vand.u32 %v574, 4294901760
    %576 = vmatpush1.xpose.msra.mxu0 %v575
    %577 = vmatprep.subr.mxu0 0.0
    %v578 = vand.u32 %v85, 4294901760
    %v579 = vsub.f32 %v85, %v578
    %v580 = vand.u32 %v579, 4294901760
    %581 = vmatpush1.xpose.msra.mxu0 %v580
    %582 = vmatprep.subr.mxu0 0.0
    %v583 = vand.u32 %v88, 4294901760
    %v584 = vsub.f32 %v88, %v583
    %v585 = vand.u32 %v584, 4294901760
    %586 = vmatpush1.xpose.msra.mxu0 %v585
    %587 = vmatprep.subr.mxu0 0.0
    %v588 = vand.u32 %v91, 4294901760
    %v589 = vsub.f32 %v91, %v588
    %v590 = vand.u32 %v589, 4294901760
    %591 = vmatpush1.xpose.msra.mxu0 %v590
    %592 = vmatprep.subr.mxu0 0.0
    %v593 = vand.u32 %v94, 4294901760
    %v594 = vsub.f32 %v94, %v593
    %v595 = vand.u32 %v594, 4294901760
    %596 = vmatpush1.xpose.msra.mxu0 %v595
    %597 = vmatprep.subr.mxu0 0.0
    %v598 = vand.u32 %v97, 4294901760
    %v599 = vsub.f32 %v97, %v598
    %v600 = vand.u32 %v599, 4294901760
    %601 = vmatpush1.xpose.msra.mxu0 %v600
    %602 = vmatprep.subr.mxu0 0.0
    %v603 = vand.u32 %v100, 4294901760
    %v604 = vsub.f32 %v100, %v603
    %v605 = vand.u32 %v604, 4294901760
    %606 = vmatpush1.xpose.msra.mxu0 %v605
    %607 = vmatprep.subr.mxu0 0.0
    %v608 = vand.u32 %v103, 4294901760
    %v609 = vsub.f32 %v103, %v608
    %v610 = vand.u32 %v609, 4294901760
    %611 = vmatpush1.xpose.msra.mxu0 %v610
    %612 = vmatprep.subr.mxu0 0.0
    %v613 = vand.u32 %v106, 4294901760
    %v614 = vsub.f32 %v106, %v613
    %v615 = vand.u32 %v614, 4294901760
    %616 = vmatpush1.xpose.msra.mxu0 %v615
    %617 = vmatprep.subr.mxu0 0.0
    %v618 = vand.u32 %v109, 4294901760
    %v619 = vsub.f32 %v109, %v618
    %v620 = vand.u32 %v619, 4294901760
    %621 = vmatpush1.xpose.msra.mxu0 %v620
    %622 = vmatprep.subr.mxu0 0.0
    %v623 = vand.u32 %v112, 4294901760
    %v624 = vsub.f32 %v112, %v623
    %v625 = vand.u32 %v624, 4294901760
    %626 = vmatpush1.xpose.msra.mxu0 %v625
    %627 = vmatprep.subr.mxu0 0.0
    %v628 = vand.u32 %v115, 4294901760
    %v629 = vsub.f32 %v115, %v628
    %v630 = vand.u32 %v629, 4294901760
    %631 = vmatpush1.xpose.msra.mxu0 %v630
    %632 = vmatprep.subr.mxu0 0.0
    %633 = vmatpush1.xpose.msra.mxu0 0.0
    %634 = vmatprep.subr.mxu0 0.0
    %635 = vmatpush1.xpose.msra.mxu0 0.0
    %636 = vmatprep.subr.mxu0 0.0
    %637 = vmatpush1.xpose.msra.mxu0 0.0
    %638 = vmatprep.subr.mxu0 0.0
    %639 = vmatpush1.xpose.msra.mxu0 0.0
    %640 = vmatprep.subr.mxu0 0.0
    %641 = vmatpush1.xpose.msra.mxu0 0.0
    %642 = vmatprep.subr.mxu0 0.0
    %643 = vmatpush1.xpose.msra.mxu0 0.0
    %644 = vmatprep.subr.mxu0 0.0
    %645 = vmatpush1.xpose.msra.mxu0 0.0
    %646 = vmatprep.subr.mxu0 0.0
    %647 = vmatpush1.xpose.msra.mxu0 0.0
    %648 = vmatprep.subr.mxu0 0.0
    %649 = vmatpush1.xpose.msra.mxu0 0.0
    %650 = vmatprep.subr.mxu0 0.0
    %651 = vmatpush1.xpose.msra.mxu0 0.0
    %652 = vmatprep.subr.mxu0 0.0
    %653 = vmatpush1.xpose.msra.mxu0 0.0
    %654 = vmatprep.subr.mxu0 0.0
    %655 = vmatpush1.xpose.msra.mxu0 0.0
    %656 = vmatprep.subr.mxu0 0.0
    %657 = vmatpush1.xpose.msra.mxu0 0.0
    %658 = vmatprep.subr.mxu0 0.0
    %659 = vmatpush1.xpose.msra.mxu0 0.0
    %660 = vmatprep.subr.mxu0 0.0
    %661 = vmatpush1.xpose.msra.mxu0 0.0
    %662 = vmatprep.subr.mxu0 0.0
    %663 = vmatpush1.xpose.msra.mxu0 0.0
    %664 = vmatprep.mubr.f32.mxu0 0.0
    %v665 = vand.u32 %v67, 4294901760
    %666 = vmatmul.mubr.f32.gmra.mrb[0].mxu0 %v665
    %v667 = vpop.f32.mrb[0].mxu0
    %v668 = vadd.f32 %v549, %v667
    %v669 = vpop.f32.mrb[0].mxu0
    %670 = vdwg.mxu0
    %671 = vmatprep.subr.mxu0 0.0
    %v672 = vand.u32 %v70, 4294901760
    %673 = vmatpush1.xpose.msra.mxu0 %v672
    %674 = vmatprep.subr.mxu0 0.0
    %v675 = vand.u32 %v73, 4294901760
    %676 = vmatpush1.xpose.msra.mxu0 %v675
    %677 = vmatprep.subr.mxu0 0.0
    %v678 = vand.u32 %v76, 4294901760
    %679 = vmatpush1.xpose.msra.mxu0 %v678
    %680 = vmatprep.subr.mxu0 0.0
    %v681 = vand.u32 %v79, 4294901760
    %682 = vmatpush1.xpose.msra.mxu0 %v681
    %683 = vmatprep.subr.mxu0 0.0
    %v684 = vand.u32 %v82, 4294901760
    %685 = vmatpush1.xpose.msra.mxu0 %v684
    %686 = vmatprep.subr.mxu0 0.0
    %v687 = vand.u32 %v85, 4294901760
    %688 = vmatpush1.xpose.msra.mxu0 %v687
    %689 = vmatprep.subr.mxu0 0.0
    %v690 = vand.u32 %v88, 4294901760
    %691 = vmatpush1.xpose.msra.mxu0 %v690
    %692 = vmatprep.subr.mxu0 0.0
    %v693 = vand.u32 %v91, 4294901760
    %694 = vmatpush1.xpose.msra.mxu0 %v693
    %695 = vmatprep.subr.mxu0 0.0
    %v696 = vand.u32 %v94, 4294901760
    %697 = vmatpush1.xpose.msra.mxu0 %v696
    %698 = vmatprep.subr.mxu0 0.0
    %v699 = vand.u32 %v97, 4294901760
    %700 = vmatpush1.xpose.msra.mxu0 %v699
    %701 = vmatprep.subr.mxu0 0.0
    %v702 = vand.u32 %v100, 4294901760
    %703 = vmatpush1.xpose.msra.mxu0 %v702
    %704 = vmatprep.subr.mxu0 0.0
    %v705 = vand.u32 %v103, 4294901760
    %706 = vmatpush1.xpose.msra.mxu0 %v705
    %707 = vmatprep.subr.mxu0 0.0
    %v708 = vand.u32 %v106, 4294901760
    %709 = vmatpush1.xpose.msra.mxu0 %v708
    %710 = vmatprep.subr.mxu0 0.0
    %v711 = vand.u32 %v109, 4294901760
    %712 = vmatpush1.xpose.msra.mxu0 %v711
    %713 = vmatprep.subr.mxu0 0.0
    %v714 = vand.u32 %v112, 4294901760
    %715 = vmatpush1.xpose.msra.mxu0 %v714
    %716 = vmatprep.subr.mxu0 0.0
    %v717 = vand.u32 %v115, 4294901760
    %718 = vmatpush1.xpose.msra.mxu0 %v717
    %719 = vmatprep.subr.mxu0 0.0
    %720 = vmatpush1.xpose.msra.mxu0 0.0
    %721 = vmatprep.subr.mxu0 0.0
    %722 = vmatpush1.xpose.msra.mxu0 0.0
    %723 = vmatprep.subr.mxu0 0.0
    %724 = vmatpush1.xpose.msra.mxu0 0.0
    %725 = vmatprep.subr.mxu0 0.0
    %726 = vmatpush1.xpose.msra.mxu0 0.0
    %727 = vmatprep.subr.mxu0 0.0
    %728 = vmatpush1.xpose.msra.mxu0 0.0
    %729 = vmatprep.subr.mxu0 0.0
    %730 = vmatpush1.xpose.msra.mxu0 0.0
    %731 = vmatprep.subr.mxu0 0.0
    %732 = vmatpush1.xpose.msra.mxu0 0.0
    %733 = vmatprep.subr.mxu0 0.0
    %734 = vmatpush1.xpose.msra.mxu0 0.0
    %735 = vmatprep.subr.mxu0 0.0
    %736 = vmatpush1.xpose.msra.mxu0 0.0
    %737 = vmatprep.subr.mxu0 0.0
    %738 = vmatpush1.xpose.msra.mxu0 0.0
    %739 = vmatprep.subr.mxu0 0.0
    %740 = vmatpush1.xpose.msra.mxu0 0.0
    %741 = vmatprep.subr.mxu0 0.0
    %742 = vmatpush1.xpose.msra.mxu0 0.0
    %743 = vmatprep.subr.mxu0 0.0
    %744 = vmatpush1.xpose.msra.mxu0 0.0
    %745 = vmatprep.subr.mxu0 0.0
    %746 = vmatpush1.xpose.msra.mxu0 0.0
    %747 = vmatprep.subr.mxu0 0.0
    %748 = vmatpush1.xpose.msra.mxu0 0.0
    %749 = vmatprep.subr.mxu0 0.0
    %750 = vmatpush1.xpose.msra.mxu0 0.0
    %751 = vmatprep.mubr.f32.mxu0 0.0
    %v752 = vand.u32 %v67, 4294901760
    %753 = vmatmul.mubr.f32.gmra.mrb[0].mxu0 %v752
    %v754 = vpop.f32.mrb[0].mxu0
    %v755 = vadd.f32 %v668, %v754
    %v756 = vpop.f32.mrb[0].mxu0
    %757 = vdwg.mxu0
    %vm758 = vcmask 64512
    %v760 = vsel %vm758, %v28, 0
    %v763 = vsel %vm758, %v33, 0
    %v766 = vsel %vm758, %v34, 0
    %v769 = vsel %vm758, %v35, 0
    %v772 = vsel %vm758, %v36, 0
    %v775 = vsel %vm758, %v37, 0
    %v778 = vsel %vm758, %v38, 0
    %v781 = vsel %vm758, %v39, 0
    %v784 = vsel %vm758, %v40, 0
    %v787 = vsel %vm758, %v41, 0
    %v790 = vsel %vm758, %v42, 0
    %v793 = vsel %vm758, %v43, 0
    %v796 = vsel %vm758, %v44, 0
    %v799 = vsel %vm758, %v45, 0
    %v802 = vsel %vm758, %v46, 0
    %v805 = vsel %vm758, %v47, 0
    %v808 = vsel %vm758, %v48, 0
    %810 = vmatprep.subr.mxu0 0.0
    %v811 = vand.u32 %v763, 4294901760
    %812 = vmatpush1.xpose.msra.mxu0 %v811
    %813 = vmatprep.subr.mxu0 0.0
    %v814 = vand.u32 %v766, 4294901760
    %815 = vmatpush1.xpose.msra.mxu0 %v814
    %816 = vmatprep.subr.mxu0 0.0
    %v817 = vand.u32 %v769, 4294901760
    %818 = vmatpush1.xpose.msra.mxu0 %v817
    %819 = vmatprep.subr.mxu0 0.0
    %v820 = vand.u32 %v772, 4294901760
    %821 = vmatpush1.xpose.msra.mxu0 %v820
    %822 = vmatprep.subr.mxu0 0.0
    %v823 = vand.u32 %v775, 4294901760
    %824 = vmatpush1.xpose.msra.mxu0 %v823
    %825 = vmatprep.subr.mxu0 0.0
    %v826 = vand.u32 %v778, 4294901760
    %827 = vmatpush1.xpose.msra.mxu0 %v826
    %828 = vmatprep.subr.mxu0 0.0
    %v829 = vand.u32 %v781, 4294901760
    %830 = vmatpush1.xpose.msra.mxu0 %v829
    %831 = vmatprep.subr.mxu0 0.0
    %v832 = vand.u32 %v784, 4294901760
    %833 = vmatpush1.xpose.msra.mxu0 %v832
    %834 = vmatprep.subr.mxu0 0.0
    %v835 = vand.u32 %v787, 4294901760
    %836 = vmatpush1.xpose.msra.mxu0 %v835
    %837 = vmatprep.subr.mxu0 0.0
    %v838 = vand.u32 %v790, 4294901760
    %839 = vmatpush1.xpose.msra.mxu0 %v838
    %840 = vmatprep.subr.mxu0 0.0
    %v841 = vand.u32 %v793, 4294901760
    %842 = vmatpush1.xpose.msra.mxu0 %v841
    %843 = vmatprep.subr.mxu0 0.0
    %v844 = vand.u32 %v796, 4294901760
    %845 = vmatpush1.xpose.msra.mxu0 %v844
    %846 = vmatprep.subr.mxu0 0.0
    %v847 = vand.u32 %v799, 4294901760
    %848 = vmatpush1.xpose.msra.mxu0 %v847
    %849 = vmatprep.subr.mxu0 0.0
    %v850 = vand.u32 %v802, 4294901760
    %851 = vmatpush1.xpose.msra.mxu0 %v850
    %852 = vmatprep.subr.mxu0 0.0
    %v853 = vand.u32 %v805, 4294901760
    %854 = vmatpush1.xpose.msra.mxu0 %v853
    %855 = vmatprep.subr.mxu0 0.0
    %v856 = vand.u32 %v808, 4294901760
    %857 = vmatpush1.xpose.msra.mxu0 %v856
    %858 = vmatprep.subr.mxu0 0.0
    %859 = vmatpush1.xpose.msra.mxu0 0.0
    %860 = vmatprep.subr.mxu0 0.0
    %861 = vmatpush1.xpose.msra.mxu0 0.0
    %862 = vmatprep.subr.mxu0 0.0
    %863 = vmatpush1.xpose.msra.mxu0 0.0
    %864 = vmatprep.subr.mxu0 0.0
    %865 = vmatpush1.xpose.msra.mxu0 0.0
    %866 = vmatprep.subr.mxu0 0.0
    %867 = vmatpush1.xpose.msra.mxu0 0.0
    %868 = vmatprep.subr.mxu0 0.0
    %869 = vmatpush1.xpose.msra.mxu0 0.0
    %870 = vmatprep.subr.mxu0 0.0
    %871 = vmatpush1.xpose.msra.mxu0 0.0
    %872 = vmatprep.subr.mxu0 0.0
    %873 = vmatpush1.xpose.msra.mxu0 0.0
    %874 = vmatprep.subr.mxu0 0.0
    %875 = vmatpush1.xpose.msra.mxu0 0.0
    %876 = vmatprep.subr.mxu0 0.0
    %877 = vmatpush1.xpose.msra.mxu0 0.0
    %878 = vmatprep.subr.mxu0 0.0
    %879 = vmatpush1.xpose.msra.mxu0 0.0
    %880 = vmatprep.subr.mxu0 0.0
    %881 = vmatpush1.xpose.msra.mxu0 0.0
    %882 = vmatprep.subr.mxu0 0.0
    %883 = vmatpush1.xpose.msra.mxu0 0.0
    %884 = vmatprep.subr.mxu0 0.0
    %885 = vmatpush1.xpose.msra.mxu0 0.0
    %886 = vmatprep.subr.mxu0 0.0
    %887 = vmatpush1.xpose.msra.mxu0 0.0
    %888 = vmatprep.subr.mxu0 0.0
    %889 = vmatpush1.xpose.msra.mxu0 0.0
    %890 = vmatprep.mubr.f32.mxu0 0.0
    %v891 = vand.u32 %v760, 4294901760
    %v892 = vsub.f32 %v760, %v891
    %v893 = vand.u32 %v892, 4294901760
    %v894 = vsub.f32 %v892, %v893
    %v895 = vand.u32 %v894, 4294901760
    %896 = vmatmul.mubr.f32.gmra.mrb[0].mxu0 %v895
    %v897 = vpop.f32.mrb[0].mxu0
    %v898 = vadd.f32 %v755, %v897
    %v899 = vpop.f32.mrb[0].mxu0
    %900 = vdwg.mxu0
    %901 = vmatprep.subr.mxu0 0.0
    %v902 = vand.u32 %v763, 4294901760
    %v903 = vsub.f32 %v763, %v902
    %v904 = vand.u32 %v903, 4294901760
    %v905 = vsub.f32 %v903, %v904
    %v906 = vand.u32 %v905, 4294901760
    %907 = vmatpush1.xpose.msra.mxu0 %v906
    %908 = vmatprep.subr.mxu0 0.0
    %v909 = vand.u32 %v766, 4294901760
    %v910 = vsub.f32 %v766, %v909
    %v911 = vand.u32 %v910, 4294901760
    %v912 = vsub.f32 %v910, %v911
    %v913 = vand.u32 %v912, 4294901760
    %914 = vmatpush1.xpose.msra.mxu0 %v913
    %915 = vmatprep.subr.mxu0 0.0
    %v916 = vand.u32 %v769, 4294901760
    %v917 = vsub.f32 %v769, %v916
    %v918 = vand.u32 %v917, 4294901760
    %v919 = vsub.f32 %v917, %v918
    %v920 = vand.u32 %v919, 4294901760
    %921 = vmatpush1.xpose.msra.mxu0 %v920
    %922 = vmatprep.subr.mxu0 0.0
    %v923 = vand.u32 %v772, 4294901760
    %v924 = vsub.f32 %v772, %v923
    %v925 = vand.u32 %v924, 4294901760
    %v926 = vsub.f32 %v924, %v925
    %v927 = vand.u32 %v926, 4294901760
    %928 = vmatpush1.xpose.msra.mxu0 %v927
    %929 = vmatprep.subr.mxu0 0.0
    %v930 = vand.u32 %v775, 4294901760
    %v931 = vsub.f32 %v775, %v930
    %v932 = vand.u32 %v931, 4294901760
    %v933 = vsub.f32 %v931, %v932
    %v934 = vand.u32 %v933, 4294901760
    %935 = vmatpush1.xpose.msra.mxu0 %v934
    %936 = vmatprep.subr.mxu0 0.0
    %v937 = vand.u32 %v778, 4294901760
    %v938 = vsub.f32 %v778, %v937
    %v939 = vand.u32 %v938, 4294901760
    %v940 = vsub.f32 %v938, %v939
    %v941 = vand.u32 %v940, 4294901760
    %942 = vmatpush1.xpose.msra.mxu0 %v941
    %943 = vmatprep.subr.mxu0 0.0
    %v944 = vand.u32 %v781, 4294901760
    %v945 = vsub.f32 %v781, %v944
    %v946 = vand.u32 %v945, 4294901760
    %v947 = vsub.f32 %v945, %v946
    %v948 = vand.u32 %v947, 4294901760
    %949 = vmatpush1.xpose.msra.mxu0 %v948
    %950 = vmatprep.subr.mxu0 0.0
    %v951 = vand.u32 %v784, 4294901760
    %v952 = vsub.f32 %v784, %v951
    %v953 = vand.u32 %v952, 4294901760
    %v954 = vsub.f32 %v952, %v953
    %v955 = vand.u32 %v954, 4294901760
    %956 = vmatpush1.xpose.msra.mxu0 %v955
    %957 = vmatprep.subr.mxu0 0.0
    %v958 = vand.u32 %v787, 4294901760
    %v959 = vsub.f32 %v787, %v958
    %v960 = vand.u32 %v959, 4294901760
    %v961 = vsub.f32 %v959, %v960
    %v962 = vand.u32 %v961, 4294901760
    %963 = vmatpush1.xpose.msra.mxu0 %v962
    %964 = vmatprep.subr.mxu0 0.0
    %v965 = vand.u32 %v790, 4294901760
    %v966 = vsub.f32 %v790, %v965
    %v967 = vand.u32 %v966, 4294901760
    %v968 = vsub.f32 %v966, %v967
    %v969 = vand.u32 %v968, 4294901760
    %970 = vmatpush1.xpose.msra.mxu0 %v969
    %971 = vmatprep.subr.mxu0 0.0
    %v972 = vand.u32 %v793, 4294901760
    %v973 = vsub.f32 %v793, %v972
    %v974 = vand.u32 %v973, 4294901760
    %v975 = vsub.f32 %v973, %v974
    %v976 = vand.u32 %v975, 4294901760
    %977 = vmatpush1.xpose.msra.mxu0 %v976
    %978 = vmatprep.subr.mxu0 0.0
    %v979 = vand.u32 %v796, 4294901760
    %v980 = vsub.f32 %v796, %v979
    %v981 = vand.u32 %v980, 4294901760
    %v982 = vsub.f32 %v980, %v981
    %v983 = vand.u32 %v982, 4294901760
    %984 = vmatpush1.xpose.msra.mxu0 %v983
    %985 = vmatprep.subr.mxu0 0.0
    %v986 = vand.u32 %v799, 4294901760
    %v987 = vsub.f32 %v799, %v986
    %v988 = vand.u32 %v987, 4294901760
    %v989 = vsub.f32 %v987, %v988
    %v990 = vand.u32 %v989, 4294901760
    %991 = vmatpush1.xpose.msra.mxu0 %v990
    %992 = vmatprep.subr.mxu0 0.0
    %v993 = vand.u32 %v802, 4294901760
    %v994 = vsub.f32 %v802, %v993
    %v995 = vand.u32 %v994, 4294901760
    %v996 = vsub.f32 %v994, %v995
    %v997 = vand.u32 %v996, 4294901760
    %998 = vmatpush1.xpose.msra.mxu0 %v997
    %999 = vmatprep.subr.mxu0 0.0
    %v1000 = vand.u32 %v805, 4294901760
    %v1001 = vsub.f32 %v805, %v1000
    %v1002 = vand.u32 %v1001, 4294901760
    %v1003 = vsub.f32 %v1001, %v1002
    %v1004 = vand.u32 %v1003, 4294901760
    %1005 = vmatpush1.xpose.msra.mxu0 %v1004
    %1006 = vmatprep.subr.mxu0 0.0
    %v1007 = vand.u32 %v808, 4294901760
    %v1008 = vsub.f32 %v808, %v1007
    %v1009 = vand.u32 %v1008, 4294901760
    %v1010 = vsub.f32 %v1008, %v1009
    %v1011 = vand.u32 %v1010, 4294901760
    %1012 = vmatpush1.xpose.msra.mxu0 %v1011
    %1013 = vmatprep.subr.mxu0 0.0
    %1014 = vmatpush1.xpose.msra.mxu0 0.0
    %1015 = vmatprep.subr.mxu0 0.0
    %1016 = vmatpush1.xpose.msra.mxu0 0.0
    %1017 = vmatprep.subr.mxu0 0.0
    %1018 = vmatpush1.xpose.msra.mxu0 0.0
    %1019 = vmatprep.subr.mxu0 0.0
    %1020 = vmatpush1.xpose.msra.mxu0 0.0
    %1021 = vmatprep.subr.mxu0 0.0
    %1022 = vmatpush1.xpose.msra.mxu0 0.0
    %1023 = vmatprep.subr.mxu0 0.0
    %1024 = vmatpush1.xpose.msra.mxu0 0.0
    %1025 = vmatprep.subr.mxu0 0.0
    %1026 = vmatpush1.xpose.msra.mxu0 0.0
    %1027 = vmatprep.subr.mxu0 0.0
    %1028 = vmatpush1.xpose.msra.mxu0 0.0
    %1029 = vmatprep.subr.mxu0 0.0
    %1030 = vmatpush1.xpose.msra.mxu0 0.0
    %1031 = vmatprep.subr.mxu0 0.0
    %1032 = vmatpush1.xpose.msra.mxu0 0.0
    %1033 = vmatprep.subr.mxu0 0.0
    %1034 = vmatpush1.xpose.msra.mxu0 0.0
    %1035 = vmatprep.subr.mxu0 0.0
    %1036 = vmatpush1.xpose.msra.mxu0 0.0
    %1037 = vmatprep.subr.mxu0 0.0
    %1038 = vmatpush1.xpose.msra.mxu0 0.0
    %1039 = vmatprep.subr.mxu0 0.0
    %1040 = vmatpush1.xpose.msra.mxu0 0.0
    %1041 = vmatprep.subr.mxu0 0.0
    %1042 = vmatpush1.xpose.msra.mxu0 0.0
    %1043 = vmatprep.subr.mxu0 0.0
    %1044 = vmatpush1.xpose.msra.mxu0 0.0
    %1045 = vmatprep.mubr.f32.mxu0 0.0
    %v1046 = vand.u32 %v760, 4294901760
    %1047 = vmatmul.mubr.f32.gmra.mrb[0].mxu0 %v1046
    %v1048 = vpop.f32.mrb[0].mxu0
    %v1049 = vadd.f32 %v898, %v1048
    %v1050 = vpop.f32.mrb[0].mxu0
    %1051 = vdwg.mxu0
    %1052 = vmatprep.subr.mxu0 0.0
    %v1053 = vand.u32 %v763, 4294901760
    %v1054 = vsub.f32 %v763, %v1053
    %1055 = vmatpush1.xpose.msra.mxu0 %v1054
    %1056 = vmatprep.subr.mxu0 0.0
    %v1057 = vand.u32 %v766, 4294901760
    %v1058 = vsub.f32 %v766, %v1057
    %1059 = vmatpush1.xpose.msra.mxu0 %v1058
    %1060 = vmatprep.subr.mxu0 0.0
    %v1061 = vand.u32 %v769, 4294901760
    %v1062 = vsub.f32 %v769, %v1061
    %1063 = vmatpush1.xpose.msra.mxu0 %v1062
    %1064 = vmatprep.subr.mxu0 0.0
    %v1065 = vand.u32 %v772, 4294901760
    %v1066 = vsub.f32 %v772, %v1065
    %1067 = vmatpush1.xpose.msra.mxu0 %v1066
    %1068 = vmatprep.subr.mxu0 0.0
    %v1069 = vand.u32 %v775, 4294901760
    %v1070 = vsub.f32 %v775, %v1069
    %1071 = vmatpush1.xpose.msra.mxu0 %v1070
    %1072 = vmatprep.subr.mxu0 0.0
    %v1073 = vand.u32 %v778, 4294901760
    %v1074 = vsub.f32 %v778, %v1073
    %1075 = vmatpush1.xpose.msra.mxu0 %v1074
    %1076 = vmatprep.subr.mxu0 0.0
    %v1077 = vand.u32 %v781, 4294901760
    %v1078 = vsub.f32 %v781, %v1077
    %1079 = vmatpush1.xpose.msra.mxu0 %v1078
    %1080 = vmatprep.subr.mxu0 0.0
    %v1081 = vand.u32 %v784, 4294901760
    %v1082 = vsub.f32 %v784, %v1081
    %1083 = vmatpush1.xpose.msra.mxu0 %v1082
    %1084 = vmatprep.subr.mxu0 0.0
    %v1085 = vand.u32 %v787, 4294901760
    %v1086 = vsub.f32 %v787, %v1085
    %1087 = vmatpush1.xpose.msra.mxu0 %v1086
    %1088 = vmatprep.subr.mxu0 0.0
    %v1089 = vand.u32 %v790, 4294901760
    %v1090 = vsub.f32 %v790, %v1089
    %1091 = vmatpush1.xpose.msra.mxu0 %v1090
    %1092 = vmatprep.subr.mxu0 0.0
    %v1093 = vand.u32 %v793, 4294901760
    %v1094 = vsub.f32 %v793, %v1093
    %1095 = vmatpush1.xpose.msra.mxu0 %v1094
    %1096 = vmatprep.subr.mxu0 0.0
    %v1097 = vand.u32 %v796, 4294901760
    %v1098 = vsub.f32 %v796, %v1097
    %1099 = vmatpush1.xpose.msra.mxu0 %v1098
    %1100 = vmatprep.subr.mxu0 0.0
    %v1101 = vand.u32 %v799, 4294901760
    %v1102 = vsub.f32 %v799, %v1101
    %1103 = vmatpush1.xpose.msra.mxu0 %v1102
    %1104 = vmatprep.subr.mxu0 0.0
    %v1105 = vand.u32 %v802, 4294901760
    %v1106 = vsub.f32 %v802, %v1105
    %1107 = vmatpush1.xpose.msra.mxu0 %v1106
    %1108 = vmatprep.subr.mxu0 0.0
    %v1109 = vand.u32 %v805, 4294901760
    %v1110 = vsub.f32 %v805, %v1109
    %1111 = vmatpush1.xpose.msra.mxu0 %v1110
    %1112 = vmatprep.subr.mxu0 0.0
    %v1113 = vand.u32 %v808, 4294901760
    %v1114 = vsub.f32 %v808, %v1113
    %1115 = vmatpush1.xpose.msra.mxu0 %v1114
    %1116 = vmatprep.subr.mxu0 0.0
    %1117 = vmatpush1.xpose.msra.mxu0 0.0
    %1118 = vmatprep.subr.mxu0 0.0
    %1119 = vmatpush1.xpose.msra.mxu0 0.0
    %1120 = vmatprep.subr.mxu0 0.0
    %1121 = vmatpush1.xpose.msra.mxu0 0.0
    %1122 = vmatprep.subr.mxu0 0.0
    %1123 = vmatpush1.xpose.msra.mxu0 0.0
    %1124 = vmatprep.subr.mxu0 0.0
    %1125 = vmatpush1.xpose.msra.mxu0 0.0
    %1126 = vmatprep.subr.mxu0 0.0
    %1127 = vmatpush1.xpose.msra.mxu0 0.0
    %1128 = vmatprep.subr.mxu0 0.0
    %1129 = vmatpush1.xpose.msra.mxu0 0.0
    %1130 = vmatprep.subr.mxu0 0.0
    %1131 = vmatpush1.xpose.msra.mxu0 0.0
    %1132 = vmatprep.subr.mxu0 0.0
    %1133 = vmatpush1.xpose.msra.mxu0 0.0
    %1134 = vmatprep.subr.mxu0 0.0
    %1135 = vmatpush1.xpose.msra.mxu0 0.0
    %1136 = vmatprep.subr.mxu0 0.0
    %1137 = vmatpush1.xpose.msra.mxu0 0.0
    %1138 = vmatprep.subr.mxu0 0.0
    %1139 = vmatpush1.xpose.msra.mxu0 0.0
    %1140 = vmatprep.subr.mxu0 0.0
    %1141 = vmatpush1.xpose.msra.mxu0 0.0
    %1142 = vmatprep.subr.mxu0 0.0
    %1143 = vmatpush1.xpose.msra.mxu0 0.0
    %1144 = vmatprep.subr.mxu0 0.0
    %1145 = vmatpush1.xpose.msra.mxu0 0.0
    %1146 = vmatprep.subr.mxu0 0.0
    %1147 = vmatpush1.xpose.msra.mxu0 0.0
    %1148 = vmatprep.mubr.f32.mxu0 0.0
    %v1149 = vand.u32 %v760, 4294901760
    %v1150 = vsub.f32 %v760, %v1149
    %1151 = vmatmul.mubr.f32.gmra.mrb[0].mxu0 %v1150
    %v1152 = vpop.f32.mrb[0].mxu0
    %v1153 = vadd.f32 %v1049, %v1152
    %v1154 = vpop.f32.mrb[0].mxu0
    %1155 = vdwg.mxu0
    %1156 = vmatprep.subr.mxu0 0.0
    %v1157 = vand.u32 %v763, 4294901760
    %1158 = vmatpush1.xpose.msra.mxu0 %v1157
    %1159 = vmatprep.subr.mxu0 0.0
    %v1160 = vand.u32 %v766, 4294901760
    %1161 = vmatpush1.xpose.msra.mxu0 %v1160
    %1162 = vmatprep.subr.mxu0 0.0
    %v1163 = vand.u32 %v769, 4294901760
    %1164 = vmatpush1.xpose.msra.mxu0 %v1163
    %1165 = vmatprep.subr.mxu0 0.0
    %v1166 = vand.u32 %v772, 4294901760
    %1167 = vmatpush1.xpose.msra.mxu0 %v1166
    %1168 = vmatprep.subr.mxu0 0.0
    %v1169 = vand.u32 %v775, 4294901760
    %1170 = vmatpush1.xpose.msra.mxu0 %v1169
    %1171 = vmatprep.subr.mxu0 0.0
    %v1172 = vand.u32 %v778, 4294901760
    %1173 = vmatpush1.xpose.msra.mxu0 %v1172
    %1174 = vmatprep.subr.mxu0 0.0
    %v1175 = vand.u32 %v781, 4294901760
    %1176 = vmatpush1.xpose.msra.mxu0 %v1175
    %1177 = vmatprep.subr.mxu0 0.0
    %v1178 = vand.u32 %v784, 4294901760
    %1179 = vmatpush1.xpose.msra.mxu0 %v1178
    %1180 = vmatprep.subr.mxu0 0.0
    %v1181 = vand.u32 %v787, 4294901760
    %1182 = vmatpush1.xpose.msra.mxu0 %v1181
    %1183 = vmatprep.subr.mxu0 0.0
    %v1184 = vand.u32 %v790, 4294901760
    %1185 = vmatpush1.xpose.msra.mxu0 %v1184
    %1186 = vmatprep.subr.mxu0 0.0
    %v1187 = vand.u32 %v793, 4294901760
    %1188 = vmatpush1.xpose.msra.mxu0 %v1187
    %1189 = vmatprep.subr.mxu0 0.0
    %v1190 = vand.u32 %v796, 4294901760
    %1191 = vmatpush1.xpose.msra.mxu0 %v1190
    %1192 = vmatprep.subr.mxu0 0.0
    %v1193 = vand.u32 %v799, 4294901760
    %1194 = vmatpush1.xpose.msra.mxu0 %v1193
    %1195 = vmatprep.subr.mxu0 0.0
    %v1196 = vand.u32 %v802, 4294901760
    %1197 = vmatpush1.xpose.msra.mxu0 %v1196
    %1198 = vmatprep.subr.mxu0 0.0
    %v1199 = vand.u32 %v805, 4294901760
    %1200 = vmatpush1.xpose.msra.mxu0 %v1199
    %1201 = vmatprep.subr.mxu0 0.0
    %v1202 = vand.u32 %v808, 4294901760
    %1203 = vmatpush1.xpose.msra.mxu0 %v1202
    %1204 = vmatprep.subr.mxu0 0.0
    %1205 = vmatpush1.xpose.msra.mxu0 0.0
    %1206 = vmatprep.subr.mxu0 0.0
    %1207 = vmatpush1.xpose.msra.mxu0 0.0
    %1208 = vmatprep.subr.mxu0 0.0
    %1209 = vmatpush1.xpose.msra.mxu0 0.0
    %1210 = vmatprep.subr.mxu0 0.0
    %1211 = vmatpush1.xpose.msra.mxu0 0.0
    %1212 = vmatprep.subr.mxu0 0.0
    %1213 = vmatpush1.xpose.msra.mxu0 0.0
    %1214 = vmatprep.subr.mxu0 0.0
    %1215 = vmatpush1.xpose.msra.mxu0 0.0
    %1216 = vmatprep.subr.mxu0 0.0
    %1217 = vmatpush1.xpose.msra.mxu0 0.0
    %1218 = vmatprep.subr.mxu0 0.0
    %1219 = vmatpush1.xpose.msra.mxu0 0.0
    %1220 = vmatprep.subr.mxu0 0.0
    %1221 = vmatpush1.xpose.msra.mxu0 0.0
    %1222 = vmatprep.subr.mxu0 0.0
    %1223 = vmatpush1.xpose.msra.mxu0 0.0
    %1224 = vmatprep.subr.mxu0 0.0
    %1225 = vmatpush1.xpose.msra.mxu0 0.0
    %1226 = vmatprep.subr.mxu0 0.0
    %1227 = vmatpush1.xpose.msra.mxu0 0.0
    %1228 = vmatprep.subr.mxu0 0.0
    %1229 = vmatpush1.xpose.msra.mxu0 0.0
    %1230 = vmatprep.subr.mxu0 0.0
    %1231 = vmatpush1.xpose.msra.mxu0 0.0
    %1232 = vmatprep.subr.mxu0 0.0
    %1233 = vmatpush1.xpose.msra.mxu0 0.0
    %1234 = vmatprep.subr.mxu0 0.0
    %1235 = vmatpush1.xpose.msra.mxu0 0.0
    %1236 = vmatprep.mubr.f32.mxu0 0.0
    %v1237 = vand.u32 %v760, 4294901760
    %v1238 = vsub.f32 %v760, %v1237
    %v1239 = vand.u32 %v1238, 4294901760
    %1240 = vmatmul.mubr.f32.gmra.mrb[0].mxu0 %v1239
    %v1241 = vpop.f32.mrb[0].mxu0
    %v1242 = vadd.f32 %v1153, %v1241
    %v1243 = vpop.f32.mrb[0].mxu0
    %1244 = vdwg.mxu0
    %1245 = vmatprep.subr.mxu0 0.0
    %v1246 = vand.u32 %v763, 4294901760
    %v1247 = vsub.f32 %v763, %v1246
    %v1248 = vand.u32 %v1247, 4294901760
    %1249 = vmatpush1.xpose.msra.mxu0 %v1248
    %1250 = vmatprep.subr.mxu0 0.0
    %v1251 = vand.u32 %v766, 4294901760
    %v1252 = vsub.f32 %v766, %v1251
    %v1253 = vand.u32 %v1252, 4294901760
    %1254 = vmatpush1.xpose.msra.mxu0 %v1253
    %1255 = vmatprep.subr.mxu0 0.0
    %v1256 = vand.u32 %v769, 4294901760
    %v1257 = vsub.f32 %v769, %v1256
    %v1258 = vand.u32 %v1257, 4294901760
    %1259 = vmatpush1.xpose.msra.mxu0 %v1258
    %1260 = vmatprep.subr.mxu0 0.0
    %v1261 = vand.u32 %v772, 4294901760
    %v1262 = vsub.f32 %v772, %v1261
    %v1263 = vand.u32 %v1262, 4294901760
    %1264 = vmatpush1.xpose.msra.mxu0 %v1263
    %1265 = vmatprep.subr.mxu0 0.0
    %v1266 = vand.u32 %v775, 4294901760
    %v1267 = vsub.f32 %v775, %v1266
    %v1268 = vand.u32 %v1267, 4294901760
    %1269 = vmatpush1.xpose.msra.mxu0 %v1268
    %1270 = vmatprep.subr.mxu0 0.0
    %v1271 = vand.u32 %v778, 4294901760
    %v1272 = vsub.f32 %v778, %v1271
    %v1273 = vand.u32 %v1272, 4294901760
    %1274 = vmatpush1.xpose.msra.mxu0 %v1273
    %1275 = vmatprep.subr.mxu0 0.0
    %v1276 = vand.u32 %v781, 4294901760
    %v1277 = vsub.f32 %v781, %v1276
    %v1278 = vand.u32 %v1277, 4294901760
    %1279 = vmatpush1.xpose.msra.mxu0 %v1278
    %1280 = vmatprep.subr.mxu0 0.0
    %v1281 = vand.u32 %v784, 4294901760
    %v1282 = vsub.f32 %v784, %v1281
    %v1283 = vand.u32 %v1282, 4294901760
    %1284 = vmatpush1.xpose.msra.mxu0 %v1283
    %1285 = vmatprep.subr.mxu0 0.0
    %v1286 = vand.u32 %v787, 4294901760
    %v1287 = vsub.f32 %v787, %v1286
    %v1288 = vand.u32 %v1287, 4294901760
    %1289 = vmatpush1.xpose.msra.mxu0 %v1288
    %1290 = vmatprep.subr.mxu0 0.0
    %v1291 = vand.u32 %v790, 4294901760
    %v1292 = vsub.f32 %v790, %v1291
    %v1293 = vand.u32 %v1292, 4294901760
    %1294 = vmatpush1.xpose.msra.mxu0 %v1293
    %1295 = vmatprep.subr.mxu0 0.0
    %v1296 = vand.u32 %v793, 4294901760
    %v1297 = vsub.f32 %v793, %v1296
    %v1298 = vand.u32 %v1297, 4294901760
    %1299 = vmatpush1.xpose.msra.mxu0 %v1298
    %1300 = vmatprep.subr.mxu0 0.0
    %v1301 = vand.u32 %v796, 4294901760
    %v1302 = vsub.f32 %v796, %v1301
    %v1303 = vand.u32 %v1302, 4294901760
    %1304 = vmatpush1.xpose.msra.mxu0 %v1303
    %1305 = vmatprep.subr.mxu0 0.0
    %v1306 = vand.u32 %v799, 4294901760
    %v1307 = vsub.f32 %v799, %v1306
    %v1308 = vand.u32 %v1307, 4294901760
    %1309 = vmatpush1.xpose.msra.mxu0 %v1308
    %1310 = vmatprep.subr.mxu0 0.0
    %v1311 = vand.u32 %v802, 4294901760
    %v1312 = vsub.f32 %v802, %v1311
    %v1313 = vand.u32 %v1312, 4294901760
    %1314 = vmatpush1.xpose.msra.mxu0 %v1313
    %1315 = vmatprep.subr.mxu0 0.0
    %v1316 = vand.u32 %v805, 4294901760
    %v1317 = vsub.f32 %v805, %v1316
    %v1318 = vand.u32 %v1317, 4294901760
    %1319 = vmatpush1.xpose.msra.mxu0 %v1318
    %1320 = vmatprep.subr.mxu0 0.0
    %v1321 = vand.u32 %v808, 4294901760
    %v1322 = vsub.f32 %v808, %v1321
    %v1323 = vand.u32 %v1322, 4294901760
    %1324 = vmatpush1.xpose.msra.mxu0 %v1323
    %1325 = vmatprep.subr.mxu0 0.0
    %1326 = vmatpush1.xpose.msra.mxu0 0.0
    %1327 = vmatprep.subr.mxu0 0.0
    %1328 = vmatpush1.xpose.msra.mxu0 0.0
    %1329 = vmatprep.subr.mxu0 0.0
    %1330 = vmatpush1.xpose.msra.mxu0 0.0
    %1331 = vmatprep.subr.mxu0 0.0
    %1332 = vmatpush1.xpose.msra.mxu0 0.0
    %1333 = vmatprep.subr.mxu0 0.0
    %1334 = vmatpush1.xpose.msra.mxu0 0.0
    %1335 = vmatprep.subr.mxu0 0.0
    %1336 = vmatpush1.xpose.msra.mxu0 0.0
    %1337 = vmatprep.subr.mxu0 0.0
    %1338 = vmatpush1.xpose.msra.mxu0 0.0
    %1339 = vmatprep.subr.mxu0 0.0
    %1340 = vmatpush1.xpose.msra.mxu0 0.0
    %1341 = vmatprep.subr.mxu0 0.0
    %1342 = vmatpush1.xpose.msra.mxu0 0.0
    %1343 = vmatprep.subr.mxu0 0.0
    %1344 = vmatpush1.xpose.msra.mxu0 0.0
    %1345 = vmatprep.subr.mxu0 0.0
    %1346 = vmatpush1.xpose.msra.mxu0 0.0
    %1347 = vmatprep.subr.mxu0 0.0
    %1348 = vmatpush1.xpose.msra.mxu0 0.0
    %1349 = vmatprep.subr.mxu0 0.0
    %1350 = vmatpush1.xpose.msra.mxu0 0.0
    %1351 = vmatprep.subr.mxu0 0.0
    %1352 = vmatpush1.xpose.msra.mxu0 0.0
    %1353 = vmatprep.subr.mxu0 0.0
    %1354 = vmatpush1.xpose.msra.mxu0 0.0
    %1355 = vmatprep.subr.mxu0 0.0
    %1356 = vmatpush1.xpose.msra.mxu0 0.0
    %1357 = vmatprep.mubr.f32.mxu0 0.0
    %v1358 = vand.u32 %v760, 4294901760
    %1359 = vmatmul.mubr.f32.gmra.mrb[0].mxu0 %v1358
    %v1360 = vpop.f32.mrb[0].mxu0
    %v1361 = vadd.f32 %v1242, %v1360
    %v1362 = vpop.f32.mrb[0].mxu0
    %1363 = vdwg.mxu0
    %1364 = vmatprep.subr.mxu0 0.0
    %v1365 = vand.u32 %v763, 4294901760
    %1366 = vmatpush1.xpose.msra.mxu0 %v1365
    %1367 = vmatprep.subr.mxu0 0.0
    %v1368 = vand.u32 %v766, 4294901760
    %1369 = vmatpush1.xpose.msra.mxu0 %v1368
    %1370 = vmatprep.subr.mxu0 0.0
    %v1371 = vand.u32 %v769, 4294901760
    %1372 = vmatpush1.xpose.msra.mxu0 %v1371
    %1373 = vmatprep.subr.mxu0 0.0
    %v1374 = vand.u32 %v772, 4294901760
    %1375 = vmatpush1.xpose.msra.mxu0 %v1374
    %1376 = vmatprep.subr.mxu0 0.0
    %v1377 = vand.u32 %v775, 4294901760
    %1378 = vmatpush1.xpose.msra.mxu0 %v1377
    %1379 = vmatprep.subr.mxu0 0.0
    %v1380 = vand.u32 %v778, 4294901760
    %1381 = vmatpush1.xpose.msra.mxu0 %v1380
    %1382 = vmatprep.subr.mxu0 0.0
    %v1383 = vand.u32 %v781, 4294901760
    %1384 = vmatpush1.xpose.msra.mxu0 %v1383
    %1385 = vmatprep.subr.mxu0 0.0
    %v1386 = vand.u32 %v784, 4294901760
    %1387 = vmatpush1.xpose.msra.mxu0 %v1386
    %1388 = vmatprep.subr.mxu0 0.0
    %v1389 = vand.u32 %v787, 4294901760
    %1390 = vmatpush1.xpose.msra.mxu0 %v1389
    %1391 = vmatprep.subr.mxu0 0.0
    %v1392 = vand.u32 %v790, 4294901760
    %1393 = vmatpush1.xpose.msra.mxu0 %v1392
    %1394 = vmatprep.subr.mxu0 0.0
    %v1395 = vand.u32 %v793, 4294901760
    %1396 = vmatpush1.xpose.msra.mxu0 %v1395
    %1397 = vmatprep.subr.mxu0 0.0
    %v1398 = vand.u32 %v796, 4294901760
    %1399 = vmatpush1.xpose.msra.mxu0 %v1398
    %1400 = vmatprep.subr.mxu0 0.0
    %v1401 = vand.u32 %v799, 4294901760
    %1402 = vmatpush1.xpose.msra.mxu0 %v1401
    %1403 = vmatprep.subr.mxu0 0.0
    %v1404 = vand.u32 %v802, 4294901760
    %1405 = vmatpush1.xpose.msra.mxu0 %v1404
    %1406 = vmatprep.subr.mxu0 0.0
    %v1407 = vand.u32 %v805, 4294901760
    %1408 = vmatpush1.xpose.msra.mxu0 %v1407
    %1409 = vmatprep.subr.mxu0 0.0
    %v1410 = vand.u32 %v808, 4294901760
    %1411 = vmatpush1.xpose.msra.mxu0 %v1410
    %1412 = vmatprep.subr.mxu0 0.0
    %1413 = vmatpush1.xpose.msra.mxu0 0.0
    %1414 = vmatprep.subr.mxu0 0.0
    %1415 = vmatpush1.xpose.msra.mxu0 0.0
    %1416 = vmatprep.subr.mxu0 0.0
    %1417 = vmatpush1.xpose.msra.mxu0 0.0
    %1418 = vmatprep.subr.mxu0 0.0
    %1419 = vmatpush1.xpose.msra.mxu0 0.0
    %1420 = vmatprep.subr.mxu0 0.0
    %1421 = vmatpush1.xpose.msra.mxu0 0.0
    %1422 = vmatprep.subr.mxu0 0.0
    %1423 = vmatpush1.xpose.msra.mxu0 0.0
    %1424 = vmatprep.subr.mxu0 0.0
    %1425 = vmatpush1.xpose.msra.mxu0 0.0
    %1426 = vmatprep.subr.mxu0 0.0
    %1427 = vmatpush1.xpose.msra.mxu0 0.0
    %1428 = vmatprep.subr.mxu0 0.0
    %1429 = vmatpush1.xpose.msra.mxu0 0.0
    %1430 = vmatprep.subr.mxu0 0.0
    %1431 = vmatpush1.xpose.msra.mxu0 0.0
    %1432 = vmatprep.subr.mxu0 0.0
    %1433 = vmatpush1.xpose.msra.mxu0 0.0
    %1434 = vmatprep.subr.mxu0 0.0
    %1435 = vmatpush1.xpose.msra.mxu0 0.0
    %1436 = vmatprep.subr.mxu0 0.0
    %1437 = vmatpush1.xpose.msra.mxu0 0.0
    %1438 = vmatprep.subr.mxu0 0.0
    %1439 = vmatpush1.xpose.msra.mxu0 0.0
    %1440 = vmatprep.subr.mxu0 0.0
    %1441 = vmatpush1.xpose.msra.mxu0 0.0
    %1442 = vmatprep.subr.mxu0 0.0
    %1443 = vmatpush1.xpose.msra.mxu0 0.0
    %1444 = vmatprep.mubr.f32.mxu0 0.0
    %v1445 = vand.u32 %v760, 4294901760
    %1446 = vmatmul.mubr.f32.gmra.mrb[0].mxu0 %v1445
    %v1447 = vpop.f32.mrb[0].mxu0
    %v1448 = vadd.f32 %v1361, %v1447
    %v1449 = vpop.f32.mrb[0].mxu0
    %1450 = vdwg.mxu0
    %1452 = vset.pattern.permute.xlu0 0
    %1453 = vperm.xlu0 %1452, %v30
    %v1454 = vpop.permute.xlu0 %1453
    %v1456 = vadd.f32 %v1448, %v1454
    %v1457 = vmax.f32 %v1456, 0.0
    %1459 = vset.pattern.permute.xlu0 0
    %1460 = vperm.xlu0 %1459, %v31
    %v1461 = vpop.permute.xlu0 %1460
    %v1463 = vmul.f32 %v1457, %v1461
    %vm1464 = vcmask 1045504
    %v1465 = vsel %vm1464, %v1463, 0.0
    %v1466 = vrot.slane %v1465, 4
    %v1467 = vadd.f32 %v1465, %v1466
    %v1468 = vrot.slane %v1467, 2
    %v1469 = vadd.f32 %v1467, %v1468
    %v1470 = vrot.slane %v1469, 1
    %v1471 = vadd.f32 %v1469, %v1470
    %v1472 = vstv %s32
    %v1473 = vadd.f32 %v1471, %v1472
    %v1474 = vxor.u32 %v1473, 2147483648
    %v1475 = vmul.f32 %v1474, 1.442695
    %v1476 = vpow.pop %v1475
    %v1477 = vadd.f32 %v1476, 1.0
    %v1478 = vrcp.pop %v1477
    %v1479 = vmul.f32 1.0, %v1478
    %1480 = vst [vmem:[#allocation3] sm:$0x1] %v1479
    %v1481 = vld [vmem:[%s0 + $0x80] sm:$0xff]
    %v1482 = vld [vmem:[%s0 + $0x88] sm:$0xff]
    %v1483 = vld [vmem:[%s0 + $0x90] sm:$0xff]
    %v1484 = vld [vmem:[%s0 + $0x98] sm:$0xff]
    %v1485 = vld [vmem:[%s0 + $0xa0] sm:$0xff]
    %v1486 = vld [vmem:[%s0 + $0xa8] sm:$0xff]
    %v1487 = vld [vmem:[%s0 + $0xb0] sm:$0xff]
    %v1488 = vld [vmem:[%s0 + $0xb8] sm:$0xff]
    %v1489 = vld [vmem:[%s0 + $0xc0] sm:$0xff]
    %v1490 = vld [vmem:[%s0 + $0xc8] sm:$0xff]
    %v1491 = vld [vmem:[%s0 + $0xd0] sm:$0xff]
    %v1492 = vld [vmem:[%s0 + $0xd8] sm:$0xff]
    %v1493 = vld [vmem:[%s0 + $0xe0] sm:$0xff]
    %v1494 = vld [vmem:[%s0 + $0xe8] sm:$0xff]
    %v1495 = vld [vmem:[%s0 + $0xf0] sm:$0xff]
    %v1496 = vld [vmem:[%s0 + $0xf8] sm:$0xff]
    %v1497 = vld [vmem:[%s1 + $0x80] sm:$0xff]
    %v1498 = vld [vmem:[%s1 + $0x88] sm:$0xff]
    %v1499 = vld [vmem:[%s1 + $0x90] sm:$0xff]
    %v1500 = vld [vmem:[%s1 + $0x98] sm:$0xff]
    %v1501 = vld [vmem:[%s1 + $0xa0] sm:$0xff]
    %v1502 = vld [vmem:[%s1 + $0xa8] sm:$0xff]
    %v1503 = vld [vmem:[%s1 + $0xb0] sm:$0xff]
    %v1504 = vld [vmem:[%s1 + $0xb8] sm:$0xff]
    %v1505 = vld [vmem:[%s1 + $0xc0] sm:$0xff]
    %v1506 = vld [vmem:[%s1 + $0xc8] sm:$0xff]
    %v1507 = vld [vmem:[%s1 + $0xd0] sm:$0xff]
    %v1508 = vld [vmem:[%s1 + $0xd8] sm:$0xff]
    %v1509 = vld [vmem:[%s1 + $0xe0] sm:$0xff]
    %v1510 = vld [vmem:[%s1 + $0xe8] sm:$0xff]
    %v1511 = vld [vmem:[%s1 + $0xf0] sm:$0xff]
    %v1512 = vld [vmem:[%s1 + $0xf8] sm:$0xff]
    %v1514 = vsel %vm65, %v1497, 0
    %v1517 = vsel %vm65, %v1498, 0
    %v1520 = vsel %vm65, %v1499, 0
    %v1523 = vsel %vm65, %v1500, 0
    %v1526 = vsel %vm65, %v1501, 0
    %v1529 = vsel %vm65, %v1502, 0
    %v1532 = vsel %vm65, %v1503, 0
    %v1535 = vsel %vm65, %v1504, 0
    %v1538 = vsel %vm65, %v1505, 0
    %v1541 = vsel %vm65, %v1506, 0
    %v1544 = vsel %vm65, %v1507, 0
    %v1547 = vsel %vm65, %v1508, 0
    %v1550 = vsel %vm65, %v1509, 0
    %v1553 = vsel %vm65, %v1510, 0
    %v1556 = vsel %vm65, %v1511, 0
    %v1559 = vsel %vm65, %v1512, 0
    %1561 = vmatprep.subr.mxu0 0.0
    %v1562 = vand.u32 %v1514, 4294901760
    %1563 = vmatpush1.xpose.msra.mxu0 %v1562
    %1564 = vmatprep.subr.mxu0 0.0
    %v1565 = vand.u32 %v1517, 4294901760
    %1566 = vmatpush1.xpose.msra.mxu0 %v1565
    %1567 = vmatprep.subr.mxu0 0.0
    %v1568 = vand.u32 %v1520, 4294901760
    %1569 = vmatpush1.xpose.msra.mxu0 %v1568
    %1570 = vmatprep.subr.mxu0 0.0
    %v1571 = vand.u32 %v1523, 4294901760
    %1572 = vmatpush1.xpose.msra.mxu0 %v1571
    %1573 = vmatprep.subr.mxu0 0.0
    %v1574 = vand.u32 %v1526, 4294901760
    %1575 = vmatpush1.xpose.msra.mxu0 %v1574
    %1576 = vmatprep.subr.mxu0 0.0
    %v1577 = vand.u32 %v1529, 4294901760
    %1578 = vmatpush1.xpose.msra.mxu0 %v1577
    %1579 = vmatprep.subr.mxu0 0.0
    %v1580 = vand.u32 %v1532, 4294901760
    %1581 = vmatpush1.xpose.msra.mxu0 %v1580
    %1582 = vmatprep.subr.mxu0 0.0
    %v1583 = vand.u32 %v1535, 4294901760
    %1584 = vmatpush1.xpose.msra.mxu0 %v1583
    %1585 = vmatprep.subr.mxu0 0.0
    %v1586 = vand.u32 %v1538, 4294901760
    %1587 = vmatpush1.xpose.msra.mxu0 %v1586
    %1588 = vmatprep.subr.mxu0 0.0
    %v1589 = vand.u32 %v1541, 4294901760
    %1590 = vmatpush1.xpose.msra.mxu0 %v1589
    %1591 = vmatprep.subr.mxu0 0.0
    %v1592 = vand.u32 %v1544, 4294901760
    %1593 = vmatpush1.xpose.msra.mxu0 %v1592
    %1594 = vmatprep.subr.mxu0 0.0
    %v1595 = vand.u32 %v1547, 4294901760
    %1596 = vmatpush1.xpose.msra.mxu0 %v1595
    %1597 = vmatprep.subr.mxu0 0.0
    %v1598 = vand.u32 %v1550, 4294901760
    %1599 = vmatpush1.xpose.msra.mxu0 %v1598
    %1600 = vmatprep.subr.mxu0 0.0
    %v1601 = vand.u32 %v1553, 4294901760
    %1602 = vmatpush1.xpose.msra.mxu0 %v1601
    %1603 = vmatprep.subr.mxu0 0.0
    %v1604 = vand.u32 %v1556, 4294901760
    %1605 = vmatpush1.xpose.msra.mxu0 %v1604
    %1606 = vmatprep.subr.mxu0 0.0
    %v1607 = vand.u32 %v1559, 4294901760
    %1608 = vmatpush1.xpose.msra.mxu0 %v1607
    %1609 = vmatprep.subr.mxu0 0.0
    %1610 = vmatpush1.xpose.msra.mxu0 0.0
    %1611 = vmatprep.subr.mxu0 0.0
    %1612 = vmatpush1.xpose.msra.mxu0 0.0
    %1613 = vmatprep.subr.mxu0 0.0
    %1614 = vmatpush1.xpose.msra.mxu0 0.0
    %1615 = vmatprep.subr.mxu0 0.0
    %1616 = vmatpush1.xpose.msra.mxu0 0.0
    %1617 = vmatprep.subr.mxu0 0.0
    %1618 = vmatpush1.xpose.msra.mxu0 0.0
    %1619 = vmatprep.subr.mxu0 0.0
    %1620 = vmatpush1.xpose.msra.mxu0 0.0
    %1621 = vmatprep.subr.mxu0 0.0
    %1622 = vmatpush1.xpose.msra.mxu0 0.0
    %1623 = vmatprep.subr.mxu0 0.0
    %1624 = vmatpush1.xpose.msra.mxu0 0.0
    %1625 = vmatprep.subr.mxu0 0.0
    %1626 = vmatpush1.xpose.msra.mxu0 0.0
    %1627 = vmatprep.subr.mxu0 0.0
    %1628 = vmatpush1.xpose.msra.mxu0 0.0
    %1629 = vmatprep.subr.mxu0 0.0
    %1630 = vmatpush1.xpose.msra.mxu0 0.0
    %1631 = vmatprep.subr.mxu0 0.0
    %1632 = vmatpush1.xpose.msra.mxu0 0.0
    %1633 = vmatprep.subr.mxu0 0.0
    %1634 = vmatpush1.xpose.msra.mxu0 0.0
    %1635 = vmatprep.subr.mxu0 0.0
    %1636 = vmatpush1.xpose.msra.mxu0 0.0
    %1637 = vmatprep.subr.mxu0 0.0
    %1638 = vmatpush1.xpose.msra.mxu0 0.0
    %1639 = vmatprep.subr.mxu0 0.0
    %1640 = vmatpush1.xpose.msra.mxu0 0.0
    %1641 = vmatprep.mubr.f32.mxu0 0.0
    %v1642 = vand.u32 %v67, 4294901760
    %v1643 = vsub.f32 %v67, %v1642
    %v1644 = vand.u32 %v1643, 4294901760
    %v1645 = vsub.f32 %v1643, %v1644
    %v1646 = vand.u32 %v1645, 4294901760
    %1647 = vmatmul.mubr.f32.gmra.mrb[0].mxu0 %v1646
    %v1648 = vpop.f32.mrb[0].mxu0
    %v1649 = vadd.f32 0.0, %v1648
    %v1650 = vpop.f32.mrb[0].mxu0
    %1651 = vdwg.mxu0
    %1652 = vmatprep.subr.mxu0 0.0
    %v1653 = vand.u32 %v1514, 4294901760
    %v1654 = vsub.f32 %v1514, %v1653
    %v1655 = vand.u32 %v1654, 4294901760
    %v1656 = vsub.f32 %v1654, %v1655
    %v1657 = vand.u32 %v1656, 4294901760
    %1658 = vmatpush1.xpose.msra.mxu0 %v1657
    %1659 = vmatprep.subr.mxu0 0.0
    %v1660 = vand.u32 %v1517, 4294901760
    %v1661 = vsub.f32 %v1517, %v1660
    %v1662 = vand.u32 %v1661, 4294901760
    %v1663 = vsub.f32 %v1661, %v1662
    %v1664 = vand.u32 %v1663, 4294901760
    %1665 = vmatpush1.xpose.msra.mxu0 %v1664
    %1666 = vmatprep.subr.mxu0 0.0
    %v1667 = vand.u32 %v1520, 4294901760
    %v1668 = vsub.f32 %v1520, %v1667
    %v1669 = vand.u32 %v1668, 4294901760
    %v1670 = vsub.f32 %v1668, %v1669
    %v1671 = vand.u32 %v1670, 4294901760
    %1672 = vmatpush1.xpose.msra.mxu0 %v1671
    %1673 = vmatprep.subr.mxu0 0.0
    %v1674 = vand.u32 %v1523, 4294901760
    %v1675 = vsub.f32 %v1523, %v1674
    %v1676 = vand.u32 %v1675, 4294901760
    %v1677 = vsub.f32 %v1675, %v1676
    %v1678 = vand.u32 %v1677, 4294901760
    %1679 = vmatpush1.xpose.msra.mxu0 %v1678
    %1680 = vmatprep.subr.mxu0 0.0
    %v1681 = vand.u32 %v1526, 4294901760
    %v1682 = vsub.f32 %v1526, %v1681
    %v1683 = vand.u32 %v1682, 4294901760
    %v1684 = vsub.f32 %v1682, %v1683
    %v1685 = vand.u32 %v1684, 4294901760
    %1686 = vmatpush1.xpose.msra.mxu0 %v1685
    %1687 = vmatprep.subr.mxu0 0.0
    %v1688 = vand.u32 %v1529, 4294901760
    %v1689 = vsub.f32 %v1529, %v1688
    %v1690 = vand.u32 %v1689, 4294901760
    %v1691 = vsub.f32 %v1689, %v1690
    %v1692 = vand.u32 %v1691, 4294901760
    %1693 = vmatpush1.xpose.msra.mxu0 %v1692
    %1694 = vmatprep.subr.mxu0 0.0
    %v1695 = vand.u32 %v1532, 4294901760
    %v1696 = vsub.f32 %v1532, %v1695
    %v1697 = vand.u32 %v1696, 4294901760
    %v1698 = vsub.f32 %v1696, %v1697
    %v1699 = vand.u32 %v1698, 4294901760
    %1700 = vmatpush1.xpose.msra.mxu0 %v1699
    %1701 = vmatprep.subr.mxu0 0.0
    %v1702 = vand.u32 %v1535, 4294901760
    %v1703 = vsub.f32 %v1535, %v1702
    %v1704 = vand.u32 %v1703, 4294901760
    %v1705 = vsub.f32 %v1703, %v1704
    %v1706 = vand.u32 %v1705, 4294901760
    %1707 = vmatpush1.xpose.msra.mxu0 %v1706
    %1708 = vmatprep.subr.mxu0 0.0
    %v1709 = vand.u32 %v1538, 4294901760
    %v1710 = vsub.f32 %v1538, %v1709
    %v1711 = vand.u32 %v1710, 4294901760
    %v1712 = vsub.f32 %v1710, %v1711
    %v1713 = vand.u32 %v1712, 4294901760
    %1714 = vmatpush1.xpose.msra.mxu0 %v1713
    %1715 = vmatprep.subr.mxu0 0.0
    %v1716 = vand.u32 %v1541, 4294901760
    %v1717 = vsub.f32 %v1541, %v1716
    %v1718 = vand.u32 %v1717, 4294901760
    %v1719 = vsub.f32 %v1717, %v1718
    %v1720 = vand.u32 %v1719, 4294901760
    %1721 = vmatpush1.xpose.msra.mxu0 %v1720
    %1722 = vmatprep.subr.mxu0 0.0
    %v1723 = vand.u32 %v1544, 4294901760
    %v1724 = vsub.f32 %v1544, %v1723
    %v1725 = vand.u32 %v1724, 4294901760
    %v1726 = vsub.f32 %v1724, %v1725
    %v1727 = vand.u32 %v1726, 4294901760
    %1728 = vmatpush1.xpose.msra.mxu0 %v1727
    %1729 = vmatprep.subr.mxu0 0.0
    %v1730 = vand.u32 %v1547, 4294901760
    %v1731 = vsub.f32 %v1547, %v1730
    %v1732 = vand.u32 %v1731, 4294901760
    %v1733 = vsub.f32 %v1731, %v1732
    %v1734 = vand.u32 %v1733, 4294901760
    %1735 = vmatpush1.xpose.msra.mxu0 %v1734
    %1736 = vmatprep.subr.mxu0 0.0
    %v1737 = vand.u32 %v1550, 4294901760
    %v1738 = vsub.f32 %v1550, %v1737
    %v1739 = vand.u32 %v1738, 4294901760
    %v1740 = vsub.f32 %v1738, %v1739
    %v1741 = vand.u32 %v1740, 4294901760
    %1742 = vmatpush1.xpose.msra.mxu0 %v1741
    %1743 = vmatprep.subr.mxu0 0.0
    %v1744 = vand.u32 %v1553, 4294901760
    %v1745 = vsub.f32 %v1553, %v1744
    %v1746 = vand.u32 %v1745, 4294901760
    %v1747 = vsub.f32 %v1745, %v1746
    %v1748 = vand.u32 %v1747, 4294901760
    %1749 = vmatpush1.xpose.msra.mxu0 %v1748
    %1750 = vmatprep.subr.mxu0 0.0
    %v1751 = vand.u32 %v1556, 4294901760
    %v1752 = vsub.f32 %v1556, %v1751
    %v1753 = vand.u32 %v1752, 4294901760
    %v1754 = vsub.f32 %v1752, %v1753
    %v1755 = vand.u32 %v1754, 4294901760
    %1756 = vmatpush1.xpose.msra.mxu0 %v1755
    %1757 = vmatprep.subr.mxu0 0.0
    %v1758 = vand.u32 %v1559, 4294901760
    %v1759 = vsub.f32 %v1559, %v1758
    %v1760 = vand.u32 %v1759, 4294901760
    %v1761 = vsub.f32 %v1759, %v1760
    %v1762 = vand.u32 %v1761, 4294901760
    %1763 = vmatpush1.xpose.msra.mxu0 %v1762
    %1764 = vmatprep.subr.mxu0 0.0
    %1765 = vmatpush1.xpose.msra.mxu0 0.0
    %1766 = vmatprep.subr.mxu0 0.0
    %1767 = vmatpush1.xpose.msra.mxu0 0.0
    %1768 = vmatprep.subr.mxu0 0.0
    %1769 = vmatpush1.xpose.msra.mxu0 0.0
    %1770 = vmatprep.subr.mxu0 0.0
    %1771 = vmatpush1.xpose.msra.mxu0 0.0
    %1772 = vmatprep.subr.mxu0 0.0
    %1773 = vmatpush1.xpose.msra.mxu0 0.0
    %1774 = vmatprep.subr.mxu0 0.0
    %1775 = vmatpush1.xpose.msra.mxu0 0.0
    %1776 = vmatprep.subr.mxu0 0.0
    %1777 = vmatpush1.xpose.msra.mxu0 0.0
    %1778 = vmatprep.subr.mxu0 0.0
    %1779 = vmatpush1.xpose.msra.mxu0 0.0
    %1780 = vmatprep.subr.mxu0 0.0
    %1781 = vmatpush1.xpose.msra.mxu0 0.0
    %1782 = vmatprep.subr.mxu0 0.0
    %1783 = vmatpush1.xpose.msra.mxu0 0.0
    %1784 = vmatprep.subr.mxu0 0.0
    %1785 = vmatpush1.xpose.msra.mxu0 0.0
    %1786 = vmatprep.subr.mxu0 0.0
    %1787 = vmatpush1.xpose.msra.mxu0 0.0
    %1788 = vmatprep.subr.mxu0 0.0
    %1789 = vmatpush1.xpose.msra.mxu0 0.0
    %1790 = vmatprep.subr.mxu0 0.0
    %1791 = vmatpush1.xpose.msra.mxu0 0.0
    %1792 = vmatprep.subr.mxu0 0.0
    %1793 = vmatpush1.xpose.msra.mxu0 0.0
    %1794 = vmatprep.subr.mxu0 0.0
    %1795 = vmatpush1.xpose.msra.mxu0 0.0
    %1796 = vmatprep.mubr.f32.mxu0 0.0
    %v1797 = vand.u32 %v67, 4294901760
    %1798 = vmatmul.mubr.f32.gmra.mrb[0].mxu0 %v1797
    %v1799 = vpop.f32.mrb[0].mxu0
    %v1800 = vadd.f32 %v1649, %v1799
    %v1801 = vpop.f32.mrb[0].mxu0
    %1802 = vdwg.mxu0
    %1803 = vmatprep.subr.mxu0 0.0
    %v1804 = vand.u32 %v1514, 4294901760
    %v1805 = vsub.f32 %v1514, %v1804
    %1806 = vmatpush1.xpose.msra.mxu0 %v1805
    %1807 = vmatprep.subr.mxu0 0.0
    %v1808 = vand.u32 %v1517, 4294901760
    %v1809 = vsub.f32 %v1517, %v1808
    %1810 = vmatpush1.xpose.msra.mxu0 %v1809
    %1811 = vmatprep.subr.mxu0 0.0
    %v1812 = vand.u32 %v1520, 4294901760
    %v1813 = vsub.f32 %v1520, %v1812
    %1814 = vmatpush1.xpose.msra.mxu0 %v1813
    %1815 = vmatprep.subr.mxu0 0.0
    %v1816 = vand.u32 %v1523, 4294901760
    %v1817 = vsub.f32 %v1523, %v1816
    %1818 = vmatpush1.xpose.msra.mxu0 %v1817
    %1819 = vmatprep.subr.mxu0 0.0
    %v1820 = vand.u32 %v1526, 4294901760
    %v1821 = vsub.f32 %v1526, %v1820
    %1822 = vmatpush1.xpose.msra.mxu0 %v1821
    %1823 = vmatprep.subr.mxu0 0.0
    %v1824 = vand.u32 %v1529, 4294901760
    %v1825 = vsub.f32 %v1529, %v1824
    %1826 = vmatpush1.xpose.msra.mxu0 %v1825
    %1827 = vmatprep.subr.mxu0 0.0
    %v1828 = vand.u32 %v1532, 4294901760
    %v1829 = vsub.f32 %v1532, %v1828
    %1830 = vmatpush1.xpose.msra.mxu0 %v1829
    %1831 = vmatprep.subr.mxu0 0.0
    %v1832 = vand.u32 %v1535, 4294901760
    %v1833 = vsub.f32 %v1535, %v1832
    %1834 = vmatpush1.xpose.msra.mxu0 %v1833
    %1835 = vmatprep.subr.mxu0 0.0
    %v1836 = vand.u32 %v1538, 4294901760
    %v1837 = vsub.f32 %v1538, %v1836
    %1838 = vmatpush1.xpose.msra.mxu0 %v1837
    %1839 = vmatprep.subr.mxu0 0.0
    %v1840 = vand.u32 %v1541, 4294901760
    %v1841 = vsub.f32 %v1541, %v1840
    %1842 = vmatpush1.xpose.msra.mxu0 %v1841
    %1843 = vmatprep.subr.mxu0 0.0
    %v1844 = vand.u32 %v1544, 4294901760
    %v1845 = vsub.f32 %v1544, %v1844
    %1846 = vmatpush1.xpose.msra.mxu0 %v1845
    %1847 = vmatprep.subr.mxu0 0.0
    %v1848 = vand.u32 %v1547, 4294901760
    %v1849 = vsub.f32 %v1547, %v1848
    %1850 = vmatpush1.xpose.msra.mxu0 %v1849
    %1851 = vmatprep.subr.mxu0 0.0
    %v1852 = vand.u32 %v1550, 4294901760
    %v1853 = vsub.f32 %v1550, %v1852
    %1854 = vmatpush1.xpose.msra.mxu0 %v1853
    %1855 = vmatprep.subr.mxu0 0.0
    %v1856 = vand.u32 %v1553, 4294901760
    %v1857 = vsub.f32 %v1553, %v1856
    %1858 = vmatpush1.xpose.msra.mxu0 %v1857
    %1859 = vmatprep.subr.mxu0 0.0
    %v1860 = vand.u32 %v1556, 4294901760
    %v1861 = vsub.f32 %v1556, %v1860
    %1862 = vmatpush1.xpose.msra.mxu0 %v1861
    %1863 = vmatprep.subr.mxu0 0.0
    %v1864 = vand.u32 %v1559, 4294901760
    %v1865 = vsub.f32 %v1559, %v1864
    %1866 = vmatpush1.xpose.msra.mxu0 %v1865
    %1867 = vmatprep.subr.mxu0 0.0
    %1868 = vmatpush1.xpose.msra.mxu0 0.0
    %1869 = vmatprep.subr.mxu0 0.0
    %1870 = vmatpush1.xpose.msra.mxu0 0.0
    %1871 = vmatprep.subr.mxu0 0.0
    %1872 = vmatpush1.xpose.msra.mxu0 0.0
    %1873 = vmatprep.subr.mxu0 0.0
    %1874 = vmatpush1.xpose.msra.mxu0 0.0
    %1875 = vmatprep.subr.mxu0 0.0
    %1876 = vmatpush1.xpose.msra.mxu0 0.0
    %1877 = vmatprep.subr.mxu0 0.0
    %1878 = vmatpush1.xpose.msra.mxu0 0.0
    %1879 = vmatprep.subr.mxu0 0.0
    %1880 = vmatpush1.xpose.msra.mxu0 0.0
    %1881 = vmatprep.subr.mxu0 0.0
    %1882 = vmatpush1.xpose.msra.mxu0 0.0
    %1883 = vmatprep.subr.mxu0 0.0
    %1884 = vmatpush1.xpose.msra.mxu0 0.0
    %1885 = vmatprep.subr.mxu0 0.0
    %1886 = vmatpush1.xpose.msra.mxu0 0.0
    %1887 = vmatprep.subr.mxu0 0.0
    %1888 = vmatpush1.xpose.msra.mxu0 0.0
    %1889 = vmatprep.subr.mxu0 0.0
    %1890 = vmatpush1.xpose.msra.mxu0 0.0
    %1891 = vmatprep.subr.mxu0 0.0
    %1892 = vmatpush1.xpose.msra.mxu0 0.0
    %1893 = vmatprep.subr.mxu0 0.0
    %1894 = vmatpush1.xpose.msra.mxu0 0.0
    %1895 = vmatprep.subr.mxu0 0.0
    %1896 = vmatpush1.xpose.msra.mxu0 0.0
    %1897 = vmatprep.subr.mxu0 0.0
    %1898 = vmatpush1.xpose.msra.mxu0 0.0
    %1899 = vmatprep.mubr.f32.mxu0 0.0
    %v1900 = vand.u32 %v67, 4294901760
    %v1901 = vsub.f32 %v67, %v1900
    %1902 = vmatmul.mubr.f32.gmra.mrb[0].mxu0 %v1901
    %v1903 = vpop.f32.mrb[0].mxu0
    %v1904 = vadd.f32 %v1800, %v1903
    %v1905 = vpop.f32.mrb[0].mxu0
    %1906 = vdwg.mxu0
    %1907 = vmatprep.subr.mxu0 0.0
    %v1908 = vand.u32 %v1514, 4294901760
    %1909 = vmatpush1.xpose.msra.mxu0 %v1908
    %1910 = vmatprep.subr.mxu0 0.0
    %v1911 = vand.u32 %v1517, 4294901760
    %1912 = vmatpush1.xpose.msra.mxu0 %v1911
    %1913 = vmatprep.subr.mxu0 0.0
    %v1914 = vand.u32 %v1520, 4294901760
    %1915 = vmatpush1.xpose.msra.mxu0 %v1914
    %1916 = vmatprep.subr.mxu0 0.0
    %v1917 = vand.u32 %v1523, 4294901760
    %1918 = vmatpush1.xpose.msra.mxu0 %v1917
    %1919 = vmatprep.subr.mxu0 0.0
    %v1920 = vand.u32 %v1526, 4294901760
    %1921 = vmatpush1.xpose.msra.mxu0 %v1920
    %1922 = vmatprep.subr.mxu0 0.0
    %v1923 = vand.u32 %v1529, 4294901760
    %1924 = vmatpush1.xpose.msra.mxu0 %v1923
    %1925 = vmatprep.subr.mxu0 0.0
    %v1926 = vand.u32 %v1532, 4294901760
    %1927 = vmatpush1.xpose.msra.mxu0 %v1926
    %1928 = vmatprep.subr.mxu0 0.0
    %v1929 = vand.u32 %v1535, 4294901760
    %1930 = vmatpush1.xpose.msra.mxu0 %v1929
    %1931 = vmatprep.subr.mxu0 0.0
    %v1932 = vand.u32 %v1538, 4294901760
    %1933 = vmatpush1.xpose.msra.mxu0 %v1932
    %1934 = vmatprep.subr.mxu0 0.0
    %v1935 = vand.u32 %v1541, 4294901760
    %1936 = vmatpush1.xpose.msra.mxu0 %v1935
    %1937 = vmatprep.subr.mxu0 0.0
    %v1938 = vand.u32 %v1544, 4294901760
    %1939 = vmatpush1.xpose.msra.mxu0 %v1938
    %1940 = vmatprep.subr.mxu0 0.0
    %v1941 = vand.u32 %v1547, 4294901760
    %1942 = vmatpush1.xpose.msra.mxu0 %v1941
    %1943 = vmatprep.subr.mxu0 0.0
    %v1944 = vand.u32 %v1550, 4294901760
    %1945 = vmatpush1.xpose.msra.mxu0 %v1944
    %1946 = vmatprep.subr.mxu0 0.0
    %v1947 = vand.u32 %v1553, 4294901760
    %1948 = vmatpush1.xpose.msra.mxu0 %v1947
    %1949 = vmatprep.subr.mxu0 0.0
    %v1950 = vand.u32 %v1556, 4294901760
    %1951 = vmatpush1.xpose.msra.mxu0 %v1950
    %1952 = vmatprep.subr.mxu0 0.0
    %v1953 = vand.u32 %v1559, 4294901760
    %1954 = vmatpush1.xpose.msra.mxu0 %v1953
    %1955 = vmatprep.subr.mxu0 0.0
    %1956 = vmatpush1.xpose.msra.mxu0 0.0
    %1957 = vmatprep.subr.mxu0 0.0
    %1958 = vmatpush1.xpose.msra.mxu0 0.0
    %1959 = vmatprep.subr.mxu0 0.0
    %1960 = vmatpush1.xpose.msra.mxu0 0.0
    %1961 = vmatprep.subr.mxu0 0.0
    %1962 = vmatpush1.xpose.msra.mxu0 0.0
    %1963 = vmatprep.subr.mxu0 0.0
    %1964 = vmatpush1.xpose.msra.mxu0 0.0
    %1965 = vmatprep.subr.mxu0 0.0
    %1966 = vmatpush1.xpose.msra.mxu0 0.0
    %1967 = vmatprep.subr.mxu0 0.0
    %1968 = vmatpush1.xpose.msra.mxu0 0.0
    %1969 = vmatprep.subr.mxu0 0.0
    %1970 = vmatpush1.xpose.msra.mxu0 0.0
    %1971 = vmatprep.subr.mxu0 0.0
    %1972 = vmatpush1.xpose.msra.mxu0 0.0
    %1973 = vmatprep.subr.mxu0 0.0
    %1974 = vmatpush1.xpose.msra.mxu0 0.0
    %1975 = vmatprep.subr.mxu0 0.0
    %1976 = vmatpush1.xpose.msra.mxu0 0.0
    %1977 = vmatprep.subr.mxu0 0.0
    %1978 = vmatpush1.xpose.msra.mxu0 0.0
    %1979 = vmatprep.subr.mxu0 0.0
    %1980 = vmatpush1.xpose.msra.mxu0 0.0
    %1981 = vmatprep.subr.mxu0 0.0
    %1982 = vmatpush1.xpose.msra.mxu0 0.0
    %1983 = vmatprep.subr.mxu0 0.0
    %1984 = vmatpush1.xpose.msra.mxu0 0.0
    %1985 = vmatprep.subr.mxu0 0.0
    %1986 = vmatpush1.xpose.msra.mxu0 0.0
    %1987 = vmatprep.mubr.f32.mxu0 0.0
    %v1988 = vand.u32 %v67, 4294901760
    %v1989 = vsub.f32 %v67, %v1988
    %v1990 = vand.u32 %v1989, 4294901760
    %1991 = vmatmul.mubr.f32.gmra.mrb[0].mxu0 %v1990
    %v1992 = vpop.f32.mrb[0].mxu0
    %v1993 = vadd.f32 %v1904, %v1992
    %v1994 = vpop.f32.mrb[0].mxu0
    %1995 = vdwg.mxu0
    %1996 = vmatprep.subr.mxu0 0.0
    %v1997 = vand.u32 %v1514, 4294901760
    %v1998 = vsub.f32 %v1514, %v1997
    %v1999 = vand.u32 %v1998, 4294901760
    %2000 = vmatpush1.xpose.msra.mxu0 %v1999
    %2001 = vmatprep.subr.mxu0 0.0
    %v2002 = vand.u32 %v1517, 4294901760
    %v2003 = vsub.f32 %v1517, %v2002
    %v2004 = vand.u32 %v2003, 4294901760
    %2005 = vmatpush1.xpose.msra.mxu0 %v2004
    %2006 = vmatprep.subr.mxu0 0.0
    %v2007 = vand.u32 %v1520, 4294901760
    %v2008 = vsub.f32 %v1520, %v2007
    %v2009 = vand.u32 %v2008, 4294901760
    %2010 = vmatpush1.xpose.msra.mxu0 %v2009
    %2011 = vmatprep.subr.mxu0 0.0
    %v2012 = vand.u32 %v1523, 4294901760
    %v2013 = vsub.f32 %v1523, %v2012
    %v2014 = vand.u32 %v2013, 4294901760
    %2015 = vmatpush1.xpose.msra.mxu0 %v2014
    %2016 = vmatprep.subr.mxu0 0.0
    %v2017 = vand.u32 %v1526, 4294901760
    %v2018 = vsub.f32 %v1526, %v2017
    %v2019 = vand.u32 %v2018, 4294901760
    %2020 = vmatpush1.xpose.msra.mxu0 %v2019
    %2021 = vmatprep.subr.mxu0 0.0
    %v2022 = vand.u32 %v1529, 4294901760
    %v2023 = vsub.f32 %v1529, %v2022
    %v2024 = vand.u32 %v2023, 4294901760
    %2025 = vmatpush1.xpose.msra.mxu0 %v2024
    %2026 = vmatprep.subr.mxu0 0.0
    %v2027 = vand.u32 %v1532, 4294901760
    %v2028 = vsub.f32 %v1532, %v2027
    %v2029 = vand.u32 %v2028, 4294901760
    %2030 = vmatpush1.xpose.msra.mxu0 %v2029
    %2031 = vmatprep.subr.mxu0 0.0
    %v2032 = vand.u32 %v1535, 4294901760
    %v2033 = vsub.f32 %v1535, %v2032
    %v2034 = vand.u32 %v2033, 4294901760
    %2035 = vmatpush1.xpose.msra.mxu0 %v2034
    %2036 = vmatprep.subr.mxu0 0.0
    %v2037 = vand.u32 %v1538, 4294901760
    %v2038 = vsub.f32 %v1538, %v2037
    %v2039 = vand.u32 %v2038, 4294901760
    %2040 = vmatpush1.xpose.msra.mxu0 %v2039
    %2041 = vmatprep.subr.mxu0 0.0
    %v2042 = vand.u32 %v1541, 4294901760
    %v2043 = vsub.f32 %v1541, %v2042
    %v2044 = vand.u32 %v2043, 4294901760
    %2045 = vmatpush1.xpose.msra.mxu0 %v2044
    %2046 = vmatprep.subr.mxu0 0.0
    %v2047 = vand.u32 %v1544, 4294901760
    %v2048 = vsub.f32 %v1544, %v2047
    %v2049 = vand.u32 %v2048, 4294901760
    %2050 = vmatpush1.xpose.msra.mxu0 %v2049
    %2051 = vmatprep.subr.mxu0 0.0
    %v2052 = vand.u32 %v1547, 4294901760
    %v2053 = vsub.f32 %v1547, %v2052
    %v2054 = vand.u32 %v2053, 4294901760
    %2055 = vmatpush1.xpose.msra.mxu0 %v2054
    %2056 = vmatprep.subr.mxu0 0.0
    %v2057 = vand.u32 %v1550, 4294901760
    %v2058 = vsub.f32 %v1550, %v2057
    %v2059 = vand.u32 %v2058, 4294901760
    %2060 = vmatpush1.xpose.msra.mxu0 %v2059
    %2061 = vmatprep.subr.mxu0 0.0
    %v2062 = vand.u32 %v1553, 4294901760
    %v2063 = vsub.f32 %v1553, %v2062
    %v2064 = vand.u32 %v2063, 4294901760
    %2065 = vmatpush1.xpose.msra.mxu0 %v2064
    %2066 = vmatprep.subr.mxu0 0.0
    %v2067 = vand.u32 %v1556, 4294901760
    %v2068 = vsub.f32 %v1556, %v2067
    %v2069 = vand.u32 %v2068, 4294901760
    %2070 = vmatpush1.xpose.msra.mxu0 %v2069
    %2071 = vmatprep.subr.mxu0 0.0
    %v2072 = vand.u32 %v1559, 4294901760
    %v2073 = vsub.f32 %v1559, %v2072
    %v2074 = vand.u32 %v2073, 4294901760
    %2075 = vmatpush1.xpose.msra.mxu0 %v2074
    %2076 = vmatprep.subr.mxu0 0.0
    %2077 = vmatpush1.xpose.msra.mxu0 0.0
    %2078 = vmatprep.subr.mxu0 0.0
    %2079 = vmatpush1.xpose.msra.mxu0 0.0
    %2080 = vmatprep.subr.mxu0 0.0
    %2081 = vmatpush1.xpose.msra.mxu0 0.0
    %2082 = vmatprep.subr.mxu0 0.0
    %2083 = vmatpush1.xpose.msra.mxu0 0.0
    %2084 = vmatprep.subr.mxu0 0.0
    %2085 = vmatpush1.xpose.msra.mxu0 0.0
    %2086 = vmatprep.subr.mxu0 0.0
    %2087 = vmatpush1.xpose.msra.mxu0 0.0
    %2088 = vmatprep.subr.mxu0 0.0
    %2089 = vmatpush1.xpose.msra.mxu0 0.0
    %2090 = vmatprep.subr.mxu0 0.0
    %2091 = vmatpush1.xpose.msra.mxu0 0.0
    %2092 = vmatprep.subr.mxu0 0.0
    %2093 = vmatpush1.xpose.msra.mxu0 0.0
    %2094 = vmatprep.subr.mxu0 0.0
    %2095 = vmatpush1.xpose.msra.mxu0 0.0
    %2096 = vmatprep.subr.mxu0 0.0
    %2097 = vmatpush1.xpose.msra.mxu0 0.0
    %2098 = vmatprep.subr.mxu0 0.0
    %2099 = vmatpush1.xpose.msra.mxu0 0.0
    %2100 = vmatprep.subr.mxu0 0.0
    %2101 = vmatpush1.xpose.msra.mxu0 0.0
    %2102 = vmatprep.subr.mxu0 0.0
    %2103 = vmatpush1.xpose.msra.mxu0 0.0
    %2104 = vmatprep.subr.mxu0 0.0
    %2105 = vmatpush1.xpose.msra.mxu0 0.0
    %2106 = vmatprep.subr.mxu0 0.0
    %2107 = vmatpush1.xpose.msra.mxu0 0.0
    %2108 = vmatprep.mubr.f32.mxu0 0.0
    %v2109 = vand.u32 %v67, 4294901760
    %2110 = vmatmul.mubr.f32.gmra.mrb[0].mxu0 %v2109
    %v2111 = vpop.f32.mrb[0].mxu0
    %v2112 = vadd.f32 %v1993, %v2111
    %v2113 = vpop.f32.mrb[0].mxu0
    %2114 = vdwg.mxu0
    %2115 = vmatprep.subr.mxu0 0.0
    %v2116 = vand.u32 %v1514, 4294901760
    %2117 = vmatpush1.xpose.msra.mxu0 %v2116
    %2118 = vmatprep.subr.mxu0 0.0
    %v2119 = vand.u32 %v1517, 4294901760
    %2120 = vmatpush1.xpose.msra.mxu0 %v2119
    %2121 = vmatprep.subr.mxu0 0.0
    %v2122 = vand.u32 %v1520, 4294901760
    %2123 = vmatpush1.xpose.msra.mxu0 %v2122
    %2124 = vmatprep.subr.mxu0 0.0
    %v2125 = vand.u32 %v1523, 4294901760
    %2126 = vmatpush1.xpose.msra.mxu0 %v2125
    %2127 = vmatprep.subr.mxu0 0.0
    %v2128 = vand.u32 %v1526, 4294901760
    %2129 = vmatpush1.xpose.msra.mxu0 %v2128
    %2130 = vmatprep.subr.mxu0 0.0
    %v2131 = vand.u32 %v1529, 4294901760
    %2132 = vmatpush1.xpose.msra.mxu0 %v2131
    %2133 = vmatprep.subr.mxu0 0.0
    %v2134 = vand.u32 %v1532, 4294901760
    %2135 = vmatpush1.xpose.msra.mxu0 %v2134
    %2136 = vmatprep.subr.mxu0 0.0
    %v2137 = vand.u32 %v1535, 4294901760
    %2138 = vmatpush1.xpose.msra.mxu0 %v2137
    %2139 = vmatprep.subr.mxu0 0.0
    %v2140 = vand.u32 %v1538, 4294901760
    %2141 = vmatpush1.xpose.msra.mxu0 %v2140
    %2142 = vmatprep.subr.mxu0 0.0
    %v2143 = vand.u32 %v1541, 4294901760
    %2144 = vmatpush1.xpose.msra.mxu0 %v2143
    %2145 = vmatprep.subr.mxu0 0.0
    %v2146 = vand.u32 %v1544, 4294901760
    %2147 = vmatpush1.xpose.msra.mxu0 %v2146
    %2148 = vmatprep.subr.mxu0 0.0
    %v2149 = vand.u32 %v1547, 4294901760
    %2150 = vmatpush1.xpose.msra.mxu0 %v2149
    %2151 = vmatprep.subr.mxu0 0.0
    %v2152 = vand.u32 %v1550, 4294901760
    %2153 = vmatpush1.xpose.msra.mxu0 %v2152
    %2154 = vmatprep.subr.mxu0 0.0
    %v2155 = vand.u32 %v1553, 4294901760
    %2156 = vmatpush1.xpose.msra.mxu0 %v2155
    %2157 = vmatprep.subr.mxu0 0.0
    %v2158 = vand.u32 %v1556, 4294901760
    %2159 = vmatpush1.xpose.msra.mxu0 %v2158
    %2160 = vmatprep.subr.mxu0 0.0
    %v2161 = vand.u32 %v1559, 4294901760
    %2162 = vmatpush1.xpose.msra.mxu0 %v2161
    %2163 = vmatprep.subr.mxu0 0.0
    %2164 = vmatpush1.xpose.msra.mxu0 0.0
    %2165 = vmatprep.subr.mxu0 0.0
    %2166 = vmatpush1.xpose.msra.mxu0 0.0
    %2167 = vmatprep.subr.mxu0 0.0
    %2168 = vmatpush1.xpose.msra.mxu0 0.0
    %2169 = vmatprep.subr.mxu0 0.0
    %2170 = vmatpush1.xpose.msra.mxu0 0.0
    %2171 = vmatprep.subr.mxu0 0.0
    %2172 = vmatpush1.xpose.msra.mxu0 0.0
    %2173 = vmatprep.subr.mxu0 0.0
    %2174 = vmatpush1.xpose.msra.mxu0 0.0
    %2175 = vmatprep.subr.mxu0 0.0
    %2176 = vmatpush1.xpose.msra.mxu0 0.0
    %2177 = vmatprep.subr.mxu0 0.0
    %2178 = vmatpush1.xpose.msra.mxu0 0.0
    %2179 = vmatprep.subr.mxu0 0.0
    %2180 = vmatpush1.xpose.msra.mxu0 0.0
    %2181 = vmatprep.subr.mxu0 0.0
    %2182 = vmatpush1.xpose.msra.mxu0 0.0
    %2183 = vmatprep.subr.mxu0 0.0
    %2184 = vmatpush1.xpose.msra.mxu0 0.0
    %2185 = vmatprep.subr.mxu0 0.0
    %2186 = vmatpush1.xpose.msra.mxu0 0.0
    %2187 = vmatprep.subr.mxu0 0.0
    %2188 = vmatpush1.xpose.msra.mxu0 0.0
    %2189 = vmatprep.subr.mxu0 0.0
    %2190 = vmatpush1.xpose.msra.mxu0 0.0
    %2191 = vmatprep.subr.mxu0 0.0
    %2192 = vmatpush1.xpose.msra.mxu0 0.0
    %2193 = vmatprep.subr.mxu0 0.0
    %2194 = vmatpush1.xpose.msra.mxu0 0.0
    %2195 = vmatprep.mubr.f32.mxu0 0.0
    %v2196 = vand.u32 %v67, 4294901760
    %2197 = vmatmul.mubr.f32.gmra.mrb[0].mxu0 %v2196
    %v2198 = vpop.f32.mrb[0].mxu0
    %v2199 = vadd.f32 %v2112, %v2198
    %v2200 = vpop.f32.mrb[0].mxu0
    %2201 = vdwg.mxu0
    %v2203 = vsel %vm758, %v1481, 0
    %v2206 = vsel %vm758, %v1482, 0
    %v2209 = vsel %vm758, %v1483, 0
    %v2212 = vsel %vm758, %v1484, 0
    %v2215 = vsel %vm758, %v1485, 0
    %v2218 = vsel %vm758, %v1486, 0
    %v2221 = vsel %vm758, %v1487, 0
    %v2224 = vsel %vm758, %v1488, 0
    %v2227 = vsel %vm758, %v1489, 0
    %v2230 = vsel %vm758, %v1490, 0
    %v2233 = vsel %vm758, %v1491, 0
    %v2236 = vsel %vm758, %v1492, 0
    %v2239 = vsel %vm758, %v1493, 0
    %v2242 = vsel %vm758, %v1494, 0
    %v2245 = vsel %vm758, %v1495, 0
    %v2248 = vsel %vm758, %v1496, 0
    %2250 = vmatprep.subr.mxu0 0.0
    %v2251 = vand.u32 %v2203, 4294901760
    %2252 = vmatpush1.xpose.msra.mxu0 %v2251
    %2253 = vmatprep.subr.mxu0 0.0
    %v2254 = vand.u32 %v2206, 4294901760
    %2255 = vmatpush1.xpose.msra.mxu0 %v2254
    %2256 = vmatprep.subr.mxu0 0.0
    %v2257 = vand.u32 %v2209, 4294901760
    %2258 = vmatpush1.xpose.msra.mxu0 %v2257
    %2259 = vmatprep.subr.mxu0 0.0
    %v2260 = vand.u32 %v2212, 4294901760
    %2261 = vmatpush1.xpose.msra.mxu0 %v2260
    %2262 = vmatprep.subr.mxu0 0.0
    %v2263 = vand.u32 %v2215, 4294901760
    %2264 = vmatpush1.xpose.msra.mxu0 %v2263
    %2265 = vmatprep.subr.mxu0 0.0
    %v2266 = vand.u32 %v2218, 4294901760
    %2267 = vmatpush1.xpose.msra.mxu0 %v2266
    %2268 = vmatprep.subr.mxu0 0.0
    %v2269 = vand.u32 %v2221, 4294901760
    %2270 = vmatpush1.xpose.msra.mxu0 %v2269
    %2271 = vmatprep.subr.mxu0 0.0
    %v2272 = vand.u32 %v2224, 4294901760
    %2273 = vmatpush1.xpose.msra.mxu0 %v2272
    %2274 = vmatprep.subr.mxu0 0.0
    %v2275 = vand.u32 %v2227, 4294901760
    %2276 = vmatpush1.xpose.msra.mxu0 %v2275
    %2277 = vmatprep.subr.mxu0 0.0
    %v2278 = vand.u32 %v2230, 4294901760
    %2279 = vmatpush1.xpose.msra.mxu0 %v2278
    %2280 = vmatprep.subr.mxu0 0.0
    %v2281 = vand.u32 %v2233, 4294901760
    %2282 = vmatpush1.xpose.msra.mxu0 %v2281
    %2283 = vmatprep.subr.mxu0 0.0
    %v2284 = vand.u32 %v2236, 4294901760
    %2285 = vmatpush1.xpose.msra.mxu0 %v2284
    %2286 = vmatprep.subr.mxu0 0.0
    %v2287 = vand.u32 %v2239, 4294901760
    %2288 = vmatpush1.xpose.msra.mxu0 %v2287
    %2289 = vmatprep.subr.mxu0 0.0
    %v2290 = vand.u32 %v2242, 4294901760
    %2291 = vmatpush1.xpose.msra.mxu0 %v2290
    %2292 = vmatprep.subr.mxu0 0.0
    %v2293 = vand.u32 %v2245, 4294901760
    %2294 = vmatpush1.xpose.msra.mxu0 %v2293
    %2295 = vmatprep.subr.mxu0 0.0
    %v2296 = vand.u32 %v2248, 4294901760
    %2297 = vmatpush1.xpose.msra.mxu0 %v2296
    %2298 = vmatprep.subr.mxu0 0.0
    %2299 = vmatpush1.xpose.msra.mxu0 0.0
    %2300 = vmatprep.subr.mxu0 0.0
    %2301 = vmatpush1.xpose.msra.mxu0 0.0
    %2302 = vmatprep.subr.mxu0 0.0
    %2303 = vmatpush1.xpose.msra.mxu0 0.0
    %2304 = vmatprep.subr.mxu0 0.0
    %2305 = vmatpush1.xpose.msra.mxu0 0.0
    %2306 = vmatprep.subr.mxu0 0.0
    %2307 = vmatpush1.xpose.msra.mxu0 0.0
    %2308 = vmatprep.subr.mxu0 0.0
    %2309 = vmatpush1.xpose.msra.mxu0 0.0
    %2310 = vmatprep.subr.mxu0 0.0
    %2311 = vmatpush1.xpose.msra.mxu0 0.0
    %2312 = vmatprep.subr.mxu0 0.0
    %2313 = vmatpush1.xpose.msra.mxu0 0.0
    %2314 = vmatprep.subr.mxu0 0.0
    %2315 = vmatpush1.xpose.msra.mxu0 0.0
    %2316 = vmatprep.subr.mxu0 0.0
    %2317 = vmatpush1.xpose.msra.mxu0 0.0
    %2318 = vmatprep.subr.mxu0 0.0
    %2319 = vmatpush1.xpose.msra.mxu0 0.0
    %2320 = vmatprep.subr.mxu0 0.0
    %2321 = vmatpush1.xpose.msra.mxu0 0.0
    %2322 = vmatprep.subr.mxu0 0.0
    %2323 = vmatpush1.xpose.msra.mxu0 0.0
    %2324 = vmatprep.subr.mxu0 0.0
    %2325 = vmatpush1.xpose.msra.mxu0 0.0
    %2326 = vmatprep.subr.mxu0 0.0
    %2327 = vmatpush1.xpose.msra.mxu0 0.0
    %2328 = vmatprep.subr.mxu0 0.0
    %2329 = vmatpush1.xpose.msra.mxu0 0.0
    %2330 = vmatprep.mubr.f32.mxu0 0.0
    %v2331 = vand.u32 %v760, 4294901760
    %v2332 = vsub.f32 %v760, %v2331
    %v2333 = vand.u32 %v2332, 4294901760
    %v2334 = vsub.f32 %v2332, %v2333
    %v2335 = vand.u32 %v2334, 4294901760
    %2336 = vmatmul.mubr.f32.gmra.mrb[0].mxu0 %v2335
    %v2337 = vpop.f32.mrb[0].mxu0
    %v2338 = vadd.f32 %v2199, %v2337
    %v2339 = vpop.f32.mrb[0].mxu0
    %2340 = vdwg.mxu0
    %2341 = vmatprep.subr.mxu0 0.0
    %v2342 = vand.u32 %v2203, 4294901760
    %v2343 = vsub.f32 %v2203, %v2342
    %v2344 = vand.u32 %v2343, 4294901760
    %v2345 = vsub.f32 %v2343, %v2344
    %v2346 = vand.u32 %v2345, 4294901760
    %2347 = vmatpush1.xpose.msra.mxu0 %v2346
    %2348 = vmatprep.subr.mxu0 0.0
    %v2349 = vand.u32 %v2206, 4294901760
    %v2350 = vsub.f32 %v2206, %v2349
    %v2351 = vand.u32 %v2350, 4294901760
    %v2352 = vsub.f32 %v2350, %v2351
    %v2353 = vand.u32 %v2352, 4294901760
    %2354 = vmatpush1.xpose.msra.mxu0 %v2353
    %2355 = vmatprep.subr.mxu0 0.0
    %v2356 = vand.u32 %v2209, 4294901760
    %v2357 = vsub.f32 %v2209, %v2356
    %v2358 = vand.u32 %v2357, 4294901760
    %v2359 = vsub.f32 %v2357, %v2358
    %v2360 = vand.u32 %v2359, 4294901760
    %2361 = vmatpush1.xpose.msra.mxu0 %v2360
    %2362 = vmatprep.subr.mxu0 0.0
    %v2363 = vand.u32 %v2212, 4294901760
    %v2364 = vsub.f32 %v2212, %v2363
    %v2365 = vand.u32 %v2364, 4294901760
    %v2366 = vsub.f32 %v2364, %v2365
    %v2367 = vand.u32 %v2366, 4294901760
    %2368 = vmatpush1.xpose.msra.mxu0 %v2367
    %2369 = vmatprep.subr.mxu0 0.0
    %v2370 = vand.u32 %v2215, 4294901760
    %v2371 = vsub.f32 %v2215, %v2370
    %v2372 = vand.u32 %v2371, 4294901760
    %v2373 = vsub.f32 %v2371, %v2372
    %v2374 = vand.u32 %v2373, 4294901760
    %2375 = vmatpush1.xpose.msra.mxu0 %v2374
    %2376 = vmatprep.subr.mxu0 0.0
    %v2377 = vand.u32 %v2218, 4294901760
    %v2378 = vsub.f32 %v2218, %v2377
    %v2379 = vand.u32 %v2378, 4294901760
    %v2380 = vsub.f32 %v2378, %v2379
    %v2381 = vand.u32 %v2380, 4294901760
    %2382 = vmatpush1.xpose.msra.mxu0 %v2381
    %2383 = vmatprep.subr.mxu0 0.0
    %v2384 = vand.u32 %v2221, 4294901760
    %v2385 = vsub.f32 %v2221, %v2384
    %v2386 = vand.u32 %v2385, 4294901760
    %v2387 = vsub.f32 %v2385, %v2386
    %v2388 = vand.u32 %v2387, 4294901760
    %2389 = vmatpush1.xpose.msra.mxu0 %v2388
    %2390 = vmatprep.subr.mxu0 0.0
    %v2391 = vand.u32 %v2224, 4294901760
    %v2392 = vsub.f32 %v2224, %v2391
    %v2393 = vand.u32 %v2392, 4294901760
    %v2394 = vsub.f32 %v2392, %v2393
    %v2395 = vand.u32 %v2394, 4294901760
    %2396 = vmatpush1.xpose.msra.mxu0 %v2395
    %2397 = vmatprep.subr.mxu0 0.0
    %v2398 = vand.u32 %v2227, 4294901760
    %v2399 = vsub.f32 %v2227, %v2398
    %v2400 = vand.u32 %v2399, 4294901760
    %v2401 = vsub.f32 %v2399, %v2400
    %v2402 = vand.u32 %v2401, 4294901760
    %2403 = vmatpush1.xpose.msra.mxu0 %v2402
    %2404 = vmatprep.subr.mxu0 0.0
    %v2405 = vand.u32 %v2230, 4294901760
    %v2406 = vsub.f32 %v2230, %v2405
    %v2407 = vand.u32 %v2406, 4294901760
    %v2408 = vsub.f32 %v2406, %v2407
    %v2409 = vand.u32 %v2408, 4294901760
    %2410 = vmatpush1.xpose.msra.mxu0 %v2409
    %2411 = vmatprep.subr.mxu0 0.0
    %v2412 = vand.u32 %v2233, 4294901760
    %v2413 = vsub.f32 %v2233, %v2412
    %v2414 = vand.u32 %v2413, 4294901760
    %v2415 = vsub.f32 %v2413, %v2414
    %v2416 = vand.u32 %v2415, 4294901760
    %2417 = vmatpush1.xpose.msra.mxu0 %v2416
    %2418 = vmatprep.subr.mxu0 0.0
    %v2419 = vand.u32 %v2236, 4294901760
    %v2420 = vsub.f32 %v2236, %v2419
    %v2421 = vand.u32 %v2420, 4294901760
    %v2422 = vsub.f32 %v2420, %v2421
    %v2423 = vand.u32 %v2422, 4294901760
    %2424 = vmatpush1.xpose.msra.mxu0 %v2423
    %2425 = vmatprep.subr.mxu0 0.0
    %v2426 = vand.u32 %v2239, 4294901760
    %v2427 = vsub.f32 %v2239, %v2426
    %v2428 = vand.u32 %v2427, 4294901760
    %v2429 = vsub.f32 %v2427, %v2428
    %v2430 = vand.u32 %v2429, 4294901760
    %2431 = vmatpush1.xpose.msra.mxu0 %v2430
    %2432 = vmatprep.subr.mxu0 0.0
    %v2433 = vand.u32 %v2242, 4294901760
    %v2434 = vsub.f32 %v2242, %v2433
    %v2435 = vand.u32 %v2434, 4294901760
    %v2436 = vsub.f32 %v2434, %v2435
    %v2437 = vand.u32 %v2436, 4294901760
    %2438 = vmatpush1.xpose.msra.mxu0 %v2437
    %2439 = vmatprep.subr.mxu0 0.0
    %v2440 = vand.u32 %v2245, 4294901760
    %v2441 = vsub.f32 %v2245, %v2440
    %v2442 = vand.u32 %v2441, 4294901760
    %v2443 = vsub.f32 %v2441, %v2442
    %v2444 = vand.u32 %v2443, 4294901760
    %2445 = vmatpush1.xpose.msra.mxu0 %v2444
    %2446 = vmatprep.subr.mxu0 0.0
    %v2447 = vand.u32 %v2248, 4294901760
    %v2448 = vsub.f32 %v2248, %v2447
    %v2449 = vand.u32 %v2448, 4294901760
    %v2450 = vsub.f32 %v2448, %v2449
    %v2451 = vand.u32 %v2450, 4294901760
    %2452 = vmatpush1.xpose.msra.mxu0 %v2451
    %2453 = vmatprep.subr.mxu0 0.0
    %2454 = vmatpush1.xpose.msra.mxu0 0.0
    %2455 = vmatprep.subr.mxu0 0.0
    %2456 = vmatpush1.xpose.msra.mxu0 0.0
    %2457 = vmatprep.subr.mxu0 0.0
    %2458 = vmatpush1.xpose.msra.mxu0 0.0
    %2459 = vmatprep.subr.mxu0 0.0
    %2460 = vmatpush1.xpose.msra.mxu0 0.0
    %2461 = vmatprep.subr.mxu0 0.0
    %2462 = vmatpush1.xpose.msra.mxu0 0.0
    %2463 = vmatprep.subr.mxu0 0.0
    %2464 = vmatpush1.xpose.msra.mxu0 0.0
    %2465 = vmatprep.subr.mxu0 0.0
    %2466 = vmatpush1.xpose.msra.mxu0 0.0
    %2467 = vmatprep.subr.mxu0 0.0
    %2468 = vmatpush1.xpose.msra.mxu0 0.0
    %2469 = vmatprep.subr.mxu0 0.0
    %2470 = vmatpush1.xpose.msra.mxu0 0.0
    %2471 = vmatprep.subr.mxu0 0.0
    %2472 = vmatpush1.xpose.msra.mxu0 0.0
    %2473 = vmatprep.subr.mxu0 0.0
    %2474 = vmatpush1.xpose.msra.mxu0 0.0
    %2475 = vmatprep.subr.mxu0 0.0
    %2476 = vmatpush1.xpose.msra.mxu0 0.0
    %2477 = vmatprep.subr.mxu0 0.0
    %2478 = vmatpush1.xpose.msra.mxu0 0.0
    %2479 = vmatprep.subr.mxu0 0.0
    %2480 = vmatpush1.xpose.msra.mxu0 0.0
    %2481 = vmatprep.subr.mxu0 0.0
    %2482 = vmatpush1.xpose.msra.mxu0 0.0
    %2483 = vmatprep.subr.mxu0 0.0
    %2484 = vmatpush1.xpose.msra.mxu0 0.0
    %2485 = vmatprep.mubr.f32.mxu0 0.0
    %v2486 = vand.u32 %v760, 4294901760
    %2487 = vmatmul.mubr.f32.gmra.mrb[0].mxu0 %v2486
    %v2488 = vpop.f32.mrb[0].mxu0
    %v2489 = vadd.f32 %v2338, %v2488
    %v2490 = vpop.f32.mrb[0].mxu0
    %2491 = vdwg.mxu0
    %2492 = vmatprep.subr.mxu0 0.0
    %v2493 = vand.u32 %v2203, 4294901760
    %v2494 = vsub.f32 %v2203, %v2493
    %2495 = vmatpush1.xpose.msra.mxu0 %v2494
    %2496 = vmatprep.subr.mxu0 0.0
    %v2497 = vand.u32 %v2206, 4294901760
    %v2498 = vsub.f32 %v2206, %v2497
    %2499 = vmatpush1.xpose.msra.mxu0 %v2498
    %2500 = vmatprep.subr.mxu0 0.0
    %v2501 = vand.u32 %v2209, 4294901760
    %v2502 = vsub.f32 %v2209, %v2501
    %2503 = vmatpush1.xpose.msra.mxu0 %v2502
    %2504 = vmatprep.subr.mxu0 0.0
    %v2505 = vand.u32 %v2212, 4294901760
    %v2506 = vsub.f32 %v2212, %v2505
    %2507 = vmatpush1.xpose.msra.mxu0 %v2506
    %2508 = vmatprep.subr.mxu0 0.0
    %v2509 = vand.u32 %v2215, 4294901760
    %v2510 = vsub.f32 %v2215, %v2509
    %2511 = vmatpush1.xpose.msra.mxu0 %v2510
    %2512 = vmatprep.subr.mxu0 0.0
    %v2513 = vand.u32 %v2218, 4294901760
    %v2514 = vsub.f32 %v2218, %v2513
    %2515 = vmatpush1.xpose.msra.mxu0 %v2514
    %2516 = vmatprep.subr.mxu0 0.0
    %v2517 = vand.u32 %v2221, 4294901760
    %v2518 = vsub.f32 %v2221, %v2517
    %2519 = vmatpush1.xpose.msra.mxu0 %v2518
    %2520 = vmatprep.subr.mxu0 0.0
    %v2521 = vand.u32 %v2224, 4294901760
    %v2522 = vsub.f32 %v2224, %v2521
    %2523 = vmatpush1.xpose.msra.mxu0 %v2522
    %2524 = vmatprep.subr.mxu0 0.0
    %v2525 = vand.u32 %v2227, 4294901760
    %v2526 = vsub.f32 %v2227, %v2525
    %2527 = vmatpush1.xpose.msra.mxu0 %v2526
    %2528 = vmatprep.subr.mxu0 0.0
    %v2529 = vand.u32 %v2230, 4294901760
    %v2530 = vsub.f32 %v2230, %v2529
    %2531 = vmatpush1.xpose.msra.mxu0 %v2530
    %2532 = vmatprep.subr.mxu0 0.0
    %v2533 = vand.u32 %v2233, 4294901760
    %v2534 = vsub.f32 %v2233, %v2533
    %2535 = vmatpush1.xpose.msra.mxu0 %v2534
    %2536 = vmatprep.subr.mxu0 0.0
    %v2537 = vand.u32 %v2236, 4294901760
    %v2538 = vsub.f32 %v2236, %v2537
    %2539 = vmatpush1.xpose.msra.mxu0 %v2538
    %2540 = vmatprep.subr.mxu0 0.0
    %v2541 = vand.u32 %v2239, 4294901760
    %v2542 = vsub.f32 %v2239, %v2541
    %2543 = vmatpush1.xpose.msra.mxu0 %v2542
    %2544 = vmatprep.subr.mxu0 0.0
    %v2545 = vand.u32 %v2242, 4294901760
    %v2546 = vsub.f32 %v2242, %v2545
    %2547 = vmatpush1.xpose.msra.mxu0 %v2546
    %2548 = vmatprep.subr.mxu0 0.0
    %v2549 = vand.u32 %v2245, 4294901760
    %v2550 = vsub.f32 %v2245, %v2549
    %2551 = vmatpush1.xpose.msra.mxu0 %v2550
    %2552 = vmatprep.subr.mxu0 0.0
    %v2553 = vand.u32 %v2248, 4294901760
    %v2554 = vsub.f32 %v2248, %v2553
    %2555 = vmatpush1.xpose.msra.mxu0 %v2554
    %2556 = vmatprep.subr.mxu0 0.0
    %2557 = vmatpush1.xpose.msra.mxu0 0.0
    %2558 = vmatprep.subr.mxu0 0.0
    %2559 = vmatpush1.xpose.msra.mxu0 0.0
    %2560 = vmatprep.subr.mxu0 0.0
    %2561 = vmatpush1.xpose.msra.mxu0 0.0
    %2562 = vmatprep.subr.mxu0 0.0
    %2563 = vmatpush1.xpose.msra.mxu0 0.0
    %2564 = vmatprep.subr.mxu0 0.0
    %2565 = vmatpush1.xpose.msra.mxu0 0.0
    %2566 = vmatprep.subr.mxu0 0.0
    %2567 = vmatpush1.xpose.msra.mxu0 0.0
    %2568 = vmatprep.subr.mxu0 0.0
    %2569 = vmatpush1.xpose.msra.mxu0 0.0
    %2570 = vmatprep.subr.mxu0 0.0
    %2571 = vmatpush1.xpose.msra.mxu0 0.0
    %2572 = vmatprep.subr.mxu0 0.0
    %2573 = vmatpush1.xpose.msra.mxu0 0.0
    %2574 = vmatprep.subr.mxu0 0.0
    %2575 = vmatpush1.xpose.msra.mxu0 0.0
    %2576 = vmatprep.subr.mxu0 0.0
    %2577 = vmatpush1.xpose.msra.mxu0 0.0
    %2578 = vmatprep.subr.mxu0 0.0
    %2579 = vmatpush1.xpose.msra.mxu0 0.0
    %2580 = vmatprep.subr.mxu0 0.0
    %2581 = vmatpush1.xpose.msra.mxu0 0.0
    %2582 = vmatprep.subr.mxu0 0.0
    %2583 = vmatpush1.xpose.msra.mxu0 0.0
    %2584 = vmatprep.subr.mxu0 0.0
    %2585 = vmatpush1.xpose.msra.mxu0 0.0
    %2586 = vmatprep.subr.mxu0 0.0
    %2587 = vmatpush1.xpose.msra.mxu0 0.0
    %2588 = vmatprep.mubr.f32.mxu0 0.0
    %v2589 = vand.u32 %v760, 4294901760
    %v2590 = vsub.f32 %v760, %v2589
    %2591 = vmatmul.mubr.f32.gmra.mrb[0].mxu0 %v2590
    %v2592 = vpop.f32.mrb[0].mxu0
    %v2593 = vadd.f32 %v2489, %v2592
    %v2594 = vpop.f32.mrb[0].mxu0
    %2595 = vdwg.mxu0
    %2596 = vmatprep.subr.mxu0 0.0
    %v2597 = vand.u32 %v2203, 4294901760
    %2598 = vmatpush1.xpose.msra.mxu0 %v2597
    %2599 = vmatprep.subr.mxu0 0.0
    %v2600 = vand.u32 %v2206, 4294901760
    %2601 = vmatpush1.xpose.msra.mxu0 %v2600
    %2602 = vmatprep.subr.mxu0 0.0
    %v2603 = vand.u32 %v2209, 4294901760
    %2604 = vmatpush1.xpose.msra.mxu0 %v2603
    %2605 = vmatprep.subr.mxu0 0.0
    %v2606 = vand.u32 %v2212, 4294901760
    %2607 = vmatpush1.xpose.msra.mxu0 %v2606
    %2608 = vmatprep.subr.mxu0 0.0
    %v2609 = vand.u32 %v2215, 4294901760
    %2610 = vmatpush1.xpose.msra.mxu0 %v2609
    %2611 = vmatprep.subr.mxu0 0.0
    %v2612 = vand.u32 %v2218, 4294901760
    %2613 = vmatpush1.xpose.msra.mxu0 %v2612
    %2614 = vmatprep.subr.mxu0 0.0
    %v2615 = vand.u32 %v2221, 4294901760
    %2616 = vmatpush1.xpose.msra.mxu0 %v2615
    %2617 = vmatprep.subr.mxu0 0.0
    %v2618 = vand.u32 %v2224, 4294901760
    %2619 = vmatpush1.xpose.msra.mxu0 %v2618
    %2620 = vmatprep.subr.mxu0 0.0
    %v2621 = vand.u32 %v2227, 4294901760
    %2622 = vmatpush1.xpose.msra.mxu0 %v2621
    %2623 = vmatprep.subr.mxu0 0.0
    %v2624 = vand.u32 %v2230, 4294901760
    %2625 = vmatpush1.xpose.msra.mxu0 %v2624
    %2626 = vmatprep.subr.mxu0 0.0
    %v2627 = vand.u32 %v2233, 4294901760
    %2628 = vmatpush1.xpose.msra.mxu0 %v2627
    %2629 = vmatprep.subr.mxu0 0.0
    %v2630 = vand.u32 %v2236, 4294901760
    %2631 = vmatpush1.xpose.msra.mxu0 %v2630
    %2632 = vmatprep.subr.mxu0 0.0
    %v2633 = vand.u32 %v2239, 4294901760
    %2634 = vmatpush1.xpose.msra.mxu0 %v2633
    %2635 = vmatprep.subr.mxu0 0.0
    %v2636 = vand.u32 %v2242, 4294901760
    %2637 = vmatpush1.xpose.msra.mxu0 %v2636
    %2638 = vmatprep.subr.mxu0 0.0
    %v2639 = vand.u32 %v2245, 4294901760
    %2640 = vmatpush1.xpose.msra.mxu0 %v2639
    %2641 = vmatprep.subr.mxu0 0.0
    %v2642 = vand.u32 %v2248, 4294901760
    %2643 = vmatpush1.xpose.msra.mxu0 %v2642
    %2644 = vmatprep.subr.mxu0 0.0
    %2645 = vmatpush1.xpose.msra.mxu0 0.0
    %2646 = vmatprep.subr.mxu0 0.0
    %2647 = vmatpush1.xpose.msra.mxu0 0.0
    %2648 = vmatprep.subr.mxu0 0.0
    %2649 = vmatpush1.xpose.msra.mxu0 0.0
    %2650 = vmatprep.subr.mxu0 0.0
    %2651 = vmatpush1.xpose.msra.mxu0 0.0
    %2652 = vmatprep.subr.mxu0 0.0
    %2653 = vmatpush1.xpose.msra.mxu0 0.0
    %2654 = vmatprep.subr.mxu0 0.0
    %2655 = vmatpush1.xpose.msra.mxu0 0.0
    %2656 = vmatprep.subr.mxu0 0.0
    %2657 = vmatpush1.xpose.msra.mxu0 0.0
    %2658 = vmatprep.subr.mxu0 0.0
    %2659 = vmatpush1.xpose.msra.mxu0 0.0
    %2660 = vmatprep.subr.mxu0 0.0
    %2661 = vmatpush1.xpose.msra.mxu0 0.0
    %2662 = vmatprep.subr.mxu0 0.0
    %2663 = vmatpush1.xpose.msra.mxu0 0.0
    %2664 = vmatprep.subr.mxu0 0.0
    %2665 = vmatpush1.xpose.msra.mxu0 0.0
    %2666 = vmatprep.subr.mxu0 0.0
    %2667 = vmatpush1.xpose.msra.mxu0 0.0
    %2668 = vmatprep.subr.mxu0 0.0
    %2669 = vmatpush1.xpose.msra.mxu0 0.0
    %2670 = vmatprep.subr.mxu0 0.0
    %2671 = vmatpush1.xpose.msra.mxu0 0.0
    %2672 = vmatprep.subr.mxu0 0.0
    %2673 = vmatpush1.xpose.msra.mxu0 0.0
    %2674 = vmatprep.subr.mxu0 0.0
    %2675 = vmatpush1.xpose.msra.mxu0 0.0
    %2676 = vmatprep.mubr.f32.mxu0 0.0
    %v2677 = vand.u32 %v760, 4294901760
    %v2678 = vsub.f32 %v760, %v2677
    %v2679 = vand.u32 %v2678, 4294901760
    %2680 = vmatmul.mubr.f32.gmra.mrb[0].mxu0 %v2679
    %v2681 = vpop.f32.mrb[0].mxu0
    %v2682 = vadd.f32 %v2593, %v2681
    %v2683 = vpop.f32.mrb[0].mxu0
    %2684 = vdwg.mxu0
    %2685 = vmatprep.subr.mxu0 0.0
    %v2686 = vand.u32 %v2203, 4294901760
    %v2687 = vsub.f32 %v2203, %v2686
    %v2688 = vand.u32 %v2687, 4294901760
    %2689 = vmatpush1.xpose.msra.mxu0 %v2688
    %2690 = vmatprep.subr.mxu0 0.0
    %v2691 = vand.u32 %v2206, 4294901760
    %v2692 = vsub.f32 %v2206, %v2691
    %v2693 = vand.u32 %v2692, 4294901760
    %2694 = vmatpush1.xpose.msra.mxu0 %v2693
    %2695 = vmatprep.subr.mxu0 0.0
    %v2696 = vand.u32 %v2209, 4294901760
    %v2697 = vsub.f32 %v2209, %v2696
    %v2698 = vand.u32 %v2697, 4294901760
    %2699 = vmatpush1.xpose.msra.mxu0 %v2698
    %2700 = vmatprep.subr.mxu0 0.0
    %v2701 = vand.u32 %v2212, 4294901760
    %v2702 = vsub.f32 %v2212, %v2701
    %v2703 = vand.u32 %v2702, 4294901760
    %2704 = vmatpush1.xpose.msra.mxu0 %v2703
    %2705 = vmatprep.subr.mxu0 0.0
    %v2706 = vand.u32 %v2215, 4294901760
    %v2707 = vsub.f32 %v2215, %v2706
    %v2708 = vand.u32 %v2707, 4294901760
    %2709 = vmatpush1.xpose.msra.mxu0 %v2708
    %2710 = vmatprep.subr.mxu0 0.0
    %v2711 = vand.u32 %v2218, 4294901760
    %v2712 = vsub.f32 %v2218, %v2711
    %v2713 = vand.u32 %v2712, 4294901760
    %2714 = vmatpush1.xpose.msra.mxu0 %v2713
    %2715 = vmatprep.subr.mxu0 0.0
    %v2716 = vand.u32 %v2221, 4294901760
    %v2717 = vsub.f32 %v2221, %v2716
    %v2718 = vand.u32 %v2717, 4294901760
    %2719 = vmatpush1.xpose.msra.mxu0 %v2718
    %2720 = vmatprep.subr.mxu0 0.0
    %v2721 = vand.u32 %v2224, 4294901760
    %v2722 = vsub.f32 %v2224, %v2721
    %v2723 = vand.u32 %v2722, 4294901760
    %2724 = vmatpush1.xpose.msra.mxu0 %v2723
    %2725 = vmatprep.subr.mxu0 0.0
    %v2726 = vand.u32 %v2227, 4294901760
    %v2727 = vsub.f32 %v2227, %v2726
    %v2728 = vand.u32 %v2727, 4294901760
    %2729 = vmatpush1.xpose.msra.mxu0 %v2728
    %2730 = vmatprep.subr.mxu0 0.0
    %v2731 = vand.u32 %v2230, 4294901760
    %v2732 = vsub.f32 %v2230, %v2731
    %v2733 = vand.u32 %v2732, 4294901760
    %2734 = vmatpush1.xpose.msra.mxu0 %v2733
    %2735 = vmatprep.subr.mxu0 0.0
    %v2736 = vand.u32 %v2233, 4294901760
    %v2737 = vsub.f32 %v2233, %v2736
    %v2738 = vand.u32 %v2737, 4294901760
    %2739 = vmatpush1.xpose.msra.mxu0 %v2738
    %2740 = vmatprep.subr.mxu0 0.0
    %v2741 = vand.u32 %v2236, 4294901760
    %v2742 = vsub.f32 %v2236, %v2741
    %v2743 = vand.u32 %v2742, 4294901760
    %2744 = vmatpush1.xpose.msra.mxu0 %v2743
    %2745 = vmatprep.subr.mxu0 0.0
    %v2746 = vand.u32 %v2239, 4294901760
    %v2747 = vsub.f32 %v2239, %v2746
    %v2748 = vand.u32 %v2747, 4294901760
    %2749 = vmatpush1.xpose.msra.mxu0 %v2748
    %2750 = vmatprep.subr.mxu0 0.0
    %v2751 = vand.u32 %v2242, 4294901760
    %v2752 = vsub.f32 %v2242, %v2751
    %v2753 = vand.u32 %v2752, 4294901760
    %2754 = vmatpush1.xpose.msra.mxu0 %v2753
    %2755 = vmatprep.subr.mxu0 0.0
    %v2756 = vand.u32 %v2245, 4294901760
    %v2757 = vsub.f32 %v2245, %v2756
    %v2758 = vand.u32 %v2757, 4294901760
    %2759 = vmatpush1.xpose.msra.mxu0 %v2758
    %2760 = vmatprep.subr.mxu0 0.0
    %v2761 = vand.u32 %v2248, 4294901760
    %v2762 = vsub.f32 %v2248, %v2761
    %v2763 = vand.u32 %v2762, 4294901760
    %2764 = vmatpush1.xpose.msra.mxu0 %v2763
    %2765 = vmatprep.subr.mxu0 0.0
    %2766 = vmatpush1.xpose.msra.mxu0 0.0
    %2767 = vmatprep.subr.mxu0 0.0
    %2768 = vmatpush1.xpose.msra.mxu0 0.0
    %2769 = vmatprep.subr.mxu0 0.0
    %2770 = vmatpush1.xpose.msra.mxu0 0.0
    %2771 = vmatprep.subr.mxu0 0.0
    %2772 = vmatpush1.xpose.msra.mxu0 0.0
    %2773 = vmatprep.subr.mxu0 0.0
    %2774 = vmatpush1.xpose.msra.mxu0 0.0
    %2775 = vmatprep.subr.mxu0 0.0
    %2776 = vmatpush1.xpose.msra.mxu0 0.0
    %2777 = vmatprep.subr.mxu0 0.0
    %2778 = vmatpush1.xpose.msra.mxu0 0.0
    %2779 = vmatprep.subr.mxu0 0.0
    %2780 = vmatpush1.xpose.msra.mxu0 0.0
    %2781 = vmatprep.subr.mxu0 0.0
    %2782 = vmatpush1.xpose.msra.mxu0 0.0
    %2783 = vmatprep.subr.mxu0 0.0
    %2784 = vmatpush1.xpose.msra.mxu0 0.0
    %2785 = vmatprep.subr.mxu0 0.0
    %2786 = vmatpush1.xpose.msra.mxu0 0.0
    %2787 = vmatprep.subr.mxu0 0.0
    %2788 = vmatpush1.xpose.msra.mxu0 0.0
    %2789 = vmatprep.subr.mxu0 0.0
    %2790 = vmatpush1.xpose.msra.mxu0 0.0
    %2791 = vmatprep.subr.mxu0 0.0
    %2792 = vmatpush1.xpose.msra.mxu0 0.0
    %2793 = vmatprep.subr.mxu0 0.0
    %2794 = vmatpush1.xpose.msra.mxu0 0.0
    %2795 = vmatprep.subr.mxu0 0.0
    %2796 = vmatpush1.xpose.msra.mxu0 0.0
    %2797 = vmatprep.mubr.f32.mxu0 0.0
    %v2798 = vand.u32 %v760, 4294901760
    %2799 = vmatmul.mubr.f32.gmra.mrb[0].mxu0 %v2798
    %v2800 = vpop.f32.mrb[0].mxu0
    %v2801 = vadd.f32 %v2682, %v2800
    %v2802 = vpop.f32.mrb[0].mxu0
    %2803 = vdwg.mxu0
    %2804 = vmatprep.subr.mxu0 0.0
    %v2805 = vand.u32 %v2203, 4294901760
    %2806 = vmatpush1.xpose.msra.mxu0 %v2805
    %2807 = vmatprep.subr.mxu0 0.0
    %v2808 = vand.u32 %v2206, 4294901760
    %2809 = vmatpush1.xpose.msra.mxu0 %v2808
    %2810 = vmatprep.subr.mxu0 0.0
    %v2811 = vand.u32 %v2209, 4294901760
    %2812 = vmatpush1.xpose.msra.mxu0 %v2811
    %2813 = vmatprep.subr.mxu0 0.0
    %v2814 = vand.u32 %v2212, 4294901760
    %2815 = vmatpush1.xpose.msra.mxu0 %v2814
    %2816 = vmatprep.subr.mxu0 0.0
    %v2817 = vand.u32 %v2215, 4294901760
    %2818 = vmatpush1.xpose.msra.mxu0 %v2817
    %2819 = vmatprep.subr.mxu0 0.0
    %v2820 = vand.u32 %v2218, 4294901760
    %2821 = vmatpush1.xpose.msra.mxu0 %v2820
    %2822 = vmatprep.subr.mxu0 0.0
    %v2823 = vand.u32 %v2221, 4294901760
    %2824 = vmatpush1.xpose.msra.mxu0 %v2823
    %2825 = vmatprep.subr.mxu0 0.0
    %v2826 = vand.u32 %v2224, 4294901760
    %2827 = vmatpush1.xpose.msra.mxu0 %v2826
    %2828 = vmatprep.subr.mxu0 0.0
    %v2829 = vand.u32 %v2227, 4294901760
    %2830 = vmatpush1.xpose.msra.mxu0 %v2829
    %2831 = vmatprep.subr.mxu0 0.0
    %v2832 = vand.u32 %v2230, 4294901760
    %2833 = vmatpush1.xpose.msra.mxu0 %v2832
    %2834 = vmatprep.subr.mxu0 0.0
    %v2835 = vand.u32 %v2233, 4294901760
    %2836 = vmatpush1.xpose.msra.mxu0 %v2835
    %2837 = vmatprep.subr.mxu0 0.0
    %v2838 = vand.u32 %v2236, 4294901760
    %2839 = vmatpush1.xpose.msra.mxu0 %v2838
    %2840 = vmatprep.subr.mxu0 0.0
    %v2841 = vand.u32 %v2239, 4294901760
    %2842 = vmatpush1.xpose.msra.mxu0 %v2841
    %2843 = vmatprep.subr.mxu0 0.0
    %v2844 = vand.u32 %v2242, 4294901760
    %2845 = vmatpush1.xpose.msra.mxu0 %v2844
    %2846 = vmatprep.subr.mxu0 0.0
    %v2847 = vand.u32 %v2245, 4294901760
    %2848 = vmatpush1.xpose.msra.mxu0 %v2847
    %2849 = vmatprep.subr.mxu0 0.0
    %v2850 = vand.u32 %v2248, 4294901760
    %2851 = vmatpush1.xpose.msra.mxu0 %v2850
    %2852 = vmatprep.subr.mxu0 0.0
    %2853 = vmatpush1.xpose.msra.mxu0 0.0
    %2854 = vmatprep.subr.mxu0 0.0
    %2855 = vmatpush1.xpose.msra.mxu0 0.0
    %2856 = vmatprep.subr.mxu0 0.0
    %2857 = vmatpush1.xpose.msra.mxu0 0.0
    %2858 = vmatprep.subr.mxu0 0.0
    %2859 = vmatpush1.xpose.msra.mxu0 0.0
    %2860 = vmatprep.subr.mxu0 0.0
    %2861 = vmatpush1.xpose.msra.mxu0 0.0
    %2862 = vmatprep.subr.mxu0 0.0
    %2863 = vmatpush1.xpose.msra.mxu0 0.0
    %2864 = vmatprep.subr.mxu0 0.0
    %2865 = vmatpush1.xpose.msra.mxu0 0.0
    %2866 = vmatprep.subr.mxu0 0.0
    %2867 = vmatpush1.xpose.msra.mxu0 0.0
    %2868 = vmatprep.subr.mxu0 0.0
    %2869 = vmatpush1.xpose.msra.mxu0 0.0
    %2870 = vmatprep.subr.mxu0 0.0
    %2871 = vmatpush1.xpose.msra.mxu0 0.0
    %2872 = vmatprep.subr.mxu0 0.0
    %2873 = vmatpush1.xpose.msra.mxu0 0.0
    %2874 = vmatprep.subr.mxu0 0.0
    %2875 = vmatpush1.xpose.msra.mxu0 0.0
    %2876 = vmatprep.subr.mxu0 0.0
    %2877 = vmatpush1.xpose.msra.mxu0 0.0
    %2878 = vmatprep.subr.mxu0 0.0
    %2879 = vmatpush1.xpose.msra.mxu0 0.0
    %2880 = vmatprep.subr.mxu0 0.0
    %2881 = vmatpush1.xpose.msra.mxu0 0.0
    %2882 = vmatprep.subr.mxu0 0.0
    %2883 = vmatpush1.xpose.msra.mxu0 0.0
    %2884 = vmatprep.mubr.f32.mxu0 0.0
    %v2885 = vand.u32 %v760, 4294901760
    %2886 = vmatmul.mubr.f32.gmra.mrb[0].mxu0 %v2885
    %v2887 = vpop.f32.mrb[0].mxu0
    %v2888 = vadd.f32 %v2801, %v2887
    %v2889 = vpop.f32.mrb[0].mxu0
    %2890 = vdwg.mxu0
    %v2891 = vadd.f32 %v2888, %v1454
    %v2892 = vmax.f32 %v2891, 0.0
    %v2893 = vmul.f32 %v2892, %v1461
    %v2894 = vsel %vm1464, %v2893, 0.0
    %v2895 = vrot.slane %v2894, 4
    %v2896 = vadd.f32 %v2894, %v2895
    %v2897 = vrot.slane %v2896, 2
    %v2898 = vadd.f32 %v2896, %v2897
    %v2899 = vrot.slane %v2898, 1
    %v2900 = vadd.f32 %v2898, %v2899
    %v2901 = vadd.f32 %v2900, %v1472
    %v2902 = vxor.u32 %v2901, 2147483648
    %v2903 = vmul.f32 %v2902, 1.442695
    %v2904 = vpow.pop %v2903
    %v2905 = vadd.f32 %v2904, 1.0
    %v2906 = vrcp.pop %v2905
    %v2907 = vmul.f32 1.0, %v2906
    %2908 = vst [vmem:[#allocation3 + $0x1] sm:$0x1] %v2907
    %v2909 = vld [vmem:[%s0 + $0x100] sm:$0xff]
    %v2910 = vld [vmem:[%s0 + $0x108] sm:$0xff]
    %v2911 = vld [vmem:[%s0 + $0x110] sm:$0xff]
    %v2912 = vld [vmem:[%s0 + $0x118] sm:$0xff]
    %v2913 = vld [vmem:[%s0 + $0x120] sm:$0xff]
    %v2914 = vld [vmem:[%s0 + $0x128] sm:$0xff]
    %v2915 = vld [vmem:[%s0 + $0x130] sm:$0xff]
    %v2916 = vld [vmem:[%s0 + $0x138] sm:$0xff]
    %v2917 = vld [vmem:[%s0 + $0x140] sm:$0xff]
    %v2918 = vld [vmem:[%s0 + $0x148] sm:$0xff]
    %v2919 = vld [vmem:[%s0 + $0x150] sm:$0xff]
    %v2920 = vld [vmem:[%s0 + $0x158] sm:$0xff]
    %v2921 = vld [vmem:[%s0 + $0x160] sm:$0xff]
    %v2922 = vld [vmem:[%s0 + $0x168] sm:$0xff]
    %v2923 = vld [vmem:[%s0 + $0x170] sm:$0xff]
    %v2924 = vld [vmem:[%s0 + $0x178] sm:$0xff]
    %v2925 = vld [vmem:[%s1 + $0x100] sm:$0xff]
    %v2926 = vld [vmem:[%s1 + $0x108] sm:$0xff]
    %v2927 = vld [vmem:[%s1 + $0x110] sm:$0xff]
    %v2928 = vld [vmem:[%s1 + $0x118] sm:$0xff]
    %v2929 = vld [vmem:[%s1 + $0x120] sm:$0xff]
    %v2930 = vld [vmem:[%s1 + $0x128] sm:$0xff]
    %v2931 = vld [vmem:[%s1 + $0x130] sm:$0xff]
    %v2932 = vld [vmem:[%s1 + $0x138] sm:$0xff]
    %v2933 = vld [vmem:[%s1 + $0x140] sm:$0xff]
    %v2934 = vld [vmem:[%s1 + $0x148] sm:$0xff]
    %v2935 = vld [vmem:[%s1 + $0x150] sm:$0xff]
    %v2936 = vld [vmem:[%s1 + $0x158] sm:$0xff]
    %v2937 = vld [vmem:[%s1 + $0x160] sm:$0xff]
    %v2938 = vld [vmem:[%s1 + $0x168] sm:$0xff]
    %v2939 = vld [vmem:[%s1 + $0x170] sm:$0xff]
    %v2940 = vld [vmem:[%s1 + $0x178] sm:$0xff]
    %v2942 = vsel %vm65, %v2925, 0
    %v2945 = vsel %vm65, %v2926, 0
    %v2948 = vsel %vm65, %v2927, 0
    %v2951 = vsel %vm65, %v2928, 0
    %v2954 = vsel %vm65, %v2929, 0
    %v2957 = vsel %vm65, %v2930, 0
    %v2960 = vsel %vm65, %v2931, 0
    %v2963 = vsel %vm65, %v2932, 0
    %v2966 = vsel %vm65, %v2933, 0
    %v2969 = vsel %vm65, %v2934, 0
    %v2972 = vsel %vm65, %v2935, 0
    %v2975 = vsel %vm65, %v2936, 0
    %v2978 = vsel %vm65, %v2937, 0
    %v2981 = vsel %vm65, %v2938, 0
    %v2984 = vsel %vm65, %v2939, 0
    %v2987 = vsel %vm65, %v2940, 0
    %2989 = vmatprep.subr.mxu0 0.0
    %v2990 = vand.u32 %v2942, 4294901760
    %2991 = vmatpush1.xpose.msra.mxu0 %v2990
    %2992 = vmatprep.subr.mxu0 0.0
    %v2993 = vand.u32 %v2945, 4294901760
    %2994 = vmatpush1.xpose.msra.mxu0 %v2993
    %2995 = vmatprep.subr.mxu0 0.0
    %v2996 = vand.u32 %v2948, 4294901760
    %2997 = vmatpush1.xpose.msra.mxu0 %v2996
    %2998 = vmatprep.subr.mxu0 0.0
    %v2999 = vand.u32 %v2951, 4294901760
    %3000 = vmatpush1.xpose.msra.mxu0 %v2999
    %3001 = vmatprep.subr.mxu0 0.0
    %v3002 = vand.u32 %v2954, 4294901760
    %3003 = vmatpush1.xpose.msra.mxu0 %v3002
    %3004 = vmatprep.subr.mxu0 0.0
    %v3005 = vand.u32 %v2957, 4294901760
    %3006 = vmatpush1.xpose.msra.mxu0 %v3005
    %3007 = vmatprep.subr.mxu0 0.0
    %v3008 = vand.u32 %v2960, 4294901760
    %3009 = vmatpush1.xpose.msra.mxu0 %v3008
    %3010 = vmatprep.subr.mxu0 0.0
    %v3011 = vand.u32 %v2963, 4294901760
    %3012 = vmatpush1.xpose.msra.mxu0 %v3011
    %3013 = vmatprep.subr.mxu0 0.0
    %v3014 = vand.u32 %v2966, 4294901760
    %3015 = vmatpush1.xpose.msra.mxu0 %v3014
    %3016 = vmatprep.subr.mxu0 0.0
    %v3017 = vand.u32 %v2969, 4294901760
    %3018 = vmatpush1.xpose.msra.mxu0 %v3017
    %3019 = vmatprep.subr.mxu0 0.0
    %v3020 = vand.u32 %v2972, 4294901760
    %3021 = vmatpush1.xpose.msra.mxu0 %v3020
    %3022 = vmatprep.subr.mxu0 0.0
    %v3023 = vand.u32 %v2975, 4294901760
    %3024 = vmatpush1.xpose.msra.mxu0 %v3023
    %3025 = vmatprep.subr.mxu0 0.0
    %v3026 = vand.u32 %v2978, 4294901760
    %3027 = vmatpush1.xpose.msra.mxu0 %v3026
    %3028 = vmatprep.subr.mxu0 0.0
    %v3029 = vand.u32 %v2981, 4294901760
    %3030 = vmatpush1.xpose.msra.mxu0 %v3029
    %3031 = vmatprep.subr.mxu0 0.0
    %v3032 = vand.u32 %v2984, 4294901760
    %3033 = vmatpush1.xpose.msra.mxu0 %v3032
    %3034 = vmatprep.subr.mxu0 0.0
    %v3035 = vand.u32 %v2987, 4294901760
    %3036 = vmatpush1.xpose.msra.mxu0 %v3035
    %3037 = vmatprep.subr.mxu0 0.0
    %3038 = vmatpush1.xpose.msra.mxu0 0.0
    %3039 = vmatprep.subr.mxu0 0.0
    %3040 = vmatpush1.xpose.msra.mxu0 0.0
    %3041 = vmatprep.subr.mxu0 0.0
    %3042 = vmatpush1.xpose.msra.mxu0 0.0
    %3043 = vmatprep.subr.mxu0 0.0
    %3044 = vmatpush1.xpose.msra.mxu0 0.0
    %3045 = vmatprep.subr.mxu0 0.0
    %3046 = vmatpush1.xpose.msra.mxu0 0.0
    %3047 = vmatprep.subr.mxu0 0.0
    %3048 = vmatpush1.xpose.msra.mxu0 0.0
    %3049 = vmatprep.subr.mxu0 0.0
    %3050 = vmatpush1.xpose.msra.mxu0 0.0
    %3051 = vmatprep.subr.mxu0 0.0
    %3052 = vmatpush1.xpose.msra.mxu0 0.0
    %3053 = vmatprep.subr.mxu0 0.0
    %3054 = vmatpush1.xpose.msra.mxu0 0.0
    %3055 = vmatprep.subr.mxu0 0.0
    %3056 = vmatpush1.xpose.msra.mxu0 0.0
    %3057 = vmatprep.subr.mxu0 0.0
    %3058 = vmatpush1.xpose.msra.mxu0 0.0
    %3059 = vmatprep.subr.mxu0 0.0
    %3060 = vmatpush1.xpose.msra.mxu0 0.0
    %3061 = vmatprep.subr.mxu0 0.0
    %3062 = vmatpush1.xpose.msra.mxu0 0.0
    %3063 = vmatprep.subr.mxu0 0.0
    %3064 = vmatpush1.xpose.msra.mxu0 0.0
    %3065 = vmatprep.subr.mxu0 0.0
    %3066 = vmatpush1.xpose.msra.mxu0 0.0
    %3067 = vmatprep.subr.mxu0 0.0
    %3068 = vmatpush1.xpose.msra.mxu0 0.0
    %3069 = vmatprep.mubr.f32.mxu0 0.0
    %v3070 = vand.u32 %v67, 4294901760
    %v3071 = vsub.f32 %v67, %v3070
    %v3072 = vand.u32 %v3071, 4294901760
    %v3073 = vsub.f32 %v3071, %v3072
    %v3074 = vand.u32 %v3073, 4294901760
    %3075 = vmatmul.mubr.f32.gmra.mrb[0].mxu0 %v3074
    %v3076 = vpop.f32.mrb[0].mxu0
    %v3077 = vadd.f32 0.0, %v3076
    %v3078 = vpop.f32.mrb[0].mxu0
    %3079 = vdwg.mxu0
    %3080 = vmatprep.subr.mxu0 0.0
    %v3081 = vand.u32 %v2942, 4294901760
    %v3082 = vsub.f32 %v2942, %v3081
    %v3083 = vand.u32 %v3082, 4294901760
    %v3084 = vsub.f32 %v3082, %v3083
    %v3085 = vand.u32 %v3084, 4294901760
    %3086 = vmatpush1.xpose.msra.mxu0 %v3085
    %3087 = vmatprep.subr.mxu0 0.0
    %v3088 = vand.u32 %v2945, 4294901760
    %v3089 = vsub.f32 %v2945, %v3088
    %v3090 = vand.u32 %v3089, 4294901760
    %v3091 = vsub.f32 %v3089, %v3090
    %v3092 = vand.u32 %v3091, 4294901760
    %3093 = vmatpush1.xpose.msra.mxu0 %v3092
    %3094 = vmatprep.subr.mxu0 0.0
    %v3095 = vand.u32 %v2948, 4294901760
    %v3096 = vsub.f32 %v2948, %v3095
    %v3097 = vand.u32 %v3096, 4294901760
    %v3098 = vsub.f32 %v3096, %v3097
    %v3099 = vand.u32 %v3098, 4294901760
    %3100 = vmatpush1.xpose.msra.mxu0 %v3099
    %3101 = vmatprep.subr.mxu0 0.0
    %v3102 = vand.u32 %v2951, 4294901760
    %v3103 = vsub.f32 %v2951, %v3102
    %v3104 = vand.u32 %v3103, 4294901760
    %v3105 = vsub.f32 %v3103, %v3104
    %v3106 = vand.u32 %v3105, 4294901760
    %3107 = vmatpush1.xpose.msra.mxu0 %v3106
    %3108 = vmatprep.subr.mxu0 0.0
    %v3109 = vand.u32 %v2954, 4294901760
    %v3110 = vsub.f32 %v2954, %v3109
    %v3111 = vand.u32 %v3110, 4294901760
    %v3112 = vsub.f32 %v3110, %v3111
    %v3113 = vand.u32 %v3112, 4294901760
    %3114 = vmatpush1.xpose.msra.mxu0 %v3113
    %3115 = vmatprep.subr.mxu0 0.0
    %v3116 = vand.u32 %v2957, 4294901760
    %v3117 = vsub.f32 %v2957, %v3116
    %v3118 = vand.u32 %v3117, 4294901760
    %v3119 = vsub.f32 %v3117, %v3118
    %v3120 = vand.u32 %v3119, 4294901760
    %3121 = vmatpush1.xpose.msra.mxu0 %v3120
    %3122 = vmatprep.subr.mxu0 0.0
    %v3123 = vand.u32 %v2960, 4294901760
    %v3124 = vsub.f32 %v2960, %v3123
    %v3125 = vand.u32 %v3124, 4294901760
    %v3126 = vsub.f32 %v3124, %v3125
    %v3127 = vand.u32 %v3126, 4294901760
    %3128 = vmatpush1.xpose.msra.mxu0 %v3127
    %3129 = vmatprep.subr.mxu0 0.0
    %v3130 = vand.u32 %v2963, 4294901760
    %v3131 = vsub.f32 %v2963, %v3130
    %v3132 = vand.u32 %v3131, 4294901760
    %v3133 = vsub.f32 %v3131, %v3132
    %v3134 = vand.u32 %v3133, 4294901760
    %3135 = vmatpush1.xpose.msra.mxu0 %v3134
    %3136 = vmatprep.subr.mxu0 0.0
    %v3137 = vand.u32 %v2966, 4294901760
    %v3138 = vsub.f32 %v2966, %v3137
    %v3139 = vand.u32 %v3138, 4294901760
    %v3140 = vsub.f32 %v3138, %v3139
    %v3141 = vand.u32 %v3140, 4294901760
    %3142 = vmatpush1.xpose.msra.mxu0 %v3141
    %3143 = vmatprep.subr.mxu0 0.0
    %v3144 = vand.u32 %v2969, 4294901760
    %v3145 = vsub.f32 %v2969, %v3144
    %v3146 = vand.u32 %v3145, 4294901760
    %v3147 = vsub.f32 %v3145, %v3146
    %v3148 = vand.u32 %v3147, 4294901760
    %3149 = vmatpush1.xpose.msra.mxu0 %v3148
    %3150 = vmatprep.subr.mxu0 0.0
    %v3151 = vand.u32 %v2972, 4294901760
    %v3152 = vsub.f32 %v2972, %v3151
    %v3153 = vand.u32 %v3152, 4294901760
    %v3154 = vsub.f32 %v3152, %v3153
    %v3155 = vand.u32 %v3154, 4294901760
    %3156 = vmatpush1.xpose.msra.mxu0 %v3155
    %3157 = vmatprep.subr.mxu0 0.0
    %v3158 = vand.u32 %v2975, 4294901760
    %v3159 = vsub.f32 %v2975, %v3158
    %v3160 = vand.u32 %v3159, 4294901760
    %v3161 = vsub.f32 %v3159, %v3160
    %v3162 = vand.u32 %v3161, 4294901760
    %3163 = vmatpush1.xpose.msra.mxu0 %v3162
    %3164 = vmatprep.subr.mxu0 0.0
    %v3165 = vand.u32 %v2978, 4294901760
    %v3166 = vsub.f32 %v2978, %v3165
    %v3167 = vand.u32 %v3166, 4294901760
    %v3168 = vsub.f32 %v3166, %v3167
    %v3169 = vand.u32 %v3168, 4294901760
    %3170 = vmatpush1.xpose.msra.mxu0 %v3169
    %3171 = vmatprep.subr.mxu0 0.0
    %v3172 = vand.u32 %v2981, 4294901760
    %v3173 = vsub.f32 %v2981, %v3172
    %v3174 = vand.u32 %v3173, 4294901760
    %v3175 = vsub.f32 %v3173, %v3174
    %v3176 = vand.u32 %v3175, 4294901760
    %3177 = vmatpush1.xpose.msra.mxu0 %v3176
    %3178 = vmatprep.subr.mxu0 0.0
    %v3179 = vand.u32 %v2984, 4294901760
    %v3180 = vsub.f32 %v2984, %v3179
    %v3181 = vand.u32 %v3180, 4294901760
    %v3182 = vsub.f32 %v3180, %v3181
    %v3183 = vand.u32 %v3182, 4294901760
    %3184 = vmatpush1.xpose.msra.mxu0 %v3183
    %3185 = vmatprep.subr.mxu0 0.0
    %v3186 = vand.u32 %v2987, 4294901760
    %v3187 = vsub.f32 %v2987, %v3186
    %v3188 = vand.u32 %v3187, 4294901760
    %v3189 = vsub.f32 %v3187, %v3188
    %v3190 = vand.u32 %v3189, 4294901760
    %3191 = vmatpush1.xpose.msra.mxu0 %v3190
    %3192 = vmatprep.subr.mxu0 0.0
    %3193 = vmatpush1.xpose.msra.mxu0 0.0
    %3194 = vmatprep.subr.mxu0 0.0
    %3195 = vmatpush1.xpose.msra.mxu0 0.0
    %3196 = vmatprep.subr.mxu0 0.0
    %3197 = vmatpush1.xpose.msra.mxu0 0.0
    %3198 = vmatprep.subr.mxu0 0.0
    %3199 = vmatpush1.xpose.msra.mxu0 0.0
    %3200 = vmatprep.subr.mxu0 0.0
    %3201 = vmatpush1.xpose.msra.mxu0 0.0
    %3202 = vmatprep.subr.mxu0 0.0
    %3203 = vmatpush1.xpose.msra.mxu0 0.0
    %3204 = vmatprep.subr.mxu0 0.0
    %3205 = vmatpush1.xpose.msra.mxu0 0.0
    %3206 = vmatprep.subr.mxu0 0.0
    %3207 = vmatpush1.xpose.msra.mxu0 0.0
    %3208 = vmatprep.subr.mxu0 0.0
    %3209 = vmatpush1.xpose.msra.mxu0 0.0
    %3210 = vmatprep.subr.mxu0 0.0
    %3211 = vmatpush1.xpose.msra.mxu0 0.0
    %3212 = vmatprep.subr.mxu0 0.0
    %3213 = vmatpush1.xpose.msra.mxu0 0.0
    %3214 = vmatprep.subr.mxu0 0.0
    %3215 = vmatpush1.xpose.msra.mxu0 0.0
    %3216 = vmatprep.subr.mxu0 0.0
    %3217 = vmatpush1.xpose.msra.mxu0 0.0
    %3218 = vmatprep.subr.mxu0 0.0
    %3219 = vmatpush1.xpose.msra.mxu0 0.0
    %3220 = vmatprep.subr.mxu0 0.0
    %3221 = vmatpush1.xpose.msra.mxu0 0.0
    %3222 = vmatprep.subr.mxu0 0.0
    %3223 = vmatpush1.xpose.msra.mxu0 0.0
    %3224 = vmatprep.mubr.f32.mxu0 0.0
    %v3225 = vand.u32 %v67, 4294901760
    %3226 = vmatmul.mubr.f32.gmra.mrb[0].mxu0 %v3225
    %v3227 = vpop.f32.mrb[0].mxu0
    %v3228 = vadd.f32 %v3077, %v3227
    %v3229 = vpop.f32.mrb[0].mxu0
    %3230 = vdwg.mxu0
    %3231 = vmatprep.subr.mxu0 0.0
    %v3232 = vand.u32 %v2942, 4294901760
    %v3233 = vsub.f32 %v2942, %v3232
    %3234 = vmatpush1.xpose.msra.mxu0 %v3233
    %3235 = vmatprep.subr.mxu0 0.0
    %v3236 = vand.u32 %v2945, 4294901760
    %v3237 = vsub.f32 %v2945, %v3236
    %3238 = vmatpush1.xpose.msra.mxu0 %v3237
    %3239 = vmatprep.subr.mxu0 0.0
    %v3240 = vand.u32 %v2948, 4294901760
    %v3241 = vsub.f32 %v2948, %v3240
    %3242 = vmatpush1.xpose.msra.mxu0 %v3241
    %3243 = vmatprep.subr.mxu0 0.0
    %v3244 = vand.u32 %v2951, 4294901760
    %v3245 = vsub.f32 %v2951, %v3244
    %3246 = vmatpush1.xpose.msra.mxu0 %v3245
    %3247 = vmatprep.subr.mxu0 0.0
    %v3248 = vand.u32 %v2954, 4294901760
    %v3249 = vsub.f32 %v2954, %v3248
    %3250 = vmatpush1.xpose.msra.mxu0 %v3249
    %3251 = vmatprep.subr.mxu0 0.0
    %v3252 = vand.u32 %v2957, 4294901760
    %v3253 = vsub.f32 %v2957, %v3252
    %3254 = vmatpush1.xpose.msra.mxu0 %v3253
    %3255 = vmatprep.subr.mxu0 0.0
    %v3256 = vand.u32 %v2960, 4294901760
    %v3257 = vsub.f32 %v2960, %v3256
    %3258 = vmatpush1.xpose.msra.mxu0 %v3257
    %3259 = vmatprep.subr.mxu0 0.0
    %v3260 = vand.u32 %v2963, 4294901760
    %v3261 = vsub.f32 %v2963, %v3260
    %3262 = vmatpush1.xpose.msra.mxu0 %v3261
    %3263 = vmatprep.subr.mxu0 0.0
    %v3264 = vand.u32 %v2966, 4294901760
    %v3265 = vsub.f32 %v2966, %v3264
    %3266 = vmatpush1.xpose.msra.mxu0 %v3265
    %3267 = vmatprep.subr.mxu0 0.0
    %v3268 = vand.u32 %v2969, 4294901760
    %v3269 = vsub.f32 %v2969, %v3268
    %3270 = vmatpush1.xpose.msra.mxu0 %v3269
    %3271 = vmatprep.subr.mxu0 0.0
    %v3272 = vand.u32 %v2972, 4294901760
    %v3273 = vsub.f32 %v2972, %v3272
    %3274 = vmatpush1.xpose.msra.mxu0 %v3273
    %3275 = vmatprep.subr.mxu0 0.0
    %v3276 = vand.u32 %v2975, 4294901760
    %v3277 = vsub.f32 %v2975, %v3276
    %3278 = vmatpush1.xpose.msra.mxu0 %v3277
    %3279 = vmatprep.subr.mxu0 0.0
    %v3280 = vand.u32 %v2978, 4294901760
    %v3281 = vsub.f32 %v2978, %v3280
    %3282 = vmatpush1.xpose.msra.mxu0 %v3281
    %3283 = vmatprep.subr.mxu0 0.0
    %v3284 = vand.u32 %v2981, 4294901760
    %v3285 = vsub.f32 %v2981, %v3284
    %3286 = vmatpush1.xpose.msra.mxu0 %v3285
    %3287 = vmatprep.subr.mxu0 0.0
    %v3288 = vand.u32 %v2984, 4294901760
    %v3289 = vsub.f32 %v2984, %v3288
    %3290 = vmatpush1.xpose.msra.mxu0 %v3289
    %3291 = vmatprep.subr.mxu0 0.0
    %v3292 = vand.u32 %v2987, 4294901760
    %v3293 = vsub.f32 %v2987, %v3292
    %3294 = vmatpush1.xpose.msra.mxu0 %v3293
    %3295 = vmatprep.subr.mxu0 0.0
    %3296 = vmatpush1.xpose.msra.mxu0 0.0
    %3297 = vmatprep.subr.mxu0 0.0
    %3298 = vmatpush1.xpose.msra.mxu0 0.0
    %3299 = vmatprep.subr.mxu0 0.0
    %3300 = vmatpush1.xpose.msra.mxu0 0.0
    %3301 = vmatprep.subr.mxu0 0.0
    %3302 = vmatpush1.xpose.msra.mxu0 0.0
    %3303 = vmatprep.subr.mxu0 0.0
    %3304 = vmatpush1.xpose.msra.mxu0 0.0
    %3305 = vmatprep.subr.mxu0 0.0
    %3306 = vmatpush1.xpose.msra.mxu0 0.0
    %3307 = vmatprep.subr.mxu0 0.0
    %3308 = vmatpush1.xpose.msra.mxu0 0.0
    %3309 = vmatprep.subr.mxu0 0.0
    %3310 = vmatpush1.xpose.msra.mxu0 0.0
    %3311 = vmatprep.subr.mxu0 0.0
    %3312 = vmatpush1.xpose.msra.mxu0 0.0
    %3313 = vmatprep.subr.mxu0 0.0
    %3314 = vmatpush1.xpose.msra.mxu0 0.0
    %3315 = vmatprep.subr.mxu0 0.0
    %3316 = vmatpush1.xpose.msra.mxu0 0.0
    %3317 = vmatprep.subr.mxu0 0.0
    %3318 = vmatpush1.xpose.msra.mxu0 0.0
    %3319 = vmatprep.subr.mxu0 0.0
    %3320 = vmatpush1.xpose.msra.mxu0 0.0
    %3321 = vmatprep.subr.mxu0 0.0
    %3322 = vmatpush1.xpose.msra.mxu0 0.0
    %3323 = vmatprep.subr.mxu0 0.0
    %3324 = vmatpush1.xpose.msra.mxu0 0.0
    %3325 = vmatprep.subr.mxu0 0.0
    %3326 = vmatpush1.xpose.msra.mxu0 0.0
    %3327 = vmatprep.mubr.f32.mxu0 0.0
    %v3328 = vand.u32 %v67, 4294901760
    %v3329 = vsub.f32 %v67, %v3328
    %3330 = vmatmul.mubr.f32.gmra.mrb[0].mxu0 %v3329
    %v3331 = vpop.f32.mrb[0].mxu0
    %v3332 = vadd.f32 %v3228, %v3331
    %v3333 = vpop.f32.mrb[0].mxu0
    %3334 = vdwg.mxu0
    %3335 = vmatprep.subr.mxu0 0.0
    %v3336 = vand.u32 %v2942, 4294901760
    %3337 = vmatpush1.xpose.msra.mxu0 %v3336
    %3338 = vmatprep.subr.mxu0 0.0
    %v3339 = vand.u32 %v2945, 4294901760
    %3340 = vmatpush1.xpose.msra.mxu0 %v3339
    %3341 = vmatprep.subr.mxu0 0.0
    %v3342 = vand.u32 %v2948, 4294901760
    %3343 = vmatpush1.xpose.msra.mxu0 %v3342
    %3344 = vmatprep.subr.mxu0 0.0
    %v3345 = vand.u32 %v2951, 4294901760
    %3346 = vmatpush1.xpose.msra.mxu0 %v3345
    %3347 = vmatprep.subr.mxu0 0.0
    %v3348 = vand.u32 %v2954, 4294901760
    %3349 = vmatpush1.xpose.msra.mxu0 %v3348
    %3350 = vmatprep.subr.mxu0 0.0
    %v3351 = vand.u32 %v2957, 4294901760
    %3352 = vmatpush1.xpose.msra.mxu0 %v3351
    %3353 = vmatprep.subr.mxu0 0.0
    %v3354 = vand.u32 %v2960, 4294901760
    %3355 = vmatpush1.xpose.msra.mxu0 %v3354
    %3356 = vmatprep.subr.mxu0 0.0
    %v3357 = vand.u32 %v2963, 4294901760
    %3358 = vmatpush1.xpose.msra.mxu0 %v3357
    %3359 = vmatprep.subr.mxu0 0.0
    %v3360 = vand.u32 %v2966, 4294901760
    %3361 = vmatpush1.xpose.msra.mxu0 %v3360
    %3362 = vmatprep.subr.mxu0 0.0
    %v3363 = vand.u32 %v2969, 4294901760
    %3364 = vmatpush1.xpose.msra.mxu0 %v3363
    %3365 = vmatprep.subr.mxu0 0.0
    %v3366 = vand.u32 %v2972, 4294901760
    %3367 = vmatpush1.xpose.msra.mxu0 %v3366
    %3368 = vmatprep.subr.mxu0 0.0
    %v3369 = vand.u32 %v2975, 4294901760
    %3370 = vmatpush1.xpose.msra.mxu0 %v3369
    %3371 = vmatprep.subr.mxu0 0.0
    %v3372 = vand.u32 %v2978, 4294901760
    %3373 = vmatpush1.xpose.msra.mxu0 %v3372
    %3374 = vmatprep.subr.mxu0 0.0
    %v3375 = vand.u32 %v2981, 4294901760
    %3376 = vmatpush1.xpose.msra.mxu0 %v3375
    %3377 = vmatprep.subr.mxu0 0.0
    %v3378 = vand.u32 %v2984, 4294901760
    %3379 = vmatpush1.xpose.msra.mxu0 %v3378
    %3380 = vmatprep.subr.mxu0 0.0
    %v3381 = vand.u32 %v2987, 4294901760
    %3382 = vmatpush1.xpose.msra.mxu0 %v3381
    %3383 = vmatprep.subr.mxu0 0.0
    %3384 = vmatpush1.xpose.msra.mxu0 0.0
    %3385 = vmatprep.subr.mxu0 0.0
    %3386 = vmatpush1.xpose.msra.mxu0 0.0
    %3387 = vmatprep.subr.mxu0 0.0
    %3388 = vmatpush1.xpose.msra.mxu0 0.0
    %3389 = vmatprep.subr.mxu0 0.0
    %3390 = vmatpush1.xpose.msra.mxu0 0.0
    %3391 = vmatprep.subr.mxu0 0.0
    %3392 = vmatpush1.xpose.msra.mxu0 0.0
    %3393 = vmatprep.subr.mxu0 0.0
    %3394 = vmatpush1.xpose.msra.mxu0 0.0
    %3395 = vmatprep.subr.mxu0 0.0
    %3396 = vmatpush1.xpose.msra.mxu0 0.0
    %3397 = vmatprep.subr.mxu0 0.0
    %3398 = vmatpush1.xpose.msra.mxu0 0.0
    %3399 = vmatprep.subr.mxu0 0.0
    %3400 = vmatpush1.xpose.msra.mxu0 0.0
    %3401 = vmatprep.subr.mxu0 0.0
    %3402 = vmatpush1.xpose.msra.mxu0 0.0
    %3403 = vmatprep.subr.mxu0 0.0
    %3404 = vmatpush1.xpose.msra.mxu0 0.0
    %3405 = vmatprep.subr.mxu0 0.0
    %3406 = vmatpush1.xpose.msra.mxu0 0.0
    %3407 = vmatprep.subr.mxu0 0.0
    %3408 = vmatpush1.xpose.msra.mxu0 0.0
    %3409 = vmatprep.subr.mxu0 0.0
    %3410 = vmatpush1.xpose.msra.mxu0 0.0
    %3411 = vmatprep.subr.mxu0 0.0
    %3412 = vmatpush1.xpose.msra.mxu0 0.0
    %3413 = vmatprep.subr.mxu0 0.0
    %3414 = vmatpush1.xpose.msra.mxu0 0.0
    %3415 = vmatprep.mubr.f32.mxu0 0.0
    %v3416 = vand.u32 %v67, 4294901760
    %v3417 = vsub.f32 %v67, %v3416
    %v3418 = vand.u32 %v3417, 4294901760
    %3419 = vmatmul.mubr.f32.gmra.mrb[0].mxu0 %v3418
    %v3420 = vpop.f32.mrb[0].mxu0
    %v3421 = vadd.f32 %v3332, %v3420
    %v3422 = vpop.f32.mrb[0].mxu0
    %3423 = vdwg.mxu0
    %3424 = vmatprep.subr.mxu0 0.0
    %v3425 = vand.u32 %v2942, 4294901760
    %v3426 = vsub.f32 %v2942, %v3425
    %v3427 = vand.u32 %v3426, 4294901760
    %3428 = vmatpush1.xpose.msra.mxu0 %v3427
    %3429 = vmatprep.subr.mxu0 0.0
    %v3430 = vand.u32 %v2945, 4294901760
    %v3431 = vsub.f32 %v2945, %v3430
    %v3432 = vand.u32 %v3431, 4294901760
    %3433 = vmatpush1.xpose.msra.mxu0 %v3432
    %3434 = vmatprep.subr.mxu0 0.0
    %v3435 = vand.u32 %v2948, 4294901760
    %v3436 = vsub.f32 %v2948, %v3435
    %v3437 = vand.u32 %v3436, 4294901760
    %3438 = vmatpush1.xpose.msra.mxu0 %v3437
    %3439 = vmatprep.subr.mxu0 0.0
    %v3440 = vand.u32 %v2951, 4294901760
    %v3441 = vsub.f32 %v2951, %v3440
    %v3442 = vand.u32 %v3441, 4294901760
    %3443 = vmatpush1.xpose.msra.mxu0 %v3442
    %3444 = vmatprep.subr.mxu0 0.0
    %v3445 = vand.u32 %v2954, 4294901760
    %v3446 = vsub.f32 %v2954, %v3445
    %v3447 = vand.u32 %v3446, 4294901760
    %3448 = vmatpush1.xpose.msra.mxu0 %v3447
    %3449 = vmatprep.subr.mxu0 0.0
    %v3450 = vand.u32 %v2957, 4294901760
    %v3451 = vsub.f32 %v2957, %v3450
    %v3452 = vand.u32 %v3451, 4294901760
    %3453 = vmatpush1.xpose.msra.mxu0 %v3452
    %3454 = vmatprep.subr.mxu0 0.0
    %v3455 = vand.u32 %v2960, 4294901760
    %v3456 = vsub.f32 %v2960, %v3455
    %v3457 = vand.u32 %v3456, 4294901760
    %3458 = vmatpush1.xpose.msra.mxu0 %v3457
    %3459 = vmatprep.subr.mxu0 0.0
    %v3460 = vand.u32 %v2963, 4294901760
    %v3461 = vsub.f32 %v2963, %v3460
    %v3462 = vand.u32 %v3461, 4294901760
    %3463 = vmatpush1.xpose.msra.mxu0 %v3462
    %3464 = vmatprep.subr.mxu0 0.0
    %v3465 = vand.u32 %v2966, 4294901760
    %v3466 = vsub.f32 %v2966, %v3465
    %v3467 = vand.u32 %v3466, 4294901760
    %3468 = vmatpush1.xpose.msra.mxu0 %v3467
    %3469 = vmatprep.subr.mxu0 0.0
    %v3470 = vand.u32 %v2969, 4294901760
    %v3471 = vsub.f32 %v2969, %v3470
    %v3472 = vand.u32 %v3471, 4294901760
    %3473 = vmatpush1.xpose.msra.mxu0 %v3472
    %3474 = vmatprep.subr.mxu0 0.0
    %v3475 = vand.u32 %v2972, 4294901760
    %v3476 = vsub.f32 %v2972, %v3475
    %v3477 = vand.u32 %v3476, 4294901760
    %3478 = vmatpush1.xpose.msra.mxu0 %v3477
    %3479 = vmatprep.subr.mxu0 0.0
    %v3480 = vand.u32 %v2975, 4294901760
    %v3481 = vsub.f32 %v2975, %v3480
    %v3482 = vand.u32 %v3481, 4294901760
    %3483 = vmatpush1.xpose.msra.mxu0 %v3482
    %3484 = vmatprep.subr.mxu0 0.0
    %v3485 = vand.u32 %v2978, 4294901760
    %v3486 = vsub.f32 %v2978, %v3485
    %v3487 = vand.u32 %v3486, 4294901760
    %3488 = vmatpush1.xpose.msra.mxu0 %v3487
    %3489 = vmatprep.subr.mxu0 0.0
    %v3490 = vand.u32 %v2981, 4294901760
    %v3491 = vsub.f32 %v2981, %v3490
    %v3492 = vand.u32 %v3491, 4294901760
    %3493 = vmatpush1.xpose.msra.mxu0 %v3492
    %3494 = vmatprep.subr.mxu0 0.0
    %v3495 = vand.u32 %v2984, 4294901760
    %v3496 = vsub.f32 %v2984, %v3495
    %v3497 = vand.u32 %v3496, 4294901760
    %3498 = vmatpush1.xpose.msra.mxu0 %v3497
    %3499 = vmatprep.subr.mxu0 0.0
    %v3500 = vand.u32 %v2987, 4294901760
    %v3501 = vsub.f32 %v2987, %v3500
    %v3502 = vand.u32 %v3501, 4294901760
    %3503 = vmatpush1.xpose.msra.mxu0 %v3502
    %3504 = vmatprep.subr.mxu0 0.0
    %3505 = vmatpush1.xpose.msra.mxu0 0.0
    %3506 = vmatprep.subr.mxu0 0.0
    %3507 = vmatpush1.xpose.msra.mxu0 0.0
    %3508 = vmatprep.subr.mxu0 0.0
    %3509 = vmatpush1.xpose.msra.mxu0 0.0
    %3510 = vmatprep.subr.mxu0 0.0
    %3511 = vmatpush1.xpose.msra.mxu0 0.0
    %3512 = vmatprep.subr.mxu0 0.0
    %3513 = vmatpush1.xpose.msra.mxu0 0.0
    %3514 = vmatprep.subr.mxu0 0.0
    %3515 = vmatpush1.xpose.msra.mxu0 0.0
    %3516 = vmatprep.subr.mxu0 0.0
    %3517 = vmatpush1.xpose.msra.mxu0 0.0
    %3518 = vmatprep.subr.mxu0 0.0
    %3519 = vmatpush1.xpose.msra.mxu0 0.0
    %3520 = vmatprep.subr.mxu0 0.0
    %3521 = vmatpush1.xpose.msra.mxu0 0.0
    %3522 = vmatprep.subr.mxu0 0.0
    %3523 = vmatpush1.xpose.msra.mxu0 0.0
    %3524 = vmatprep.subr.mxu0 0.0
    %3525 = vmatpush1.xpose.msra.mxu0 0.0
    %3526 = vmatprep.subr.mxu0 0.0
    %3527 = vmatpush1.xpose.msra.mxu0 0.0
    %3528 = vmatprep.subr.mxu0 0.0
    %3529 = vmatpush1.xpose.msra.mxu0 0.0
    %3530 = vmatprep.subr.mxu0 0.0
    %3531 = vmatpush1.xpose.msra.mxu0 0.0
    %3532 = vmatprep.subr.mxu0 0.0
    %3533 = vmatpush1.xpose.msra.mxu0 0.0
    %3534 = vmatprep.subr.mxu0 0.0
    %3535 = vmatpush1.xpose.msra.mxu0 0.0
    %3536 = vmatprep.mubr.f32.mxu0 0.0
    %v3537 = vand.u32 %v67, 4294901760
    %3538 = vmatmul.mubr.f32.gmra.mrb[0].mxu0 %v3537
    %v3539 = vpop.f32.mrb[0].mxu0
    %v3540 = vadd.f32 %v3421, %v3539
    %v3541 = vpop.f32.mrb[0].mxu0
    %3542 = vdwg.mxu0
    %3543 = vmatprep.subr.mxu0 0.0
    %v3544 = vand.u32 %v2942, 4294901760
    %3545 = vmatpush1.xpose.msra.mxu0 %v3544
    %3546 = vmatprep.subr.mxu0 0.0
    %v3547 = vand.u32 %v2945, 4294901760
    %3548 = vmatpush1.xpose.msra.mxu0 %v3547
    %3549 = vmatprep.subr.mxu0 0.0
    %v3550 = vand.u32 %v2948, 4294901760
    %3551 = vmatpush1.xpose.msra.mxu0 %v3550
    %3552 = vmatprep.subr.mxu0 0.0
    %v3553 = vand.u32 %v2951, 4294901760
    %3554 = vmatpush1.xpose.msra.mxu0 %v3553
    %3555 = vmatprep.subr.mxu0 0.0
    %v3556 = vand.u32 %v2954, 4294901760
    %3557 = vmatpush1.xpose.msra.mxu0 %v3556
    %3558 = vmatprep.subr.mxu0 0.0
    %v3559 = vand.u32 %v2957, 4294901760
    %3560 = vmatpush1.xpose.msra.mxu0 %v3559
    %3561 = vmatprep.subr.mxu0 0.0
    %v3562 = vand.u32 %v2960, 4294901760
    %3563 = vmatpush1.xpose.msra.mxu0 %v3562
    %3564 = vmatprep.subr.mxu0 0.0
    %v3565 = vand.u32 %v2963, 4294901760
    %3566 = vmatpush1.xpose.msra.mxu0 %v3565
    %3567 = vmatprep.subr.mxu0 0.0
    %v3568 = vand.u32 %v2966, 4294901760
    %3569 = vmatpush1.xpose.msra.mxu0 %v3568
    %3570 = vmatprep.subr.mxu0 0.0
    %v3571 = vand.u32 %v2969, 4294901760
    %3572 = vmatpush1.xpose.msra.mxu0 %v3571
    %3573 = vmatprep.subr.mxu0 0.0
    %v3574 = vand.u32 %v2972, 4294901760
    %3575 = vmatpush1.xpose.msra.mxu0 %v3574
    %3576 = vmatprep.subr.mxu0 0.0
    %v3577 = vand.u32 %v2975, 4294901760
    %3578 = vmatpush1.xpose.msra.mxu0 %v3577
    %3579 = vmatprep.subr.mxu0 0.0
    %v3580 = vand.u32 %v2978, 4294901760
    %3581 = vmatpush1.xpose.msra.mxu0 %v3580
    %3582 = vmatprep.subr.mxu0 0.0
    %v3583 = vand.u32 %v2981, 4294901760
    %3584 = vmatpush1.xpose.msra.mxu0 %v3583
    %3585 = vmatprep.subr.mxu0 0.0
    %v3586 = vand.u32 %v2984, 4294901760
    %3587 = vmatpush1.xpose.msra.mxu0 %v3586
    %3588 = vmatprep.subr.mxu0 0.0
    %v3589 = vand.u32 %v2987, 4294901760
    %3590 = vmatpush1.xpose.msra.mxu0 %v3589
    %3591 = vmatprep.subr.mxu0 0.0
    %3592 = vmatpush1.xpose.msra.mxu0 0.0
    %3593 = vmatprep.subr.mxu0 0.0
    %3594 = vmatpush1.xpose.msra.mxu0 0.0
    %3595 = vmatprep.subr.mxu0 0.0
    %3596 = vmatpush1.xpose.msra.mxu0 0.0
    %3597 = vmatprep.subr.mxu0 0.0
    %3598 = vmatpush1.xpose.msra.mxu0 0.0
    %3599 = vmatprep.subr.mxu0 0.0
    %3600 = vmatpush1.xpose.msra.mxu0 0.0
    %3601 = vmatprep.subr.mxu0 0.0
    %3602 = vmatpush1.xpose.msra.mxu0 0.0
    %3603 = vmatprep.subr.mxu0 0.0
    %3604 = vmatpush1.xpose.msra.mxu0 0.0
    %3605 = vmatprep.subr.mxu0 0.0
    %3606 = vmatpush1.xpose.msra.mxu0 0.0
    %3607 = vmatprep.subr.mxu0 0.0
    %3608 = vmatpush1.xpose.msra.mxu0 0.0
    %3609 = vmatprep.subr.mxu0 0.0
    %3610 = vmatpush1.xpose.msra.mxu0 0.0
    %3611 = vmatprep.subr.mxu0 0.0
    %3612 = vmatpush1.xpose.msra.mxu0 0.0
    %3613 = vmatprep.subr.mxu0 0.0
    %3614 = vmatpush1.xpose.msra.mxu0 0.0
    %3615 = vmatprep.subr.mxu0 0.0
    %3616 = vmatpush1.xpose.msra.mxu0 0.0
    %3617 = vmatprep.subr.mxu0 0.0
    %3618 = vmatpush1.xpose.msra.mxu0 0.0
    %3619 = vmatprep.subr.mxu0 0.0
    %3620 = vmatpush1.xpose.msra.mxu0 0.0
    %3621 = vmatprep.subr.mxu0 0.0
    %3622 = vmatpush1.xpose.msra.mxu0 0.0
    %3623 = vmatprep.mubr.f32.mxu0 0.0
    %v3624 = vand.u32 %v67, 4294901760
    %3625 = vmatmul.mubr.f32.gmra.mrb[0].mxu0 %v3624
    %v3626 = vpop.f32.mrb[0].mxu0
    %v3627 = vadd.f32 %v3540, %v3626
    %v3628 = vpop.f32.mrb[0].mxu0
    %3629 = vdwg.mxu0
    %v3631 = vsel %vm758, %v2909, 0
    %v3634 = vsel %vm758, %v2910, 0
    %v3637 = vsel %vm758, %v2911, 0
    %v3640 = vsel %vm758, %v2912, 0
    %v3643 = vsel %vm758, %v2913, 0
    %v3646 = vsel %vm758, %v2914, 0
    %v3649 = vsel %vm758, %v2915, 0
    %v3652 = vsel %vm758, %v2916, 0
    %v3655 = vsel %vm758, %v2917, 0
    %v3658 = vsel %vm758, %v2918, 0
    %v3661 = vsel %vm758, %v2919, 0
    %v3664 = vsel %vm758, %v2920, 0
    %v3667 = vsel %vm758, %v2921, 0
    %v3670 = vsel %vm758, %v2922, 0
    %v3673 = vsel %vm758, %v2923, 0
    %v3676 = vsel %vm758, %v2924, 0
    %3678 = vmatprep.subr.mxu0 0.0
    %v3679 = vand.u32 %v3631, 4294901760
    %3680 = vmatpush1.xpose.msra.mxu0 %v3679
    %3681 = vmatprep.subr.mxu0 0.0
    %v3682 = vand.u32 %v3634, 4294901760
    %3683 = vmatpush1.xpose.msra.mxu0 %v3682
    %3684 = vmatprep.subr.mxu0 0.0
    %v3685 = vand.u32 %v3637, 4294901760
    %3686 = vmatpush1.xpose.msra.mxu0 %v3685
    %3687 = vmatprep.subr.mxu0 0.0
    %v3688 = vand.u32 %v3640, 4294901760
    %3689 = vmatpush1.xpose.msra.mxu0 %v3688
    %3690 = vmatprep.subr.mxu0 0.0
    %v3691 = vand.u32 %v3643, 4294901760
    %3692 = vmatpush1.xpose.msra.mxu0 %v3691
    %3693 = vmatprep.subr.mxu0 0.0
    %v3694 = vand.u32 %v3646, 4294901760
    %3695 = vmatpush1.xpose.msra.mxu0 %v3694
    %3696 = vmatprep.subr.mxu0 0.0
    %v3697 = vand.u32 %v3649, 4294901760
    %3698 = vmatpush1.xpose.msra.mxu0 %v3697
    %3699 = vmatprep.subr.mxu0 0.0
    %v3700 = vand.u32 %v3652, 4294901760
    %3701 = vmatpush1.xpose.msra.mxu0 %v3700
    %3702 = vmatprep.subr.mxu0 0.0
    %v3703 = vand.u32 %v3655, 4294901760
    %3704 = vmatpush1.xpose.msra.mxu0 %v3703
    %3705 = vmatprep.subr.mxu0 0.0
    %v3706 = vand.u32 %v3658, 4294901760
    %3707 = vmatpush1.xpose.msra.mxu0 %v3706
    %3708 = vmatprep.subr.mxu0 0.0
    %v3709 = vand.u32 %v3661, 4294901760
    %3710 = vmatpush1.xpose.msra.mxu0 %v3709
    %3711 = vmatprep.subr.mxu0 0.0
    %v3712 = vand.u32 %v3664, 4294901760
    %3713 = vmatpush1.xpose.msra.mxu0 %v3712
    %3714 = vmatprep.subr.mxu0 0.0
    %v3715 = vand.u32 %v3667, 4294901760
    %3716 = vmatpush1.xpose.msra.mxu0 %v3715
    %3717 = vmatprep.subr.mxu0 0.0
    %v3718 = vand.u32 %v3670, 4294901760
    %3719 = vmatpush1.xpose.msra.mxu0 %v3718
    %3720 = vmatprep.subr.mxu0 0.0
    %v3721 = vand.u32 %v3673, 4294901760
    %3722 = vmatpush1.xpose.msra.mxu0 %v3721
    %3723 = vmatprep.subr.mxu0 0.0
    %v3724 = vand.u32 %v3676, 4294901760
    %3725 = vmatpush1.xpose.msra.mxu0 %v3724
    %3726 = vmatprep.subr.mxu0 0.0
    %3727 = vmatpush1.xpose.msra.mxu0 0.0
    %3728 = vmatprep.subr.mxu0 0.0
    %3729 = vmatpush1.xpose.msra.mxu0 0.0
    %3730 = vmatprep.subr.mxu0 0.0
    %3731 = vmatpush1.xpose.msra.mxu0 0.0
    %3732 = vmatprep.subr.mxu0 0.0
    %3733 = vmatpush1.xpose.msra.mxu0 0.0
    %3734 = vmatprep.subr.mxu0 0.0
    %3735 = vmatpush1.xpose.msra.mxu0 0.0
    %3736 = vmatprep.subr.mxu0 0.0
    %3737 = vmatpush1.xpose.msra.mxu0 0.0
    %3738 = vmatprep.subr.mxu0 0.0
    %3739 = vmatpush1.xpose.msra.mxu0 0.0
    %3740 = vmatprep.subr.mxu0 0.0
    %3741 = vmatpush1.xpose.msra.mxu0 0.0
    %3742 = vmatprep.subr.mxu0 0.0
    %3743 = vmatpush1.xpose.msra.mxu0 0.0
    %3744 = vmatprep.subr.mxu0 0.0
    %3745 = vmatpush1.xpose.msra.mxu0 0.0
    %3746 = vmatprep.subr.mxu0 0.0
    %3747 = vmatpush1.xpose.msra.mxu0 0.0
    %3748 = vmatprep.subr.mxu0 0.0
    %3749 = vmatpush1.xpose.msra.mxu0 0.0
    %3750 = vmatprep.subr.mxu0 0.0
    %3751 = vmatpush1.xpose.msra.mxu0 0.0
    %3752 = vmatprep.subr.mxu0 0.0
    %3753 = vmatpush1.xpose.msra.mxu0 0.0
    %3754 = vmatprep.subr.mxu0 0.0
    %3755 = vmatpush1.xpose.msra.mxu0 0.0
    %3756 = vmatprep.subr.mxu0 0.0
    %3757 = vmatpush1.xpose.msra.mxu0 0.0
    %3758 = vmatprep.mubr.f32.mxu0 0.0
    %v3759 = vand.u32 %v760, 4294901760
    %v3760 = vsub.f32 %v760, %v3759
    %v3761 = vand.u32 %v3760, 4294901760
    %v3762 = vsub.f32 %v3760, %v3761
    %v3763 = vand.u32 %v3762, 4294901760
    %3764 = vmatmul.mubr.f32.gmra.mrb[0].mxu0 %v3763
    %v3765 = vpop.f32.mrb[0].mxu0
    %v3766 = vadd.f32 %v3627, %v3765
    %v3767 = vpop.f32.mrb[0].mxu0
    %3768 = vdwg.mxu0
    %3769 = vmatprep.subr.mxu0 0.0
    %v3770 = vand.u32 %v3631, 4294901760
    %v3771 = vsub.f32 %v3631, %v3770
    %v3772 = vand.u32 %v3771, 4294901760
    %v3773 = vsub.f32 %v3771, %v3772
    %v3774 = vand.u32 %v3773, 4294901760
    %3775 = vmatpush1.xpose.msra.mxu0 %v3774
    %3776 = vmatprep.subr.mxu0 0.0
    %v3777 = vand.u32 %v3634, 4294901760
    %v3778 = vsub.f32 %v3634, %v3777
    %v3779 = vand.u32 %v3778, 4294901760
    %v3780 = vsub.f32 %v3778, %v3779
    %v3781 = vand.u32 %v3780, 4294901760
    %3782 = vmatpush1.xpose.msra.mxu0 %v3781
    %3783 = vmatprep.subr.mxu0 0.0
    %v3784 = vand.u32 %v3637, 4294901760
    %v3785 = vsub.f32 %v3637, %v3784
    %v3786 = vand.u32 %v3785, 4294901760
    %v3787 = vsub.f32 %v3785, %v3786
    %v3788 = vand.u32 %v3787, 4294901760
    %3789 = vmatpush1.xpose.msra.mxu0 %v3788
    %3790 = vmatprep.subr.mxu0 0.0
    %v3791 = vand.u32 %v3640, 4294901760
    %v3792 = vsub.f32 %v3640, %v3791
    %v3793 = vand.u32 %v3792, 4294901760
    %v3794 = vsub.f32 %v3792, %v3793
    %v3795 = vand.u32 %v3794, 4294901760
    %3796 = vmatpush1.xpose.msra.mxu0 %v3795
    %3797 = vmatprep.subr.mxu0 0.0
    %v3798 = vand.u32 %v3643, 4294901760
    %v3799 = vsub.f32 %v3643, %v3798
    %v3800 = vand.u32 %v3799, 4294901760
    %v3801 = vsub.f32 %v3799, %v3800
    %v3802 = vand.u32 %v3801, 4294901760
    %3803 = vmatpush1.xpose.msra.mxu0 %v3802
    %3804 = vmatprep.subr.mxu0 0.0
    %v3805 = vand.u32 %v3646, 4294901760
    %v3806 = vsub.f32 %v3646, %v3805
    %v3807 = vand.u32 %v3806, 4294901760
    %v3808 = vsub.f32 %v3806, %v3807
    %v3809 = vand.u32 %v3808, 4294901760
    %3810 = vmatpush1.xpose.msra.mxu0 %v3809
    %3811 = vmatprep.subr.mxu0 0.0
    %v3812 = vand.u32 %v3649, 4294901760
    %v3813 = vsub.f32 %v3649, %v3812
    %v3814 = vand.u32 %v3813, 4294901760
    %v3815 = vsub.f32 %v3813, %v3814
    %v3816 = vand.u32 %v3815, 4294901760
    %3817 = vmatpush1.xpose.msra.mxu0 %v3816
    %3818 = vmatprep.subr.mxu0 0.0
    %v3819 = vand.u32 %v3652, 4294901760
    %v3820 = vsub.f32 %v3652, %v3819
    %v3821 = vand.u32 %v3820, 4294901760
    %v3822 = vsub.f32 %v3820, %v3821
    %v3823 = vand.u32 %v3822, 4294901760
    %3824 = vmatpush1.xpose.msra.mxu0 %v3823
    %3825 = vmatprep.subr.mxu0 0.0
    %v3826 = vand.u32 %v3655, 4294901760
    %v3827 = vsub.f32 %v3655, %v3826
    %v3828 = vand.u32 %v3827, 4294901760
    %v3829 = vsub.f32 %v3827, %v3828
    %v3830 = vand.u32 %v3829, 4294901760
    %3831 = vmatpush1.xpose.msra.mxu0 %v3830
    %3832 = vmatprep.subr.mxu0 0.0
    %v3833 = vand.u32 %v3658, 4294901760
    %v3834 = vsub.f32 %v3658, %v3833
    %v3835 = vand.u32 %v3834, 4294901760
    %v3836 = vsub.f32 %v3834, %v3835
    %v3837 = vand.u32 %v3836, 4294901760
    %3838 = vmatpush1.xpose.msra.mxu0 %v3837
    %3839 = vmatprep.subr.mxu0 0.0
    %v3840 = vand.u32 %v3661, 4294901760
    %v3841 = vsub.f32 %v3661, %v3840
    %v3842 = vand.u32 %v3841, 4294901760
    %v3843 = vsub.f32 %v3841, %v3842
    %v3844 = vand.u32 %v3843, 4294901760
    %3845 = vmatpush1.xpose.msra.mxu0 %v3844
    %3846 = vmatprep.subr.mxu0 0.0
    %v3847 = vand.u32 %v3664, 4294901760
    %v3848 = vsub.f32 %v3664, %v3847
    %v3849 = vand.u32 %v3848, 4294901760
    %v3850 = vsub.f32 %v3848, %v3849
    %v3851 = vand.u32 %v3850, 4294901760
    %3852 = vmatpush1.xpose.msra.mxu0 %v3851
    %3853 = vmatprep.subr.mxu0 0.0
    %v3854 = vand.u32 %v3667, 4294901760
    %v3855 = vsub.f32 %v3667, %v3854
    %v3856 = vand.u32 %v3855, 4294901760
    %v3857 = vsub.f32 %v3855, %v3856
    %v3858 = vand.u32 %v3857, 4294901760
    %3859 = vmatpush1.xpose.msra.mxu0 %v3858
    %3860 = vmatprep.subr.mxu0 0.0
    %v3861 = vand.u32 %v3670, 4294901760
    %v3862 = vsub.f32 %v3670, %v3861
    %v3863 = vand.u32 %v3862, 4294901760
    %v3864 = vsub.f32 %v3862, %v3863
    %v3865 = vand.u32 %v3864, 4294901760
    %3866 = vmatpush1.xpose.msra.mxu0 %v3865
    %3867 = vmatprep.subr.mxu0 0.0
    %v3868 = vand.u32 %v3673, 4294901760
    %v3869 = vsub.f32 %v3673, %v3868
    %v3870 = vand.u32 %v3869, 4294901760
    %v3871 = vsub.f32 %v3869, %v3870
    %v3872 = vand.u32 %v3871, 4294901760
    %3873 = vmatpush1.xpose.msra.mxu0 %v3872
    %3874 = vmatprep.subr.mxu0 0.0
    %v3875 = vand.u32 %v3676, 4294901760
    %v3876 = vsub.f32 %v3676, %v3875
    %v3877 = vand.u32 %v3876, 4294901760
    %v3878 = vsub.f32 %v3876, %v3877
    %v3879 = vand.u32 %v3878, 4294901760
    %3880 = vmatpush1.xpose.msra.mxu0 %v3879
    %3881 = vmatprep.subr.mxu0 0.0
    %3882 = vmatpush1.xpose.msra.mxu0 0.0
    %3883 = vmatprep.subr.mxu0 0.0
    %3884 = vmatpush1.xpose.msra.mxu0 0.0
    %3885 = vmatprep.subr.mxu0 0.0
    %3886 = vmatpush1.xpose.msra.mxu0 0.0
    %3887 = vmatprep.subr.mxu0 0.0
    %3888 = vmatpush1.xpose.msra.mxu0 0.0
    %3889 = vmatprep.subr.mxu0 0.0
    %3890 = vmatpush1.xpose.msra.mxu0 0.0
    %3891 = vmatprep.subr.mxu0 0.0
    %3892 = vmatpush1.xpose.msra.mxu0 0.0
    %3893 = vmatprep.subr.mxu0 0.0
    %3894 = vmatpush1.xpose.msra.mxu0 0.0
    %3895 = vmatprep.subr.mxu0 0.0
    %3896 = vmatpush1.xpose.msra.mxu0 0.0
    %3897 = vmatprep.subr.mxu0 0.0
    %3898 = vmatpush1.xpose.msra.mxu0 0.0
    %3899 = vmatprep.subr.mxu0 0.0
    %3900 = vmatpush1.xpose.msra.mxu0 0.0
    %3901 = vmatprep.subr.mxu0 0.0
    %3902 = vmatpush1.xpose.msra.mxu0 0.0
    %3903 = vmatprep.subr.mxu0 0.0
    %3904 = vmatpush1.xpose.msra.mxu0 0.0
    %3905 = vmatprep.subr.mxu0 0.0
    %3906 = vmatpush1.xpose.msra.mxu0 0.0
    %3907 = vmatprep.subr.mxu0 0.0
    %3908 = vmatpush1.xpose.msra.mxu0 0.0
    %3909 = vmatprep.subr.mxu0 0.0
    %3910 = vmatpush1.xpose.msra.mxu0 0.0
    %3911 = vmatprep.subr.mxu0 0.0
    %3912 = vmatpush1.xpose.msra.mxu0 0.0
    %3913 = vmatprep.mubr.f32.mxu0 0.0
    %v3914 = vand.u32 %v760, 4294901760
    %3915 = vmatmul.mubr.f32.gmra.mrb[0].mxu0 %v3914
    %v3916 = vpop.f32.mrb[0].mxu0
    %v3917 = vadd.f32 %v3766, %v3916
    %v3918 = vpop.f32.mrb[0].mxu0
    %3919 = vdwg.mxu0
    %3920 = vmatprep.subr.mxu0 0.0
    %v3921 = vand.u32 %v3631, 4294901760
    %v3922 = vsub.f32 %v3631, %v3921
    %3923 = vmatpush1.xpose.msra.mxu0 %v3922
    %3924 = vmatprep.subr.mxu0 0.0
    %v3925 = vand.u32 %v3634, 4294901760
    %v3926 = vsub.f32 %v3634, %v3925
    %3927 = vmatpush1.xpose.msra.mxu0 %v3926
    %3928 = vmatprep.subr.mxu0 0.0
    %v3929 = vand.u32 %v3637, 4294901760
    %v3930 = vsub.f32 %v3637, %v3929
    %3931 = vmatpush1.xpose.msra.mxu0 %v3930
    %3932 = vmatprep.subr.mxu0 0.0
    %v3933 = vand.u32 %v3640, 4294901760
    %v3934 = vsub.f32 %v3640, %v3933
    %3935 = vmatpush1.xpose.msra.mxu0 %v3934
    %3936 = vmatprep.subr.mxu0 0.0
    %v3937 = vand.u32 %v3643, 4294901760
    %v3938 = vsub.f32 %v3643, %v3937
    %3939 = vmatpush1.xpose.msra.mxu0 %v3938
    %3940 = vmatprep.subr.mxu0 0.0
    %v3941 = vand.u32 %v3646, 4294901760
    %v3942 = vsub.f32 %v3646, %v3941
    %3943 = vmatpush1.xpose.msra.mxu0 %v3942
    %3944 = vmatprep.subr.mxu0 0.0
    %v3945 = vand.u32 %v3649, 4294901760
    %v3946 = vsub.f32 %v3649, %v3945
    %3947 = vmatpush1.xpose.msra.mxu0 %v3946
    %3948 = vmatprep.subr.mxu0 0.0
    %v3949 = vand.u32 %v3652, 4294901760
    %v3950 = vsub.f32 %v3652, %v3949
    %3951 = vmatpush1.xpose.msra.mxu0 %v3950
    %3952 = vmatprep.subr.mxu0 0.0
    %v3953 = vand.u32 %v3655, 4294901760
    %v3954 = vsub.f32 %v3655, %v3953
    %3955 = vmatpush1.xpose.msra.mxu0 %v3954
    %3956 = vmatprep.subr.mxu0 0.0
    %v3957 = vand.u32 %v3658, 4294901760
    %v3958 = vsub.f32 %v3658, %v3957
    %3959 = vmatpush1.xpose.msra.mxu0 %v3958
    %3960 = vmatprep.subr.mxu0 0.0
    %v3961 = vand.u32 %v3661, 4294901760
    %v3962 = vsub.f32 %v3661, %v3961
    %3963 = vmatpush1.xpose.msra.mxu0 %v3962
    %3964 = vmatprep.subr.mxu0 0.0
    %v3965 = vand.u32 %v3664, 4294901760
    %v3966 = vsub.f32 %v3664, %v3965
    %3967 = vmatpush1.xpose.msra.mxu0 %v3966
    %3968 = vmatprep.subr.mxu0 0.0
    %v3969 = vand.u32 %v3667, 4294901760
    %v3970 = vsub.f32 %v3667, %v3969
    %3971 = vmatpush1.xpose.msra.mxu0 %v3970
    %3972 = vmatprep.subr.mxu0 0.0
    %v3973 = vand.u32 %v3670, 4294901760
    %v3974 = vsub.f32 %v3670, %v3973
    %3975 = vmatpush1.xpose.msra.mxu0 %v3974
    %3976 = vmatprep.subr.mxu0 0.0
    %v3977 = vand.u32 %v3673, 4294901760
    %v3978 = vsub.f32 %v3673, %v3977
    %3979 = vmatpush1.xpose.msra.mxu0 %v3978
    %3980 = vmatprep.subr.mxu0 0.0
    %v3981 = vand.u32 %v3676, 4294901760
    %v3982 = vsub.f32 %v3676, %v3981
    %3983 = vmatpush1.xpose.msra.mxu0 %v3982
    %3984 = vmatprep.subr.mxu0 0.0
    %3985 = vmatpush1.xpose.msra.mxu0 0.0
    %3986 = vmatprep.subr.mxu0 0.0
    %3987 = vmatpush1.xpose.msra.mxu0 0.0
    %3988 = vmatprep.subr.mxu0 0.0
    %3989 = vmatpush1.xpose.msra.mxu0 0.0
    %3990 = vmatprep.subr.mxu0 0.0
    %3991 = vmatpush1.xpose.msra.mxu0 0.0
    %3992 = vmatprep.subr.mxu0 0.0
    %3993 = vmatpush1.xpose.msra.mxu0 0.0
    %3994 = vmatprep.subr.mxu0 0.0
    %3995 = vmatpush1.xpose.msra.mxu0 0.0
    %3996 = vmatprep.subr.mxu0 0.0
    %3997 = vmatpush1.xpose.msra.mxu0 0.0
    %3998 = vmatprep.subr.mxu0 0.0
    %3999 = vmatpush1.xpose.msra.mxu0 0.0
    %4000 = vmatprep.subr.mxu0 0.0
    %4001 = vmatpush1.xpose.msra.mxu0 0.0
    %4002 = vmatprep.subr.mxu0 0.0
    %4003 = vmatpush1.xpose.msra.mxu0 0.0
    %4004 = vmatprep.subr.mxu0 0.0
    %4005 = vmatpush1.xpose.msra.mxu0 0.0
    %4006 = vmatprep.subr.mxu0 0.0
    %4007 = vmatpush1.xpose.msra.mxu0 0.0
    %4008 = vmatprep.subr.mxu0 0.0
    %4009 = vmatpush1.xpose.msra.mxu0 0.0
    %4010 = vmatprep.subr.mxu0 0.0
    %4011 = vmatpush1.xpose.msra.mxu0 0.0
    %4012 = vmatprep.subr.mxu0 0.0
    %4013 = vmatpush1.xpose.msra.mxu0 0.0
    %4014 = vmatprep.subr.mxu0 0.0
    %4015 = vmatpush1.xpose.msra.mxu0 0.0
    %4016 = vmatprep.mubr.f32.mxu0 0.0
    %v4017 = vand.u32 %v760, 4294901760
    %v4018 = vsub.f32 %v760, %v4017
    %4019 = vmatmul.mubr.f32.gmra.mrb[0].mxu0 %v4018
    %v4020 = vpop.f32.mrb[0].mxu0
    %v4021 = vadd.f32 %v3917, %v4020
    %v4022 = vpop.f32.mrb[0].mxu0
    %4023 = vdwg.mxu0
    %4024 = vmatprep.subr.mxu0 0.0
    %v4025 = vand.u32 %v3631, 4294901760
    %4026 = vmatpush1.xpose.msra.mxu0 %v4025
    %4027 = vmatprep.subr.mxu0 0.0
    %v4028 = vand.u32 %v3634, 4294901760
    %4029 = vmatpush1.xpose.msra.mxu0 %v4028
    %4030 = vmatprep.subr.mxu0 0.0
    %v4031 = vand.u32 %v3637, 4294901760
    %4032 = vmatpush1.xpose.msra.mxu0 %v4031
    %4033 = vmatprep.subr.mxu0 0.0
    %v4034 = vand.u32 %v3640, 4294901760
    %4035 = vmatpush1.xpose.msra.mxu0 %v4034
    %4036 = vmatprep.subr.mxu0 0.0
    %v4037 = vand.u32 %v3643, 4294901760
    %4038 = vmatpush1.xpose.msra.mxu0 %v4037
    %4039 = vmatprep.subr.mxu0 0.0
    %v4040 = vand.u32 %v3646, 4294901760
    %4041 = vmatpush1.xpose.msra.mxu0 %v4040
    %4042 = vmatprep.subr.mxu0 0.0
    %v4043 = vand.u32 %v3649, 4294901760
    %4044 = vmatpush1.xpose.msra.mxu0 %v4043
    %4045 = vmatprep.subr.mxu0 0.0
    %v4046 = vand.u32 %v3652, 4294901760
    %4047 = vmatpush1.xpose.msra.mxu0 %v4046
    %4048 = vmatprep.subr.mxu0 0.0
    %v4049 = vand.u32 %v3655, 4294901760
    %4050 = vmatpush1.xpose.msra.mxu0 %v4049
    %4051 = vmatprep.subr.mxu0 0.0
    %v4052 = vand.u32 %v3658, 4294901760
    %4053 = vmatpush1.xpose.msra.mxu0 %v4052
    %4054 = vmatprep.subr.mxu0 0.0
    %v4055 = vand.u32 %v3661, 4294901760
    %4056 = vmatpush1.xpose.msra.mxu0 %v4055
    %4057 = vmatprep.subr.mxu0 0.0
    %v4058 = vand.u32 %v3664, 4294901760
    %4059 = vmatpush1.xpose.msra.mxu0 %v4058
    %4060 = vmatprep.subr.mxu0 0.0
    %v4061 = vand.u32 %v3667, 4294901760
    %4062 = vmatpush1.xpose.msra.mxu0 %v4061
    %4063 = vmatprep.subr.mxu0 0.0
    %v4064 = vand.u32 %v3670, 4294901760
    %4065 = vmatpush1.xpose.msra.mxu0 %v4064
    %4066 = vmatprep.subr.mxu0 0.0
    %v4067 = vand.u32 %v3673, 4294901760
    %4068 = vmatpush1.xpose.msra.mxu0 %v4067
    %4069 = vmatprep.subr.mxu0 0.0
    %v4070 = vand.u32 %v3676, 4294901760
    %4071 = vmatpush1.xpose.msra.mxu0 %v4070
    %4072 = vmatprep.subr.mxu0 0.0
    %4073 = vmatpush1.xpose.msra.mxu0 0.0
    %4074 = vmatprep.subr.mxu0 0.0
    %4075 = vmatpush1.xpose.msra.mxu0 0.0
    %4076 = vmatprep.subr.mxu0 0.0
    %4077 = vmatpush1.xpose.msra.mxu0 0.0
    %4078 = vmatprep.subr.mxu0 0.0
    %4079 = vmatpush1.xpose.msra.mxu0 0.0
    %4080 = vmatprep.subr.mxu0 0.0
    %4081 = vmatpush1.xpose.msra.mxu0 0.0
    %4082 = vmatprep.subr.mxu0 0.0
    %4083 = vmatpush1.xpose.msra.mxu0 0.0
    %4084 = vmatprep.subr.mxu0 0.0
    %4085 = vmatpush1.xpose.msra.mxu0 0.0
    %4086 = vmatprep.subr.mxu0 0.0
    %4087 = vmatpush1.xpose.msra.mxu0 0.0
    %4088 = vmatprep.subr.mxu0 0.0
    %4089 = vmatpush1.xpose.msra.mxu0 0.0
    %4090 = vmatprep.subr.mxu0 0.0
    %4091 = vmatpush1.xpose.msra.mxu0 0.0
    %4092 = vmatprep.subr.mxu0 0.0
    %4093 = vmatpush1.xpose.msra.mxu0 0.0
    %4094 = vmatprep.subr.mxu0 0.0
    %4095 = vmatpush1.xpose.msra.mxu0 0.0
    %4096 = vmatprep.subr.mxu0 0.0
    %4097 = vmatpush1.xpose.msra.mxu0 0.0
    %4098 = vmatprep.subr.mxu0 0.0
    %4099 = vmatpush1.xpose.msra.mxu0 0.0
    %4100 = vmatprep.subr.mxu0 0.0
    %4101 = vmatpush1.xpose.msra.mxu0 0.0
    %4102 = vmatprep.subr.mxu0 0.0
    %4103 = vmatpush1.xpose.msra.mxu0 0.0
    %4104 = vmatprep.mubr.f32.mxu0 0.0
    %v4105 = vand.u32 %v760, 4294901760
    %v4106 = vsub.f32 %v760, %v4105
    %v4107 = vand.u32 %v4106, 4294901760
    %4108 = vmatmul.mubr.f32.gmra.mrb[0].mxu0 %v4107
    %v4109 = vpop.f32.mrb[0].mxu0
    %v4110 = vadd.f32 %v4021, %v4109
    %v4111 = vpop.f32.mrb[0].mxu0
    %4112 = vdwg.mxu0
    %4113 = vmatprep.subr.mxu0 0.0
    %v4114 = vand.u32 %v3631, 4294901760
    %v4115 = vsub.f32 %v3631, %v4114
    %v4116 = vand.u32 %v4115, 4294901760
    %4117 = vmatpush1.xpose.msra.mxu0 %v4116
    %4118 = vmatprep.subr.mxu0 0.0
    %v4119 = vand.u32 %v3634, 4294901760
    %v4120 = vsub.f32 %v3634, %v4119
    %v4121 = vand.u32 %v4120, 4294901760
    %4122 = vmatpush1.xpose.msra.mxu0 %v4121
    %4123 = vmatprep.subr.mxu0 0.0
    %v4124 = vand.u32 %v3637, 4294901760
    %v4125 = vsub.f32 %v3637, %v4124
    %v4126 = vand.u32 %v4125, 4294901760
    %4127 = vmatpush1.xpose.msra.mxu0 %v4126
    %4128 = vmatprep.subr.mxu0 0.0
    %v4129 = vand.u32 %v3640, 4294901760
    %v4130 = vsub.f32 %v3640, %v4129
    %v4131 = vand.u32 %v4130, 4294901760
    %4132 = vmatpush1.xpose.msra.mxu0 %v4131
    %4133 = vmatprep.subr.mxu0 0.0
    %v4134 = vand.u32 %v3643, 4294901760
    %v4135 = vsub.f32 %v3643, %v4134
    %v4136 = vand.u32 %v4135, 4294901760
    %4137 = vmatpush1.xpose.msra.mxu0 %v4136
    %4138 = vmatprep.subr.mxu0 0.0
    %v4139 = vand.u32 %v3646, 4294901760
    %v4140 = vsub.f32 %v3646, %v4139
    %v4141 = vand.u32 %v4140, 4294901760
    %4142 = vmatpush1.xpose.msra.mxu0 %v4141
    %4143 = vmatprep.subr.mxu0 0.0
    %v4144 = vand.u32 %v3649, 4294901760
    %v4145 = vsub.f32 %v3649, %v4144
    %v4146 = vand.u32 %v4145, 4294901760
    %4147 = vmatpush1.xpose.msra.mxu0 %v4146
    %4148 = vmatprep.subr.mxu0 0.0
    %v4149 = vand.u32 %v3652, 4294901760
    %v4150 = vsub.f32 %v3652, %v4149
    %v4151 = vand.u32 %v4150, 4294901760
    %4152 = vmatpush1.xpose.msra.mxu0 %v4151
    %4153 = vmatprep.subr.mxu0 0.0
    %v4154 = vand.u32 %v3655, 4294901760
    %v4155 = vsub.f32 %v3655, %v4154
    %v4156 = vand.u32 %v4155, 4294901760
    %4157 = vmatpush1.xpose.msra.mxu0 %v4156
    %4158 = vmatprep.subr.mxu0 0.0
    %v4159 = vand.u32 %v3658, 4294901760
    %v4160 = vsub.f32 %v3658, %v4159
    %v4161 = vand.u32 %v4160, 4294901760
    %4162 = vmatpush1.xpose.msra.mxu0 %v4161
    %4163 = vmatprep.subr.mxu0 0.0
    %v4164 = vand.u32 %v3661, 4294901760
    %v4165 = vsub.f32 %v3661, %v4164
    %v4166 = vand.u32 %v4165, 4294901760
    %4167 = vmatpush1.xpose.msra.mxu0 %v4166
    %4168 = vmatprep.subr.mxu0 0.0
    %v4169 = vand.u32 %v3664, 4294901760
    %v4170 = vsub.f32 %v3664, %v4169
    %v4171 = vand.u32 %v4170, 4294901760
    %4172 = vmatpush1.xpose.msra.mxu0 %v4171
    %4173 = vmatprep.subr.mxu0 0.0
    %v4174 = vand.u32 %v3667, 4294901760
    %v4175 = vsub.f32 %v3667, %v4174
    %v4176 = vand.u32 %v4175, 4294901760
    %4177 = vmatpush1.xpose.msra.mxu0 %v4176
    %4178 = vmatprep.subr.mxu0 0.0
    %v4179 = vand.u32 %v3670, 4294901760
    %v4180 = vsub.f32 %v3670, %v4179
    %v4181 = vand.u32 %v4180, 4294901760
    %4182 = vmatpush1.xpose.msra.mxu0 %v4181
    %4183 = vmatprep.subr.mxu0 0.0
    %v4184 = vand.u32 %v3673, 4294901760
    %v4185 = vsub.f32 %v3673, %v4184
    %v4186 = vand.u32 %v4185, 4294901760
    %4187 = vmatpush1.xpose.msra.mxu0 %v4186
    %4188 = vmatprep.subr.mxu0 0.0
    %v4189 = vand.u32 %v3676, 4294901760
    %v4190 = vsub.f32 %v3676, %v4189
    %v4191 = vand.u32 %v4190, 4294901760
    %4192 = vmatpush1.xpose.msra.mxu0 %v4191
    %4193 = vmatprep.subr.mxu0 0.0
    %4194 = vmatpush1.xpose.msra.mxu0 0.0
    %4195 = vmatprep.subr.mxu0 0.0
    %4196 = vmatpush1.xpose.msra.mxu0 0.0
    %4197 = vmatprep.subr.mxu0 0.0
    %4198 = vmatpush1.xpose.msra.mxu0 0.0
    %4199 = vmatprep.subr.mxu0 0.0
    %4200 = vmatpush1.xpose.msra.mxu0 0.0
    %4201 = vmatprep.subr.mxu0 0.0
    %4202 = vmatpush1.xpose.msra.mxu0 0.0
    %4203 = vmatprep.subr.mxu0 0.0
    %4204 = vmatpush1.xpose.msra.mxu0 0.0
    %4205 = vmatprep.subr.mxu0 0.0
    %4206 = vmatpush1.xpose.msra.mxu0 0.0
    %4207 = vmatprep.subr.mxu0 0.0
    %4208 = vmatpush1.xpose.msra.mxu0 0.0
    %4209 = vmatprep.subr.mxu0 0.0
    %4210 = vmatpush1.xpose.msra.mxu0 0.0
    %4211 = vmatprep.subr.mxu0 0.0
    %4212 = vmatpush1.xpose.msra.mxu0 0.0
    %4213 = vmatprep.subr.mxu0 0.0
    %4214 = vmatpush1.xpose.msra.mxu0 0.0
    %4215 = vmatprep.subr.mxu0 0.0
    %4216 = vmatpush1.xpose.msra.mxu0 0.0
    %4217 = vmatprep.subr.mxu0 0.0
    %4218 = vmatpush1.xpose.msra.mxu0 0.0
    %4219 = vmatprep.subr.mxu0 0.0
    %4220 = vmatpush1.xpose.msra.mxu0 0.0
    %4221 = vmatprep.subr.mxu0 0.0
    %4222 = vmatpush1.xpose.msra.mxu0 0.0
    %4223 = vmatprep.subr.mxu0 0.0
    %4224 = vmatpush1.xpose.msra.mxu0 0.0
    %4225 = vmatprep.mubr.f32.mxu0 0.0
    %v4226 = vand.u32 %v760, 4294901760
    %4227 = vmatmul.mubr.f32.gmra.mrb[0].mxu0 %v4226
    %v4228 = vpop.f32.mrb[0].mxu0
    %v4229 = vadd.f32 %v4110, %v4228
    %v4230 = vpop.f32.mrb[0].mxu0
    %4231 = vdwg.mxu0
    %4232 = vmatprep.subr.mxu0 0.0
    %v4233 = vand.u32 %v3631, 4294901760
    %4234 = vmatpush1.xpose.msra.mxu0 %v4233
    %4235 = vmatprep.subr.mxu0 0.0
    %v4236 = vand.u32 %v3634, 4294901760
    %4237 = vmatpush1.xpose.msra.mxu0 %v4236
    %4238 = vmatprep.subr.mxu0 0.0
    %v4239 = vand.u32 %v3637, 4294901760
    %4240 = vmatpush1.xpose.msra.mxu0 %v4239
    %4241 = vmatprep.subr.mxu0 0.0
    %v4242 = vand.u32 %v3640, 4294901760
    %4243 = vmatpush1.xpose.msra.mxu0 %v4242
    %4244 = vmatprep.subr.mxu0 0.0
    %v4245 = vand.u32 %v3643, 4294901760
    %4246 = vmatpush1.xpose.msra.mxu0 %v4245
    %4247 = vmatprep.subr.mxu0 0.0
    %v4248 = vand.u32 %v3646, 4294901760
    %4249 = vmatpush1.xpose.msra.mxu0 %v4248
    %4250 = vmatprep.subr.mxu0 0.0
    %v4251 = vand.u32 %v3649, 4294901760
    %4252 = vmatpush1.xpose.msra.mxu0 %v4251
    %4253 = vmatprep.subr.mxu0 0.0
    %v4254 = vand.u32 %v3652, 4294901760
    %4255 = vmatpush1.xpose.msra.mxu0 %v4254
    %4256 = vmatprep.subr.mxu0 0.0
    %v4257 = vand.u32 %v3655, 4294901760
    %4258 = vmatpush1.xpose.msra.mxu0 %v4257
    %4259 = vmatprep.subr.mxu0 0.0
    %v4260 = vand.u32 %v3658, 4294901760
    %4261 = vmatpush1.xpose.msra.mxu0 %v4260
    %4262 = vmatprep.subr.mxu0 0.0
    %v4263 = vand.u32 %v3661, 4294901760
    %4264 = vmatpush1.xpose.msra.mxu0 %v4263
    %4265 = vmatprep.subr.mxu0 0.0
    %v4266 = vand.u32 %v3664, 4294901760
    %4267 = vmatpush1.xpose.msra.mxu0 %v4266
    %4268 = vmatprep.subr.mxu0 0.0
    %v4269 = vand.u32 %v3667, 4294901760
    %4270 = vmatpush1.xpose.msra.mxu0 %v4269
    %4271 = vmatprep.subr.mxu0 0.0
    %v4272 = vand.u32 %v3670, 4294901760
    %4273 = vmatpush1.xpose.msra.mxu0 %v4272
    %4274 = vmatprep.subr.mxu0 0.0
    %v4275 = vand.u32 %v3673, 4294901760
    %4276 = vmatpush1.xpose.msra.mxu0 %v4275
    %4277 = vmatprep.subr.mxu0 0.0
    %v4278 = vand.u32 %v3676, 4294901760
    %4279 = vmatpush1.xpose.msra.mxu0 %v4278
    %4280 = vmatprep.subr.mxu0 0.0
    %4281 = vmatpush1.xpose.msra.mxu0 0.0
    %4282 = vmatprep.subr.mxu0 0.0
    %4283 = vmatpush1.xpose.msra.mxu0 0.0
    %4284 = vmatprep.subr.mxu0 0.0
    %4285 = vmatpush1.xpose.msra.mxu0 0.0
    %4286 = vmatprep.subr.mxu0 0.0
    %4287 = vmatpush1.xpose.msra.mxu0 0.0
    %4288 = vmatprep.subr.mxu0 0.0
    %4289 = vmatpush1.xpose.msra.mxu0 0.0
    %4290 = vmatprep.subr.mxu0 0.0
    %4291 = vmatpush1.xpose.msra.mxu0 0.0
    %4292 = vmatprep.subr.mxu0 0.0
    %4293 = vmatpush1.xpose.msra.mxu0 0.0
    %4294 = vmatprep.subr.mxu0 0.0
    %4295 = vmatpush1.xpose.msra.mxu0 0.0
    %4296 = vmatprep.subr.mxu0 0.0
    %4297 = vmatpush1.xpose.msra.mxu0 0.0
    %4298 = vmatprep.subr.mxu0 0.0
    %4299 = vmatpush1.xpose.msra.mxu0 0.0
    %4300 = vmatprep.subr.mxu0 0.0
    %4301 = vmatpush1.xpose.msra.mxu0 0.0
    %4302 = vmatprep.subr.mxu0 0.0
    %4303 = vmatpush1.xpose.msra.mxu0 0.0
    %4304 = vmatprep.subr.mxu0 0.0
    %4305 = vmatpush1.xpose.msra.mxu0 0.0
    %4306 = vmatprep.subr.mxu0 0.0
    %4307 = vmatpush1.xpose.msra.mxu0 0.0
    %4308 = vmatprep.subr.mxu0 0.0
    %4309 = vmatpush1.xpose.msra.mxu0 0.0
    %4310 = vmatprep.subr.mxu0 0.0
    %4311 = vmatpush1.xpose.msra.mxu0 0.0
    %4312 = vmatprep.mubr.f32.mxu0 0.0
    %v4313 = vand.u32 %v760, 4294901760
    %4314 = vmatmul.mubr.f32.gmra.mrb[0].mxu0 %v4313
    %v4315 = vpop.f32.mrb[0].mxu0
    %v4316 = vadd.f32 %v4229, %v4315
    %v4317 = vpop.f32.mrb[0].mxu0
    %4318 = vdwg.mxu0
    %v4319 = vadd.f32 %v4316, %v1454
    %v4320 = vmax.f32 %v4319, 0.0
    %v4321 = vmul.f32 %v4320, %v1461
    %v4322 = vsel %vm1464, %v4321, 0.0
    %v4323 = vrot.slane %v4322, 4
    %v4324 = vadd.f32 %v4322, %v4323
    %v4325 = vrot.slane %v4324, 2
    %v4326 = vadd.f32 %v4324, %v4325
    %v4327 = vrot.slane %v4326, 1
    %v4328 = vadd.f32 %v4326, %v4327
    %v4329 = vadd.f32 %v4328, %v1472
    %v4330 = vxor.u32 %v4329, 2147483648
    %v4331 = vmul.f32 %v4330, 1.442695
    %v4332 = vpow.pop %v4331
    %v4333 = vadd.f32 %v4332, 1.0
    %v4334 = vrcp.pop %v4333
    %v4335 = vmul.f32 1.0, %v4334
    %4336 = vst [vmem:[#allocation3 + $0x2] sm:$0x1] %v4335
    %v4337 = vld [vmem:[%s0 + $0x180] sm:$0xff]
    %v4338 = vld [vmem:[%s0 + $0x188] sm:$0xff]
    %v4339 = vld [vmem:[%s0 + $0x190] sm:$0xff]
    %v4340 = vld [vmem:[%s0 + $0x198] sm:$0xff]
    %v4341 = vld [vmem:[%s0 + $0x1a0] sm:$0xff]
    %v4342 = vld [vmem:[%s0 + $0x1a8] sm:$0xff]
    %v4343 = vld [vmem:[%s0 + $0x1b0] sm:$0xff]
    %v4344 = vld [vmem:[%s0 + $0x1b8] sm:$0xff]
    %v4345 = vld [vmem:[%s0 + $0x1c0] sm:$0xff]
    %v4346 = vld [vmem:[%s0 + $0x1c8] sm:$0xff]
    %v4347 = vld [vmem:[%s0 + $0x1d0] sm:$0xff]
    %v4348 = vld [vmem:[%s0 + $0x1d8] sm:$0xff]
    %v4349 = vld [vmem:[%s0 + $0x1e0] sm:$0xff]
    %v4350 = vld [vmem:[%s0 + $0x1e8] sm:$0xff]
    %v4351 = vld [vmem:[%s0 + $0x1f0] sm:$0xff]
    %v4352 = vld [vmem:[%s0 + $0x1f8] sm:$0xff]
    %v4353 = vld [vmem:[%s1 + $0x180] sm:$0xff]
    %v4354 = vld [vmem:[%s1 + $0x188] sm:$0xff]
    %v4355 = vld [vmem:[%s1 + $0x190] sm:$0xff]
    %v4356 = vld [vmem:[%s1 + $0x198] sm:$0xff]
    %v4357 = vld [vmem:[%s1 + $0x1a0] sm:$0xff]
    %v4358 = vld [vmem:[%s1 + $0x1a8] sm:$0xff]
    %v4359 = vld [vmem:[%s1 + $0x1b0] sm:$0xff]
    %v4360 = vld [vmem:[%s1 + $0x1b8] sm:$0xff]
    %v4361 = vld [vmem:[%s1 + $0x1c0] sm:$0xff]
    %v4362 = vld [vmem:[%s1 + $0x1c8] sm:$0xff]
    %v4363 = vld [vmem:[%s1 + $0x1d0] sm:$0xff]
    %v4364 = vld [vmem:[%s1 + $0x1d8] sm:$0xff]
    %v4365 = vld [vmem:[%s1 + $0x1e0] sm:$0xff]
    %v4366 = vld [vmem:[%s1 + $0x1e8] sm:$0xff]
    %v4367 = vld [vmem:[%s1 + $0x1f0] sm:$0xff]
    %v4368 = vld [vmem:[%s1 + $0x1f8] sm:$0xff]
    %v4370 = vsel %vm65, %v4353, 0
    %v4373 = vsel %vm65, %v4354, 0
    %v4376 = vsel %vm65, %v4355, 0
    %v4379 = vsel %vm65, %v4356, 0
    %v4382 = vsel %vm65, %v4357, 0
    %v4385 = vsel %vm65, %v4358, 0
    %v4388 = vsel %vm65, %v4359, 0
    %v4391 = vsel %vm65, %v4360, 0
    %v4394 = vsel %vm65, %v4361, 0
    %v4397 = vsel %vm65, %v4362, 0
    %v4400 = vsel %vm65, %v4363, 0
    %v4403 = vsel %vm65, %v4364, 0
    %v4406 = vsel %vm65, %v4365, 0
    %v4409 = vsel %vm65, %v4366, 0
    %v4412 = vsel %vm65, %v4367, 0
    %v4415 = vsel %vm65, %v4368, 0
    %4417 = vmatprep.subr.mxu0 0.0
    %v4418 = vand.u32 %v4370, 4294901760
    %4419 = vmatpush1.xpose.msra.mxu0 %v4418
    %4420 = vmatprep.subr.mxu0 0.0
    %v4421 = vand.u32 %v4373, 4294901760
    %4422 = vmatpush1.xpose.msra.mxu0 %v4421
    %4423 = vmatprep.subr.mxu0 0.0
    %v4424 = vand.u32 %v4376, 4294901760
    %4425 = vmatpush1.xpose.msra.mxu0 %v4424
    %4426 = vmatprep.subr.mxu0 0.0
    %v4427 = vand.u32 %v4379, 4294901760
    %4428 = vmatpush1.xpose.msra.mxu0 %v4427
    %4429 = vmatprep.subr.mxu0 0.0
    %v4430 = vand.u32 %v4382, 4294901760
    %4431 = vmatpush1.xpose.msra.mxu0 %v4430
    %4432 = vmatprep.subr.mxu0 0.0
    %v4433 = vand.u32 %v4385, 4294901760
    %4434 = vmatpush1.xpose.msra.mxu0 %v4433
    %4435 = vmatprep.subr.mxu0 0.0
    %v4436 = vand.u32 %v4388, 4294901760
    %4437 = vmatpush1.xpose.msra.mxu0 %v4436
    %4438 = vmatprep.subr.mxu0 0.0
    %v4439 = vand.u32 %v4391, 4294901760
    %4440 = vmatpush1.xpose.msra.mxu0 %v4439
    %4441 = vmatprep.subr.mxu0 0.0
    %v4442 = vand.u32 %v4394, 4294901760
    %4443 = vmatpush1.xpose.msra.mxu0 %v4442
    %4444 = vmatprep.subr.mxu0 0.0
    %v4445 = vand.u32 %v4397, 4294901760
    %4446 = vmatpush1.xpose.msra.mxu0 %v4445
    %4447 = vmatprep.subr.mxu0 0.0
    %v4448 = vand.u32 %v4400, 4294901760
    %4449 = vmatpush1.xpose.msra.mxu0 %v4448
    %4450 = vmatprep.subr.mxu0 0.0
    %v4451 = vand.u32 %v4403, 4294901760
    %4452 = vmatpush1.xpose.msra.mxu0 %v4451
    %4453 = vmatprep.subr.mxu0 0.0
    %v4454 = vand.u32 %v4406, 4294901760
    %4455 = vmatpush1.xpose.msra.mxu0 %v4454
    %4456 = vmatprep.subr.mxu0 0.0
    %v4457 = vand.u32 %v4409, 4294901760
    %4458 = vmatpush1.xpose.msra.mxu0 %v4457
    %4459 = vmatprep.subr.mxu0 0.0
    %v4460 = vand.u32 %v4412, 4294901760
    %4461 = vmatpush1.xpose.msra.mxu0 %v4460
    %4462 = vmatprep.subr.mxu0 0.0
    %v4463 = vand.u32 %v4415, 4294901760
    %4464 = vmatpush1.xpose.msra.mxu0 %v4463
    %4465 = vmatprep.subr.mxu0 0.0
    %4466 = vmatpush1.xpose.msra.mxu0 0.0
    %4467 = vmatprep.subr.mxu0 0.0
    %4468 = vmatpush1.xpose.msra.mxu0 0.0
    %4469 = vmatprep.subr.mxu0 0.0
    %4470 = vmatpush1.xpose.msra.mxu0 0.0
    %4471 = vmatprep.subr.mxu0 0.0
    %4472 = vmatpush1.xpose.msra.mxu0 0.0
    %4473 = vmatprep.subr.mxu0 0.0
    %4474 = vmatpush1.xpose.msra.mxu0 0.0
    %4475 = vmatprep.subr.mxu0 0.0
    %4476 = vmatpush1.xpose.msra.mxu0 0.0
    %4477 = vmatprep.subr.mxu0 0.0
    %4478 = vmatpush1.xpose.msra.mxu0 0.0
    %4479 = vmatprep.subr.mxu0 0.0
    %4480 = vmatpush1.xpose.msra.mxu0 0.0
    %4481 = vmatprep.subr.mxu0 0.0
    %4482 = vmatpush1.xpose.msra.mxu0 0.0
    %4483 = vmatprep.subr.mxu0 0.0
    %4484 = vmatpush1.xpose.msra.mxu0 0.0
    %4485 = vmatprep.subr.mxu0 0.0
    %4486 = vmatpush1.xpose.msra.mxu0 0.0
    %4487 = vmatprep.subr.mxu0 0.0
    %4488 = vmatpush1.xpose.msra.mxu0 0.0
    %4489 = vmatprep.subr.mxu0 0.0
    %4490 = vmatpush1.xpose.msra.mxu0 0.0
    %4491 = vmatprep.subr.mxu0 0.0
    %4492 = vmatpush1.xpose.msra.mxu0 0.0
    %4493 = vmatprep.subr.mxu0 0.0
    %4494 = vmatpush1.xpose.msra.mxu0 0.0
    %4495 = vmatprep.subr.mxu0 0.0
    %4496 = vmatpush1.xpose.msra.mxu0 0.0
    %4497 = vmatprep.mubr.f32.mxu0 0.0
    %v4498 = vand.u32 %v67, 4294901760
    %v4499 = vsub.f32 %v67, %v4498
    %v4500 = vand.u32 %v4499, 4294901760
    %v4501 = vsub.f32 %v4499, %v4500
    %v4502 = vand.u32 %v4501, 4294901760
    %4503 = vmatmul.mubr.f32.gmra.mrb[0].mxu0 %v4502
    %v4504 = vpop.f32.mrb[0].mxu0
    %v4505 = vadd.f32 0.0, %v4504
    %v4506 = vpop.f32.mrb[0].mxu0
    %4507 = vdwg.mxu0
    %4508 = vmatprep.subr.mxu0 0.0
    %v4509 = vand.u32 %v4370, 4294901760
    %v4510 = vsub.f32 %v4370, %v4509
    %v4511 = vand.u32 %v4510, 4294901760
    %v4512 = vsub.f32 %v4510, %v4511
    %v4513 = vand.u32 %v4512, 4294901760
    %4514 = vmatpush1.xpose.msra.mxu0 %v4513
    %4515 = vmatprep.subr.mxu0 0.0
    %v4516 = vand.u32 %v4373, 4294901760
    %v4517 = vsub.f32 %v4373, %v4516
    %v4518 = vand.u32 %v4517, 4294901760
    %v4519 = vsub.f32 %v4517, %v4518
    %v4520 = vand.u32 %v4519, 4294901760
    %4521 = vmatpush1.xpose.msra.mxu0 %v4520
    %4522 = vmatprep.subr.mxu0 0.0
    %v4523 = vand.u32 %v4376, 4294901760
    %v4524 = vsub.f32 %v4376, %v4523
    %v4525 = vand.u32 %v4524, 4294901760
    %v4526 = vsub.f32 %v4524, %v4525
    %v4527 = vand.u32 %v4526, 4294901760
    %4528 = vmatpush1.xpose.msra.mxu0 %v4527
    %4529 = vmatprep.subr.mxu0 0.0
    %v4530 = vand.u32 %v4379, 4294901760
    %v4531 = vsub.f32 %v4379, %v4530
    %v4532 = vand.u32 %v4531, 4294901760
    %v4533 = vsub.f32 %v4531, %v4532
    %v4534 = vand.u32 %v4533, 4294901760
    %4535 = vmatpush1.xpose.msra.mxu0 %v4534
    %4536 = vmatprep.subr.mxu0 0.0
    %v4537 = vand.u32 %v4382, 4294901760
    %v4538 = vsub.f32 %v4382, %v4537
    %v4539 = vand.u32 %v4538, 4294901760
    %v4540 = vsub.f32 %v4538, %v4539
    %v4541 = vand.u32 %v4540, 4294901760
    %4542 = vmatpush1.xpose.msra.mxu0 %v4541
    %4543 = vmatprep.subr.mxu0 0.0
    %v4544 = vand.u32 %v4385, 4294901760
    %v4545 = vsub.f32 %v4385, %v4544
    %v4546 = vand.u32 %v4545, 4294901760
    %v4547 = vsub.f32 %v4545, %v4546
    %v4548 = vand.u32 %v4547, 4294901760
    %4549 = vmatpush1.xpose.msra.mxu0 %v4548
    %4550 = vmatprep.subr.mxu0 0.0
    %v4551 = vand.u32 %v4388, 4294901760
    %v4552 = vsub.f32 %v4388, %v4551
    %v4553 = vand.u32 %v4552, 4294901760
    %v4554 = vsub.f32 %v4552, %v4553
    %v4555 = vand.u32 %v4554, 4294901760
    %4556 = vmatpush1.xpose.msra.mxu0 %v4555
    %4557 = vmatprep.subr.mxu0 0.0
    %v4558 = vand.u32 %v4391, 4294901760
    %v4559 = vsub.f32 %v4391, %v4558
    %v4560 = vand.u32 %v4559, 4294901760
    %v4561 = vsub.f32 %v4559, %v4560
    %v4562 = vand.u32 %v4561, 4294901760
    %4563 = vmatpush1.xpose.msra.mxu0 %v4562
    %4564 = vmatprep.subr.mxu0 0.0
    %v4565 = vand.u32 %v4394, 4294901760
    %v4566 = vsub.f32 %v4394, %v4565
    %v4567 = vand.u32 %v4566, 4294901760
    %v4568 = vsub.f32 %v4566, %v4567
    %v4569 = vand.u32 %v4568, 4294901760
    %4570 = vmatpush1.xpose.msra.mxu0 %v4569
    %4571 = vmatprep.subr.mxu0 0.0
    %v4572 = vand.u32 %v4397, 4294901760
    %v4573 = vsub.f32 %v4397, %v4572
    %v4574 = vand.u32 %v4573, 4294901760
    %v4575 = vsub.f32 %v4573, %v4574
    %v4576 = vand.u32 %v4575, 4294901760
    %4577 = vmatpush1.xpose.msra.mxu0 %v4576
    %4578 = vmatprep.subr.mxu0 0.0
    %v4579 = vand.u32 %v4400, 4294901760
    %v4580 = vsub.f32 %v4400, %v4579
    %v4581 = vand.u32 %v4580, 4294901760
    %v4582 = vsub.f32 %v4580, %v4581
    %v4583 = vand.u32 %v4582, 4294901760
    %4584 = vmatpush1.xpose.msra.mxu0 %v4583
    %4585 = vmatprep.subr.mxu0 0.0
    %v4586 = vand.u32 %v4403, 4294901760
    %v4587 = vsub.f32 %v4403, %v4586
    %v4588 = vand.u32 %v4587, 4294901760
    %v4589 = vsub.f32 %v4587, %v4588
    %v4590 = vand.u32 %v4589, 4294901760
    %4591 = vmatpush1.xpose.msra.mxu0 %v4590
    %4592 = vmatprep.subr.mxu0 0.0
    %v4593 = vand.u32 %v4406, 4294901760
    %v4594 = vsub.f32 %v4406, %v4593
    %v4595 = vand.u32 %v4594, 4294901760
    %v4596 = vsub.f32 %v4594, %v4595
    %v4597 = vand.u32 %v4596, 4294901760
    %4598 = vmatpush1.xpose.msra.mxu0 %v4597
    %4599 = vmatprep.subr.mxu0 0.0
    %v4600 = vand.u32 %v4409, 4294901760
    %v4601 = vsub.f32 %v4409, %v4600
    %v4602 = vand.u32 %v4601, 4294901760
    %v4603 = vsub.f32 %v4601, %v4602
    %v4604 = vand.u32 %v4603, 4294901760
    %4605 = vmatpush1.xpose.msra.mxu0 %v4604
    %4606 = vmatprep.subr.mxu0 0.0
    %v4607 = vand.u32 %v4412, 4294901760
    %v4608 = vsub.f32 %v4412, %v4607
    %v4609 = vand.u32 %v4608, 4294901760
    %v4610 = vsub.f32 %v4608, %v4609
    %v4611 = vand.u32 %v4610, 4294901760
    %4612 = vmatpush1.xpose.msra.mxu0 %v4611
    %4613 = vmatprep.subr.mxu0 0.0
    %v4614 = vand.u32 %v4415, 4294901760
    %v4615 = vsub.f32 %v4415, %v4614
    %v4616 = vand.u32 %v4615, 4294901760
    %v4617 = vsub.f32 %v4615, %v4616
    %v4618 = vand.u32 %v4617, 4294901760
    %4619 = vmatpush1.xpose.msra.mxu0 %v4618
    %4620 = vmatprep.subr.mxu0 0.0
    %4621 = vmatpush1.xpose.msra.mxu0 0.0
    %4622 = vmatprep.subr.mxu0 0.0
    %4623 = vmatpush1.xpose.msra.mxu0 0.0
    %4624 = vmatprep.subr.mxu0 0.0
    %4625 = vmatpush1.xpose.msra.mxu0 0.0
    %4626 = vmatprep.subr.mxu0 0.0
    %4627 = vmatpush1.xpose.msra.mxu0 0.0
    %4628 = vmatprep.subr.mxu0 0.0
    %4629 = vmatpush1.xpose.msra.mxu0 0.0
    %4630 = vmatprep.subr.mxu0 0.0
    %4631 = vmatpush1.xpose.msra.mxu0 0.0
    %4632 = vmatprep.subr.mxu0 0.0
    %4633 = vmatpush1.xpose.msra.mxu0 0.0
    %4634 = vmatprep.subr.mxu0 0.0
    %4635 = vmatpush1.xpose.msra.mxu0 0.0
    %4636 = vmatprep.subr.mxu0 0.0
    %4637 = vmatpush1.xpose.msra.mxu0 0.0
    %4638 = vmatprep.subr.mxu0 0.0
    %4639 = vmatpush1.xpose.msra.mxu0 0.0
    %4640 = vmatprep.subr.mxu0 0.0
    %4641 = vmatpush1.xpose.msra.mxu0 0.0
    %4642 = vmatprep.subr.mxu0 0.0
    %4643 = vmatpush1.xpose.msra.mxu0 0.0
    %4644 = vmatprep.subr.mxu0 0.0
    %4645 = vmatpush1.xpose.msra.mxu0 0.0
    %4646 = vmatprep.subr.mxu0 0.0
    %4647 = vmatpush1.xpose.msra.mxu0 0.0
    %4648 = vmatprep.subr.mxu0 0.0
    %4649 = vmatpush1.xpose.msra.mxu0 0.0
    %4650 = vmatprep.subr.mxu0 0.0
    %4651 = vmatpush1.xpose.msra.mxu0 0.0
    %4652 = vmatprep.mubr.f32.mxu0 0.0
    %v4653 = vand.u32 %v67, 4294901760
    %4654 = vmatmul.mubr.f32.gmra.mrb[0].mxu0 %v4653
    %v4655 = vpop.f32.mrb[0].mxu0
    %v4656 = vadd.f32 %v4505, %v4655
    %v4657 = vpop.f32.mrb[0].mxu0
    %4658 = vdwg.mxu0
    %4659 = vmatprep.subr.mxu0 0.0
    %v4660 = vand.u32 %v4370, 4294901760
    %v4661 = vsub.f32 %v4370, %v4660
    %4662 = vmatpush1.xpose.msra.mxu0 %v4661
    %4663 = vmatprep.subr.mxu0 0.0
    %v4664 = vand.u32 %v4373, 4294901760
    %v4665 = vsub.f32 %v4373, %v4664
    %4666 = vmatpush1.xpose.msra.mxu0 %v4665
    %4667 = vmatprep.subr.mxu0 0.0
    %v4668 = vand.u32 %v4376, 4294901760
    %v4669 = vsub.f32 %v4376, %v4668
    %4670 = vmatpush1.xpose.msra.mxu0 %v4669
    %4671 = vmatprep.subr.mxu0 0.0
    %v4672 = vand.u32 %v4379, 4294901760
    %v4673 = vsub.f32 %v4379, %v4672
    %4674 = vmatpush1.xpose.msra.mxu0 %v4673
    %4675 = vmatprep.subr.mxu0 0.0
    %v4676 = vand.u32 %v4382, 4294901760
    %v4677 = vsub.f32 %v4382, %v4676
    %4678 = vmatpush1.xpose.msra.mxu0 %v4677
    %4679 = vmatprep.subr.mxu0 0.0
    %v4680 = vand.u32 %v4385, 4294901760
    %v4681 = vsub.f32 %v4385, %v4680
    %4682 = vmatpush1.xpose.msra.mxu0 %v4681
    %4683 = vmatprep.subr.mxu0 0.0
    %v4684 = vand.u32 %v4388, 4294901760
    %v4685 = vsub.f32 %v4388, %v4684
    %4686 = vmatpush1.xpose.msra.mxu0 %v4685
    %4687 = vmatprep.subr.mxu0 0.0
    %v4688 = vand.u32 %v4391, 4294901760
    %v4689 = vsub.f32 %v4391, %v4688
    %4690 = vmatpush1.xpose.msra.mxu0 %v4689
    %4691 = vmatprep.subr.mxu0 0.0
    %v4692 = vand.u32 %v4394, 4294901760
    %v4693 = vsub.f32 %v4394, %v4692
    %4694 = vmatpush1.xpose.msra.mxu0 %v4693
    %4695 = vmatprep.subr.mxu0 0.0
    %v4696 = vand.u32 %v4397, 4294901760
    %v4697 = vsub.f32 %v4397, %v4696
    %4698 = vmatpush1.xpose.msra.mxu0 %v4697
    %4699 = vmatprep.subr.mxu0 0.0
    %v4700 = vand.u32 %v4400, 4294901760
    %v4701 = vsub.f32 %v4400, %v4700
    %4702 = vmatpush1.xpose.msra.mxu0 %v4701
    %4703 = vmatprep.subr.mxu0 0.0
    %v4704 = vand.u32 %v4403, 4294901760
    %v4705 = vsub.f32 %v4403, %v4704
    %4706 = vmatpush1.xpose.msra.mxu0 %v4705
    %4707 = vmatprep.subr.mxu0 0.0
    %v4708 = vand.u32 %v4406, 4294901760
    %v4709 = vsub.f32 %v4406, %v4708
    %4710 = vmatpush1.xpose.msra.mxu0 %v4709
    %4711 = vmatprep.subr.mxu0 0.0
    %v4712 = vand.u32 %v4409, 4294901760
    %v4713 = vsub.f32 %v4409, %v4712
    %4714 = vmatpush1.xpose.msra.mxu0 %v4713
    %4715 = vmatprep.subr.mxu0 0.0
    %v4716 = vand.u32 %v4412, 4294901760
    %v4717 = vsub.f32 %v4412, %v4716
    %4718 = vmatpush1.xpose.msra.mxu0 %v4717
    %4719 = vmatprep.subr.mxu0 0.0
    %v4720 = vand.u32 %v4415, 4294901760
    %v4721 = vsub.f32 %v4415, %v4720
    %4722 = vmatpush1.xpose.msra.mxu0 %v4721
    %4723 = vmatprep.subr.mxu0 0.0
    %4724 = vmatpush1.xpose.msra.mxu0 0.0
    %4725 = vmatprep.subr.mxu0 0.0
    %4726 = vmatpush1.xpose.msra.mxu0 0.0
    %4727 = vmatprep.subr.mxu0 0.0
    %4728 = vmatpush1.xpose.msra.mxu0 0.0
    %4729 = vmatprep.subr.mxu0 0.0
    %4730 = vmatpush1.xpose.msra.mxu0 0.0
    %4731 = vmatprep.subr.mxu0 0.0
    %4732 = vmatpush1.xpose.msra.mxu0 0.0
    %4733 = vmatprep.subr.mxu0 0.0
    %4734 = vmatpush1.xpose.msra.mxu0 0.0
    %4735 = vmatprep.subr.mxu0 0.0
    %4736 = vmatpush1.xpose.msra.mxu0 0.0
    %4737 = vmatprep.subr.mxu0 0.0
    %4738 = vmatpush1.xpose.msra.mxu0 0.0
    %4739 = vmatprep.subr.mxu0 0.0
    %4740 = vmatpush1.xpose.msra.mxu0 0.0
    %4741 = vmatprep.subr.mxu0 0.0
    %4742 = vmatpush1.xpose.msra.mxu0 0.0
    %4743 = vmatprep.subr.mxu0 0.0
    %4744 = vmatpush1.xpose.msra.mxu0 0.0
    %4745 = vmatprep.subr.mxu0 0.0
    %4746 = vmatpush1.xpose.msra.mxu0 0.0
    %4747 = vmatprep.subr.mxu0 0.0
    %4748 = vmatpush1.xpose.msra.mxu0 0.0
    %4749 = vmatprep.subr.mxu0 0.0
    %4750 = vmatpush1.xpose.msra.mxu0 0.0
    %4751 = vmatprep.subr.mxu0 0.0
    %4752 = vmatpush1.xpose.msra.mxu0 0.0
    %4753 = vmatprep.subr.mxu0 0.0
    %4754 = vmatpush1.xpose.msra.mxu0 0.0
    %4755 = vmatprep.mubr.f32.mxu0 0.0
    %v4756 = vand.u32 %v67, 4294901760
    %v4757 = vsub.f32 %v67, %v4756
    %4758 = vmatmul.mubr.f32.gmra.mrb[0].mxu0 %v4757
    %v4759 = vpop.f32.mrb[0].mxu0
    %v4760 = vadd.f32 %v4656, %v4759
    %v4761 = vpop.f32.mrb[0].mxu0
    %4762 = vdwg.mxu0
    %4763 = vmatprep.subr.mxu0 0.0
    %v4764 = vand.u32 %v4370, 4294901760
    %4765 = vmatpush1.xpose.msra.mxu0 %v4764
    %4766 = vmatprep.subr.mxu0 0.0
    %v4767 = vand.u32 %v4373, 4294901760
    %4768 = vmatpush1.xpose.msra.mxu0 %v4767
    %4769 = vmatprep.subr.mxu0 0.0
    %v4770 = vand.u32 %v4376, 4294901760
    %4771 = vmatpush1.xpose.msra.mxu0 %v4770
    %4772 = vmatprep.subr.mxu0 0.0
    %v4773 = vand.u32 %v4379, 4294901760
    %4774 = vmatpush1.xpose.msra.mxu0 %v4773
    %4775 = vmatprep.subr.mxu0 0.0
    %v4776 = vand.u32 %v4382, 4294901760
    %4777 = vmatpush1.xpose.msra.mxu0 %v4776
    %4778 = vmatprep.subr.mxu0 0.0
    %v4779 = vand.u32 %v4385, 4294901760
    %4780 = vmatpush1.xpose.msra.mxu0 %v4779
    %4781 = vmatprep.subr.mxu0 0.0
    %v4782 = vand.u32 %v4388, 4294901760
    %4783 = vmatpush1.xpose.msra.mxu0 %v4782
    %4784 = vmatprep.subr.mxu0 0.0
    %v4785 = vand.u32 %v4391, 4294901760
    %4786 = vmatpush1.xpose.msra.mxu0 %v4785
    %4787 = vmatprep.subr.mxu0 0.0
    %v4788 = vand.u32 %v4394, 4294901760
    %4789 = vmatpush1.xpose.msra.mxu0 %v4788
    %4790 = vmatprep.subr.mxu0 0.0
    %v4791 = vand.u32 %v4397, 4294901760
    %4792 = vmatpush1.xpose.msra.mxu0 %v4791
    %4793 = vmatprep.subr.mxu0 0.0
    %v4794 = vand.u32 %v4400, 4294901760
    %4795 = vmatpush1.xpose.msra.mxu0 %v4794
    %4796 = vmatprep.subr.mxu0 0.0
    %v4797 = vand.u32 %v4403, 4294901760
    %4798 = vmatpush1.xpose.msra.mxu0 %v4797
    %4799 = vmatprep.subr.mxu0 0.0
    %v4800 = vand.u32 %v4406, 4294901760
    %4801 = vmatpush1.xpose.msra.mxu0 %v4800
    %4802 = vmatprep.subr.mxu0 0.0
    %v4803 = vand.u32 %v4409, 4294901760
    %4804 = vmatpush1.xpose.msra.mxu0 %v4803
    %4805 = vmatprep.subr.mxu0 0.0
    %v4806 = vand.u32 %v4412, 4294901760
    %4807 = vmatpush1.xpose.msra.mxu0 %v4806
    %4808 = vmatprep.subr.mxu0 0.0
    %v4809 = vand.u32 %v4415, 4294901760
    %4810 = vmatpush1.xpose.msra.mxu0 %v4809
    %4811 = vmatprep.subr.mxu0 0.0
    %4812 = vmatpush1.xpose.msra.mxu0 0.0
    %4813 = vmatprep.subr.mxu0 0.0
    %4814 = vmatpush1.xpose.msra.mxu0 0.0
    %4815 = vmatprep.subr.mxu0 0.0
    %4816 = vmatpush1.xpose.msra.mxu0 0.0
    %4817 = vmatprep.subr.mxu0 0.0
    %4818 = vmatpush1.xpose.msra.mxu0 0.0
    %4819 = vmatprep.subr.mxu0 0.0
    %4820 = vmatpush1.xpose.msra.mxu0 0.0
    %4821 = vmatprep.subr.mxu0 0.0
    %4822 = vmatpush1.xpose.msra.mxu0 0.0
    %4823 = vmatprep.subr.mxu0 0.0
    %4824 = vmatpush1.xpose.msra.mxu0 0.0
    %4825 = vmatprep.subr.mxu0 0.0
    %4826 = vmatpush1.xpose.msra.mxu0 0.0
    %4827 = vmatprep.subr.mxu0 0.0
    %4828 = vmatpush1.xpose.msra.mxu0 0.0
    %4829 = vmatprep.subr.mxu0 0.0
    %4830 = vmatpush1.xpose.msra.mxu0 0.0
    %4831 = vmatprep.subr.mxu0 0.0
    %4832 = vmatpush1.xpose.msra.mxu0 0.0
    %4833 = vmatprep.subr.mxu0 0.0
    %4834 = vmatpush1.xpose.msra.mxu0 0.0
    %4835 = vmatprep.subr.mxu0 0.0
    %4836 = vmatpush1.xpose.msra.mxu0 0.0
    %4837 = vmatprep.subr.mxu0 0.0
    %4838 = vmatpush1.xpose.msra.mxu0 0.0
    %4839 = vmatprep.subr.mxu0 0.0
    %4840 = vmatpush1.xpose.msra.mxu0 0.0
    %4841 = vmatprep.subr.mxu0 0.0
    %4842 = vmatpush1.xpose.msra.mxu0 0.0
    %4843 = vmatprep.mubr.f32.mxu0 0.0
    %v4844 = vand.u32 %v67, 4294901760
    %v4845 = vsub.f32 %v67, %v4844
    %v4846 = vand.u32 %v4845, 4294901760
    %4847 = vmatmul.mubr.f32.gmra.mrb[0].mxu0 %v4846
    %v4848 = vpop.f32.mrb[0].mxu0
    %v4849 = vadd.f32 %v4760, %v4848
    %v4850 = vpop.f32.mrb[0].mxu0
    %4851 = vdwg.mxu0
    %4852 = vmatprep.subr.mxu0 0.0
    %v4853 = vand.u32 %v4370, 4294901760
    %v4854 = vsub.f32 %v4370, %v4853
    %v4855 = vand.u32 %v4854, 4294901760
    %4856 = vmatpush1.xpose.msra.mxu0 %v4855
    %4857 = vmatprep.subr.mxu0 0.0
    %v4858 = vand.u32 %v4373, 4294901760
    %v4859 = vsub.f32 %v4373, %v4858
    %v4860 = vand.u32 %v4859, 4294901760
    %4861 = vmatpush1.xpose.msra.mxu0 %v4860
    %4862 = vmatprep.subr.mxu0 0.0
    %v4863 = vand.u32 %v4376, 4294901760
    %v4864 = vsub.f32 %v4376, %v4863
    %v4865 = vand.u32 %v4864, 4294901760
    %4866 = vmatpush1.xpose.msra.mxu0 %v4865
    %4867 = vmatprep.subr.mxu0 0.0
    %v4868 = vand.u32 %v4379, 4294901760
    %v4869 = vsub.f32 %v4379, %v4868
    %v4870 = vand.u32 %v4869, 4294901760
    %4871 = vmatpush1.xpose.msra.mxu0 %v4870
    %4872 = vmatprep.subr.mxu0 0.0
    %v4873 = vand.u32 %v4382, 4294901760
    %v4874 = vsub.f32 %v4382, %v4873
    %v4875 = vand.u32 %v4874, 4294901760
    %4876 = vmatpush1.xpose.msra.mxu0 %v4875
    %4877 = vmatprep.subr.mxu0 0.0
    %v4878 = vand.u32 %v4385, 4294901760
    %v4879 = vsub.f32 %v4385, %v4878
    %v4880 = vand.u32 %v4879, 4294901760
    %4881 = vmatpush1.xpose.msra.mxu0 %v4880
    %4882 = vmatprep.subr.mxu0 0.0
    %v4883 = vand.u32 %v4388, 4294901760
    %v4884 = vsub.f32 %v4388, %v4883
    %v4885 = vand.u32 %v4884, 4294901760
    %4886 = vmatpush1.xpose.msra.mxu0 %v4885
    %4887 = vmatprep.subr.mxu0 0.0
    %v4888 = vand.u32 %v4391, 4294901760
    %v4889 = vsub.f32 %v4391, %v4888
    %v4890 = vand.u32 %v4889, 4294901760
    %4891 = vmatpush1.xpose.msra.mxu0 %v4890
    %4892 = vmatprep.subr.mxu0 0.0
    %v4893 = vand.u32 %v4394, 4294901760
    %v4894 = vsub.f32 %v4394, %v4893
    %v4895 = vand.u32 %v4894, 4294901760
    %4896 = vmatpush1.xpose.msra.mxu0 %v4895
    %4897 = vmatprep.subr.mxu0 0.0
    %v4898 = vand.u32 %v4397, 4294901760
    %v4899 = vsub.f32 %v4397, %v4898
    %v4900 = vand.u32 %v4899, 4294901760
    %4901 = vmatpush1.xpose.msra.mxu0 %v4900
    %4902 = vmatprep.subr.mxu0 0.0
    %v4903 = vand.u32 %v4400, 4294901760
    %v4904 = vsub.f32 %v4400, %v4903
    %v4905 = vand.u32 %v4904, 4294901760
    %4906 = vmatpush1.xpose.msra.mxu0 %v4905
    %4907 = vmatprep.subr.mxu0 0.0
    %v4908 = vand.u32 %v4403, 4294901760
    %v4909 = vsub.f32 %v4403, %v4908
    %v4910 = vand.u32 %v4909, 4294901760
    %4911 = vmatpush1.xpose.msra.mxu0 %v4910
    %4912 = vmatprep.subr.mxu0 0.0
    %v4913 = vand.u32 %v4406, 4294901760
    %v4914 = vsub.f32 %v4406, %v4913
    %v4915 = vand.u32 %v4914, 4294901760
    %4916 = vmatpush1.xpose.msra.mxu0 %v4915
    %4917 = vmatprep.subr.mxu0 0.0
    %v4918 = vand.u32 %v4409, 4294901760
    %v4919 = vsub.f32 %v4409, %v4918
    %v4920 = vand.u32 %v4919, 4294901760
    %4921 = vmatpush1.xpose.msra.mxu0 %v4920
    %4922 = vmatprep.subr.mxu0 0.0
    %v4923 = vand.u32 %v4412, 4294901760
    %v4924 = vsub.f32 %v4412, %v4923
    %v4925 = vand.u32 %v4924, 4294901760
    %4926 = vmatpush1.xpose.msra.mxu0 %v4925
    %4927 = vmatprep.subr.mxu0 0.0
    %v4928 = vand.u32 %v4415, 4294901760
    %v4929 = vsub.f32 %v4415, %v4928
    %v4930 = vand.u32 %v4929, 4294901760
    %4931 = vmatpush1.xpose.msra.mxu0 %v4930
    %4932 = vmatprep.subr.mxu0 0.0
    %4933 = vmatpush1.xpose.msra.mxu0 0.0
    %4934 = vmatprep.subr.mxu0 0.0
    %4935 = vmatpush1.xpose.msra.mxu0 0.0
    %4936 = vmatprep.subr.mxu0 0.0
    %4937 = vmatpush1.xpose.msra.mxu0 0.0
    %4938 = vmatprep.subr.mxu0 0.0
    %4939 = vmatpush1.xpose.msra.mxu0 0.0
    %4940 = vmatprep.subr.mxu0 0.0
    %4941 = vmatpush1.xpose.msra.mxu0 0.0
    %4942 = vmatprep.subr.mxu0 0.0
    %4943 = vmatpush1.xpose.msra.mxu0 0.0
    %4944 = vmatprep.subr.mxu0 0.0
    %4945 = vmatpush1.xpose.msra.mxu0 0.0
    %4946 = vmatprep.subr.mxu0 0.0
    %4947 = vmatpush1.xpose.msra.mxu0 0.0
    %4948 = vmatprep.subr.mxu0 0.0
    %4949 = vmatpush1.xpose.msra.mxu0 0.0
    %4950 = vmatprep.subr.mxu0 0.0
    %4951 = vmatpush1.xpose.msra.mxu0 0.0
    %4952 = vmatprep.subr.mxu0 0.0
    %4953 = vmatpush1.xpose.msra.mxu0 0.0
    %4954 = vmatprep.subr.mxu0 0.0
    %4955 = vmatpush1.xpose.msra.mxu0 0.0
    %4956 = vmatprep.subr.mxu0 0.0
    %4957 = vmatpush1.xpose.msra.mxu0 0.0
    %4958 = vmatprep.subr.mxu0 0.0
    %4959 = vmatpush1.xpose.msra.mxu0 0.0
    %4960 = vmatprep.subr.mxu0 0.0
    %4961 = vmatpush1.xpose.msra.mxu0 0.0
    %4962 = vmatprep.subr.mxu0 0.0
    %4963 = vmatpush1.xpose.msra.mxu0 0.0
    %4964 = vmatprep.mubr.f32.mxu0 0.0
    %v4965 = vand.u32 %v67, 4294901760
    %4966 = vmatmul.mubr.f32.gmra.mrb[0].mxu0 %v4965
    %v4967 = vpop.f32.mrb[0].mxu0
    %v4968 = vadd.f32 %v4849, %v4967
    %v4969 = vpop.f32.mrb[0].mxu0
    %4970 = vdwg.mxu0
    %4971 = vmatprep.subr.mxu0 0.0
    %v4972 = vand.u32 %v4370, 4294901760
    %4973 = vmatpush1.xpose.msra.mxu0 %v4972
    %4974 = vmatprep.subr.mxu0 0.0
    %v4975 = vand.u32 %v4373, 4294901760
    %4976 = vmatpush1.xpose.msra.mxu0 %v4975
    %4977 = vmatprep.subr.mxu0 0.0
    %v4978 = vand.u32 %v4376, 4294901760
    %4979 = vmatpush1.xpose.msra.mxu0 %v4978
    %4980 = vmatprep.subr.mxu0 0.0
    %v4981 = vand.u32 %v4379, 4294901760
    %4982 = vmatpush1.xpose.msra.mxu0 %v4981
    %4983 = vmatprep.subr.mxu0 0.0
    %v4984 = vand.u32 %v4382, 4294901760
    %4985 = vmatpush1.xpose.msra.mxu0 %v4984
    %4986 = vmatprep.subr.mxu0 0.0
    %v4987 = vand.u32 %v4385, 4294901760
    %4988 = vmatpush1.xpose.msra.mxu0 %v4987
    %4989 = vmatprep.subr.mxu0 0.0
    %v4990 = vand.u32 %v4388, 4294901760
    %4991 = vmatpush1.xpose.msra.mxu0 %v4990
    %4992 = vmatprep.subr.mxu0 0.0
    %v4993 = vand.u32 %v4391, 4294901760
    %4994 = vmatpush1.xpose.msra.mxu0 %v4993
    %4995 = vmatprep.subr.mxu0 0.0
    %v4996 = vand.u32 %v4394, 4294901760
    %4997 = vmatpush1.xpose.msra.mxu0 %v4996
    %4998 = vmatprep.subr.mxu0 0.0
    %v4999 = vand.u32 %v4397, 4294901760
    %5000 = vmatpush1.xpose.msra.mxu0 %v4999
    %5001 = vmatprep.subr.mxu0 0.0
    %v5002 = vand.u32 %v4400, 4294901760
    %5003 = vmatpush1.xpose.msra.mxu0 %v5002
    %5004 = vmatprep.subr.mxu0 0.0
    %v5005 = vand.u32 %v4403, 4294901760
    %5006 = vmatpush1.xpose.msra.mxu0 %v5005
    %5007 = vmatprep.subr.mxu0 0.0
    %v5008 = vand.u32 %v4406, 4294901760
    %5009 = vmatpush1.xpose.msra.mxu0 %v5008
    %5010 = vmatprep.subr.mxu0 0.0
    %v5011 = vand.u32 %v4409, 4294901760
    %5012 = vmatpush1.xpose.msra.mxu0 %v5011
    %5013 = vmatprep.subr.mxu0 0.0
    %v5014 = vand.u32 %v4412, 4294901760
    %5015 = vmatpush1.xpose.msra.mxu0 %v5014
    %5016 = vmatprep.subr.mxu0 0.0
    %v5017 = vand.u32 %v4415, 4294901760
    %5018 = vmatpush1.xpose.msra.mxu0 %v5017
    %5019 = vmatprep.subr.mxu0 0.0
    %5020 = vmatpush1.xpose.msra.mxu0 0.0
    %5021 = vmatprep.subr.mxu0 0.0
    %5022 = vmatpush1.xpose.msra.mxu0 0.0
    %5023 = vmatprep.subr.mxu0 0.0
    %5024 = vmatpush1.xpose.msra.mxu0 0.0
    %5025 = vmatprep.subr.mxu0 0.0
    %5026 = vmatpush1.xpose.msra.mxu0 0.0
    %5027 = vmatprep.subr.mxu0 0.0
    %5028 = vmatpush1.xpose.msra.mxu0 0.0
    %5029 = vmatprep.subr.mxu0 0.0
    %5030 = vmatpush1.xpose.msra.mxu0 0.0
    %5031 = vmatprep.subr.mxu0 0.0
    %5032 = vmatpush1.xpose.msra.mxu0 0.0
    %5033 = vmatprep.subr.mxu0 0.0
    %5034 = vmatpush1.xpose.msra.mxu0 0.0
    %5035 = vmatprep.subr.mxu0 0.0
    %5036 = vmatpush1.xpose.msra.mxu0 0.0
    %5037 = vmatprep.subr.mxu0 0.0
    %5038 = vmatpush1.xpose.msra.mxu0 0.0
    %5039 = vmatprep.subr.mxu0 0.0
    %5040 = vmatpush1.xpose.msra.mxu0 0.0
    %5041 = vmatprep.subr.mxu0 0.0
    %5042 = vmatpush1.xpose.msra.mxu0 0.0
    %5043 = vmatprep.subr.mxu0 0.0
    %5044 = vmatpush1.xpose.msra.mxu0 0.0
    %5045 = vmatprep.subr.mxu0 0.0
    %5046 = vmatpush1.xpose.msra.mxu0 0.0
    %5047 = vmatprep.subr.mxu0 0.0
    %5048 = vmatpush1.xpose.msra.mxu0 0.0
    %5049 = vmatprep.subr.mxu0 0.0
    %5050 = vmatpush1.xpose.msra.mxu0 0.0
    %5051 = vmatprep.mubr.f32.mxu0 0.0
    %v5052 = vand.u32 %v67, 4294901760
    %5053 = vmatmul.mubr.f32.gmra.mrb[0].mxu0 %v5052
    %v5054 = vpop.f32.mrb[0].mxu0
    %v5055 = vadd.f32 %v4968, %v5054
    %v5056 = vpop.f32.mrb[0].mxu0
    %5057 = vdwg.mxu0
    %v5059 = vsel %vm758, %v4337, 0
    %v5062 = vsel %vm758, %v4338, 0
    %v5065 = vsel %vm758, %v4339, 0
    %v5068 = vsel %vm758, %v4340, 0
    %v5071 = vsel %vm758, %v4341, 0
    %v5074 = vsel %vm758, %v4342, 0
    %v5077 = vsel %vm758, %v4343, 0
    %v5080 = vsel %vm758, %v4344, 0
    %v5083 = vsel %vm758, %v4345, 0
    %v5086 = vsel %vm758, %v4346, 0
    %v5089 = vsel %vm758, %v4347, 0
    %v5092 = vsel %vm758, %v4348, 0
    %v5095 = vsel %vm758, %v4349, 0
    %v5098 = vsel %vm758, %v4350, 0
    %v5101 = vsel %vm758, %v4351, 0
    %v5104 = vsel %vm758, %v4352, 0
    %5106 = vmatprep.subr.mxu0 0.0
    %v5107 = vand.u32 %v5059, 4294901760
    %5108 = vmatpush1.xpose.msra.mxu0 %v5107
    %5109 = vmatprep.subr.mxu0 0.0
    %v5110 = vand.u32 %v5062, 4294901760
    %5111 = vmatpush1.xpose.msra.mxu0 %v5110
    %5112 = vmatprep.subr.mxu0 0.0
    %v5113 = vand.u32 %v5065, 4294901760
    %5114 = vmatpush1.xpose.msra.mxu0 %v5113
    %5115 = vmatprep.subr.mxu0 0.0
    %v5116 = vand.u32 %v5068, 4294901760
    %5117 = vmatpush1.xpose.msra.mxu0 %v5116
    %5118 = vmatprep.subr.mxu0 0.0
    %v5119 = vand.u32 %v5071, 4294901760
    %5120 = vmatpush1.xpose.msra.mxu0 %v5119
    %5121 = vmatprep.subr.mxu0 0.0
    %v5122 = vand.u32 %v5074, 4294901760
    %5123 = vmatpush1.xpose.msra.mxu0 %v5122
    %5124 = vmatprep.subr.mxu0 0.0
    %v5125 = vand.u32 %v5077, 4294901760
    %5126 = vmatpush1.xpose.msra.mxu0 %v5125
    %5127 = vmatprep.subr.mxu0 0.0
    %v5128 = vand.u32 %v5080, 4294901760
    %5129 = vmatpush1.xpose.msra.mxu0 %v5128
    %5130 = vmatprep.subr.mxu0 0.0
    %v5131 = vand.u32 %v5083, 4294901760
    %5132 = vmatpush1.xpose.msra.mxu0 %v5131
    %5133 = vmatprep.subr.mxu0 0.0
    %v5134 = vand.u32 %v5086, 4294901760
    %5135 = vmatpush1.xpose.msra.mxu0 %v5134
    %5136 = vmatprep.subr.mxu0 0.0
    %v5137 = vand.u32 %v5089, 4294901760
    %5138 = vmatpush1.xpose.msra.mxu0 %v5137
    %5139 = vmatprep.subr.mxu0 0.0
    %v5140 = vand.u32 %v5092, 4294901760
    %5141 = vmatpush1.xpose.msra.mxu0 %v5140
    %5142 = vmatprep.subr.mxu0 0.0
    %v5143 = vand.u32 %v5095, 4294901760
    %5144 = vmatpush1.xpose.msra.mxu0 %v5143
    %5145 = vmatprep.subr.mxu0 0.0
    %v5146 = vand.u32 %v5098, 4294901760
    %5147 = vmatpush1.xpose.msra.mxu0 %v5146
    %5148 = vmatprep.subr.mxu0 0.0
    %v5149 = vand.u32 %v5101, 4294901760
    %5150 = vmatpush1.xpose.msra.mxu0 %v5149
    %5151 = vmatprep.subr.mxu0 0.0
    %v5152 = vand.u32 %v5104, 4294901760
    %5153 = vmatpush1.xpose.msra.mxu0 %v5152
    %5154 = vmatprep.subr.mxu0 0.0
    %5155 = vmatpush1.xpose.msra.mxu0 0.0
    %5156 = vmatprep.subr.mxu0 0.0
    %5157 = vmatpush1.xpose.msra.mxu0 0.0
    %5158 = vmatprep.subr.mxu0 0.0
    %5159 = vmatpush1.xpose.msra.mxu0 0.0
    %5160 = vmatprep.subr.mxu0 0.0
    %5161 = vmatpush1.xpose.msra.mxu0 0.0
    %5162 = vmatprep.subr.mxu0 0.0
    %5163 = vmatpush1.xpose.msra.mxu0 0.0
    %5164 = vmatprep.subr.mxu0 0.0
    %5165 = vmatpush1.xpose.msra.mxu0 0.0
    %5166 = vmatprep.subr.mxu0 0.0
    %5167 = vmatpush1.xpose.msra.mxu0 0.0
    %5168 = vmatprep.subr.mxu0 0.0
    %5169 = vmatpush1.xpose.msra.mxu0 0.0
    %5170 = vmatprep.subr.mxu0 0.0
    %5171 = vmatpush1.xpose.msra.mxu0 0.0
    %5172 = vmatprep.subr.mxu0 0.0
    %5173 = vmatpush1.xpose.msra.mxu0 0.0
    %5174 = vmatprep.subr.mxu0 0.0
    %5175 = vmatpush1.xpose.msra.mxu0 0.0
    %5176 = vmatprep.subr.mxu0 0.0
    %5177 = vmatpush1.xpose.msra.mxu0 0.0
    %5178 = vmatprep.subr.mxu0 0.0
    %5179 = vmatpush1.xpose.msra.mxu0 0.0
    %5180 = vmatprep.subr.mxu0 0.0
    %5181 = vmatpush1.xpose.msra.mxu0 0.0
    %5182 = vmatprep.subr.mxu0 0.0
    %5183 = vmatpush1.xpose.msra.mxu0 0.0
    %5184 = vmatprep.subr.mxu0 0.0
    %5185 = vmatpush1.xpose.msra.mxu0 0.0
    %5186 = vmatprep.mubr.f32.mxu0 0.0
    %v5187 = vand.u32 %v760, 4294901760
    %v5188 = vsub.f32 %v760, %v5187
    %v5189 = vand.u32 %v5188, 4294901760
    %v5190 = vsub.f32 %v5188, %v5189
    %v5191 = vand.u32 %v5190, 4294901760
    %5192 = vmatmul.mubr.f32.gmra.mrb[0].mxu0 %v5191
    %v5193 = vpop.f32.mrb[0].mxu0
    %v5194 = vadd.f32 %v5055, %v5193
    %v5195 = vpop.f32.mrb[0].mxu0
    %5196 = vdwg.mxu0
    %5197 = vmatprep.subr.mxu0 0.0
    %v5198 = vand.u32 %v5059, 4294901760
    %v5199 = vsub.f32 %v5059, %v5198
    %v5200 = vand.u32 %v5199, 4294901760
    %v5201 = vsub.f32 %v5199, %v5200
    %v5202 = vand.u32 %v5201, 4294901760
    %5203 = vmatpush1.xpose.msra.mxu0 %v5202
    %5204 = vmatprep.subr.mxu0 0.0
    %v5205 = vand.u32 %v5062, 4294901760
    %v5206 = vsub.f32 %v5062, %v5205
    %v5207 = vand.u32 %v5206, 4294901760
    %v5208 = vsub.f32 %v5206, %v5207
    %v5209 = vand.u32 %v5208, 4294901760
    %5210 = vmatpush1.xpose.msra.mxu0 %v5209
    %5211 = vmatprep.subr.mxu0 0.0
    %v5212 = vand.u32 %v5065, 4294901760
    %v5213 = vsub.f32 %v5065, %v5212
    %v5214 = vand.u32 %v5213, 4294901760
    %v5215 = vsub.f32 %v5213, %v5214
    %v5216 = vand.u32 %v5215, 4294901760
    %5217 = vmatpush1.xpose.msra.mxu0 %v5216
    %5218 = vmatprep.subr.mxu0 0.0
    %v5219 = vand.u32 %v5068, 4294901760
    %v5220 = vsub.f32 %v5068, %v5219
    %v5221 = vand.u32 %v5220, 4294901760
    %v5222 = vsub.f32 %v5220, %v5221
    %v5223 = vand.u32 %v5222, 4294901760
    %5224 = vmatpush1.xpose.msra.mxu0 %v5223
    %5225 = vmatprep.subr.mxu0 0.0
    %v5226 = vand.u32 %v5071, 4294901760
    %v5227 = vsub.f32 %v5071, %v5226
    %v5228 = vand.u32 %v5227, 4294901760
    %v5229 = vsub.f32 %v5227, %v5228
    %v5230 = vand.u32 %v5229, 4294901760
    %5231 = vmatpush1.xpose.msra.mxu0 %v5230
    %5232 = vmatprep.subr.mxu0 0.0
    %v5233 = vand.u32 %v5074, 4294901760
    %v5234 = vsub.f32 %v5074, %v5233
    %v5235 = vand.u32 %v5234, 4294901760
    %v5236 = vsub.f32 %v5234, %v5235
    %v5237 = vand.u32 %v5236, 4294901760
    %5238 = vmatpush1.xpose.msra.mxu0 %v5237
    %5239 = vmatprep.subr.mxu0 0.0
    %v5240 = vand.u32 %v5077, 4294901760
    %v5241 = vsub.f32 %v5077, %v5240
    %v5242 = vand.u32 %v5241, 4294901760
    %v5243 = vsub.f32 %v5241, %v5242
    %v5244 = vand.u32 %v5243, 4294901760
    %5245 = vmatpush1.xpose.msra.mxu0 %v5244
    %5246 = vmatprep.subr.mxu0 0.0
    %v5247 = vand.u32 %v5080, 4294901760
    %v5248 = vsub.f32 %v5080, %v5247
    %v5249 = vand.u32 %v5248, 4294901760
    %v5250 = vsub.f32 %v5248, %v5249
    %v5251 = vand.u32 %v5250, 4294901760
    %5252 = vmatpush1.xpose.msra.mxu0 %v5251
    %5253 = vmatprep.subr.mxu0 0.0
    %v5254 = vand.u32 %v5083, 4294901760
    %v5255 = vsub.f32 %v5083, %v5254
    %v5256 = vand.u32 %v5255, 4294901760
    %v5257 = vsub.f32 %v5255, %v5256
    %v5258 = vand.u32 %v5257, 4294901760
    %5259 = vmatpush1.xpose.msra.mxu0 %v5258
    %5260 = vmatprep.subr.mxu0 0.0
    %v5261 = vand.u32 %v5086, 4294901760
    %v5262 = vsub.f32 %v5086, %v5261
    %v5263 = vand.u32 %v5262, 4294901760
    %v5264 = vsub.f32 %v5262, %v5263
    %v5265 = vand.u32 %v5264, 4294901760
    %5266 = vmatpush1.xpose.msra.mxu0 %v5265
    %5267 = vmatprep.subr.mxu0 0.0
    %v5268 = vand.u32 %v5089, 4294901760
    %v5269 = vsub.f32 %v5089, %v5268
    %v5270 = vand.u32 %v5269, 4294901760
    %v5271 = vsub.f32 %v5269, %v5270
    %v5272 = vand.u32 %v5271, 4294901760
    %5273 = vmatpush1.xpose.msra.mxu0 %v5272
    %5274 = vmatprep.subr.mxu0 0.0
    %v5275 = vand.u32 %v5092, 4294901760
    %v5276 = vsub.f32 %v5092, %v5275
    %v5277 = vand.u32 %v5276, 4294901760
    %v5278 = vsub.f32 %v5276, %v5277
    %v5279 = vand.u32 %v5278, 4294901760
    %5280 = vmatpush1.xpose.msra.mxu0 %v5279
    %5281 = vmatprep.subr.mxu0 0.0
    %v5282 = vand.u32 %v5095, 4294901760
    %v5283 = vsub.f32 %v5095, %v5282
    %v5284 = vand.u32 %v5283, 4294901760
    %v5285 = vsub.f32 %v5283, %v5284
    %v5286 = vand.u32 %v5285, 4294901760
    %5287 = vmatpush1.xpose.msra.mxu0 %v5286
    %5288 = vmatprep.subr.mxu0 0.0
    %v5289 = vand.u32 %v5098, 4294901760
    %v5290 = vsub.f32 %v5098, %v5289
    %v5291 = vand.u32 %v5290, 4294901760
    %v5292 = vsub.f32 %v5290, %v5291
    %v5293 = vand.u32 %v5292, 4294901760
    %5294 = vmatpush1.xpose.msra.mxu0 %v5293
    %5295 = vmatprep.subr.mxu0 0.0
    %v5296 = vand.u32 %v5101, 4294901760
    %v5297 = vsub.f32 %v5101, %v5296
    %v5298 = vand.u32 %v5297, 4294901760
    %v5299 = vsub.f32 %v5297, %v5298
    %v5300 = vand.u32 %v5299, 4294901760
    %5301 = vmatpush1.xpose.msra.mxu0 %v5300
    %5302 = vmatprep.subr.mxu0 0.0
    %v5303 = vand.u32 %v5104, 4294901760
    %v5304 = vsub.f32 %v5104, %v5303
    %v5305 = vand.u32 %v5304, 4294901760
    %v5306 = vsub.f32 %v5304, %v5305
    %v5307 = vand.u32 %v5306, 4294901760
    %5308 = vmatpush1.xpose.msra.mxu0 %v5307
    %5309 = vmatprep.subr.mxu0 0.0
    %5310 = vmatpush1.xpose.msra.mxu0 0.0
    %5311 = vmatprep.subr.mxu0 0.0
    %5312 = vmatpush1.xpose.msra.mxu0 0.0
    %5313 = vmatprep.subr.mxu0 0.0
    %5314 = vmatpush1.xpose.msra.mxu0 0.0
    %5315 = vmatprep.subr.mxu0 0.0
    %5316 = vmatpush1.xpose.msra.mxu0 0.0
    %5317 = vmatprep.subr.mxu0 0.0
    %5318 = vmatpush1.xpose.msra.mxu0 0.0
    %5319 = vmatprep.subr.mxu0 0.0
    %5320 = vmatpush1.xpose.msra.mxu0 0.0
    %5321 = vmatprep.subr.mxu0 0.0
    %5322 = vmatpush1.xpose.msra.mxu0 0.0
    %5323 = vmatprep.subr.mxu0 0.0
    %5324 = vmatpush1.xpose.msra.mxu0 0.0
    %5325 = vmatprep.subr.mxu0 0.0
    %5326 = vmatpush1.xpose.msra.mxu0 0.0
    %5327 = vmatprep.subr.mxu0 0.0
    %5328 = vmatpush1.xpose.msra.mxu0 0.0
    %5329 = vmatprep.subr.mxu0 0.0
    %5330 = vmatpush1.xpose.msra.mxu0 0.0
    %5331 = vmatprep.subr.mxu0 0.0
    %5332 = vmatpush1.xpose.msra.mxu0 0.0
    %5333 = vmatprep.subr.mxu0 0.0
    %5334 = vmatpush1.xpose.msra.mxu0 0.0
    %5335 = vmatprep.subr.mxu0 0.0
    %5336 = vmatpush1.xpose.msra.mxu0 0.0
    %5337 = vmatprep.subr.mxu0 0.0
    %5338 = vmatpush1.xpose.msra.mxu0 0.0
    %5339 = vmatprep.subr.mxu0 0.0
    %5340 = vmatpush1.xpose.msra.mxu0 0.0
    %5341 = vmatprep.mubr.f32.mxu0 0.0
    %v5342 = vand.u32 %v760, 4294901760
    %5343 = vmatmul.mubr.f32.gmra.mrb[0].mxu0 %v5342
    %v5344 = vpop.f32.mrb[0].mxu0
    %v5345 = vadd.f32 %v5194, %v5344
    %v5346 = vpop.f32.mrb[0].mxu0
    %5347 = vdwg.mxu0
    %5348 = vmatprep.subr.mxu0 0.0
    %v5349 = vand.u32 %v5059, 4294901760
    %v5350 = vsub.f32 %v5059, %v5349
    %5351 = vmatpush1.xpose.msra.mxu0 %v5350
    %5352 = vmatprep.subr.mxu0 0.0
    %v5353 = vand.u32 %v5062, 4294901760
    %v5354 = vsub.f32 %v5062, %v5353
    %5355 = vmatpush1.xpose.msra.mxu0 %v5354
    %5356 = vmatprep.subr.mxu0 0.0
    %v5357 = vand.u32 %v5065, 4294901760
    %v5358 = vsub.f32 %v5065, %v5357
    %5359 = vmatpush1.xpose.msra.mxu0 %v5358
    %5360 = vmatprep.subr.mxu0 0.0
    %v5361 = vand.u32 %v5068, 4294901760
    %v5362 = vsub.f32 %v5068, %v5361
    %5363 = vmatpush1.xpose.msra.mxu0 %v5362
    %5364 = vmatprep.subr.mxu0 0.0
    %v5365 = vand.u32 %v5071, 4294901760
    %v5366 = vsub.f32 %v5071, %v5365
    %5367 = vmatpush1.xpose.msra.mxu0 %v5366
    %5368 = vmatprep.subr.mxu0 0.0
    %v5369 = vand.u32 %v5074, 4294901760
    %v5370 = vsub.f32 %v5074, %v5369
    %5371 = vmatpush1.xpose.msra.mxu0 %v5370
    %5372 = vmatprep.subr.mxu0 0.0
    %v5373 = vand.u32 %v5077, 4294901760
    %v5374 = vsub.f32 %v5077, %v5373
    %5375 = vmatpush1.xpose.msra.mxu0 %v5374
    %5376 = vmatprep.subr.mxu0 0.0
    %v5377 = vand.u32 %v5080, 4294901760
    %v5378 = vsub.f32 %v5080, %v5377
    %5379 = vmatpush1.xpose.msra.mxu0 %v5378
    %5380 = vmatprep.subr.mxu0 0.0
    %v5381 = vand.u32 %v5083, 4294901760
    %v5382 = vsub.f32 %v5083, %v5381
    %5383 = vmatpush1.xpose.msra.mxu0 %v5382
    %5384 = vmatprep.subr.mxu0 0.0
    %v5385 = vand.u32 %v5086, 4294901760
    %v5386 = vsub.f32 %v5086, %v5385
    %5387 = vmatpush1.xpose.msra.mxu0 %v5386
    %5388 = vmatprep.subr.mxu0 0.0
    %v5389 = vand.u32 %v5089, 4294901760
    %v5390 = vsub.f32 %v5089, %v5389
    %5391 = vmatpush1.xpose.msra.mxu0 %v5390
    %5392 = vmatprep.subr.mxu0 0.0
    %v5393 = vand.u32 %v5092, 4294901760
    %v5394 = vsub.f32 %v5092, %v5393
    %5395 = vmatpush1.xpose.msra.mxu0 %v5394
    %5396 = vmatprep.subr.mxu0 0.0
    %v5397 = vand.u32 %v5095, 4294901760
    %v5398 = vsub.f32 %v5095, %v5397
    %5399 = vmatpush1.xpose.msra.mxu0 %v5398
    %5400 = vmatprep.subr.mxu0 0.0
    %v5401 = vand.u32 %v5098, 4294901760
    %v5402 = vsub.f32 %v5098, %v5401
    %5403 = vmatpush1.xpose.msra.mxu0 %v5402
    %5404 = vmatprep.subr.mxu0 0.0
    %v5405 = vand.u32 %v5101, 4294901760
    %v5406 = vsub.f32 %v5101, %v5405
    %5407 = vmatpush1.xpose.msra.mxu0 %v5406
    %5408 = vmatprep.subr.mxu0 0.0
    %v5409 = vand.u32 %v5104, 4294901760
    %v5410 = vsub.f32 %v5104, %v5409
    %5411 = vmatpush1.xpose.msra.mxu0 %v5410
    %5412 = vmatprep.subr.mxu0 0.0
    %5413 = vmatpush1.xpose.msra.mxu0 0.0
    %5414 = vmatprep.subr.mxu0 0.0
    %5415 = vmatpush1.xpose.msra.mxu0 0.0
    %5416 = vmatprep.subr.mxu0 0.0
    %5417 = vmatpush1.xpose.msra.mxu0 0.0
    %5418 = vmatprep.subr.mxu0 0.0
    %5419 = vmatpush1.xpose.msra.mxu0 0.0
    %5420 = vmatprep.subr.mxu0 0.0
    %5421 = vmatpush1.xpose.msra.mxu0 0.0
    %5422 = vmatprep.subr.mxu0 0.0
    %5423 = vmatpush1.xpose.msra.mxu0 0.0
    %5424 = vmatprep.subr.mxu0 0.0
    %5425 = vmatpush1.xpose.msra.mxu0 0.0
    %5426 = vmatprep.subr.mxu0 0.0
    %5427 = vmatpush1.xpose.msra.mxu0 0.0
    %5428 = vmatprep.subr.mxu0 0.0
    %5429 = vmatpush1.xpose.msra.mxu0 0.0
    %5430 = vmatprep.subr.mxu0 0.0
    %5431 = vmatpush1.xpose.msra.mxu0 0.0
    %5432 = vmatprep.subr.mxu0 0.0
    %5433 = vmatpush1.xpose.msra.mxu0 0.0
    %5434 = vmatprep.subr.mxu0 0.0
    %5435 = vmatpush1.xpose.msra.mxu0 0.0
    %5436 = vmatprep.subr.mxu0 0.0
    %5437 = vmatpush1.xpose.msra.mxu0 0.0
    %5438 = vmatprep.subr.mxu0 0.0
    %5439 = vmatpush1.xpose.msra.mxu0 0.0
    %5440 = vmatprep.subr.mxu0 0.0
    %5441 = vmatpush1.xpose.msra.mxu0 0.0
    %5442 = vmatprep.subr.mxu0 0.0
    %5443 = vmatpush1.xpose.msra.mxu0 0.0
    %5444 = vmatprep.mubr.f32.mxu0 0.0
    %v5445 = vand.u32 %v760, 4294901760
    %v5446 = vsub.f32 %v760, %v5445
    %5447 = vmatmul.mubr.f32.gmra.mrb[0].mxu0 %v5446
    %v5448 = vpop.f32.mrb[0].mxu0
    %v5449 = vadd.f32 %v5345, %v5448
    %v5450 = vpop.f32.mrb[0].mxu0
    %5451 = vdwg.mxu0
    %5452 = vmatprep.subr.mxu0 0.0
    %v5453 = vand.u32 %v5059, 4294901760
    %5454 = vmatpush1.xpose.msra.mxu0 %v5453
    %5455 = vmatprep.subr.mxu0 0.0
    %v5456 = vand.u32 %v5062, 4294901760
    %5457 = vmatpush1.xpose.msra.mxu0 %v5456
    %5458 = vmatprep.subr.mxu0 0.0
    %v5459 = vand.u32 %v5065, 4294901760
    %5460 = vmatpush1.xpose.msra.mxu0 %v5459
    %5461 = vmatprep.subr.mxu0 0.0
    %v5462 = vand.u32 %v5068, 4294901760
    %5463 = vmatpush1.xpose.msra.mxu0 %v5462
    %5464 = vmatprep.subr.mxu0 0.0
    %v5465 = vand.u32 %v5071, 4294901760
    %5466 = vmatpush1.xpose.msra.mxu0 %v5465
    %5467 = vmatprep.subr.mxu0 0.0
    %v5468 = vand.u32 %v5074, 4294901760
    %5469 = vmatpush1.xpose.msra.mxu0 %v5468
    %5470 = vmatprep.subr.mxu0 0.0
    %v5471 = vand.u32 %v5077, 4294901760
    %5472 = vmatpush1.xpose.msra.mxu0 %v5471
    %5473 = vmatprep.subr.mxu0 0.0
    %v5474 = vand.u32 %v5080, 4294901760
    %5475 = vmatpush1.xpose.msra.mxu0 %v5474
    %5476 = vmatprep.subr.mxu0 0.0
    %v5477 = vand.u32 %v5083, 4294901760
    %5478 = vmatpush1.xpose.msra.mxu0 %v5477
    %5479 = vmatprep.subr.mxu0 0.0
    %v5480 = vand.u32 %v5086, 4294901760
    %5481 = vmatpush1.xpose.msra.mxu0 %v5480
    %5482 = vmatprep.subr.mxu0 0.0
    %v5483 = vand.u32 %v5089, 4294901760
    %5484 = vmatpush1.xpose.msra.mxu0 %v5483
    %5485 = vmatprep.subr.mxu0 0.0
    %v5486 = vand.u32 %v5092, 4294901760
    %5487 = vmatpush1.xpose.msra.mxu0 %v5486
    %5488 = vmatprep.subr.mxu0 0.0
    %v5489 = vand.u32 %v5095, 4294901760
    %5490 = vmatpush1.xpose.msra.mxu0 %v5489
    %5491 = vmatprep.subr.mxu0 0.0
    %v5492 = vand.u32 %v5098, 4294901760
    %5493 = vmatpush1.xpose.msra.mxu0 %v5492
    %5494 = vmatprep.subr.mxu0 0.0
    %v5495 = vand.u32 %v5101, 4294901760
    %5496 = vmatpush1.xpose.msra.mxu0 %v5495
    %5497 = vmatprep.subr.mxu0 0.0
    %v5498 = vand.u32 %v5104, 4294901760
    %5499 = vmatpush1.xpose.msra.mxu0 %v5498
    %5500 = vmatprep.subr.mxu0 0.0
    %5501 = vmatpush1.xpose.msra.mxu0 0.0
    %5502 = vmatprep.subr.mxu0 0.0
    %5503 = vmatpush1.xpose.msra.mxu0 0.0
    %5504 = vmatprep.subr.mxu0 0.0
    %5505 = vmatpush1.xpose.msra.mxu0 0.0
    %5506 = vmatprep.subr.mxu0 0.0
    %5507 = vmatpush1.xpose.msra.mxu0 0.0
    %5508 = vmatprep.subr.mxu0 0.0
    %5509 = vmatpush1.xpose.msra.mxu0 0.0
    %5510 = vmatprep.subr.mxu0 0.0
    %5511 = vmatpush1.xpose.msra.mxu0 0.0
    %5512 = vmatprep.subr.mxu0 0.0
    %5513 = vmatpush1.xpose.msra.mxu0 0.0
    %5514 = vmatprep.subr.mxu0 0.0
    %5515 = vmatpush1.xpose.msra.mxu0 0.0
    %5516 = vmatprep.subr.mxu0 0.0
    %5517 = vmatpush1.xpose.msra.mxu0 0.0
    %5518 = vmatprep.subr.mxu0 0.0
    %5519 = vmatpush1.xpose.msra.mxu0 0.0
    %5520 = vmatprep.subr.mxu0 0.0
    %5521 = vmatpush1.xpose.msra.mxu0 0.0
    %5522 = vmatprep.subr.mxu0 0.0
    %5523 = vmatpush1.xpose.msra.mxu0 0.0
    %5524 = vmatprep.subr.mxu0 0.0
    %5525 = vmatpush1.xpose.msra.mxu0 0.0
    %5526 = vmatprep.subr.mxu0 0.0
    %5527 = vmatpush1.xpose.msra.mxu0 0.0
    %5528 = vmatprep.subr.mxu0 0.0
    %5529 = vmatpush1.xpose.msra.mxu0 0.0
    %5530 = vmatprep.subr.mxu0 0.0
    %5531 = vmatpush1.xpose.msra.mxu0 0.0
    %5532 = vmatprep.mubr.f32.mxu0 0.0
    %v5533 = vand.u32 %v760, 4294901760
    %v5534 = vsub.f32 %v760, %v5533
    %v5535 = vand.u32 %v5534, 4294901760
    %5536 = vmatmul.mubr.f32.gmra.mrb[0].mxu0 %v5535
    %v5537 = vpop.f32.mrb[0].mxu0
    %v5538 = vadd.f32 %v5449, %v5537
    %v5539 = vpop.f32.mrb[0].mxu0
    %5540 = vdwg.mxu0
    %5541 = vmatprep.subr.mxu0 0.0
    %v5542 = vand.u32 %v5059, 4294901760
    %v5543 = vsub.f32 %v5059, %v5542
    %v5544 = vand.u32 %v5543, 4294901760
    %5545 = vmatpush1.xpose.msra.mxu0 %v5544
    %5546 = vmatprep.subr.mxu0 0.0
    %v5547 = vand.u32 %v5062, 4294901760
    %v5548 = vsub.f32 %v5062, %v5547
    %v5549 = vand.u32 %v5548, 4294901760
    %5550 = vmatpush1.xpose.msra.mxu0 %v5549
    %5551 = vmatprep.subr.mxu0 0.0
    %v5552 = vand.u32 %v5065, 4294901760
    %v5553 = vsub.f32 %v5065, %v5552
    %v5554 = vand.u32 %v5553, 4294901760
    %5555 = vmatpush1.xpose.msra.mxu0 %v5554
    %5556 = vmatprep.subr.mxu0 0.0
    %v5557 = vand.u32 %v5068, 4294901760
    %v5558 = vsub.f32 %v5068, %v5557
    %v5559 = vand.u32 %v5558, 4294901760
    %5560 = vmatpush1.xpose.msra.mxu0 %v5559
    %5561 = vmatprep.subr.mxu0 0.0
    %v5562 = vand.u32 %v5071, 4294901760
    %v5563 = vsub.f32 %v5071, %v5562
    %v5564 = vand.u32 %v5563, 4294901760
    %5565 = vmatpush1.xpose.msra.mxu0 %v5564
    %5566 = vmatprep.subr.mxu0 0.0
    %v5567 = vand.u32 %v5074, 4294901760
    %v5568 = vsub.f32 %v5074, %v5567
    %v5569 = vand.u32 %v5568, 4294901760
    %5570 = vmatpush1.xpose.msra.mxu0 %v5569
    %5571 = vmatprep.subr.mxu0 0.0
    %v5572 = vand.u32 %v5077, 4294901760
    %v5573 = vsub.f32 %v5077, %v5572
    %v5574 = vand.u32 %v5573, 4294901760
    %5575 = vmatpush1.xpose.msra.mxu0 %v5574
    %5576 = vmatprep.subr.mxu0 0.0
    %v5577 = vand.u32 %v5080, 4294901760
    %v5578 = vsub.f32 %v5080, %v5577
    %v5579 = vand.u32 %v5578, 4294901760
    %5580 = vmatpush1.xpose.msra.mxu0 %v5579
    %5581 = vmatprep.subr.mxu0 0.0
    %v5582 = vand.u32 %v5083, 4294901760
    %v5583 = vsub.f32 %v5083, %v5582
    %v5584 = vand.u32 %v5583, 4294901760
    %5585 = vmatpush1.xpose.msra.mxu0 %v5584
    %5586 = vmatprep.subr.mxu0 0.0
    %v5587 = vand.u32 %v5086, 4294901760
    %v5588 = vsub.f32 %v5086, %v5587
    %v5589 = vand.u32 %v5588, 4294901760
    %5590 = vmatpush1.xpose.msra.mxu0 %v5589
    %5591 = vmatprep.subr.mxu0 0.0
    %v5592 = vand.u32 %v5089, 4294901760
    %v5593 = vsub.f32 %v5089, %v5592
    %v5594 = vand.u32 %v5593, 4294901760
    %5595 = vmatpush1.xpose.msra.mxu0 %v5594
    %5596 = vmatprep.subr.mxu0 0.0
    %v5597 = vand.u32 %v5092, 4294901760
    %v5598 = vsub.f32 %v5092, %v5597
    %v5599 = vand.u32 %v5598, 4294901760
    %5600 = vmatpush1.xpose.msra.mxu0 %v5599
    %5601 = vmatprep.subr.mxu0 0.0
    %v5602 = vand.u32 %v5095, 4294901760
    %v5603 = vsub.f32 %v5095, %v5602
    %v5604 = vand.u32 %v5603, 4294901760
    %5605 = vmatpush1.xpose.msra.mxu0 %v5604
    %5606 = vmatprep.subr.mxu0 0.0
    %v5607 = vand.u32 %v5098, 4294901760
    %v5608 = vsub.f32 %v5098, %v5607
    %v5609 = vand.u32 %v5608, 4294901760
    %5610 = vmatpush1.xpose.msra.mxu0 %v5609
    %5611 = vmatprep.subr.mxu0 0.0
    %v5612 = vand.u32 %v5101, 4294901760
    %v5613 = vsub.f32 %v5101, %v5612
    %v5614 = vand.u32 %v5613, 4294901760
    %5615 = vmatpush1.xpose.msra.mxu0 %v5614
    %5616 = vmatprep.subr.mxu0 0.0
    %v5617 = vand.u32 %v5104, 4294901760
    %v5618 = vsub.f32 %v5104, %v5617
    %v5619 = vand.u32 %v5618, 4294901760
    %5620 = vmatpush1.xpose.msra.mxu0 %v5619
    %5621 = vmatprep.subr.mxu0 0.0
    %5622 = vmatpush1.xpose.msra.mxu0 0.0
    %5623 = vmatprep.subr.mxu0 0.0
    %5624 = vmatpush1.xpose.msra.mxu0 0.0
    %5625 = vmatprep.subr.mxu0 0.0
    %5626 = vmatpush1.xpose.msra.mxu0 0.0
    %5627 = vmatprep.subr.mxu0 0.0
    %5628 = vmatpush1.xpose.msra.mxu0 0.0
    %5629 = vmatprep.subr.mxu0 0.0
    %5630 = vmatpush1.xpose.msra.mxu0 0.0
    %5631 = vmatprep.subr.mxu0 0.0
    %5632 = vmatpush1.xpose.msra.mxu0 0.0
    %5633 = vmatprep.subr.mxu0 0.0
    %5634 = vmatpush1.xpose.msra.mxu0 0.0
    %5635 = vmatprep.subr.mxu0 0.0
    %5636 = vmatpush1.xpose.msra.mxu0 0.0
    %5637 = vmatprep.subr.mxu0 0.0
    %5638 = vmatpush1.xpose.msra.mxu0 0.0
    %5639 = vmatprep.subr.mxu0 0.0
    %5640 = vmatpush1.xpose.msra.mxu0 0.0
    %5641 = vmatprep.subr.mxu0 0.0
    %5642 = vmatpush1.xpose.msra.mxu0 0.0
    %5643 = vmatprep.subr.mxu0 0.0
    %5644 = vmatpush1.xpose.msra.mxu0 0.0
    %5645 = vmatprep.subr.mxu0 0.0
    %5646 = vmatpush1.xpose.msra.mxu0 0.0
    %5647 = vmatprep.subr.mxu0 0.0
    %5648 = vmatpush1.xpose.msra.mxu0 0.0
    %5649 = vmatprep.subr.mxu0 0.0
    %5650 = vmatpush1.xpose.msra.mxu0 0.0
    %5651 = vmatprep.subr.mxu0 0.0
    %5652 = vmatpush1.xpose.msra.mxu0 0.0
    %5653 = vmatprep.mubr.f32.mxu0 0.0
    %v5654 = vand.u32 %v760, 4294901760
    %5655 = vmatmul.mubr.f32.gmra.mrb[0].mxu0 %v5654
    %v5656 = vpop.f32.mrb[0].mxu0
    %v5657 = vadd.f32 %v5538, %v5656
    %v5658 = vpop.f32.mrb[0].mxu0
    %5659 = vdwg.mxu0
    %5660 = vmatprep.subr.mxu0 0.0
    %v5661 = vand.u32 %v5059, 4294901760
    %5662 = vmatpush1.xpose.msra.mxu0 %v5661
    %5663 = vmatprep.subr.mxu0 0.0
    %v5664 = vand.u32 %v5062, 4294901760
    %5665 = vmatpush1.xpose.msra.mxu0 %v5664
    %5666 = vmatprep.subr.mxu0 0.0
    %v5667 = vand.u32 %v5065, 4294901760
    %5668 = vmatpush1.xpose.msra.mxu0 %v5667
    %5669 = vmatprep.subr.mxu0 0.0
    %v5670 = vand.u32 %v5068, 4294901760
    %5671 = vmatpush1.xpose.msra.mxu0 %v5670
    %5672 = vmatprep.subr.mxu0 0.0
    %v5673 = vand.u32 %v5071, 4294901760
    %5674 = vmatpush1.xpose.msra.mxu0 %v5673
    %5675 = vmatprep.subr.mxu0 0.0
    %v5676 = vand.u32 %v5074, 4294901760
    %5677 = vmatpush1.xpose.msra.mxu0 %v5676
    %5678 = vmatprep.subr.mxu0 0.0
    %v5679 = vand.u32 %v5077, 4294901760
    %5680 = vmatpush1.xpose.msra.mxu0 %v5679
    %5681 = vmatprep.subr.mxu0 0.0
    %v5682 = vand.u32 %v5080, 4294901760
    %5683 = vmatpush1.xpose.msra.mxu0 %v5682
    %5684 = vmatprep.subr.mxu0 0.0
    %v5685 = vand.u32 %v5083, 4294901760
    %5686 = vmatpush1.xpose.msra.mxu0 %v5685
    %5687 = vmatprep.subr.mxu0 0.0
    %v5688 = vand.u32 %v5086, 4294901760
    %5689 = vmatpush1.xpose.msra.mxu0 %v5688
    %5690 = vmatprep.subr.mxu0 0.0
    %v5691 = vand.u32 %v5089, 4294901760
    %5692 = vmatpush1.xpose.msra.mxu0 %v5691
    %5693 = vmatprep.subr.mxu0 0.0
    %v5694 = vand.u32 %v5092, 4294901760
    %5695 = vmatpush1.xpose.msra.mxu0 %v5694
    %5696 = vmatprep.subr.mxu0 0.0
    %v5697 = vand.u32 %v5095, 4294901760
    %5698 = vmatpush1.xpose.msra.mxu0 %v5697
    %5699 = vmatprep.subr.mxu0 0.0
    %v5700 = vand.u32 %v5098, 4294901760
    %5701 = vmatpush1.xpose.msra.mxu0 %v5700
    %5702 = vmatprep.subr.mxu0 0.0
    %v5703 = vand.u32 %v5101, 4294901760
    %5704 = vmatpush1.xpose.msra.mxu0 %v5703
    %5705 = vmatprep.subr.mxu0 0.0
    %v5706 = vand.u32 %v5104, 4294901760
    %5707 = vmatpush1.xpose.msra.mxu0 %v5706
    %5708 = vmatprep.subr.mxu0 0.0
    %5709 = vmatpush1.xpose.msra.mxu0 0.0
    %5710 = vmatprep.subr.mxu0 0.0
    %5711 = vmatpush1.xpose.msra.mxu0 0.0
    %5712 = vmatprep.subr.mxu0 0.0
    %5713 = vmatpush1.xpose.msra.mxu0 0.0
    %5714 = vmatprep.subr.mxu0 0.0
    %5715 = vmatpush1.xpose.msra.mxu0 0.0
    %5716 = vmatprep.subr.mxu0 0.0
    %5717 = vmatpush1.xpose.msra.mxu0 0.0
    %5718 = vmatprep.subr.mxu0 0.0
    %5719 = vmatpush1.xpose.msra.mxu0 0.0
    %5720 = vmatprep.subr.mxu0 0.0
    %5721 = vmatpush1.xpose.msra.mxu0 0.0
    %5722 = vmatprep.subr.mxu0 0.0
    %5723 = vmatpush1.xpose.msra.mxu0 0.0
    %5724 = vmatprep.subr.mxu0 0.0
    %5725 = vmatpush1.xpose.msra.mxu0 0.0
    %5726 = vmatprep.subr.mxu0 0.0
    %5727 = vmatpush1.xpose.msra.mxu0 0.0
    %5728 = vmatprep.subr.mxu0 0.0
    %5729 = vmatpush1.xpose.msra.mxu0 0.0
    %5730 = vmatprep.subr.mxu0 0.0
    %5731 = vmatpush1.xpose.msra.mxu0 0.0
    %5732 = vmatprep.subr.mxu0 0.0
    %5733 = vmatpush1.xpose.msra.mxu0 0.0
    %5734 = vmatprep.subr.mxu0 0.0
    %5735 = vmatpush1.xpose.msra.mxu0 0.0
    %5736 = vmatprep.subr.mxu0 0.0
    %5737 = vmatpush1.xpose.msra.mxu0 0.0
    %5738 = vmatprep.subr.mxu0 0.0
    %5739 = vmatpush1.xpose.msra.mxu0 0.0
    %5740 = vmatprep.mubr.f32.mxu0 0.0
    %v5741 = vand.u32 %v760, 4294901760
    %5742 = vmatmul.mubr.f32.gmra.mrb[0].mxu0 %v5741
    %v5743 = vpop.f32.mrb[0].mxu0
    %v5744 = vadd.f32 %v5657, %v5743
    %v5745 = vpop.f32.mrb[0].mxu0
    %5746 = vdwg.mxu0
    %v5747 = vadd.f32 %v5744, %v1454
    %v5748 = vmax.f32 %v5747, 0.0
    %v5749 = vmul.f32 %v5748, %v1461
    %v5750 = vsel %vm1464, %v5749, 0.0
    %v5751 = vrot.slane %v5750, 4
    %v5752 = vadd.f32 %v5750, %v5751
    %v5753 = vrot.slane %v5752, 2
    %v5754 = vadd.f32 %v5752, %v5753
    %v5755 = vrot.slane %v5754, 1
    %v5756 = vadd.f32 %v5754, %v5755
    %v5757 = vadd.f32 %v5756, %v1472
    %v5758 = vxor.u32 %v5757, 2147483648
    %v5759 = vmul.f32 %v5758, 1.442695
    %v5760 = vpow.pop %v5759
    %v5761 = vadd.f32 %v5760, 1.0
    %v5762 = vrcp.pop %v5761
    %v5763 = vmul.f32 1.0, %v5762
    %5764 = vst [vmem:[#allocation3 + $0x3] sm:$0x1] %v5763
    %v5765 = vld [vmem:[%s0 + $0x200] sm:$0xff]
    %v5766 = vld [vmem:[%s0 + $0x208] sm:$0xff]
    %v5767 = vld [vmem:[%s0 + $0x210] sm:$0xff]
    %v5768 = vld [vmem:[%s0 + $0x218] sm:$0xff]
    %v5769 = vld [vmem:[%s0 + $0x220] sm:$0xff]
    %v5770 = vld [vmem:[%s0 + $0x228] sm:$0xff]
    %v5771 = vld [vmem:[%s0 + $0x230] sm:$0xff]
    %v5772 = vld [vmem:[%s0 + $0x238] sm:$0xff]
    %v5773 = vld [vmem:[%s0 + $0x240] sm:$0xff]
    %v5774 = vld [vmem:[%s0 + $0x248] sm:$0xff]
    %v5775 = vld [vmem:[%s0 + $0x250] sm:$0xff]
    %v5776 = vld [vmem:[%s0 + $0x258] sm:$0xff]
    %v5777 = vld [vmem:[%s0 + $0x260] sm:$0xff]
    %v5778 = vld [vmem:[%s0 + $0x268] sm:$0xff]
    %v5779 = vld [vmem:[%s0 + $0x270] sm:$0xff]
    %v5780 = vld [vmem:[%s0 + $0x278] sm:$0xff]
    %v5781 = vld [vmem:[%s1 + $0x200] sm:$0xff]
    %v5782 = vld [vmem:[%s1 + $0x208] sm:$0xff]
    %v5783 = vld [vmem:[%s1 + $0x210] sm:$0xff]
    %v5784 = vld [vmem:[%s1 + $0x218] sm:$0xff]
    %v5785 = vld [vmem:[%s1 + $0x220] sm:$0xff]
    %v5786 = vld [vmem:[%s1 + $0x228] sm:$0xff]
    %v5787 = vld [vmem:[%s1 + $0x230] sm:$0xff]
    %v5788 = vld [vmem:[%s1 + $0x238] sm:$0xff]
    %v5789 = vld [vmem:[%s1 + $0x240] sm:$0xff]
    %v5790 = vld [vmem:[%s1 + $0x248] sm:$0xff]
    %v5791 = vld [vmem:[%s1 + $0x250] sm:$0xff]
    %v5792 = vld [vmem:[%s1 + $0x258] sm:$0xff]
    %v5793 = vld [vmem:[%s1 + $0x260] sm:$0xff]
    %v5794 = vld [vmem:[%s1 + $0x268] sm:$0xff]
    %v5795 = vld [vmem:[%s1 + $0x270] sm:$0xff]
    %v5796 = vld [vmem:[%s1 + $0x278] sm:$0xff]
    %v5798 = vsel %vm65, %v5781, 0
    %v5801 = vsel %vm65, %v5782, 0
    %v5804 = vsel %vm65, %v5783, 0
    %v5807 = vsel %vm65, %v5784, 0
    %v5810 = vsel %vm65, %v5785, 0
    %v5813 = vsel %vm65, %v5786, 0
    %v5816 = vsel %vm65, %v5787, 0
    %v5819 = vsel %vm65, %v5788, 0
    %v5822 = vsel %vm65, %v5789, 0
    %v5825 = vsel %vm65, %v5790, 0
    %v5828 = vsel %vm65, %v5791, 0
    %v5831 = vsel %vm65, %v5792, 0
    %v5834 = vsel %vm65, %v5793, 0
    %v5837 = vsel %vm65, %v5794, 0
    %v5840 = vsel %vm65, %v5795, 0
    %v5843 = vsel %vm65, %v5796, 0
    %5845 = vmatprep.subr.mxu0 0.0
    %v5846 = vand.u32 %v5798, 4294901760
    %5847 = vmatpush1.xpose.msra.mxu0 %v5846
    %5848 = vmatprep.subr.mxu0 0.0
    %v5849 = vand.u32 %v5801, 4294901760
    %5850 = vmatpush1.xpose.msra.mxu0 %v5849
    %5851 = vmatprep.subr.mxu0 0.0
    %v5852 = vand.u32 %v5804, 4294901760
    %5853 = vmatpush1.xpose.msra.mxu0 %v5852
    %5854 = vmatprep.subr.mxu0 0.0
    %v5855 = vand.u32 %v5807, 4294901760
    %5856 = vmatpush1.xpose.msra.mxu0 %v5855
    %5857 = vmatprep.subr.mxu0 0.0
    %v5858 = vand.u32 %v5810, 4294901760
    %5859 = vmatpush1.xpose.msra.mxu0 %v5858
    %5860 = vmatprep.subr.mxu0 0.0
    %v5861 = vand.u32 %v5813, 4294901760
    %5862 = vmatpush1.xpose.msra.mxu0 %v5861
    %5863 = vmatprep.subr.mxu0 0.0
    %v5864 = vand.u32 %v5816, 4294901760
    %5865 = vmatpush1.xpose.msra.mxu0 %v5864
    %5866 = vmatprep.subr.mxu0 0.0
    %v5867 = vand.u32 %v5819, 4294901760
    %5868 = vmatpush1.xpose.msra.mxu0 %v5867
    %5869 = vmatprep.subr.mxu0 0.0
    %v5870 = vand.u32 %v5822, 4294901760
    %5871 = vmatpush1.xpose.msra.mxu0 %v5870
    %5872 = vmatprep.subr.mxu0 0.0
    %v5873 = vand.u32 %v5825, 4294901760
    %5874 = vmatpush1.xpose.msra.mxu0 %v5873
    %5875 = vmatprep.subr.mxu0 0.0
    %v5876 = vand.u32 %v5828, 4294901760
    %5877 = vmatpush1.xpose.msra.mxu0 %v5876
    %5878 = vmatprep.subr.mxu0 0.0
    %v5879 = vand.u32 %v5831, 4294901760
    %5880 = vmatpush1.xpose.msra.mxu0 %v5879
    %5881 = vmatprep.subr.mxu0 0.0
    %v5882 = vand.u32 %v5834, 4294901760
    %5883 = vmatpush1.xpose.msra.mxu0 %v5882
    %5884 = vmatprep.subr.mxu0 0.0
    %v5885 = vand.u32 %v5837, 4294901760
    %5886 = vmatpush1.xpose.msra.mxu0 %v5885
    %5887 = vmatprep.subr.mxu0 0.0
    %v5888 = vand.u32 %v5840, 4294901760
    %5889 = vmatpush1.xpose.msra.mxu0 %v5888
    %5890 = vmatprep.subr.mxu0 0.0
    %v5891 = vand.u32 %v5843, 4294901760
    %5892 = vmatpush1.xpose.msra.mxu0 %v5891
    %5893 = vmatprep.subr.mxu0 0.0
    %5894 = vmatpush1.xpose.msra.mxu0 0.0
    %5895 = vmatprep.subr.mxu0 0.0
    %5896 = vmatpush1.xpose.msra.mxu0 0.0
    %5897 = vmatprep.subr.mxu0 0.0
    %5898 = vmatpush1.xpose.msra.mxu0 0.0
    %5899 = vmatprep.subr.mxu0 0.0
    %5900 = vmatpush1.xpose.msra.mxu0 0.0
    %5901 = vmatprep.subr.mxu0 0.0
    %5902 = vmatpush1.xpose.msra.mxu0 0.0
    %5903 = vmatprep.subr.mxu0 0.0
    %5904 = vmatpush1.xpose.msra.mxu0 0.0
    %5905 = vmatprep.subr.mxu0 0.0
    %5906 = vmatpush1.xpose.msra.mxu0 0.0
    %5907 = vmatprep.subr.mxu0 0.0
    %5908 = vmatpush1.xpose.msra.mxu0 0.0
    %5909 = vmatprep.subr.mxu0 0.0
    %5910 = vmatpush1.xpose.msra.mxu0 0.0
    %5911 = vmatprep.subr.mxu0 0.0
    %5912 = vmatpush1.xpose.msra.mxu0 0.0
    %5913 = vmatprep.subr.mxu0 0.0
    %5914 = vmatpush1.xpose.msra.mxu0 0.0
    %5915 = vmatprep.subr.mxu0 0.0
    %5916 = vmatpush1.xpose.msra.mxu0 0.0
    %5917 = vmatprep.subr.mxu0 0.0
    %5918 = vmatpush1.xpose.msra.mxu0 0.0
    %5919 = vmatprep.subr.mxu0 0.0
    %5920 = vmatpush1.xpose.msra.mxu0 0.0
    %5921 = vmatprep.subr.mxu0 0.0
    %5922 = vmatpush1.xpose.msra.mxu0 0.0
    %5923 = vmatprep.subr.mxu0 0.0
    %5924 = vmatpush1.xpose.msra.mxu0 0.0
    %5925 = vmatprep.mubr.f32.mxu0 0.0
    %v5926 = vand.u32 %v67, 4294901760
    %v5927 = vsub.f32 %v67, %v5926
    %v5928 = vand.u32 %v5927, 4294901760
    %v5929 = vsub.f32 %v5927, %v5928
    %v5930 = vand.u32 %v5929, 4294901760
    %5931 = vmatmul.mubr.f32.gmra.mrb[0].mxu0 %v5930
    %v5932 = vpop.f32.mrb[0].mxu0
    %v5933 = vadd.f32 0.0, %v5932
    %v5934 = vpop.f32.mrb[0].mxu0
    %5935 = vdwg.mxu0
    %5936 = vmatprep.subr.mxu0 0.0
    %v5937 = vand.u32 %v5798, 4294901760
    %v5938 = vsub.f32 %v5798, %v5937
    %v5939 = vand.u32 %v5938, 4294901760
    %v5940 = vsub.f32 %v5938, %v5939
    %v5941 = vand.u32 %v5940, 4294901760
    %5942 = vmatpush1.xpose.msra.mxu0 %v5941
    %5943 = vmatprep.subr.mxu0 0.0
    %v5944 = vand.u32 %v5801, 4294901760
    %v5945 = vsub.f32 %v5801, %v5944
    %v5946 = vand.u32 %v5945, 4294901760
    %v5947 = vsub.f32 %v5945, %v5946
    %v5948 = vand.u32 %v5947, 4294901760
    %5949 = vmatpush1.xpose.msra.mxu0 %v5948
    %5950 = vmatprep.subr.mxu0 0.0
    %v5951 = vand.u32 %v5804, 4294901760
    %v5952 = vsub.f32 %v5804, %v5951
    %v5953 = vand.u32 %v5952, 4294901760
    %v5954 = vsub.f32 %v5952, %v5953
    %v5955 = vand.u32 %v5954, 4294901760
    %5956 = vmatpush1.xpose.msra.mxu0 %v5955
    %5957 = vmatprep.subr.mxu0 0.0
    %v5958 = vand.u32 %v5807, 4294901760
    %v5959 = vsub.f32 %v5807, %v5958
    %v5960 = vand.u32 %v5959, 4294901760
    %v5961 = vsub.f32 %v5959, %v5960
    %v5962 = vand.u32 %v5961, 4294901760
    %5963 = vmatpush1.xpose.msra.mxu0 %v5962
    %5964 = vmatprep.subr.mxu0 0.0
    %v5965 = vand.u32 %v5810, 4294901760
    %v5966 = vsub.f32 %v5810, %v5965
    %v5967 = vand.u32 %v5966, 4294901760
    %v5968 = vsub.f32 %v5966, %v5967
    %v5969 = vand.u32 %v5968, 4294901760
    %5970 = vmatpush1.xpose.msra.mxu0 %v5969
    %5971 = vmatprep.subr.mxu0 0.0
    %v5972 = vand.u32 %v5813, 4294901760
    %v5973 = vsub.f32 %v5813, %v5972
    %v5974 = vand.u32 %v5973, 4294901760
    %v5975 = vsub.f32 %v5973, %v5974
    %v5976 = vand.u32 %v5975, 4294901760
    %5977 = vmatpush1.xpose.msra.mxu0 %v5976
    %5978 = vmatprep.subr.mxu0 0.0
    %v5979 = vand.u32 %v5816, 4294901760
    %v5980 = vsub.f32 %v5816, %v5979
    %v5981 = vand.u32 %v5980, 4294901760
    %v5982 = vsub.f32 %v5980, %v5981
    %v5983 = vand.u32 %v5982, 4294901760
    %5984 = vmatpush1.xpose.msra.mxu0 %v5983
    %5985 = vmatprep.subr.mxu0 0.0
    %v5986 = vand.u32 %v5819, 4294901760
    %v5987 = vsub.f32 %v5819, %v5986
    %v5988 = vand.u32 %v5987, 4294901760
    %v5989 = vsub.f32 %v5987, %v5988
    %v5990 = vand.u32 %v5989, 4294901760
    %5991 = vmatpush1.xpose.msra.mxu0 %v5990
    %5992 = vmatprep.subr.mxu0 0.0
    %v5993 = vand.u32 %v5822, 4294901760
    %v5994 = vsub.f32 %v5822, %v5993
    %v5995 = vand.u32 %v5994, 4294901760
    %v5996 = vsub.f32 %v5994, %v5995
    %v5997 = vand.u32 %v5996, 4294901760
    %5998 = vmatpush1.xpose.msra.mxu0 %v5997
    %5999 = vmatprep.subr.mxu0 0.0
    %v6000 = vand.u32 %v5825, 4294901760
    %v6001 = vsub.f32 %v5825, %v6000
    %v6002 = vand.u32 %v6001, 4294901760
    %v6003 = vsub.f32 %v6001, %v6002
    %v6004 = vand.u32 %v6003, 4294901760
    %6005 = vmatpush1.xpose.msra.mxu0 %v6004
    %6006 = vmatprep.subr.mxu0 0.0
    %v6007 = vand.u32 %v5828, 4294901760
    %v6008 = vsub.f32 %v5828, %v6007
    %v6009 = vand.u32 %v6008, 4294901760
    %v6010 = vsub.f32 %v6008, %v6009
    %v6011 = vand.u32 %v6010, 4294901760
    %6012 = vmatpush1.xpose.msra.mxu0 %v6011
    %6013 = vmatprep.subr.mxu0 0.0
    %v6014 = vand.u32 %v5831, 4294901760
    %v6015 = vsub.f32 %v5831, %v6014
    %v6016 = vand.u32 %v6015, 4294901760
    %v6017 = vsub.f32 %v6015, %v6016
    %v6018 = vand.u32 %v6017, 4294901760
    %6019 = vmatpush1.xpose.msra.mxu0 %v6018
    %6020 = vmatprep.subr.mxu0 0.0
    %v6021 = vand.u32 %v5834, 4294901760
    %v6022 = vsub.f32 %v5834, %v6021
    %v6023 = vand.u32 %v6022, 4294901760
    %v6024 = vsub.f32 %v6022, %v6023
    %v6025 = vand.u32 %v6024, 4294901760
    %6026 = vmatpush1.xpose.msra.mxu0 %v6025
    %6027 = vmatprep.subr.mxu0 0.0
    %v6028 = vand.u32 %v5837, 4294901760
    %v6029 = vsub.f32 %v5837, %v6028
    %v6030 = vand.u32 %v6029, 4294901760
    %v6031 = vsub.f32 %v6029, %v6030
    %v6032 = vand.u32 %v6031, 4294901760
    %6033 = vmatpush1.xpose.msra.mxu0 %v6032
    %6034 = vmatprep.subr.mxu0 0.0
    %v6035 = vand.u32 %v5840, 4294901760
    %v6036 = vsub.f32 %v5840, %v6035
    %v6037 = vand.u32 %v6036, 4294901760
    %v6038 = vsub.f32 %v6036, %v6037
    %v6039 = vand.u32 %v6038, 4294901760
    %6040 = vmatpush1.xpose.msra.mxu0 %v6039
    %6041 = vmatprep.subr.mxu0 0.0
    %v6042 = vand.u32 %v5843, 4294901760
    %v6043 = vsub.f32 %v5843, %v6042
    %v6044 = vand.u32 %v6043, 4294901760
    %v6045 = vsub.f32 %v6043, %v6044
    %v6046 = vand.u32 %v6045, 4294901760
    %6047 = vmatpush1.xpose.msra.mxu0 %v6046
    %6048 = vmatprep.subr.mxu0 0.0
    %6049 = vmatpush1.xpose.msra.mxu0 0.0
    %6050 = vmatprep.subr.mxu0 0.0
    %6051 = vmatpush1.xpose.msra.mxu0 0.0
    %6052 = vmatprep.subr.mxu0 0.0
    %6053 = vmatpush1.xpose.msra.mxu0 0.0
    %6054 = vmatprep.subr.mxu0 0.0
    %6055 = vmatpush1.xpose.msra.mxu0 0.0
    %6056 = vmatprep.subr.mxu0 0.0
    %6057 = vmatpush1.xpose.msra.mxu0 0.0
    %6058 = vmatprep.subr.mxu0 0.0
    %6059 = vmatpush1.xpose.msra.mxu0 0.0
    %6060 = vmatprep.subr.mxu0 0.0
    %6061 = vmatpush1.xpose.msra.mxu0 0.0
    %6062 = vmatprep.subr.mxu0 0.0
    %6063 = vmatpush1.xpose.msra.mxu0 0.0
    %6064 = vmatprep.subr.mxu0 0.0
    %6065 = vmatpush1.xpose.msra.mxu0 0.0
    %6066 = vmatprep.subr.mxu0 0.0
    %6067 = vmatpush1.xpose.msra.mxu0 0.0
    %6068 = vmatprep.subr.mxu0 0.0
    %6069 = vmatpush1.xpose.msra.mxu0 0.0
    %6070 = vmatprep.subr.mxu0 0.0
    %6071 = vmatpush1.xpose.msra.mxu0 0.0
    %6072 = vmatprep.subr.mxu0 0.0
    %6073 = vmatpush1.xpose.msra.mxu0 0.0
    %6074 = vmatprep.subr.mxu0 0.0
    %6075 = vmatpush1.xpose.msra.mxu0 0.0
    %6076 = vmatprep.subr.mxu0 0.0
    %6077 = vmatpush1.xpose.msra.mxu0 0.0
    %6078 = vmatprep.subr.mxu0 0.0
    %6079 = vmatpush1.xpose.msra.mxu0 0.0
    %6080 = vmatprep.mubr.f32.mxu0 0.0
    %v6081 = vand.u32 %v67, 4294901760
    %6082 = vmatmul.mubr.f32.gmra.mrb[0].mxu0 %v6081
    %v6083 = vpop.f32.mrb[0].mxu0
    %v6084 = vadd.f32 %v5933, %v6083
    %v6085 = vpop.f32.mrb[0].mxu0
    %6086 = vdwg.mxu0
    %6087 = vmatprep.subr.mxu0 0.0
    %v6088 = vand.u32 %v5798, 4294901760
    %v6089 = vsub.f32 %v5798, %v6088
    %6090 = vmatpush1.xpose.msra.mxu0 %v6089
    %6091 = vmatprep.subr.mxu0 0.0
    %v6092 = vand.u32 %v5801, 4294901760
    %v6093 = vsub.f32 %v5801, %v6092
    %6094 = vmatpush1.xpose.msra.mxu0 %v6093
    %6095 = vmatprep.subr.mxu0 0.0
    %v6096 = vand.u32 %v5804, 4294901760
    %v6097 = vsub.f32 %v5804, %v6096
    %6098 = vmatpush1.xpose.msra.mxu0 %v6097
    %6099 = vmatprep.subr.mxu0 0.0
    %v6100 = vand.u32 %v5807, 4294901760
    %v6101 = vsub.f32 %v5807, %v6100
    %6102 = vmatpush1.xpose.msra.mxu0 %v6101
    %6103 = vmatprep.subr.mxu0 0.0
    %v6104 = vand.u32 %v5810, 4294901760
    %v6105 = vsub.f32 %v5810, %v6104
    %6106 = vmatpush1.xpose.msra.mxu0 %v6105
    %6107 = vmatprep.subr.mxu0 0.0
    %v6108 = vand.u32 %v5813, 4294901760
    %v6109 = vsub.f32 %v5813, %v6108
    %6110 = vmatpush1.xpose.msra.mxu0 %v6109
    %6111 = vmatprep.subr.mxu0 0.0
    %v6112 = vand.u32 %v5816, 4294901760
    %v6113 = vsub.f32 %v5816, %v6112
    %6114 = vmatpush1.xpose.msra.mxu0 %v6113
    %6115 = vmatprep.subr.mxu0 0.0
    %v6116 = vand.u32 %v5819, 4294901760
    %v6117 = vsub.f32 %v5819, %v6116
    %6118 = vmatpush1.xpose.msra.mxu0 %v6117
    %6119 = vmatprep.subr.mxu0 0.0
    %v6120 = vand.u32 %v5822, 4294901760
    %v6121 = vsub.f32 %v5822, %v6120
    %6122 = vmatpush1.xpose.msra.mxu0 %v6121
    %6123 = vmatprep.subr.mxu0 0.0
    %v6124 = vand.u32 %v5825, 4294901760
    %v6125 = vsub.f32 %v5825, %v6124
    %6126 = vmatpush1.xpose.msra.mxu0 %v6125
    %6127 = vmatprep.subr.mxu0 0.0
    %v6128 = vand.u32 %v5828, 4294901760
    %v6129 = vsub.f32 %v5828, %v6128
    %6130 = vmatpush1.xpose.msra.mxu0 %v6129
    %6131 = vmatprep.subr.mxu0 0.0
    %v6132 = vand.u32 %v5831, 4294901760
    %v6133 = vsub.f32 %v5831, %v6132
    %6134 = vmatpush1.xpose.msra.mxu0 %v6133
    %6135 = vmatprep.subr.mxu0 0.0
    %v6136 = vand.u32 %v5834, 4294901760
    %v6137 = vsub.f32 %v5834, %v6136
    %6138 = vmatpush1.xpose.msra.mxu0 %v6137
    %6139 = vmatprep.subr.mxu0 0.0
    %v6140 = vand.u32 %v5837, 4294901760
    %v6141 = vsub.f32 %v5837, %v6140
    %6142 = vmatpush1.xpose.msra.mxu0 %v6141
    %6143 = vmatprep.subr.mxu0 0.0
    %v6144 = vand.u32 %v5840, 4294901760
    %v6145 = vsub.f32 %v5840, %v6144
    %6146 = vmatpush1.xpose.msra.mxu0 %v6145
    %6147 = vmatprep.subr.mxu0 0.0
    %v6148 = vand.u32 %v5843, 4294901760
    %v6149 = vsub.f32 %v5843, %v6148
    %6150 = vmatpush1.xpose.msra.mxu0 %v6149
    %6151 = vmatprep.subr.mxu0 0.0
    %6152 = vmatpush1.xpose.msra.mxu0 0.0
    %6153 = vmatprep.subr.mxu0 0.0
    %6154 = vmatpush1.xpose.msra.mxu0 0.0
    %6155 = vmatprep.subr.mxu0 0.0
    %6156 = vmatpush1.xpose.msra.mxu0 0.0
    %6157 = vmatprep.subr.mxu0 0.0
    %6158 = vmatpush1.xpose.msra.mxu0 0.0
    %6159 = vmatprep.subr.mxu0 0.0
    %6160 = vmatpush1.xpose.msra.mxu0 0.0
    %6161 = vmatprep.subr.mxu0 0.0
    %6162 = vmatpush1.xpose.msra.mxu0 0.0
    %6163 = vmatprep.subr.mxu0 0.0
    %6164 = vmatpush1.xpose.msra.mxu0 0.0
    %6165 = vmatprep.subr.mxu0 0.0
    %6166 = vmatpush1.xpose.msra.mxu0 0.0
    %6167 = vmatprep.subr.mxu0 0.0
    %6168 = vmatpush1.xpose.msra.mxu0 0.0
    %6169 = vmatprep.subr.mxu0 0.0
    %6170 = vmatpush1.xpose.msra.mxu0 0.0
    %6171 = vmatprep.subr.mxu0 0.0
    %6172 = vmatpush1.xpose.msra.mxu0 0.0
    %6173 = vmatprep.subr.mxu0 0.0
    %6174 = vmatpush1.xpose.msra.mxu0 0.0
    %6175 = vmatprep.subr.mxu0 0.0
    %6176 = vmatpush1.xpose.msra.mxu0 0.0
    %6177 = vmatprep.subr.mxu0 0.0
    %6178 = vmatpush1.xpose.msra.mxu0 0.0
    %6179 = vmatprep.subr.mxu0 0.0
    %6180 = vmatpush1.xpose.msra.mxu0 0.0
    %6181 = vmatprep.subr.mxu0 0.0
    %6182 = vmatpush1.xpose.msra.mxu0 0.0
    %6183 = vmatprep.mubr.f32.mxu0 0.0
    %v6184 = vand.u32 %v67, 4294901760
    %v6185 = vsub.f32 %v67, %v6184
    %6186 = vmatmul.mubr.f32.gmra.mrb[0].mxu0 %v6185
    %v6187 = vpop.f32.mrb[0].mxu0
    %v6188 = vadd.f32 %v6084, %v6187
    %v6189 = vpop.f32.mrb[0].mxu0
    %6190 = vdwg.mxu0
    %6191 = vmatprep.subr.mxu0 0.0
    %v6192 = vand.u32 %v5798, 4294901760
    %6193 = vmatpush1.xpose.msra.mxu0 %v6192
    %6194 = vmatprep.subr.mxu0 0.0
    %v6195 = vand.u32 %v5801, 4294901760
    %6196 = vmatpush1.xpose.msra.mxu0 %v6195
    %6197 = vmatprep.subr.mxu0 0.0
    %v6198 = vand.u32 %v5804, 4294901760
    %6199 = vmatpush1.xpose.msra.mxu0 %v6198
    %6200 = vmatprep.subr.mxu0 0.0
    %v6201 = vand.u32 %v5807, 4294901760
    %6202 = vmatpush1.xpose.msra.mxu0 %v6201
    %6203 = vmatprep.subr.mxu0 0.0
    %v6204 = vand.u32 %v5810, 4294901760
    %6205 = vmatpush1.xpose.msra.mxu0 %v6204
    %6206 = vmatprep.subr.mxu0 0.0
    %v6207 = vand.u32 %v5813, 4294901760
    %6208 = vmatpush1.xpose.msra.mxu0 %v6207
    %6209 = vmatprep.subr.mxu0 0.0
    %v6210 = vand.u32 %v5816, 4294901760
    %6211 = vmatpush1.xpose.msra.mxu0 %v6210
    %6212 = vmatprep.subr.mxu0 0.0
    %v6213 = vand.u32 %v5819, 4294901760
    %6214 = vmatpush1.xpose.msra.mxu0 %v6213
    %6215 = vmatprep.subr.mxu0 0.0
    %v6216 = vand.u32 %v5822, 4294901760
    %6217 = vmatpush1.xpose.msra.mxu0 %v6216
    %6218 = vmatprep.subr.mxu0 0.0
    %v6219 = vand.u32 %v5825, 4294901760
    %6220 = vmatpush1.xpose.msra.mxu0 %v6219
    %6221 = vmatprep.subr.mxu0 0.0
    %v6222 = vand.u32 %v5828, 4294901760
    %6223 = vmatpush1.xpose.msra.mxu0 %v6222
    %6224 = vmatprep.subr.mxu0 0.0
    %v6225 = vand.u32 %v5831, 4294901760
    %6226 = vmatpush1.xpose.msra.mxu0 %v6225
    %6227 = vmatprep.subr.mxu0 0.0
    %v6228 = vand.u32 %v5834, 4294901760
    %6229 = vmatpush1.xpose.msra.mxu0 %v6228
    %6230 = vmatprep.subr.mxu0 0.0
    %v6231 = vand.u32 %v5837, 4294901760
    %6232 = vmatpush1.xpose.msra.mxu0 %v6231
    %6233 = vmatprep.subr.mxu0 0.0
    %v6234 = vand.u32 %v5840, 4294901760
    %6235 = vmatpush1.xpose.msra.mxu0 %v6234
    %6236 = vmatprep.subr.mxu0 0.0
    %v6237 = vand.u32 %v5843, 4294901760
    %6238 = vmatpush1.xpose.msra.mxu0 %v6237
    %6239 = vmatprep.subr.mxu0 0.0
    %6240 = vmatpush1.xpose.msra.mxu0 0.0
    %6241 = vmatprep.subr.mxu0 0.0
    %6242 = vmatpush1.xpose.msra.mxu0 0.0
    %6243 = vmatprep.subr.mxu0 0.0
    %6244 = vmatpush1.xpose.msra.mxu0 0.0
    %6245 = vmatprep.subr.mxu0 0.0
    %6246 = vmatpush1.xpose.msra.mxu0 0.0
    %6247 = vmatprep.subr.mxu0 0.0
    %6248 = vmatpush1.xpose.msra.mxu0 0.0
    %6249 = vmatprep.subr.mxu0 0.0
    %6250 = vmatpush1.xpose.msra.mxu0 0.0
    %6251 = vmatprep.subr.mxu0 0.0
    %6252 = vmatpush1.xpose.msra.mxu0 0.0
    %6253 = vmatprep.subr.mxu0 0.0
    %6254 = vmatpush1.xpose.msra.mxu0 0.0
    %6255 = vmatprep.subr.mxu0 0.0
    %6256 = vmatpush1.xpose.msra.mxu0 0.0
    %6257 = vmatprep.subr.mxu0 0.0
    %6258 = vmatpush1.xpose.msra.mxu0 0.0
    %6259 = vmatprep.subr.mxu0 0.0
    %6260 = vmatpush1.xpose.msra.mxu0 0.0
    %6261 = vmatprep.subr.mxu0 0.0
    %6262 = vmatpush1.xpose.msra.mxu0 0.0
    %6263 = vmatprep.subr.mxu0 0.0
    %6264 = vmatpush1.xpose.msra.mxu0 0.0
    %6265 = vmatprep.subr.mxu0 0.0
    %6266 = vmatpush1.xpose.msra.mxu0 0.0
    %6267 = vmatprep.subr.mxu0 0.0
    %6268 = vmatpush1.xpose.msra.mxu0 0.0
    %6269 = vmatprep.subr.mxu0 0.0
    %6270 = vmatpush1.xpose.msra.mxu0 0.0
    %6271 = vmatprep.mubr.f32.mxu0 0.0
    %v6272 = vand.u32 %v67, 4294901760
    %v6273 = vsub.f32 %v67, %v6272
    %v6274 = vand.u32 %v6273, 4294901760
    %6275 = vmatmul.mubr.f32.gmra.mrb[0].mxu0 %v6274
    %v6276 = vpop.f32.mrb[0].mxu0
    %v6277 = vadd.f32 %v6188, %v6276
    %v6278 = vpop.f32.mrb[0].mxu0
    %6279 = vdwg.mxu0
    %6280 = vmatprep.subr.mxu0 0.0
    %v6281 = vand.u32 %v5798, 4294901760
    %v6282 = vsub.f32 %v5798, %v6281
    %v6283 = vand.u32 %v6282, 4294901760
    %6284 = vmatpush1.xpose.msra.mxu0 %v6283
    %6285 = vmatprep.subr.mxu0 0.0
    %v6286 = vand.u32 %v5801, 4294901760
    %v6287 = vsub.f32 %v5801, %v6286
    %v6288 = vand.u32 %v6287, 4294901760
    %6289 = vmatpush1.xpose.msra.mxu0 %v6288
    %6290 = vmatprep.subr.mxu0 0.0
    %v6291 = vand.u32 %v5804, 4294901760
    %v6292 = vsub.f32 %v5804, %v6291
    %v6293 = vand.u32 %v6292, 4294901760
    %6294 = vmatpush1.xpose.msra.mxu0 %v6293
    %6295 = vmatprep.subr.mxu0 0.0
    %v6296 = vand.u32 %v5807, 4294901760
    %v6297 = vsub.f32 %v5807, %v6296
    %v6298 = vand.u32 %v6297, 4294901760
    %6299 = vmatpush1.xpose.msra.mxu0 %v6298
    %6300 = vmatprep.subr.mxu0 0.0
    %v6301 = vand.u32 %v5810, 4294901760
    %v6302 = vsub.f32 %v5810, %v6301
    %v6303 = vand.u32 %v6302, 4294901760
    %6304 = vmatpush1.xpose.msra.mxu0 %v6303
    %6305 = vmatprep.subr.mxu0 0.0
    %v6306 = vand.u32 %v5813, 4294901760
    %v6307 = vsub.f32 %v5813, %v6306
    %v6308 = vand.u32 %v6307, 4294901760
    %6309 = vmatpush1.xpose.msra.mxu0 %v6308
    %6310 = vmatprep.subr.mxu0 0.0
    %v6311 = vand.u32 %v5816, 4294901760
    %v6312 = vsub.f32 %v5816, %v6311
    %v6313 = vand.u32 %v6312, 4294901760
    %6314 = vmatpush1.xpose.msra.mxu0 %v6313
    %6315 = vmatprep.subr.mxu0 0.0
    %v6316 = vand.u32 %v5819, 4294901760
    %v6317 = vsub.f32 %v5819, %v6316
    %v6318 = vand.u32 %v6317, 4294901760
    %6319 = vmatpush1.xpose.msra.mxu0 %v6318
    %6320 = vmatprep.subr.mxu0 0.0
    %v6321 = vand.u32 %v5822, 4294901760
    %v6322 = vsub.f32 %v5822, %v6321
    %v6323 = vand.u32 %v6322, 4294901760
    %6324 = vmatpush1.xpose.msra.mxu0 %v6323
    %6325 = vmatprep.subr.mxu0 0.0
    %v6326 = vand.u32 %v5825, 4294901760
    %v6327 = vsub.f32 %v5825, %v6326
    %v6328 = vand.u32 %v6327, 4294901760
    %6329 = vmatpush1.xpose.msra.mxu0 %v6328
    %6330 = vmatprep.subr.mxu0 0.0
    %v6331 = vand.u32 %v5828, 4294901760
    %v6332 = vsub.f32 %v5828, %v6331
    %v6333 = vand.u32 %v6332, 4294901760
    %6334 = vmatpush1.xpose.msra.mxu0 %v6333
    %6335 = vmatprep.subr.mxu0 0.0
    %v6336 = vand.u32 %v5831, 4294901760
    %v6337 = vsub.f32 %v5831, %v6336
    %v6338 = vand.u32 %v6337, 4294901760
    %6339 = vmatpush1.xpose.msra.mxu0 %v6338
    %6340 = vmatprep.subr.mxu0 0.0
    %v6341 = vand.u32 %v5834, 4294901760
    %v6342 = vsub.f32 %v5834, %v6341
    %v6343 = vand.u32 %v6342, 4294901760
    %6344 = vmatpush1.xpose.msra.mxu0 %v6343
    %6345 = vmatprep.subr.mxu0 0.0
    %v6346 = vand.u32 %v5837, 4294901760
    %v6347 = vsub.f32 %v5837, %v6346
    %v6348 = vand.u32 %v6347, 4294901760
    %6349 = vmatpush1.xpose.msra.mxu0 %v6348
    %6350 = vmatprep.subr.mxu0 0.0
    %v6351 = vand.u32 %v5840, 4294901760
    %v6352 = vsub.f32 %v5840, %v6351
    %v6353 = vand.u32 %v6352, 4294901760
    %6354 = vmatpush1.xpose.msra.mxu0 %v6353
    %6355 = vmatprep.subr.mxu0 0.0
    %v6356 = vand.u32 %v5843, 4294901760
    %v6357 = vsub.f32 %v5843, %v6356
    %v6358 = vand.u32 %v6357, 4294901760
    %6359 = vmatpush1.xpose.msra.mxu0 %v6358
    %6360 = vmatprep.subr.mxu0 0.0
    %6361 = vmatpush1.xpose.msra.mxu0 0.0
    %6362 = vmatprep.subr.mxu0 0.0
    %6363 = vmatpush1.xpose.msra.mxu0 0.0
    %6364 = vmatprep.subr.mxu0 0.0
    %6365 = vmatpush1.xpose.msra.mxu0 0.0
    %6366 = vmatprep.subr.mxu0 0.0
    %6367 = vmatpush1.xpose.msra.mxu0 0.0
    %6368 = vmatprep.subr.mxu0 0.0
    %6369 = vmatpush1.xpose.msra.mxu0 0.0
    %6370 = vmatprep.subr.mxu0 0.0
    %6371 = vmatpush1.xpose.msra.mxu0 0.0
    %6372 = vmatprep.subr.mxu0 0.0
    %6373 = vmatpush1.xpose.msra.mxu0 0.0
    %6374 = vmatprep.subr.mxu0 0.0
    %6375 = vmatpush1.xpose.msra.mxu0 0.0
    %6376 = vmatprep.subr.mxu0 0.0
    %6377 = vmatpush1.xpose.msra.mxu0 0.0
    %6378 = vmatprep.subr.mxu0 0.0
    %6379 = vmatpush1.xpose.msra.mxu0 0.0
    %6380 = vmatprep.subr.mxu0 0.0
    %6381 = vmatpush1.xpose.msra.mxu0 0.0
    %6382 = vmatprep.subr.mxu0 0.0
    %6383 = vmatpush1.xpose.msra.mxu0 0.0
    %6384 = vmatprep.subr.mxu0 0.0
    %6385 = vmatpush1.xpose.msra.mxu0 0.0
    %6386 = vmatprep.subr.mxu0 0.0
    %6387 = vmatpush1.xpose.msra.mxu0 0.0
    %6388 = vmatprep.subr.mxu0 0.0
    %6389 = vmatpush1.xpose.msra.mxu0 0.0
    %6390 = vmatprep.subr.mxu0 0.0
    %6391 = vmatpush1.xpose.msra.mxu0 0.0
    %6392 = vmatprep.mubr.f32.mxu0 0.0
    %v6393 = vand.u32 %v67, 4294901760
    %6394 = vmatmul.mubr.f32.gmra.mrb[0].mxu0 %v6393
    %v6395 = vpop.f32.mrb[0].mxu0
    %v6396 = vadd.f32 %v6277, %v6395
    %v6397 = vpop.f32.mrb[0].mxu0
    %6398 = vdwg.mxu0
    %6399 = vmatprep.subr.mxu0 0.0
    %v6400 = vand.u32 %v5798, 4294901760
    %6401 = vmatpush1.xpose.msra.mxu0 %v6400
    %6402 = vmatprep.subr.mxu0 0.0
    %v6403 = vand.u32 %v5801, 4294901760
    %6404 = vmatpush1.xpose.msra.mxu0 %v6403
    %6405 = vmatprep.subr.mxu0 0.0
    %v6406 = vand.u32 %v5804, 4294901760
    %6407 = vmatpush1.xpose.msra.mxu0 %v6406
    %6408 = vmatprep.subr.mxu0 0.0
    %v6409 = vand.u32 %v5807, 4294901760
    %6410 = vmatpush1.xpose.msra.mxu0 %v6409
    %6411 = vmatprep.subr.mxu0 0.0
    %v6412 = vand.u32 %v5810, 4294901760
    %6413 = vmatpush1.xpose.msra.mxu0 %v6412
    %6414 = vmatprep.subr.mxu0 0.0
    %v6415 = vand.u32 %v5813, 4294901760
    %6416 = vmatpush1.xpose.msra.mxu0 %v6415
    %6417 = vmatprep.subr.mxu0 0.0
    %v6418 = vand.u32 %v5816, 4294901760
    %6419 = vmatpush1.xpose.msra.mxu0 %v6418
    %6420 = vmatprep.subr.mxu0 0.0
    %v6421 = vand.u32 %v5819, 4294901760
    %6422 = vmatpush1.xpose.msra.mxu0 %v6421
    %6423 = vmatprep.subr.mxu0 0.0
    %v6424 = vand.u32 %v5822, 4294901760
    %6425 = vmatpush1.xpose.msra.mxu0 %v6424
    %6426 = vmatprep.subr.mxu0 0.0
    %v6427 = vand.u32 %v5825, 4294901760
    %6428 = vmatpush1.xpose.msra.mxu0 %v6427
    %6429 = vmatprep.subr.mxu0 0.0
    %v6430 = vand.u32 %v5828, 4294901760
    %6431 = vmatpush1.xpose.msra.mxu0 %v6430
    %6432 = vmatprep.subr.mxu0 0.0
    %v6433 = vand.u32 %v5831, 4294901760
    %6434 = vmatpush1.xpose.msra.mxu0 %v6433
    %6435 = vmatprep.subr.mxu0 0.0
    %v6436 = vand.u32 %v5834, 4294901760
    %6437 = vmatpush1.xpose.msra.mxu0 %v6436
    %6438 = vmatprep.subr.mxu0 0.0
    %v6439 = vand.u32 %v5837, 4294901760
    %6440 = vmatpush1.xpose.msra.mxu0 %v6439
    %6441 = vmatprep.subr.mxu0 0.0
    %v6442 = vand.u32 %v5840, 4294901760
    %6443 = vmatpush1.xpose.msra.mxu0 %v6442
    %6444 = vmatprep.subr.mxu0 0.0
    %v6445 = vand.u32 %v5843, 4294901760
    %6446 = vmatpush1.xpose.msra.mxu0 %v6445
    %6447 = vmatprep.subr.mxu0 0.0
    %6448 = vmatpush1.xpose.msra.mxu0 0.0
    %6449 = vmatprep.subr.mxu0 0.0
    %6450 = vmatpush1.xpose.msra.mxu0 0.0
    %6451 = vmatprep.subr.mxu0 0.0
    %6452 = vmatpush1.xpose.msra.mxu0 0.0
    %6453 = vmatprep.subr.mxu0 0.0
    %6454 = vmatpush1.xpose.msra.mxu0 0.0
    %6455 = vmatprep.subr.mxu0 0.0
    %6456 = vmatpush1.xpose.msra.mxu0 0.0
    %6457 = vmatprep.subr.mxu0 0.0
    %6458 = vmatpush1.xpose.msra.mxu0 0.0
    %6459 = vmatprep.subr.mxu0 0.0
    %6460 = vmatpush1.xpose.msra.mxu0 0.0
    %6461 = vmatprep.subr.mxu0 0.0
    %6462 = vmatpush1.xpose.msra.mxu0 0.0
    %6463 = vmatprep.subr.mxu0 0.0
    %6464 = vmatpush1.xpose.msra.mxu0 0.0
    %6465 = vmatprep.subr.mxu0 0.0
    %6466 = vmatpush1.xpose.msra.mxu0 0.0
    %6467 = vmatprep.subr.mxu0 0.0
    %6468 = vmatpush1.xpose.msra.mxu0 0.0
    %6469 = vmatprep.subr.mxu0 0.0
    %6470 = vmatpush1.xpose.msra.mxu0 0.0
    %6471 = vmatprep.subr.mxu0 0.0
    %6472 = vmatpush1.xpose.msra.mxu0 0.0
    %6473 = vmatprep.subr.mxu0 0.0
    %6474 = vmatpush1.xpose.msra.mxu0 0.0
    %6475 = vmatprep.subr.mxu0 0.0
    %6476 = vmatpush1.xpose.msra.mxu0 0.0
    %6477 = vmatprep.subr.mxu0 0.0
    %6478 = vmatpush1.xpose.msra.mxu0 0.0
    %6479 = vmatprep.mubr.f32.mxu0 0.0
    %v6480 = vand.u32 %v67, 4294901760
    %6481 = vmatmul.mubr.f32.gmra.mrb[0].mxu0 %v6480
    %v6482 = vpop.f32.mrb[0].mxu0
    %v6483 = vadd.f32 %v6396, %v6482
    %v6484 = vpop.f32.mrb[0].mxu0
    %6485 = vdwg.mxu0
    %v6487 = vsel %vm758, %v5765, 0
    %v6490 = vsel %vm758, %v5766, 0
    %v6493 = vsel %vm758, %v5767, 0
    %v6496 = vsel %vm758, %v5768, 0
    %v6499 = vsel %vm758, %v5769, 0
    %v6502 = vsel %vm758, %v5770, 0
    %v6505 = vsel %vm758, %v5771, 0
    %v6508 = vsel %vm758, %v5772, 0
    %v6511 = vsel %vm758, %v5773, 0
    %v6514 = vsel %vm758, %v5774, 0
    %v6517 = vsel %vm758, %v5775, 0
    %v6520 = vsel %vm758, %v5776, 0
    %v6523 = vsel %vm758, %v5777, 0
    %v6526 = vsel %vm758, %v5778, 0
    %v6529 = vsel %vm758, %v5779, 0
    %v6532 = vsel %vm758, %v5780, 0
    %6534 = vmatprep.subr.mxu0 0.0
    %v6535 = vand.u32 %v6487, 4294901760
    %6536 = vmatpush1.xpose.msra.mxu0 %v6535
    %6537 = vmatprep.subr.mxu0 0.0
    %v6538 = vand.u32 %v6490, 4294901760
    %6539 = vmatpush1.xpose.msra.mxu0 %v6538
    %6540 = vmatprep.subr.mxu0 0.0
    %v6541 = vand.u32 %v6493, 4294901760
    %6542 = vmatpush1.xpose.msra.mxu0 %v6541
    %6543 = vmatprep.subr.mxu0 0.0
    %v6544 = vand.u32 %v6496, 4294901760
    %6545 = vmatpush1.xpose.msra.mxu0 %v6544
    %6546 = vmatprep.subr.mxu0 0.0
    %v6547 = vand.u32 %v6499, 4294901760
    %6548 = vmatpush1.xpose.msra.mxu0 %v6547
    %6549 = vmatprep.subr.mxu0 0.0
    %v6550 = vand.u32 %v6502, 4294901760
    %6551 = vmatpush1.xpose.msra.mxu0 %v6550
    %6552 = vmatprep.subr.mxu0 0.0
    %v6553 = vand.u32 %v6505, 4294901760
    %6554 = vmatpush1.xpose.msra.mxu0 %v6553
    %6555 = vmatprep.subr.mxu0 0.0
    %v6556 = vand.u32 %v6508, 4294901760
    %6557 = vmatpush1.xpose.msra.mxu0 %v6556
    %6558 = vmatprep.subr.mxu0 0.0
    %v6559 = vand.u32 %v6511, 4294901760
    %6560 = vmatpush1.xpose.msra.mxu0 %v6559
    %6561 = vmatprep.subr.mxu0 0.0
    %v6562 = vand.u32 %v6514, 4294901760
    %6563 = vmatpush1.xpose.msra.mxu0 %v6562
    %6564 = vmatprep.subr.mxu0 0.0
    %v6565 = vand.u32 %v6517, 4294901760
    %6566 = vmatpush1.xpose.msra.mxu0 %v6565
    %6567 = vmatprep.subr.mxu0 0.0
    %v6568 = vand.u32 %v6520, 4294901760
    %6569 = vmatpush1.xpose.msra.mxu0 %v6568
    %6570 = vmatprep.subr.mxu0 0.0
    %v6571 = vand.u32 %v6523, 4294901760
    %6572 = vmatpush1.xpose.msra.mxu0 %v6571
    %6573 = vmatprep.subr.mxu0 0.0
    %v6574 = vand.u32 %v6526, 4294901760
    %6575 = vmatpush1.xpose.msra.mxu0 %v6574
    %6576 = vmatprep.subr.mxu0 0.0
    %v6577 = vand.u32 %v6529, 4294901760
    %6578 = vmatpush1.xpose.msra.mxu0 %v6577
    %6579 = vmatprep.subr.mxu0 0.0
    %v6580 = vand.u32 %v6532, 4294901760
    %6581 = vmatpush1.xpose.msra.mxu0 %v6580
    %6582 = vmatprep.subr.mxu0 0.0
    %6583 = vmatpush1.xpose.msra.mxu0 0.0
    %6584 = vmatprep.subr.mxu0 0.0
    %6585 = vmatpush1.xpose.msra.mxu0 0.0
    %6586 = vmatprep.subr.mxu0 0.0
    %6587 = vmatpush1.xpose.msra.mxu0 0.0
    %6588 = vmatprep.subr.mxu0 0.0
    %6589 = vmatpush1.xpose.msra.mxu0 0.0
    %6590 = vmatprep.subr.mxu0 0.0
    %6591 = vmatpush1.xpose.msra.mxu0 0.0
    %6592 = vmatprep.subr.mxu0 0.0
    %6593 = vmatpush1.xpose.msra.mxu0 0.0
    %6594 = vmatprep.subr.mxu0 0.0
    %6595 = vmatpush1.xpose.msra.mxu0 0.0
    %6596 = vmatprep.subr.mxu0 0.0
    %6597 = vmatpush1.xpose.msra.mxu0 0.0
    %6598 = vmatprep.subr.mxu0 0.0
    %6599 = vmatpush1.xpose.msra.mxu0 0.0
    %6600 = vmatprep.subr.mxu0 0.0
    %6601 = vmatpush1.xpose.msra.mxu0 0.0
    %6602 = vmatprep.subr.mxu0 0.0
    %6603 = vmatpush1.xpose.msra.mxu0 0.0
    %6604 = vmatprep.subr.mxu0 0.0
    %6605 = vmatpush1.xpose.msra.mxu0 0.0
    %6606 = vmatprep.subr.mxu0 0.0
    %6607 = vmatpush1.xpose.msra.mxu0 0.0
    %6608 = vmatprep.subr.mxu0 0.0
    %6609 = vmatpush1.xpose.msra.mxu0 0.0
    %6610 = vmatprep.subr.mxu0 0.0
    %6611 = vmatpush1.xpose.msra.mxu0 0.0
    %6612 = vmatprep.subr.mxu0 0.0
    %6613 = vmatpush1.xpose.msra.mxu0 0.0
    %6614 = vmatprep.mubr.f32.mxu0 0.0
    %v6615 = vand.u32 %v760, 4294901760
    %v6616 = vsub.f32 %v760, %v6615
    %v6617 = vand.u32 %v6616, 4294901760
    %v6618 = vsub.f32 %v6616, %v6617
    %v6619 = vand.u32 %v6618, 4294901760
    %6620 = vmatmul.mubr.f32.gmra.mrb[0].mxu0 %v6619
    %v6621 = vpop.f32.mrb[0].mxu0
    %v6622 = vadd.f32 %v6483, %v6621
    %v6623 = vpop.f32.mrb[0].mxu0
    %6624 = vdwg.mxu0
    %6625 = vmatprep.subr.mxu0 0.0
    %v6626 = vand.u32 %v6487, 4294901760
    %v6627 = vsub.f32 %v6487, %v6626
    %v6628 = vand.u32 %v6627, 4294901760
    %v6629 = vsub.f32 %v6627, %v6628
    %v6630 = vand.u32 %v6629, 4294901760
    %6631 = vmatpush1.xpose.msra.mxu0 %v6630
    %6632 = vmatprep.subr.mxu0 0.0
    %v6633 = vand.u32 %v6490, 4294901760
    %v6634 = vsub.f32 %v6490, %v6633
    %v6635 = vand.u32 %v6634, 4294901760
    %v6636 = vsub.f32 %v6634, %v6635
    %v6637 = vand.u32 %v6636, 4294901760
    %6638 = vmatpush1.xpose.msra.mxu0 %v6637
    %6639 = vmatprep.subr.mxu0 0.0
    %v6640 = vand.u32 %v6493, 4294901760
    %v6641 = vsub.f32 %v6493, %v6640
    %v6642 = vand.u32 %v6641, 4294901760
    %v6643 = vsub.f32 %v6641, %v6642
    %v6644 = vand.u32 %v6643, 4294901760
    %6645 = vmatpush1.xpose.msra.mxu0 %v6644
    %6646 = vmatprep.subr.mxu0 0.0
    %v6647 = vand.u32 %v6496, 4294901760
    %v6648 = vsub.f32 %v6496, %v6647
    %v6649 = vand.u32 %v6648, 4294901760
    %v6650 = vsub.f32 %v6648, %v6649
    %v6651 = vand.u32 %v6650, 4294901760
    %6652 = vmatpush1.xpose.msra.mxu0 %v6651
    %6653 = vmatprep.subr.mxu0 0.0
    %v6654 = vand.u32 %v6499, 4294901760
    %v6655 = vsub.f32 %v6499, %v6654
    %v6656 = vand.u32 %v6655, 4294901760
    %v6657 = vsub.f32 %v6655, %v6656
    %v6658 = vand.u32 %v6657, 4294901760
    %6659 = vmatpush1.xpose.msra.mxu0 %v6658
    %6660 = vmatprep.subr.mxu0 0.0
    %v6661 = vand.u32 %v6502, 4294901760
    %v6662 = vsub.f32 %v6502, %v6661
    %v6663 = vand.u32 %v6662, 4294901760
    %v6664 = vsub.f32 %v6662, %v6663
    %v6665 = vand.u32 %v6664, 4294901760
    %6666 = vmatpush1.xpose.msra.mxu0 %v6665
    %6667 = vmatprep.subr.mxu0 0.0
    %v6668 = vand.u32 %v6505, 4294901760
    %v6669 = vsub.f32 %v6505, %v6668
    %v6670 = vand.u32 %v6669, 4294901760
    %v6671 = vsub.f32 %v6669, %v6670
    %v6672 = vand.u32 %v6671, 4294901760
    %6673 = vmatpush1.xpose.msra.mxu0 %v6672
    %6674 = vmatprep.subr.mxu0 0.0
    %v6675 = vand.u32 %v6508, 4294901760
    %v6676 = vsub.f32 %v6508, %v6675
    %v6677 = vand.u32 %v6676, 4294901760
    %v6678 = vsub.f32 %v6676, %v6677
    %v6679 = vand.u32 %v6678, 4294901760
    %6680 = vmatpush1.xpose.msra.mxu0 %v6679
    %6681 = vmatprep.subr.mxu0 0.0
    %v6682 = vand.u32 %v6511, 4294901760
    %v6683 = vsub.f32 %v6511, %v6682
    %v6684 = vand.u32 %v6683, 4294901760
    %v6685 = vsub.f32 %v6683, %v6684
    %v6686 = vand.u32 %v6685, 4294901760
    %6687 = vmatpush1.xpose.msra.mxu0 %v6686
    %6688 = vmatprep.subr.mxu0 0.0
    %v6689 = vand.u32 %v6514, 4294901760
    %v6690 = vsub.f32 %v6514, %v6689
    %v6691 = vand.u32 %v6690, 4294901760
    %v6692 = vsub.f32 %v6690, %v6691
    %v6693 = vand.u32 %v6692, 4294901760
    %6694 = vmatpush1.xpose.msra.mxu0 %v6693
    %6695 = vmatprep.subr.mxu0 0.0
    %v6696 = vand.u32 %v6517, 4294901760
    %v6697 = vsub.f32 %v6517, %v6696
    %v6698 = vand.u32 %v6697, 4294901760
    %v6699 = vsub.f32 %v6697, %v6698
    %v6700 = vand.u32 %v6699, 4294901760
    %6701 = vmatpush1.xpose.msra.mxu0 %v6700
    %6702 = vmatprep.subr.mxu0 0.0
    %v6703 = vand.u32 %v6520, 4294901760
    %v6704 = vsub.f32 %v6520, %v6703
    %v6705 = vand.u32 %v6704, 4294901760
    %v6706 = vsub.f32 %v6704, %v6705
    %v6707 = vand.u32 %v6706, 4294901760
    %6708 = vmatpush1.xpose.msra.mxu0 %v6707
    %6709 = vmatprep.subr.mxu0 0.0
    %v6710 = vand.u32 %v6523, 4294901760
    %v6711 = vsub.f32 %v6523, %v6710
    %v6712 = vand.u32 %v6711, 4294901760
    %v6713 = vsub.f32 %v6711, %v6712
    %v6714 = vand.u32 %v6713, 4294901760
    %6715 = vmatpush1.xpose.msra.mxu0 %v6714
    %6716 = vmatprep.subr.mxu0 0.0
    %v6717 = vand.u32 %v6526, 4294901760
    %v6718 = vsub.f32 %v6526, %v6717
    %v6719 = vand.u32 %v6718, 4294901760
    %v6720 = vsub.f32 %v6718, %v6719
    %v6721 = vand.u32 %v6720, 4294901760
    %6722 = vmatpush1.xpose.msra.mxu0 %v6721
    %6723 = vmatprep.subr.mxu0 0.0
    %v6724 = vand.u32 %v6529, 4294901760
    %v6725 = vsub.f32 %v6529, %v6724
    %v6726 = vand.u32 %v6725, 4294901760
    %v6727 = vsub.f32 %v6725, %v6726
    %v6728 = vand.u32 %v6727, 4294901760
    %6729 = vmatpush1.xpose.msra.mxu0 %v6728
    %6730 = vmatprep.subr.mxu0 0.0
    %v6731 = vand.u32 %v6532, 4294901760
    %v6732 = vsub.f32 %v6532, %v6731
    %v6733 = vand.u32 %v6732, 4294901760
    %v6734 = vsub.f32 %v6732, %v6733
    %v6735 = vand.u32 %v6734, 4294901760
    %6736 = vmatpush1.xpose.msra.mxu0 %v6735
    %6737 = vmatprep.subr.mxu0 0.0
    %6738 = vmatpush1.xpose.msra.mxu0 0.0
    %6739 = vmatprep.subr.mxu0 0.0
    %6740 = vmatpush1.xpose.msra.mxu0 0.0
    %6741 = vmatprep.subr.mxu0 0.0
    %6742 = vmatpush1.xpose.msra.mxu0 0.0
    %6743 = vmatprep.subr.mxu0 0.0
    %6744 = vmatpush1.xpose.msra.mxu0 0.0
    %6745 = vmatprep.subr.mxu0 0.0
    %6746 = vmatpush1.xpose.msra.mxu0 0.0
    %6747 = vmatprep.subr.mxu0 0.0
    %6748 = vmatpush1.xpose.msra.mxu0 0.0
    %6749 = vmatprep.subr.mxu0 0.0
    %6750 = vmatpush1.xpose.msra.mxu0 0.0
    %6751 = vmatprep.subr.mxu0 0.0
    %6752 = vmatpush1.xpose.msra.mxu0 0.0
    %6753 = vmatprep.subr.mxu0 0.0
    %6754 = vmatpush1.xpose.msra.mxu0 0.0
    %6755 = vmatprep.subr.mxu0 0.0
    %6756 = vmatpush1.xpose.msra.mxu0 0.0
    %6757 = vmatprep.subr.mxu0 0.0
    %6758 = vmatpush1.xpose.msra.mxu0 0.0
    %6759 = vmatprep.subr.mxu0 0.0
    %6760 = vmatpush1.xpose.msra.mxu0 0.0
    %6761 = vmatprep.subr.mxu0 0.0
    %6762 = vmatpush1.xpose.msra.mxu0 0.0
    %6763 = vmatprep.subr.mxu0 0.0
    %6764 = vmatpush1.xpose.msra.mxu0 0.0
    %6765 = vmatprep.subr.mxu0 0.0
    %6766 = vmatpush1.xpose.msra.mxu0 0.0
    %6767 = vmatprep.subr.mxu0 0.0
    %6768 = vmatpush1.xpose.msra.mxu0 0.0
    %6769 = vmatprep.mubr.f32.mxu0 0.0
    %v6770 = vand.u32 %v760, 4294901760
    %6771 = vmatmul.mubr.f32.gmra.mrb[0].mxu0 %v6770
    %v6772 = vpop.f32.mrb[0].mxu0
    %v6773 = vadd.f32 %v6622, %v6772
    %v6774 = vpop.f32.mrb[0].mxu0
    %6775 = vdwg.mxu0
    %6776 = vmatprep.subr.mxu0 0.0
    %v6777 = vand.u32 %v6487, 4294901760
    %v6778 = vsub.f32 %v6487, %v6777
    %6779 = vmatpush1.xpose.msra.mxu0 %v6778
    %6780 = vmatprep.subr.mxu0 0.0
    %v6781 = vand.u32 %v6490, 4294901760
    %v6782 = vsub.f32 %v6490, %v6781
    %6783 = vmatpush1.xpose.msra.mxu0 %v6782
    %6784 = vmatprep.subr.mxu0 0.0
    %v6785 = vand.u32 %v6493, 4294901760
    %v6786 = vsub.f32 %v6493, %v6785
    %6787 = vmatpush1.xpose.msra.mxu0 %v6786
    %6788 = vmatprep.subr.mxu0 0.0
    %v6789 = vand.u32 %v6496, 4294901760
    %v6790 = vsub.f32 %v6496, %v6789
    %6791 = vmatpush1.xpose.msra.mxu0 %v6790
    %6792 = vmatprep.subr.mxu0 0.0
    %v6793 = vand.u32 %v6499, 4294901760
    %v6794 = vsub.f32 %v6499, %v6793
    %6795 = vmatpush1.xpose.msra.mxu0 %v6794
    %6796 = vmatprep.subr.mxu0 0.0
    %v6797 = vand.u32 %v6502, 4294901760
    %v6798 = vsub.f32 %v6502, %v6797
    %6799 = vmatpush1.xpose.msra.mxu0 %v6798
    %6800 = vmatprep.subr.mxu0 0.0
    %v6801 = vand.u32 %v6505, 4294901760
    %v6802 = vsub.f32 %v6505, %v6801
    %6803 = vmatpush1.xpose.msra.mxu0 %v6802
    %6804 = vmatprep.subr.mxu0 0.0
    %v6805 = vand.u32 %v6508, 4294901760
    %v6806 = vsub.f32 %v6508, %v6805
    %6807 = vmatpush1.xpose.msra.mxu0 %v6806
    %6808 = vmatprep.subr.mxu0 0.0
    %v6809 = vand.u32 %v6511, 4294901760
    %v6810 = vsub.f32 %v6511, %v6809
    %6811 = vmatpush1.xpose.msra.mxu0 %v6810
    %6812 = vmatprep.subr.mxu0 0.0
    %v6813 = vand.u32 %v6514, 4294901760
    %v6814 = vsub.f32 %v6514, %v6813
    %6815 = vmatpush1.xpose.msra.mxu0 %v6814
    %6816 = vmatprep.subr.mxu0 0.0
    %v6817 = vand.u32 %v6517, 4294901760
    %v6818 = vsub.f32 %v6517, %v6817
    %6819 = vmatpush1.xpose.msra.mxu0 %v6818
    %6820 = vmatprep.subr.mxu0 0.0
    %v6821 = vand.u32 %v6520, 4294901760
    %v6822 = vsub.f32 %v6520, %v6821
    %6823 = vmatpush1.xpose.msra.mxu0 %v6822
    %6824 = vmatprep.subr.mxu0 0.0
    %v6825 = vand.u32 %v6523, 4294901760
    %v6826 = vsub.f32 %v6523, %v6825
    %6827 = vmatpush1.xpose.msra.mxu0 %v6826
    %6828 = vmatprep.subr.mxu0 0.0
    %v6829 = vand.u32 %v6526, 4294901760
    %v6830 = vsub.f32 %v6526, %v6829
    %6831 = vmatpush1.xpose.msra.mxu0 %v6830
    %6832 = vmatprep.subr.mxu0 0.0
    %v6833 = vand.u32 %v6529, 4294901760
    %v6834 = vsub.f32 %v6529, %v6833
    %6835 = vmatpush1.xpose.msra.mxu0 %v6834
    %6836 = vmatprep.subr.mxu0 0.0
    %v6837 = vand.u32 %v6532, 4294901760
    %v6838 = vsub.f32 %v6532, %v6837
    %6839 = vmatpush1.xpose.msra.mxu0 %v6838
    %6840 = vmatprep.subr.mxu0 0.0
    %6841 = vmatpush1.xpose.msra.mxu0 0.0
    %6842 = vmatprep.subr.mxu0 0.0
    %6843 = vmatpush1.xpose.msra.mxu0 0.0
    %6844 = vmatprep.subr.mxu0 0.0
    %6845 = vmatpush1.xpose.msra.mxu0 0.0
    %6846 = vmatprep.subr.mxu0 0.0
    %6847 = vmatpush1.xpose.msra.mxu0 0.0
    %6848 = vmatprep.subr.mxu0 0.0
    %6849 = vmatpush1.xpose.msra.mxu0 0.0
    %6850 = vmatprep.subr.mxu0 0.0
    %6851 = vmatpush1.xpose.msra.mxu0 0.0
    %6852 = vmatprep.subr.mxu0 0.0
    %6853 = vmatpush1.xpose.msra.mxu0 0.0
    %6854 = vmatprep.subr.mxu0 0.0
    %6855 = vmatpush1.xpose.msra.mxu0 0.0
    %6856 = vmatprep.subr.mxu0 0.0
    %6857 = vmatpush1.xpose.msra.mxu0 0.0
    %6858 = vmatprep.subr.mxu0 0.0
    %6859 = vmatpush1.xpose.msra.mxu0 0.0
    %6860 = vmatprep.subr.mxu0 0.0
    %6861 = vmatpush1.xpose.msra.mxu0 0.0
    %6862 = vmatprep.subr.mxu0 0.0
    %6863 = vmatpush1.xpose.msra.mxu0 0.0
    %6864 = vmatprep.subr.mxu0 0.0
    %6865 = vmatpush1.xpose.msra.mxu0 0.0
    %6866 = vmatprep.subr.mxu0 0.0
    %6867 = vmatpush1.xpose.msra.mxu0 0.0
    %6868 = vmatprep.subr.mxu0 0.0
    %6869 = vmatpush1.xpose.msra.mxu0 0.0
    %6870 = vmatprep.subr.mxu0 0.0
    %6871 = vmatpush1.xpose.msra.mxu0 0.0
    %6872 = vmatprep.mubr.f32.mxu0 0.0
    %v6873 = vand.u32 %v760, 4294901760
    %v6874 = vsub.f32 %v760, %v6873
    %6875 = vmatmul.mubr.f32.gmra.mrb[0].mxu0 %v6874
    %v6876 = vpop.f32.mrb[0].mxu0
    %v6877 = vadd.f32 %v6773, %v6876
    %v6878 = vpop.f32.mrb[0].mxu0
    %6879 = vdwg.mxu0
    %6880 = vmatprep.subr.mxu0 0.0
    %v6881 = vand.u32 %v6487, 4294901760
    %6882 = vmatpush1.xpose.msra.mxu0 %v6881
    %6883 = vmatprep.subr.mxu0 0.0
    %v6884 = vand.u32 %v6490, 4294901760
    %6885 = vmatpush1.xpose.msra.mxu0 %v6884
    %6886 = vmatprep.subr.mxu0 0.0
    %v6887 = vand.u32 %v6493, 4294901760
    %6888 = vmatpush1.xpose.msra.mxu0 %v6887
    %6889 = vmatprep.subr.mxu0 0.0
    %v6890 = vand.u32 %v6496, 4294901760
    %6891 = vmatpush1.xpose.msra.mxu0 %v6890
    %6892 = vmatprep.subr.mxu0 0.0
    %v6893 = vand.u32 %v6499, 4294901760
    %6894 = vmatpush1.xpose.msra.mxu0 %v6893
    %6895 = vmatprep.subr.mxu0 0.0
    %v6896 = vand.u32 %v6502, 4294901760
    %6897 = vmatpush1.xpose.msra.mxu0 %v6896
    %6898 = vmatprep.subr.mxu0 0.0
    %v6899 = vand.u32 %v6505, 4294901760
    %6900 = vmatpush1.xpose.msra.mxu0 %v6899
    %6901 = vmatprep.subr.mxu0 0.0
    %v6902 = vand.u32 %v6508, 4294901760
    %6903 = vmatpush1.xpose.msra.mxu0 %v6902
    %6904 = vmatprep.subr.mxu0 0.0
    %v6905 = vand.u32 %v6511, 4294901760
    %6906 = vmatpush1.xpose.msra.mxu0 %v6905
    %6907 = vmatprep.subr.mxu0 0.0
    %v6908 = vand.u32 %v6514, 4294901760
    %6909 = vmatpush1.xpose.msra.mxu0 %v6908
    %6910 = vmatprep.subr.mxu0 0.0
    %v6911 = vand.u32 %v6517, 4294901760
    %6912 = vmatpush1.xpose.msra.mxu0 %v6911
    %6913 = vmatprep.subr.mxu0 0.0
    %v6914 = vand.u32 %v6520, 4294901760
    %6915 = vmatpush1.xpose.msra.mxu0 %v6914
    %6916 = vmatprep.subr.mxu0 0.0
    %v6917 = vand.u32 %v6523, 4294901760
    %6918 = vmatpush1.xpose.msra.mxu0 %v6917
    %6919 = vmatprep.subr.mxu0 0.0
    %v6920 = vand.u32 %v6526, 4294901760
    %6921 = vmatpush1.xpose.msra.mxu0 %v6920
    %6922 = vmatprep.subr.mxu0 0.0
    %v6923 = vand.u32 %v6529, 4294901760
    %6924 = vmatpush1.xpose.msra.mxu0 %v6923
    %6925 = vmatprep.subr.mxu0 0.0
    %v6926 = vand.u32 %v6532, 4294901760
    %6927 = vmatpush1.xpose.msra.mxu0 %v6926
    %6928 = vmatprep.subr.mxu0 0.0
    %6929 = vmatpush1.xpose.msra.mxu0 0.0
    %6930 = vmatprep.subr.mxu0 0.0
    %6931 = vmatpush1.xpose.msra.mxu0 0.0
    %6932 = vmatprep.subr.mxu0 0.0
    %6933 = vmatpush1.xpose.msra.mxu0 0.0
    %6934 = vmatprep.subr.mxu0 0.0
    %6935 = vmatpush1.xpose.msra.mxu0 0.0
    %6936 = vmatprep.subr.mxu0 0.0
    %6937 = vmatpush1.xpose.msra.mxu0 0.0
    %6938 = vmatprep.subr.mxu0 0.0
    %6939 = vmatpush1.xpose.msra.mxu0 0.0
    %6940 = vmatprep.subr.mxu0 0.0
    %6941 = vmatpush1.xpose.msra.mxu0 0.0
    %6942 = vmatprep.subr.mxu0 0.0
    %6943 = vmatpush1.xpose.msra.mxu0 0.0
    %6944 = vmatprep.subr.mxu0 0.0
    %6945 = vmatpush1.xpose.msra.mxu0 0.0
    %6946 = vmatprep.subr.mxu0 0.0
    %6947 = vmatpush1.xpose.msra.mxu0 0.0
    %6948 = vmatprep.subr.mxu0 0.0
    %6949 = vmatpush1.xpose.msra.mxu0 0.0
    %6950 = vmatprep.subr.mxu0 0.0
    %6951 = vmatpush1.xpose.msra.mxu0 0.0
    %6952 = vmatprep.subr.mxu0 0.0
    %6953 = vmatpush1.xpose.msra.mxu0 0.0
    %6954 = vmatprep.subr.mxu0 0.0
    %6955 = vmatpush1.xpose.msra.mxu0 0.0
    %6956 = vmatprep.subr.mxu0 0.0
    %6957 = vmatpush1.xpose.msra.mxu0 0.0
    %6958 = vmatprep.subr.mxu0 0.0
    %6959 = vmatpush1.xpose.msra.mxu0 0.0
    %6960 = vmatprep.mubr.f32.mxu0 0.0
    %v6961 = vand.u32 %v760, 4294901760
    %v6962 = vsub.f32 %v760, %v6961
    %v6963 = vand.u32 %v6962, 4294901760
    %6964 = vmatmul.mubr.f32.gmra.mrb[0].mxu0 %v6963
    %v6965 = vpop.f32.mrb[0].mxu0
    %v6966 = vadd.f32 %v6877, %v6965
    %v6967 = vpop.f32.mrb[0].mxu0
    %6968 = vdwg.mxu0
    %6969 = vmatprep.subr.mxu0 0.0
    %v6970 = vand.u32 %v6487, 4294901760
    %v6971 = vsub.f32 %v6487, %v6970
    %v6972 = vand.u32 %v6971, 4294901760
    %6973 = vmatpush1.xpose.msra.mxu0 %v6972
    %6974 = vmatprep.subr.mxu0 0.0
    %v6975 = vand.u32 %v6490, 4294901760
    %v6976 = vsub.f32 %v6490, %v6975
    %v6977 = vand.u32 %v6976, 4294901760
    %6978 = vmatpush1.xpose.msra.mxu0 %v6977
    %6979 = vmatprep.subr.mxu0 0.0
    %v6980 = vand.u32 %v6493, 4294901760
    %v6981 = vsub.f32 %v6493, %v6980
    %v6982 = vand.u32 %v6981, 4294901760
    %6983 = vmatpush1.xpose.msra.mxu0 %v6982
    %6984 = vmatprep.subr.mxu0 0.0
    %v6985 = vand.u32 %v6496, 4294901760
    %v6986 = vsub.f32 %v6496, %v6985
    %v6987 = vand.u32 %v6986, 4294901760
    %6988 = vmatpush1.xpose.msra.mxu0 %v6987
    %6989 = vmatprep.subr.mxu0 0.0
    %v6990 = vand.u32 %v6499, 4294901760
    %v6991 = vsub.f32 %v6499, %v6990
    %v6992 = vand.u32 %v6991, 4294901760
    %6993 = vmatpush1.xpose.msra.mxu0 %v6992
    %6994 = vmatprep.subr.mxu0 0.0
    %v6995 = vand.u32 %v6502, 4294901760
    %v6996 = vsub.f32 %v6502, %v6995
    %v6997 = vand.u32 %v6996, 4294901760
    %6998 = vmatpush1.xpose.msra.mxu0 %v6997
    %6999 = vmatprep.subr.mxu0 0.0
    %v7000 = vand.u32 %v6505, 4294901760
    %v7001 = vsub.f32 %v6505, %v7000
    %v7002 = vand.u32 %v7001, 4294901760
    %7003 = vmatpush1.xpose.msra.mxu0 %v7002
    %7004 = vmatprep.subr.mxu0 0.0
    %v7005 = vand.u32 %v6508, 4294901760
    %v7006 = vsub.f32 %v6508, %v7005
    %v7007 = vand.u32 %v7006, 4294901760
    %7008 = vmatpush1.xpose.msra.mxu0 %v7007
    %7009 = vmatprep.subr.mxu0 0.0
    %v7010 = vand.u32 %v6511, 4294901760
    %v7011 = vsub.f32 %v6511, %v7010
    %v7012 = vand.u32 %v7011, 4294901760
    %7013 = vmatpush1.xpose.msra.mxu0 %v7012
    %7014 = vmatprep.subr.mxu0 0.0
    %v7015 = vand.u32 %v6514, 4294901760
    %v7016 = vsub.f32 %v6514, %v7015
    %v7017 = vand.u32 %v7016, 4294901760
    %7018 = vmatpush1.xpose.msra.mxu0 %v7017
    %7019 = vmatprep.subr.mxu0 0.0
    %v7020 = vand.u32 %v6517, 4294901760
    %v7021 = vsub.f32 %v6517, %v7020
    %v7022 = vand.u32 %v7021, 4294901760
    %7023 = vmatpush1.xpose.msra.mxu0 %v7022
    %7024 = vmatprep.subr.mxu0 0.0
    %v7025 = vand.u32 %v6520, 4294901760
    %v7026 = vsub.f32 %v6520, %v7025
    %v7027 = vand.u32 %v7026, 4294901760
    %7028 = vmatpush1.xpose.msra.mxu0 %v7027
    %7029 = vmatprep.subr.mxu0 0.0
    %v7030 = vand.u32 %v6523, 4294901760
    %v7031 = vsub.f32 %v6523, %v7030
    %v7032 = vand.u32 %v7031, 4294901760
    %7033 = vmatpush1.xpose.msra.mxu0 %v7032
    %7034 = vmatprep.subr.mxu0 0.0
    %v7035 = vand.u32 %v6526, 4294901760
    %v7036 = vsub.f32 %v6526, %v7035
    %v7037 = vand.u32 %v7036, 4294901760
    %7038 = vmatpush1.xpose.msra.mxu0 %v7037
    %7039 = vmatprep.subr.mxu0 0.0
    %v7040 = vand.u32 %v6529, 4294901760
    %v7041 = vsub.f32 %v6529, %v7040
    %v7042 = vand.u32 %v7041, 4294901760
    %7043 = vmatpush1.xpose.msra.mxu0 %v7042
    %7044 = vmatprep.subr.mxu0 0.0
    %v7045 = vand.u32 %v6532, 4294901760
    %v7046 = vsub.f32 %v6532, %v7045
    %v7047 = vand.u32 %v7046, 4294901760
    %7048 = vmatpush1.xpose.msra.mxu0 %v7047
    %7049 = vmatprep.subr.mxu0 0.0
    %7050 = vmatpush1.xpose.msra.mxu0 0.0
    %7051 = vmatprep.subr.mxu0 0.0
    %7052 = vmatpush1.xpose.msra.mxu0 0.0
    %7053 = vmatprep.subr.mxu0 0.0
    %7054 = vmatpush1.xpose.msra.mxu0 0.0
    %7055 = vmatprep.subr.mxu0 0.0
    %7056 = vmatpush1.xpose.msra.mxu0 0.0
    %7057 = vmatprep.subr.mxu0 0.0
    %7058 = vmatpush1.xpose.msra.mxu0 0.0
    %7059 = vmatprep.subr.mxu0 0.0
    %7060 = vmatpush1.xpose.msra.mxu0 0.0
    %7061 = vmatprep.subr.mxu0 0.0
    %7062 = vmatpush1.xpose.msra.mxu0 0.0
    %7063 = vmatprep.subr.mxu0 0.0
    %7064 = vmatpush1.xpose.msra.mxu0 0.0
    %7065 = vmatprep.subr.mxu0 0.0
    %7066 = vmatpush1.xpose.msra.mxu0 0.0
    %7067 = vmatprep.subr.mxu0 0.0
    %7068 = vmatpush1.xpose.msra.mxu0 0.0
    %7069 = vmatprep.subr.mxu0 0.0
    %7070 = vmatpush1.xpose.msra.mxu0 0.0
    %7071 = vmatprep.subr.mxu0 0.0
    %7072 = vmatpush1.xpose.msra.mxu0 0.0
    %7073 = vmatprep.subr.mxu0 0.0
    %7074 = vmatpush1.xpose.msra.mxu0 0.0
    %7075 = vmatprep.subr.mxu0 0.0
    %7076 = vmatpush1.xpose.msra.mxu0 0.0
    %7077 = vmatprep.subr.mxu0 0.0
    %7078 = vmatpush1.xpose.msra.mxu0 0.0
    %7079 = vmatprep.subr.mxu0 0.0
    %7080 = vmatpush1.xpose.msra.mxu0 0.0
    %7081 = vmatprep.mubr.f32.mxu0 0.0
    %v7082 = vand.u32 %v760, 4294901760
    %7083 = vmatmul.mubr.f32.gmra.mrb[0].mxu0 %v7082
    %v7084 = vpop.f32.mrb[0].mxu0
    %v7085 = vadd.f32 %v6966, %v7084
    %v7086 = vpop.f32.mrb[0].mxu0
    %7087 = vdwg.mxu0
    %7088 = vmatprep.subr.mxu0 0.0
    %v7089 = vand.u32 %v6487, 4294901760
    %7090 = vmatpush1.xpose.msra.mxu0 %v7089
    %7091 = vmatprep.subr.mxu0 0.0
    %v7092 = vand.u32 %v6490, 4294901760
    %7093 = vmatpush1.xpose.msra.mxu0 %v7092
    %7094 = vmatprep.subr.mxu0 0.0
    %v7095 = vand.u32 %v6493, 4294901760
    %7096 = vmatpush1.xpose.msra.mxu0 %v7095
    %7097 = vmatprep.subr.mxu0 0.0
    %v7098 = vand.u32 %v6496, 4294901760
    %7099 = vmatpush1.xpose.msra.mxu0 %v7098
    %7100 = vmatprep.subr.mxu0 0.0
    %v7101 = vand.u32 %v6499, 4294901760
    %7102 = vmatpush1.xpose.msra.mxu0 %v7101
    %7103 = vmatprep.subr.mxu0 0.0
    %v7104 = vand.u32 %v6502, 4294901760
    %7105 = vmatpush1.xpose.msra.mxu0 %v7104
    %7106 = vmatprep.subr.mxu0 0.0
    %v7107 = vand.u32 %v6505, 4294901760
    %7108 = vmatpush1.xpose.msra.mxu0 %v7107
    %7109 = vmatprep.subr.mxu0 0.0
    %v7110 = vand.u32 %v6508, 4294901760
    %7111 = vmatpush1.xpose.msra.mxu0 %v7110
    %7112 = vmatprep.subr.mxu0 0.0
    %v7113 = vand.u32 %v6511, 4294901760
    %7114 = vmatpush1.xpose.msra.mxu0 %v7113
    %7115 = vmatprep.subr.mxu0 0.0
    %v7116 = vand.u32 %v6514, 4294901760
    %7117 = vmatpush1.xpose.msra.mxu0 %v7116
    %7118 = vmatprep.subr.mxu0 0.0
    %v7119 = vand.u32 %v6517, 4294901760
    %7120 = vmatpush1.xpose.msra.mxu0 %v7119
    %7121 = vmatprep.subr.mxu0 0.0
    %v7122 = vand.u32 %v6520, 4294901760
    %7123 = vmatpush1.xpose.msra.mxu0 %v7122
    %7124 = vmatprep.subr.mxu0 0.0
    %v7125 = vand.u32 %v6523, 4294901760
    %7126 = vmatpush1.xpose.msra.mxu0 %v7125
    %7127 = vmatprep.subr.mxu0 0.0
    %v7128 = vand.u32 %v6526, 4294901760
    %7129 = vmatpush1.xpose.msra.mxu0 %v7128
    %7130 = vmatprep.subr.mxu0 0.0
    %v7131 = vand.u32 %v6529, 4294901760
    %7132 = vmatpush1.xpose.msra.mxu0 %v7131
    %7133 = vmatprep.subr.mxu0 0.0
    %v7134 = vand.u32 %v6532, 4294901760
    %7135 = vmatpush1.xpose.msra.mxu0 %v7134
    %7136 = vmatprep.subr.mxu0 0.0
    %7137 = vmatpush1.xpose.msra.mxu0 0.0
    %7138 = vmatprep.subr.mxu0 0.0
    %7139 = vmatpush1.xpose.msra.mxu0 0.0
    %7140 = vmatprep.subr.mxu0 0.0
    %7141 = vmatpush1.xpose.msra.mxu0 0.0
    %7142 = vmatprep.subr.mxu0 0.0
    %7143 = vmatpush1.xpose.msra.mxu0 0.0
    %7144 = vmatprep.subr.mxu0 0.0
    %7145 = vmatpush1.xpose.msra.mxu0 0.0
    %7146 = vmatprep.subr.mxu0 0.0
    %7147 = vmatpush1.xpose.msra.mxu0 0.0
    %7148 = vmatprep.subr.mxu0 0.0
    %7149 = vmatpush1.xpose.msra.mxu0 0.0
    %7150 = vmatprep.subr.mxu0 0.0
    %7151 = vmatpush1.xpose.msra.mxu0 0.0
    %7152 = vmatprep.subr.mxu0 0.0
    %7153 = vmatpush1.xpose.msra.mxu0 0.0
    %7154 = vmatprep.subr.mxu0 0.0
    %7155 = vmatpush1.xpose.msra.mxu0 0.0
    %7156 = vmatprep.subr.mxu0 0.0
    %7157 = vmatpush1.xpose.msra.mxu0 0.0
    %7158 = vmatprep.subr.mxu0 0.0
    %7159 = vmatpush1.xpose.msra.mxu0 0.0
    %7160 = vmatprep.subr.mxu0 0.0
    %7161 = vmatpush1.xpose.msra.mxu0 0.0
    %7162 = vmatprep.subr.mxu0 0.0
    %7163 = vmatpush1.xpose.msra.mxu0 0.0
    %7164 = vmatprep.subr.mxu0 0.0
    %7165 = vmatpush1.xpose.msra.mxu0 0.0
    %7166 = vmatprep.subr.mxu0 0.0
    %7167 = vmatpush1.xpose.msra.mxu0 0.0
    %7168 = vmatprep.mubr.f32.mxu0 0.0
    %v7169 = vand.u32 %v760, 4294901760
    %7170 = vmatmul.mubr.f32.gmra.mrb[0].mxu0 %v7169
    %v7171 = vpop.f32.mrb[0].mxu0
    %v7172 = vadd.f32 %v7085, %v7171
    %v7173 = vpop.f32.mrb[0].mxu0
    %7174 = vdwg.mxu0
    %v7175 = vadd.f32 %v7172, %v1454
    %v7176 = vmax.f32 %v7175, 0.0
    %v7177 = vmul.f32 %v7176, %v1461
    %v7178 = vsel %vm1464, %v7177, 0.0
    %v7179 = vrot.slane %v7178, 4
    %v7180 = vadd.f32 %v7178, %v7179
    %v7181 = vrot.slane %v7180, 2
    %v7182 = vadd.f32 %v7180, %v7181
    %v7183 = vrot.slane %v7182, 1
    %v7184 = vadd.f32 %v7182, %v7183
    %v7185 = vadd.f32 %v7184, %v1472
    %v7186 = vxor.u32 %v7185, 2147483648
    %v7187 = vmul.f32 %v7186, 1.442695
    %v7188 = vpow.pop %v7187
    %v7189 = vadd.f32 %v7188, 1.0
    %v7190 = vrcp.pop %v7189
    %v7191 = vmul.f32 1.0, %v7190
    %7192 = vst [vmem:[#allocation3 + $0x4] sm:$0x1] %v7191
    %v7193 = vld [vmem:[%s0 + $0x280] sm:$0xff]
    %v7194 = vld [vmem:[%s0 + $0x288] sm:$0xff]
    %v7195 = vld [vmem:[%s0 + $0x290] sm:$0xff]
    %v7196 = vld [vmem:[%s0 + $0x298] sm:$0xff]
    %v7197 = vld [vmem:[%s0 + $0x2a0] sm:$0xff]
    %v7198 = vld [vmem:[%s0 + $0x2a8] sm:$0xff]
    %v7199 = vld [vmem:[%s0 + $0x2b0] sm:$0xff]
    %v7200 = vld [vmem:[%s0 + $0x2b8] sm:$0xff]
    %v7201 = vld [vmem:[%s0 + $0x2c0] sm:$0xff]
    %v7202 = vld [vmem:[%s0 + $0x2c8] sm:$0xff]
    %v7203 = vld [vmem:[%s0 + $0x2d0] sm:$0xff]
    %v7204 = vld [vmem:[%s0 + $0x2d8] sm:$0xff]
    %v7205 = vld [vmem:[%s0 + $0x2e0] sm:$0xff]
    %v7206 = vld [vmem:[%s0 + $0x2e8] sm:$0xff]
    %v7207 = vld [vmem:[%s0 + $0x2f0] sm:$0xff]
    %v7208 = vld [vmem:[%s0 + $0x2f8] sm:$0xff]
    %v7209 = vld [vmem:[%s1 + $0x280] sm:$0xff]
    %v7210 = vld [vmem:[%s1 + $0x288] sm:$0xff]
    %v7211 = vld [vmem:[%s1 + $0x290] sm:$0xff]
    %v7212 = vld [vmem:[%s1 + $0x298] sm:$0xff]
    %v7213 = vld [vmem:[%s1 + $0x2a0] sm:$0xff]
    %v7214 = vld [vmem:[%s1 + $0x2a8] sm:$0xff]
    %v7215 = vld [vmem:[%s1 + $0x2b0] sm:$0xff]
    %v7216 = vld [vmem:[%s1 + $0x2b8] sm:$0xff]
    %v7217 = vld [vmem:[%s1 + $0x2c0] sm:$0xff]
    %v7218 = vld [vmem:[%s1 + $0x2c8] sm:$0xff]
    %v7219 = vld [vmem:[%s1 + $0x2d0] sm:$0xff]
    %v7220 = vld [vmem:[%s1 + $0x2d8] sm:$0xff]
    %v7221 = vld [vmem:[%s1 + $0x2e0] sm:$0xff]
    %v7222 = vld [vmem:[%s1 + $0x2e8] sm:$0xff]
    %v7223 = vld [vmem:[%s1 + $0x2f0] sm:$0xff]
    %v7224 = vld [vmem:[%s1 + $0x2f8] sm:$0xff]
    %v7226 = vsel %vm65, %v7209, 0
    %v7229 = vsel %vm65, %v7210, 0
    %v7232 = vsel %vm65, %v7211, 0
    %v7235 = vsel %vm65, %v7212, 0
    %v7238 = vsel %vm65, %v7213, 0
    %v7241 = vsel %vm65, %v7214, 0
    %v7244 = vsel %vm65, %v7215, 0
    %v7247 = vsel %vm65, %v7216, 0
    %v7250 = vsel %vm65, %v7217, 0
    %v7253 = vsel %vm65, %v7218, 0
    %v7256 = vsel %vm65, %v7219, 0
    %v7259 = vsel %vm65, %v7220, 0
    %v7262 = vsel %vm65, %v7221, 0
    %v7265 = vsel %vm65, %v7222, 0
    %v7268 = vsel %vm65, %v7223, 0
    %v7271 = vsel %vm65, %v7224, 0
    %7273 = vmatprep.subr.mxu0 0.0
    %v7274 = vand.u32 %v7226, 4294901760
    %7275 = vmatpush1.xpose.msra.mxu0 %v7274
    %7276 = vmatprep.subr.mxu0 0.0
    %v7277 = vand.u32 %v7229, 4294901760
    %7278 = vmatpush1.xpose.msra.mxu0 %v7277
    %7279 = vmatprep.subr.mxu0 0.0
    %v7280 = vand.u32 %v7232, 4294901760
    %7281 = vmatpush1.xpose.msra.mxu0 %v7280
    %7282 = vmatprep.subr.mxu0 0.0
    %v7283 = vand.u32 %v7235, 4294901760
    %7284 = vmatpush1.xpose.msra.mxu0 %v7283
    %7285 = vmatprep.subr.mxu0 0.0
    %v7286 = vand.u32 %v7238, 4294901760
    %7287 = vmatpush1.xpose.msra.mxu0 %v7286
    %7288 = vmatprep.subr.mxu0 0.0
    %v7289 = vand.u32 %v7241, 4294901760
    %7290 = vmatpush1.xpose.msra.mxu0 %v7289
    %7291 = vmatprep.subr.mxu0 0.0
    %v7292 = vand.u32 %v7244, 4294901760
    %7293 = vmatpush1.xpose.msra.mxu0 %v7292
    %7294 = vmatprep.subr.mxu0 0.0
    %v7295 = vand.u32 %v7247, 4294901760
    %7296 = vmatpush1.xpose.msra.mxu0 %v7295
    %7297 = vmatprep.subr.mxu0 0.0
    %v7298 = vand.u32 %v7250, 4294901760
    %7299 = vmatpush1.xpose.msra.mxu0 %v7298
    %7300 = vmatprep.subr.mxu0 0.0
    %v7301 = vand.u32 %v7253, 4294901760
    %7302 = vmatpush1.xpose.msra.mxu0 %v7301
    %7303 = vmatprep.subr.mxu0 0.0
    %v7304 = vand.u32 %v7256, 4294901760
    %7305 = vmatpush1.xpose.msra.mxu0 %v7304
    %7306 = vmatprep.subr.mxu0 0.0
    %v7307 = vand.u32 %v7259, 4294901760
    %7308 = vmatpush1.xpose.msra.mxu0 %v7307
    %7309 = vmatprep.subr.mxu0 0.0
    %v7310 = vand.u32 %v7262, 4294901760
    %7311 = vmatpush1.xpose.msra.mxu0 %v7310
    %7312 = vmatprep.subr.mxu0 0.0
    %v7313 = vand.u32 %v7265, 4294901760
    %7314 = vmatpush1.xpose.msra.mxu0 %v7313
    %7315 = vmatprep.subr.mxu0 0.0
    %v7316 = vand.u32 %v7268, 4294901760
    %7317 = vmatpush1.xpose.msra.mxu0 %v7316
    %7318 = vmatprep.subr.mxu0 0.0
    %v7319 = vand.u32 %v7271, 4294901760
    %7320 = vmatpush1.xpose.msra.mxu0 %v7319
    %7321 = vmatprep.subr.mxu0 0.0
    %7322 = vmatpush1.xpose.msra.mxu0 0.0
    %7323 = vmatprep.subr.mxu0 0.0
    %7324 = vmatpush1.xpose.msra.mxu0 0.0
    %7325 = vmatprep.subr.mxu0 0.0
    %7326 = vmatpush1.xpose.msra.mxu0 0.0
    %7327 = vmatprep.subr.mxu0 0.0
    %7328 = vmatpush1.xpose.msra.mxu0 0.0
    %7329 = vmatprep.subr.mxu0 0.0
    %7330 = vmatpush1.xpose.msra.mxu0 0.0
    %7331 = vmatprep.subr.mxu0 0.0
    %7332 = vmatpush1.xpose.msra.mxu0 0.0
    %7333 = vmatprep.subr.mxu0 0.0
    %7334 = vmatpush1.xpose.msra.mxu0 0.0
    %7335 = vmatprep.subr.mxu0 0.0
    %7336 = vmatpush1.xpose.msra.mxu0 0.0
    %7337 = vmatprep.subr.mxu0 0.0
    %7338 = vmatpush1.xpose.msra.mxu0 0.0
    %7339 = vmatprep.subr.mxu0 0.0
    %7340 = vmatpush1.xpose.msra.mxu0 0.0
    %7341 = vmatprep.subr.mxu0 0.0
    %7342 = vmatpush1.xpose.msra.mxu0 0.0
    %7343 = vmatprep.subr.mxu0 0.0
    %7344 = vmatpush1.xpose.msra.mxu0 0.0
    %7345 = vmatprep.subr.mxu0 0.0
    %7346 = vmatpush1.xpose.msra.mxu0 0.0
    %7347 = vmatprep.subr.mxu0 0.0
    %7348 = vmatpush1.xpose.msra.mxu0 0.0
    %7349 = vmatprep.subr.mxu0 0.0
    %7350 = vmatpush1.xpose.msra.mxu0 0.0
    %7351 = vmatprep.subr.mxu0 0.0
    %7352 = vmatpush1.xpose.msra.mxu0 0.0
    %7353 = vmatprep.mubr.f32.mxu0 0.0
    %v7354 = vand.u32 %v67, 4294901760
    %v7355 = vsub.f32 %v67, %v7354
    %v7356 = vand.u32 %v7355, 4294901760
    %v7357 = vsub.f32 %v7355, %v7356
    %v7358 = vand.u32 %v7357, 4294901760
    %7359 = vmatmul.mubr.f32.gmra.mrb[0].mxu0 %v7358
    %v7360 = vpop.f32.mrb[0].mxu0
    %v7361 = vadd.f32 0.0, %v7360
    %v7362 = vpop.f32.mrb[0].mxu0
    %7363 = vdwg.mxu0
    %7364 = vmatprep.subr.mxu0 0.0
    %v7365 = vand.u32 %v7226, 4294901760
    %v7366 = vsub.f32 %v7226, %v7365
    %v7367 = vand.u32 %v7366, 4294901760
    %v7368 = vsub.f32 %v7366, %v7367
    %v7369 = vand.u32 %v7368, 4294901760
    %7370 = vmatpush1.xpose.msra.mxu0 %v7369
    %7371 = vmatprep.subr.mxu0 0.0
    %v7372 = vand.u32 %v7229, 4294901760
    %v7373 = vsub.f32 %v7229, %v7372
    %v7374 = vand.u32 %v7373, 4294901760
    %v7375 = vsub.f32 %v7373, %v7374
    %v7376 = vand.u32 %v7375, 4294901760
    %7377 = vmatpush1.xpose.msra.mxu0 %v7376
    %7378 = vmatprep.subr.mxu0 0.0
    %v7379 = vand.u32 %v7232, 4294901760
    %v7380 = vsub.f32 %v7232, %v7379
    %v7381 = vand.u32 %v7380, 4294901760
    %v7382 = vsub.f32 %v7380, %v7381
    %v7383 = vand.u32 %v7382, 4294901760
    %7384 = vmatpush1.xpose.msra.mxu0 %v7383
    %7385 = vmatprep.subr.mxu0 0.0
    %v7386 = vand.u32 %v7235, 4294901760
    %v7387 = vsub.f32 %v7235, %v7386
    %v7388 = vand.u32 %v7387, 4294901760
    %v7389 = vsub.f32 %v7387, %v7388
    %v7390 = vand.u32 %v7389, 4294901760
    %7391 = vmatpush1.xpose.msra.mxu0 %v7390
    %7392 = vmatprep.subr.mxu0 0.0
    %v7393 = vand.u32 %v7238, 4294901760
    %v7394 = vsub.f32 %v7238, %v7393
    %v7395 = vand.u32 %v7394, 4294901760
    %v7396 = vsub.f32 %v7394, %v7395
    %v7397 = vand.u32 %v7396, 4294901760
    %7398 = vmatpush1.xpose.msra.mxu0 %v7397
    %7399 = vmatprep.subr.mxu0 0.0
    %v7400 = vand.u32 %v7241, 4294901760
    %v7401 = vsub.f32 %v7241, %v7400
    %v7402 = vand.u32 %v7401, 4294901760
    %v7403 = vsub.f32 %v7401, %v7402
    %v7404 = vand.u32 %v7403, 4294901760
    %7405 = vmatpush1.xpose.msra.mxu0 %v7404
    %7406 = vmatprep.subr.mxu0 0.0
    %v7407 = vand.u32 %v7244, 4294901760
    %v7408 = vsub.f32 %v7244, %v7407
    %v7409 = vand.u32 %v7408, 4294901760
    %v7410 = vsub.f32 %v7408, %v7409
    %v7411 = vand.u32 %v7410, 4294901760
    %7412 = vmatpush1.xpose.msra.mxu0 %v7411
    %7413 = vmatprep.subr.mxu0 0.0
    %v7414 = vand.u32 %v7247, 4294901760
    %v7415 = vsub.f32 %v7247, %v7414
    %v7416 = vand.u32 %v7415, 4294901760
    %v7417 = vsub.f32 %v7415, %v7416
    %v7418 = vand.u32 %v7417, 4294901760
    %7419 = vmatpush1.xpose.msra.mxu0 %v7418
    %7420 = vmatprep.subr.mxu0 0.0
    %v7421 = vand.u32 %v7250, 4294901760
    %v7422 = vsub.f32 %v7250, %v7421
    %v7423 = vand.u32 %v7422, 4294901760
    %v7424 = vsub.f32 %v7422, %v7423
    %v7425 = vand.u32 %v7424, 4294901760
    %7426 = vmatpush1.xpose.msra.mxu0 %v7425
    %7427 = vmatprep.subr.mxu0 0.0
    %v7428 = vand.u32 %v7253, 4294901760
    %v7429 = vsub.f32 %v7253, %v7428
    %v7430 = vand.u32 %v7429, 4294901760
    %v7431 = vsub.f32 %v7429, %v7430
    %v7432 = vand.u32 %v7431, 4294901760
    %7433 = vmatpush1.xpose.msra.mxu0 %v7432
    %7434 = vmatprep.subr.mxu0 0.0
    %v7435 = vand.u32 %v7256, 4294901760
    %v7436 = vsub.f32 %v7256, %v7435
    %v7437 = vand.u32 %v7436, 4294901760
    %v7438 = vsub.f32 %v7436, %v7437
    %v7439 = vand.u32 %v7438, 4294901760
    %7440 = vmatpush1.xpose.msra.mxu0 %v7439
    %7441 = vmatprep.subr.mxu0 0.0
    %v7442 = vand.u32 %v7259, 4294901760
    %v7443 = vsub.f32 %v7259, %v7442
    %v7444 = vand.u32 %v7443, 4294901760
    %v7445 = vsub.f32 %v7443, %v7444
    %v7446 = vand.u32 %v7445, 4294901760
    %7447 = vmatpush1.xpose.msra.mxu0 %v7446
    %7448 = vmatprep.subr.mxu0 0.0
    %v7449 = vand.u32 %v7262, 4294901760
    %v7450 = vsub.f32 %v7262, %v7449
    %v7451 = vand.u32 %v7450, 4294901760
    %v7452 = vsub.f32 %v7450, %v7451
    %v7453 = vand.u32 %v7452, 4294901760
    %7454 = vmatpush1.xpose.msra.mxu0 %v7453
    %7455 = vmatprep.subr.mxu0 0.0
    %v7456 = vand.u32 %v7265, 4294901760
    %v7457 = vsub.f32 %v7265, %v7456
    %v7458 = vand.u32 %v7457, 4294901760
    %v7459 = vsub.f32 %v7457, %v7458
    %v7460 = vand.u32 %v7459, 4294901760
    %7461 = vmatpush1.xpose.msra.mxu0 %v7460
    %7462 = vmatprep.subr.mxu0 0.0
    %v7463 = vand.u32 %v7268, 4294901760
    %v7464 = vsub.f32 %v7268, %v7463
    %v7465 = vand.u32 %v7464, 4294901760
    %v7466 = vsub.f32 %v7464, %v7465
    %v7467 = vand.u32 %v7466, 4294901760
    %7468 = vmatpush1.xpose.msra.mxu0 %v7467
    %7469 = vmatprep.subr.mxu0 0.0
    %v7470 = vand.u32 %v7271, 4294901760
    %v7471 = vsub.f32 %v7271, %v7470
    %v7472 = vand.u32 %v7471, 4294901760
    %v7473 = vsub.f32 %v7471, %v7472
    %v7474 = vand.u32 %v7473, 4294901760
    %7475 = vmatpush1.xpose.msra.mxu0 %v7474
    %7476 = vmatprep.subr.mxu0 0.0
    %7477 = vmatpush1.xpose.msra.mxu0 0.0
    %7478 = vmatprep.subr.mxu0 0.0
    %7479 = vmatpush1.xpose.msra.mxu0 0.0
    %7480 = vmatprep.subr.mxu0 0.0
    %7481 = vmatpush1.xpose.msra.mxu0 0.0
    %7482 = vmatprep.subr.mxu0 0.0
    %7483 = vmatpush1.xpose.msra.mxu0 0.0
    %7484 = vmatprep.subr.mxu0 0.0
    %7485 = vmatpush1.xpose.msra.mxu0 0.0
    %7486 = vmatprep.subr.mxu0 0.0
    %7487 = vmatpush1.xpose.msra.mxu0 0.0
    %7488 = vmatprep.subr.mxu0 0.0
    %7489 = vmatpush1.xpose.msra.mxu0 0.0
    %7490 = vmatprep.subr.mxu0 0.0
    %7491 = vmatpush1.xpose.msra.mxu0 0.0
    %7492 = vmatprep.subr.mxu0 0.0
    %7493 = vmatpush1.xpose.msra.mxu0 0.0
    %7494 = vmatprep.subr.mxu0 0.0
    %7495 = vmatpush1.xpose.msra.mxu0 0.0
    %7496 = vmatprep.subr.mxu0 0.0
    %7497 = vmatpush1.xpose.msra.mxu0 0.0
    %7498 = vmatprep.subr.mxu0 0.0
    %7499 = vmatpush1.xpose.msra.mxu0 0.0
    %7500 = vmatprep.subr.mxu0 0.0
    %7501 = vmatpush1.xpose.msra.mxu0 0.0
    %7502 = vmatprep.subr.mxu0 0.0
    %7503 = vmatpush1.xpose.msra.mxu0 0.0
    %7504 = vmatprep.subr.mxu0 0.0
    %7505 = vmatpush1.xpose.msra.mxu0 0.0
    %7506 = vmatprep.subr.mxu0 0.0
    %7507 = vmatpush1.xpose.msra.mxu0 0.0
    %7508 = vmatprep.mubr.f32.mxu0 0.0
    %v7509 = vand.u32 %v67, 4294901760
    %7510 = vmatmul.mubr.f32.gmra.mrb[0].mxu0 %v7509
    %v7511 = vpop.f32.mrb[0].mxu0
    %v7512 = vadd.f32 %v7361, %v7511
    %v7513 = vpop.f32.mrb[0].mxu0
    %7514 = vdwg.mxu0
    %7515 = vmatprep.subr.mxu0 0.0
    %v7516 = vand.u32 %v7226, 4294901760
    %v7517 = vsub.f32 %v7226, %v7516
    %7518 = vmatpush1.xpose.msra.mxu0 %v7517
    %7519 = vmatprep.subr.mxu0 0.0
    %v7520 = vand.u32 %v7229, 4294901760
    %v7521 = vsub.f32 %v7229, %v7520
    %7522 = vmatpush1.xpose.msra.mxu0 %v7521
    %7523 = vmatprep.subr.mxu0 0.0
    %v7524 = vand.u32 %v7232, 4294901760
    %v7525 = vsub.f32 %v7232, %v7524
    %7526 = vmatpush1.xpose.msra.mxu0 %v7525
    %7527 = vmatprep.subr.mxu0 0.0
    %v7528 = vand.u32 %v7235, 4294901760
    %v7529 = vsub.f32 %v7235, %v7528
    %7530 = vmatpush1.xpose.msra.mxu0 %v7529
    %7531 = vmatprep.subr.mxu0 0.0
    %v7532 = vand.u32 %v7238, 4294901760
    %v7533 = vsub.f32 %v7238, %v7532
    %7534 = vmatpush1.xpose.msra.mxu0 %v7533
    %7535 = vmatprep.subr.mxu0 0.0
    %v7536 = vand.u32 %v7241, 4294901760
    %v7537 = vsub.f32 %v7241, %v7536
    %7538 = vmatpush1.xpose.msra.mxu0 %v7537
    %7539 = vmatprep.subr.mxu0 0.0
    %v7540 = vand.u32 %v7244, 4294901760
    %v7541 = vsub.f32 %v7244, %v7540
    %7542 = vmatpush1.xpose.msra.mxu0 %v7541
    %7543 = vmatprep.subr.mxu0 0.0
    %v7544 = vand.u32 %v7247, 4294901760
    %v7545 = vsub.f32 %v7247, %v7544
    %7546 = vmatpush1.xpose.msra.mxu0 %v7545
    %7547 = vmatprep.subr.mxu0 0.0
    %v7548 = vand.u32 %v7250, 4294901760
    %v7549 = vsub.f32 %v7250, %v7548
    %7550 = vmatpush1.xpose.msra.mxu0 %v7549
    %7551 = vmatprep.subr.mxu0 0.0
    %v7552 = vand.u32 %v7253, 4294901760
    %v7553 = vsub.f32 %v7253, %v7552
    %7554 = vmatpush1.xpose.msra.mxu0 %v7553
    %7555 = vmatprep.subr.mxu0 0.0
    %v7556 = vand.u32 %v7256, 4294901760
    %v7557 = vsub.f32 %v7256, %v7556
    %7558 = vmatpush1.xpose.msra.mxu0 %v7557
    %7559 = vmatprep.subr.mxu0 0.0
    %v7560 = vand.u32 %v7259, 4294901760
    %v7561 = vsub.f32 %v7259, %v7560
    %7562 = vmatpush1.xpose.msra.mxu0 %v7561
    %7563 = vmatprep.subr.mxu0 0.0
    %v7564 = vand.u32 %v7262, 4294901760
    %v7565 = vsub.f32 %v7262, %v7564
    %7566 = vmatpush1.xpose.msra.mxu0 %v7565
    %7567 = vmatprep.subr.mxu0 0.0
    %v7568 = vand.u32 %v7265, 4294901760
    %v7569 = vsub.f32 %v7265, %v7568
    %7570 = vmatpush1.xpose.msra.mxu0 %v7569
    %7571 = vmatprep.subr.mxu0 0.0
    %v7572 = vand.u32 %v7268, 4294901760
    %v7573 = vsub.f32 %v7268, %v7572
    %7574 = vmatpush1.xpose.msra.mxu0 %v7573
    %7575 = vmatprep.subr.mxu0 0.0
    %v7576 = vand.u32 %v7271, 4294901760
    %v7577 = vsub.f32 %v7271, %v7576
    %7578 = vmatpush1.xpose.msra.mxu0 %v7577
    %7579 = vmatprep.subr.mxu0 0.0
    %7580 = vmatpush1.xpose.msra.mxu0 0.0
    %7581 = vmatprep.subr.mxu0 0.0
    %7582 = vmatpush1.xpose.msra.mxu0 0.0
    %7583 = vmatprep.subr.mxu0 0.0
    %7584 = vmatpush1.xpose.msra.mxu0 0.0
    %7585 = vmatprep.subr.mxu0 0.0
    %7586 = vmatpush1.xpose.msra.mxu0 0.0
    %7587 = vmatprep.subr.mxu0 0.0
    %7588 = vmatpush1.xpose.msra.mxu0 0.0
    %7589 = vmatprep.subr.mxu0 0.0
    %7590 = vmatpush1.xpose.msra.mxu0 0.0
    %7591 = vmatprep.subr.mxu0 0.0
    %7592 = vmatpush1.xpose.msra.mxu0 0.0
    %7593 = vmatprep.subr.mxu0 0.0
    %7594 = vmatpush1.xpose.msra.mxu0 0.0
    %7595 = vmatprep.subr.mxu0 0.0
    %7596 = vmatpush1.xpose.msra.mxu0 0.0
    %7597 = vmatprep.subr.mxu0 0.0
    %7598 = vmatpush1.xpose.msra.mxu0 0.0
    %7599 = vmatprep.subr.mxu0 0.0
    %7600 = vmatpush1.xpose.msra.mxu0 0.0
    %7601 = vmatprep.subr.mxu0 0.0
    %7602 = vmatpush1.xpose.msra.mxu0 0.0
    %7603 = vmatprep.subr.mxu0 0.0
    %7604 = vmatpush1.xpose.msra.mxu0 0.0
    %7605 = vmatprep.subr.mxu0 0.0
    %7606 = vmatpush1.xpose.msra.mxu0 0.0
    %7607 = vmatprep.subr.mxu0 0.0
    %7608 = vmatpush1.xpose.msra.mxu0 0.0
    %7609 = vmatprep.subr.mxu0 0.0
    %7610 = vmatpush1.xpose.msra.mxu0 0.0
    %7611 = vmatprep.mubr.f32.mxu0 0.0
    %v7612 = vand.u32 %v67, 4294901760
    %v7613 = vsub.f32 %v67, %v7612
    %7614 = vmatmul.mubr.f32.gmra.mrb[0].mxu0 %v7613
    %v7615 = vpop.f32.mrb[0].mxu0
    %v7616 = vadd.f32 %v7512, %v7615
    %v7617 = vpop.f32.mrb[0].mxu0
    %7618 = vdwg.mxu0
    %7619 = vmatprep.subr.mxu0 0.0
    %v7620 = vand.u32 %v7226, 4294901760
    %7621 = vmatpush1.xpose.msra.mxu0 %v7620
    %7622 = vmatprep.subr.mxu0 0.0
    %v7623 = vand.u32 %v7229, 4294901760
    %7624 = vmatpush1.xpose.msra.mxu0 %v7623
    %7625 = vmatprep.subr.mxu0 0.0
    %v7626 = vand.u32 %v7232, 4294901760
    %7627 = vmatpush1.xpose.msra.mxu0 %v7626
    %7628 = vmatprep.subr.mxu0 0.0
    %v7629 = vand.u32 %v7235, 4294901760
    %7630 = vmatpush1.xpose.msra.mxu0 %v7629
    %7631 = vmatprep.subr.mxu0 0.0
    %v7632 = vand.u32 %v7238, 4294901760
    %7633 = vmatpush1.xpose.msra.mxu0 %v7632
    %7634 = vmatprep.subr.mxu0 0.0
    %v7635 = vand.u32 %v7241, 4294901760
    %7636 = vmatpush1.xpose.msra.mxu0 %v7635
    %7637 = vmatprep.subr.mxu0 0.0
    %v7638 = vand.u32 %v7244, 4294901760
    %7639 = vmatpush1.xpose.msra.mxu0 %v7638
    %7640 = vmatprep.subr.mxu0 0.0
    %v7641 = vand.u32 %v7247, 4294901760
    %7642 = vmatpush1.xpose.msra.mxu0 %v7641
    %7643 = vmatprep.subr.mxu0 0.0
    %v7644 = vand.u32 %v7250, 4294901760
    %7645 = vmatpush1.xpose.msra.mxu0 %v7644
    %7646 = vmatprep.subr.mxu0 0.0
    %v7647 = vand.u32 %v7253, 4294901760
    %7648 = vmatpush1.xpose.msra.mxu0 %v7647
    %7649 = vmatprep.subr.mxu0 0.0
    %v7650 = vand.u32 %v7256, 4294901760
    %7651 = vmatpush1.xpose.msra.mxu0 %v7650
    %7652 = vmatprep.subr.mxu0 0.0
    %v7653 = vand.u32 %v7259, 4294901760
    %7654 = vmatpush1.xpose.msra.mxu0 %v7653
    %7655 = vmatprep.subr.mxu0 0.0
    %v7656 = vand.u32 %v7262, 4294901760
    %7657 = vmatpush1.xpose.msra.mxu0 %v7656
    %7658 = vmatprep.subr.mxu0 0.0
    %v7659 = vand.u32 %v7265, 4294901760
    %7660 = vmatpush1.xpose.msra.mxu0 %v7659
    %7661 = vmatprep.subr.mxu0 0.0
    %v7662 = vand.u32 %v7268, 4294901760
    %7663 = vmatpush1.xpose.msra.mxu0 %v7662
    %7664 = vmatprep.subr.mxu0 0.0
    %v7665 = vand.u32 %v7271, 4294901760
    %7666 = vmatpush1.xpose.msra.mxu0 %v7665
    %7667 = vmatprep.subr.mxu0 0.0
    %7668 = vmatpush1.xpose.msra.mxu0 0.0
    %7669 = vmatprep.subr.mxu0 0.0
    %7670 = vmatpush1.xpose.msra.mxu0 0.0
    %7671 = vmatprep.subr.mxu0 0.0
    %7672 = vmatpush1.xpose.msra.mxu0 0.0
    %7673 = vmatprep.subr.mxu0 0.0
    %7674 = vmatpush1.xpose.msra.mxu0 0.0
    %7675 = vmatprep.subr.mxu0 0.0
    %7676 = vmatpush1.xpose.msra.mxu0 0.0
    %7677 = vmatprep.subr.mxu0 0.0
    %7678 = vmatpush1.xpose.msra.mxu0 0.0
    %7679 = vmatprep.subr.mxu0 0.0
    %7680 = vmatpush1.xpose.msra.mxu0 0.0
    %7681 = vmatprep.subr.mxu0 0.0
    %7682 = vmatpush1.xpose.msra.mxu0 0.0
    %7683 = vmatprep.subr.mxu0 0.0
    %7684 = vmatpush1.xpose.msra.mxu0 0.0
    %7685 = vmatprep.subr.mxu0 0.0
    %7686 = vmatpush1.xpose.msra.mxu0 0.0
    %7687 = vmatprep.subr.mxu0 0.0
    %7688 = vmatpush1.xpose.msra.mxu0 0.0
    %7689 = vmatprep.subr.mxu0 0.0
    %7690 = vmatpush1.xpose.msra.mxu0 0.0
    %7691 = vmatprep.subr.mxu0 0.0
    %7692 = vmatpush1.xpose.msra.mxu0 0.0
    %7693 = vmatprep.subr.mxu0 0.0
    %7694 = vmatpush1.xpose.msra.mxu0 0.0
    %7695 = vmatprep.subr.mxu0 0.0
    %7696 = vmatpush1.xpose.msra.mxu0 0.0
    %7697 = vmatprep.subr.mxu0 0.0
    %7698 = vmatpush1.xpose.msra.mxu0 0.0
    %7699 = vmatprep.mubr.f32.mxu0 0.0
    %v7700 = vand.u32 %v67, 4294901760
    %v7701 = vsub.f32 %v67, %v7700
    %v7702 = vand.u32 %v7701, 4294901760
    %7703 = vmatmul.mubr.f32.gmra.mrb[0].mxu0 %v7702
    %v7704 = vpop.f32.mrb[0].mxu0
    %v7705 = vadd.f32 %v7616, %v7704
    %v7706 = vpop.f32.mrb[0].mxu0
    %7707 = vdwg.mxu0
    %7708 = vmatprep.subr.mxu0 0.0
    %v7709 = vand.u32 %v7226, 4294901760
    %v7710 = vsub.f32 %v7226, %v7709
    %v7711 = vand.u32 %v7710, 4294901760
    %7712 = vmatpush1.xpose.msra.mxu0 %v7711
    %7713 = vmatprep.subr.mxu0 0.0
    %v7714 = vand.u32 %v7229, 4294901760
    %v7715 = vsub.f32 %v7229, %v7714
    %v7716 = vand.u32 %v7715, 4294901760
    %7717 = vmatpush1.xpose.msra.mxu0 %v7716
    %7718 = vmatprep.subr.mxu0 0.0
    %v7719 = vand.u32 %v7232, 4294901760
    %v7720 = vsub.f32 %v7232, %v7719
    %v7721 = vand.u32 %v7720, 4294901760
    %7722 = vmatpush1.xpose.msra.mxu0 %v7721
    %7723 = vmatprep.subr.mxu0 0.0
    %v7724 = vand.u32 %v7235, 4294901760
    %v7725 = vsub.f32 %v7235, %v7724
    %v7726 = vand.u32 %v7725, 4294901760
    %7727 = vmatpush1.xpose.msra.mxu0 %v7726
    %7728 = vmatprep.subr.mxu0 0.0
    %v7729 = vand.u32 %v7238, 4294901760
    %v7730 = vsub.f32 %v7238, %v7729
    %v7731 = vand.u32 %v7730, 4294901760
    %7732 = vmatpush1.xpose.msra.mxu0 %v7731
    %7733 = vmatprep.subr.mxu0 0.0
    %v7734 = vand.u32 %v7241, 4294901760
    %v7735 = vsub.f32 %v7241, %v7734
    %v7736 = vand.u32 %v7735, 4294901760
    %7737 = vmatpush1.xpose.msra.mxu0 %v7736
    %7738 = vmatprep.subr.mxu0 0.0
    %v7739 = vand.u32 %v7244, 4294901760
    %v7740 = vsub.f32 %v7244, %v7739
    %v7741 = vand.u32 %v7740, 4294901760
    %7742 = vmatpush1.xpose.msra.mxu0 %v7741
    %7743 = vmatprep.subr.mxu0 0.0
    %v7744 = vand.u32 %v7247, 4294901760
    %v7745 = vsub.f32 %v7247, %v7744
    %v7746 = vand.u32 %v7745, 4294901760
    %7747 = vmatpush1.xpose.msra.mxu0 %v7746
    %7748 = vmatprep.subr.mxu0 0.0
    %v7749 = vand.u32 %v7250, 4294901760
    %v7750 = vsub.f32 %v7250, %v7749
    %v7751 = vand.u32 %v7750, 4294901760
    %7752 = vmatpush1.xpose.msra.mxu0 %v7751
    %7753 = vmatprep.subr.mxu0 0.0
    %v7754 = vand.u32 %v7253, 4294901760
    %v7755 = vsub.f32 %v7253, %v7754
    %v7756 = vand.u32 %v7755, 4294901760
    %7757 = vmatpush1.xpose.msra.mxu0 %v7756
    %7758 = vmatprep.subr.mxu0 0.0
    %v7759 = vand.u32 %v7256, 4294901760
    %v7760 = vsub.f32 %v7256, %v7759
    %v7761 = vand.u32 %v7760, 4294901760
    %7762 = vmatpush1.xpose.msra.mxu0 %v7761
    %7763 = vmatprep.subr.mxu0 0.0
    %v7764 = vand.u32 %v7259, 4294901760
    %v7765 = vsub.f32 %v7259, %v7764
    %v7766 = vand.u32 %v7765, 4294901760
    %7767 = vmatpush1.xpose.msra.mxu0 %v7766
    %7768 = vmatprep.subr.mxu0 0.0
    %v7769 = vand.u32 %v7262, 4294901760
    %v7770 = vsub.f32 %v7262, %v7769
    %v7771 = vand.u32 %v7770, 4294901760
    %7772 = vmatpush1.xpose.msra.mxu0 %v7771
    %7773 = vmatprep.subr.mxu0 0.0
    %v7774 = vand.u32 %v7265, 4294901760
    %v7775 = vsub.f32 %v7265, %v7774
    %v7776 = vand.u32 %v7775, 4294901760
    %7777 = vmatpush1.xpose.msra.mxu0 %v7776
    %7778 = vmatprep.subr.mxu0 0.0
    %v7779 = vand.u32 %v7268, 4294901760
    %v7780 = vsub.f32 %v7268, %v7779
    %v7781 = vand.u32 %v7780, 4294901760
    %7782 = vmatpush1.xpose.msra.mxu0 %v7781
    %7783 = vmatprep.subr.mxu0 0.0
    %v7784 = vand.u32 %v7271, 4294901760
    %v7785 = vsub.f32 %v7271, %v7784
    %v7786 = vand.u32 %v7785, 4294901760
    %7787 = vmatpush1.xpose.msra.mxu0 %v7786
    %7788 = vmatprep.subr.mxu0 0.0
    %7789 = vmatpush1.xpose.msra.mxu0 0.0
    %7790 = vmatprep.subr.mxu0 0.0
    %7791 = vmatpush1.xpose.msra.mxu0 0.0
    %7792 = vmatprep.subr.mxu0 0.0
    %7793 = vmatpush1.xpose.msra.mxu0 0.0
    %7794 = vmatprep.subr.mxu0 0.0
    %7795 = vmatpush1.xpose.msra.mxu0 0.0
    %7796 = vmatprep.subr.mxu0 0.0
    %7797 = vmatpush1.xpose.msra.mxu0 0.0
    %7798 = vmatprep.subr.mxu0 0.0
    %7799 = vmatpush1.xpose.msra.mxu0 0.0
    %7800 = vmatprep.subr.mxu0 0.0
    %7801 = vmatpush1.xpose.msra.mxu0 0.0
    %7802 = vmatprep.subr.mxu0 0.0
    %7803 = vmatpush1.xpose.msra.mxu0 0.0
    %7804 = vmatprep.subr.mxu0 0.0
    %7805 = vmatpush1.xpose.msra.mxu0 0.0
    %7806 = vmatprep.subr.mxu0 0.0
    %7807 = vmatpush1.xpose.msra.mxu0 0.0
    %7808 = vmatprep.subr.mxu0 0.0
    %7809 = vmatpush1.xpose.msra.mxu0 0.0
    %7810 = vmatprep.subr.mxu0 0.0
    %7811 = vmatpush1.xpose.msra.mxu0 0.0
    %7812 = vmatprep.subr.mxu0 0.0
    %7813 = vmatpush1.xpose.msra.mxu0 0.0
    %7814 = vmatprep.subr.mxu0 0.0
    %7815 = vmatpush1.xpose.msra.mxu0 0.0
    %7816 = vmatprep.subr.mxu0 0.0
    %7817 = vmatpush1.xpose.msra.mxu0 0.0
    %7818 = vmatprep.subr.mxu0 0.0
    %7819 = vmatpush1.xpose.msra.mxu0 0.0
    %7820 = vmatprep.mubr.f32.mxu0 0.0
    %v7821 = vand.u32 %v67, 4294901760
    %7822 = vmatmul.mubr.f32.gmra.mrb[0].mxu0 %v7821
    %v7823 = vpop.f32.mrb[0].mxu0
    %v7824 = vadd.f32 %v7705, %v7823
    %v7825 = vpop.f32.mrb[0].mxu0
    %7826 = vdwg.mxu0
    %7827 = vmatprep.subr.mxu0 0.0
    %v7828 = vand.u32 %v7226, 4294901760
    %7829 = vmatpush1.xpose.msra.mxu0 %v7828
    %7830 = vmatprep.subr.mxu0 0.0
    %v7831 = vand.u32 %v7229, 4294901760
    %7832 = vmatpush1.xpose.msra.mxu0 %v7831
    %7833 = vmatprep.subr.mxu0 0.0
    %v7834 = vand.u32 %v7232, 4294901760
    %7835 = vmatpush1.xpose.msra.mxu0 %v7834
    %7836 = vmatprep.subr.mxu0 0.0
    %v7837 = vand.u32 %v7235, 4294901760
    %7838 = vmatpush1.xpose.msra.mxu0 %v7837
    %7839 = vmatprep.subr.mxu0 0.0
    %v7840 = vand.u32 %v7238, 4294901760
    %7841 = vmatpush1.xpose.msra.mxu0 %v7840
    %7842 = vmatprep.subr.mxu0 0.0
    %v7843 = vand.u32 %v7241, 4294901760
    %7844 = vmatpush1.xpose.msra.mxu0 %v7843
    %7845 = vmatprep.subr.mxu0 0.0
    %v7846 = vand.u32 %v7244, 4294901760
    %7847 = vmatpush1.xpose.msra.mxu0 %v7846
    %7848 = vmatprep.subr.mxu0 0.0
    %v7849 = vand.u32 %v7247, 4294901760
    %7850 = vmatpush1.xpose.msra.mxu0 %v7849
    %7851 = vmatprep.subr.mxu0 0.0
    %v7852 = vand.u32 %v7250, 4294901760
    %7853 = vmatpush1.xpose.msra.mxu0 %v7852
    %7854 = vmatprep.subr.mxu0 0.0
    %v7855 = vand.u32 %v7253, 4294901760
    %7856 = vmatpush1.xpose.msra.mxu0 %v7855
    %7857 = vmatprep.subr.mxu0 0.0
    %v7858 = vand.u32 %v7256, 4294901760
    %7859 = vmatpush1.xpose.msra.mxu0 %v7858
    %7860 = vmatprep.subr.mxu0 0.0
    %v7861 = vand.u32 %v7259, 4294901760
    %7862 = vmatpush1.xpose.msra.mxu0 %v7861
    %7863 = vmatprep.subr.mxu0 0.0
    %v7864 = vand.u32 %v7262, 4294901760
    %7865 = vmatpush1.xpose.msra.mxu0 %v7864
    %7866 = vmatprep.subr.mxu0 0.0
    %v7867 = vand.u32 %v7265, 4294901760
    %7868 = vmatpush1.xpose.msra.mxu0 %v7867
    %7869 = vmatprep.subr.mxu0 0.0
    %v7870 = vand.u32 %v7268, 4294901760
    %7871 = vmatpush1.xpose.msra.mxu0 %v7870
    %7872 = vmatprep.subr.mxu0 0.0
    %v7873 = vand.u32 %v7271, 4294901760
    %7874 = vmatpush1.xpose.msra.mxu0 %v7873
    %7875 = vmatprep.subr.mxu0 0.0
    %7876 = vmatpush1.xpose.msra.mxu0 0.0
    %7877 = vmatprep.subr.mxu0 0.0
    %7878 = vmatpush1.xpose.msra.mxu0 0.0
    %7879 = vmatprep.subr.mxu0 0.0
    %7880 = vmatpush1.xpose.msra.mxu0 0.0
    %7881 = vmatprep.subr.mxu0 0.0
    %7882 = vmatpush1.xpose.msra.mxu0 0.0
    %7883 = vmatprep.subr.mxu0 0.0
    %7884 = vmatpush1.xpose.msra.mxu0 0.0
    %7885 = vmatprep.subr.mxu0 0.0
    %7886 = vmatpush1.xpose.msra.mxu0 0.0
    %7887 = vmatprep.subr.mxu0 0.0
    %7888 = vmatpush1.xpose.msra.mxu0 0.0
    %7889 = vmatprep.subr.mxu0 0.0
    %7890 = vmatpush1.xpose.msra.mxu0 0.0
    %7891 = vmatprep.subr.mxu0 0.0
    %7892 = vmatpush1.xpose.msra.mxu0 0.0
    %7893 = vmatprep.subr.mxu0 0.0
    %7894 = vmatpush1.xpose.msra.mxu0 0.0
    %7895 = vmatprep.subr.mxu0 0.0
    %7896 = vmatpush1.xpose.msra.mxu0 0.0
    %7897 = vmatprep.subr.mxu0 0.0
    %7898 = vmatpush1.xpose.msra.mxu0 0.0
    %7899 = vmatprep.subr.mxu0 0.0
    %7900 = vmatpush1.xpose.msra.mxu0 0.0
    %7901 = vmatprep.subr.mxu0 0.0
    %7902 = vmatpush1.xpose.msra.mxu0 0.0
    %7903 = vmatprep.subr.mxu0 0.0
    %7904 = vmatpush1.xpose.msra.mxu0 0.0
    %7905 = vmatprep.subr.mxu0 0.0
    %7906 = vmatpush1.xpose.msra.mxu0 0.0
    %7907 = vmatprep.mubr.f32.mxu0 0.0
    %v7908 = vand.u32 %v67, 4294901760
    %7909 = vmatmul.mubr.f32.gmra.mrb[0].mxu0 %v7908
    %v7910 = vpop.f32.mrb[0].mxu0
    %v7911 = vadd.f32 %v7824, %v7910
    %v7912 = vpop.f32.mrb[0].mxu0
    %7913 = vdwg.mxu0
    %v7915 = vsel %vm758, %v7193, 0
    %v7918 = vsel %vm758, %v7194, 0
    %v7921 = vsel %vm758, %v7195, 0
    %v7924 = vsel %vm758, %v7196, 0
    %v7927 = vsel %vm758, %v7197, 0
    %v7930 = vsel %vm758, %v7198, 0
    %v7933 = vsel %vm758, %v7199, 0
    %v7936 = vsel %vm758, %v7200, 0
    %v7939 = vsel %vm758, %v7201, 0
    %v7942 = vsel %vm758, %v7202, 0
    %v7945 = vsel %vm758, %v7203, 0
    %v7948 = vsel %vm758, %v7204, 0
    %v7951 = vsel %vm758, %v7205, 0
    %v7954 = vsel %vm758, %v7206, 0
    %v7957 = vsel %vm758, %v7207, 0
    %v7960 = vsel %vm758, %v7208, 0
    %7962 = vmatprep.subr.mxu0 0.0
    %v7963 = vand.u32 %v7915, 4294901760
    %7964 = vmatpush1.xpose.msra.mxu0 %v7963
    %7965 = vmatprep.subr.mxu0 0.0
    %v7966 = vand.u32 %v7918, 4294901760
    %7967 = vmatpush1.xpose.msra.mxu0 %v7966
    %7968 = vmatprep.subr.mxu0 0.0
    %v7969 = vand.u32 %v7921, 4294901760
    %7970 = vmatpush1.xpose.msra.mxu0 %v7969
    %7971 = vmatprep.subr.mxu0 0.0
    %v7972 = vand.u32 %v7924, 4294901760
    %7973 = vmatpush1.xpose.msra.mxu0 %v7972
    %7974 = vmatprep.subr.mxu0 0.0
    %v7975 = vand.u32 %v7927, 4294901760
    %7976 = vmatpush1.xpose.msra.mxu0 %v7975
    %7977 = vmatprep.subr.mxu0 0.0
    %v7978 = vand.u32 %v7930, 4294901760
    %7979 = vmatpush1.xpose.msra.mxu0 %v7978
    %7980 = vmatprep.subr.mxu0 0.0
    %v7981 = vand.u32 %v7933, 4294901760
    %7982 = vmatpush1.xpose.msra.mxu0 %v7981
    %7983 = vmatprep.subr.mxu0 0.0
    %v7984 = vand.u32 %v7936, 4294901760
    %7985 = vmatpush1.xpose.msra.mxu0 %v7984
    %7986 = vmatprep.subr.mxu0 0.0
    %v7987 = vand.u32 %v7939, 4294901760
    %7988 = vmatpush1.xpose.msra.mxu0 %v7987
    %7989 = vmatprep.subr.mxu0 0.0
    %v7990 = vand.u32 %v7942, 4294901760
    %7991 = vmatpush1.xpose.msra.mxu0 %v7990
    %7992 = vmatprep.subr.mxu0 0.0
    %v7993 = vand.u32 %v7945, 4294901760
    %7994 = vmatpush1.xpose.msra.mxu0 %v7993
    %7995 = vmatprep.subr.mxu0 0.0
    %v7996 = vand.u32 %v7948, 4294901760
    %7997 = vmatpush1.xpose.msra.mxu0 %v7996
    %7998 = vmatprep.subr.mxu0 0.0
    %v7999 = vand.u32 %v7951, 4294901760
    %8000 = vmatpush1.xpose.msra.mxu0 %v7999
    %8001 = vmatprep.subr.mxu0 0.0
    %v8002 = vand.u32 %v7954, 4294901760
    %8003 = vmatpush1.xpose.msra.mxu0 %v8002
    %8004 = vmatprep.subr.mxu0 0.0
    %v8005 = vand.u32 %v7957, 4294901760
    %8006 = vmatpush1.xpose.msra.mxu0 %v8005
    %8007 = vmatprep.subr.mxu0 0.0
    %v8008 = vand.u32 %v7960, 4294901760
    %8009 = vmatpush1.xpose.msra.mxu0 %v8008
    %8010 = vmatprep.subr.mxu0 0.0
    %8011 = vmatpush1.xpose.msra.mxu0 0.0
    %8012 = vmatprep.subr.mxu0 0.0
    %8013 = vmatpush1.xpose.msra.mxu0 0.0
    %8014 = vmatprep.subr.mxu0 0.0
    %8015 = vmatpush1.xpose.msra.mxu0 0.0
    %8016 = vmatprep.subr.mxu0 0.0
    %8017 = vmatpush1.xpose.msra.mxu0 0.0
    %8018 = vmatprep.subr.mxu0 0.0
    %8019 = vmatpush1.xpose.msra.mxu0 0.0
    %8020 = vmatprep.subr.mxu0 0.0
    %8021 = vmatpush1.xpose.msra.mxu0 0.0
    %8022 = vmatprep.subr.mxu0 0.0
    %8023 = vmatpush1.xpose.msra.mxu0 0.0
    %8024 = vmatprep.subr.mxu0 0.0
    %8025 = vmatpush1.xpose.msra.mxu0 0.0
    %8026 = vmatprep.subr.mxu0 0.0
    %8027 = vmatpush1.xpose.msra.mxu0 0.0
    %8028 = vmatprep.subr.mxu0 0.0
    %8029 = vmatpush1.xpose.msra.mxu0 0.0
    %8030 = vmatprep.subr.mxu0 0.0
    %8031 = vmatpush1.xpose.msra.mxu0 0.0
    %8032 = vmatprep.subr.mxu0 0.0
    %8033 = vmatpush1.xpose.msra.mxu0 0.0
    %8034 = vmatprep.subr.mxu0 0.0
    %8035 = vmatpush1.xpose.msra.mxu0 0.0
    %8036 = vmatprep.subr.mxu0 0.0
    %8037 = vmatpush1.xpose.msra.mxu0 0.0
    %8038 = vmatprep.subr.mxu0 0.0
    %8039 = vmatpush1.xpose.msra.mxu0 0.0
    %8040 = vmatprep.subr.mxu0 0.0
    %8041 = vmatpush1.xpose.msra.mxu0 0.0
    %8042 = vmatprep.mubr.f32.mxu0 0.0
    %v8043 = vand.u32 %v760, 4294901760
    %v8044 = vsub.f32 %v760, %v8043
    %v8045 = vand.u32 %v8044, 4294901760
    %v8046 = vsub.f32 %v8044, %v8045
    %v8047 = vand.u32 %v8046, 4294901760
    %8048 = vmatmul.mubr.f32.gmra.mrb[0].mxu0 %v8047
    %v8049 = vpop.f32.mrb[0].mxu0
    %v8050 = vadd.f32 %v7911, %v8049
    %v8051 = vpop.f32.mrb[0].mxu0
    %8052 = vdwg.mxu0
    %8053 = vmatprep.subr.mxu0 0.0
    %v8054 = vand.u32 %v7915, 4294901760
    %v8055 = vsub.f32 %v7915, %v8054
    %v8056 = vand.u32 %v8055, 4294901760
    %v8057 = vsub.f32 %v8055, %v8056
    %v8058 = vand.u32 %v8057, 4294901760
    %8059 = vmatpush1.xpose.msra.mxu0 %v8058
    %8060 = vmatprep.subr.mxu0 0.0
    %v8061 = vand.u32 %v7918, 4294901760
    %v8062 = vsub.f32 %v7918, %v8061
    %v8063 = vand.u32 %v8062, 4294901760
    %v8064 = vsub.f32 %v8062, %v8063
    %v8065 = vand.u32 %v8064, 4294901760
    %8066 = vmatpush1.xpose.msra.mxu0 %v8065
    %8067 = vmatprep.subr.mxu0 0.0
    %v8068 = vand.u32 %v7921, 4294901760
    %v8069 = vsub.f32 %v7921, %v8068
    %v8070 = vand.u32 %v8069, 4294901760
    %v8071 = vsub.f32 %v8069, %v8070
    %v8072 = vand.u32 %v8071, 4294901760
    %8073 = vmatpush1.xpose.msra.mxu0 %v8072
    %8074 = vmatprep.subr.mxu0 0.0
    %v8075 = vand.u32 %v7924, 4294901760
    %v8076 = vsub.f32 %v7924, %v8075
    %v8077 = vand.u32 %v8076, 4294901760
    %v8078 = vsub.f32 %v8076, %v8077
    %v8079 = vand.u32 %v8078, 4294901760
    %8080 = vmatpush1.xpose.msra.mxu0 %v8079
    %8081 = vmatprep.subr.mxu0 0.0
    %v8082 = vand.u32 %v7927, 4294901760
    %v8083 = vsub.f32 %v7927, %v8082
    %v8084 = vand.u32 %v8083, 4294901760
    %v8085 = vsub.f32 %v8083, %v8084
    %v8086 = vand.u32 %v8085, 4294901760
    %8087 = vmatpush1.xpose.msra.mxu0 %v8086
    %8088 = vmatprep.subr.mxu0 0.0
    %v8089 = vand.u32 %v7930, 4294901760
    %v8090 = vsub.f32 %v7930, %v8089
    %v8091 = vand.u32 %v8090, 4294901760
    %v8092 = vsub.f32 %v8090, %v8091
    %v8093 = vand.u32 %v8092, 4294901760
    %8094 = vmatpush1.xpose.msra.mxu0 %v8093
    %8095 = vmatprep.subr.mxu0 0.0
    %v8096 = vand.u32 %v7933, 4294901760
    %v8097 = vsub.f32 %v7933, %v8096
    %v8098 = vand.u32 %v8097, 4294901760
    %v8099 = vsub.f32 %v8097, %v8098
    %v8100 = vand.u32 %v8099, 4294901760
    %8101 = vmatpush1.xpose.msra.mxu0 %v8100
    %8102 = vmatprep.subr.mxu0 0.0
    %v8103 = vand.u32 %v7936, 4294901760
    %v8104 = vsub.f32 %v7936, %v8103
    %v8105 = vand.u32 %v8104, 4294901760
    %v8106 = vsub.f32 %v8104, %v8105
    %v8107 = vand.u32 %v8106, 4294901760
    %8108 = vmatpush1.xpose.msra.mxu0 %v8107
    %8109 = vmatprep.subr.mxu0 0.0
    %v8110 = vand.u32 %v7939, 4294901760
    %v8111 = vsub.f32 %v7939, %v8110
    %v8112 = vand.u32 %v8111, 4294901760
    %v8113 = vsub.f32 %v8111, %v8112
    %v8114 = vand.u32 %v8113, 4294901760
    %8115 = vmatpush1.xpose.msra.mxu0 %v8114
    %8116 = vmatprep.subr.mxu0 0.0
    %v8117 = vand.u32 %v7942, 4294901760
    %v8118 = vsub.f32 %v7942, %v8117
    %v8119 = vand.u32 %v8118, 4294901760
    %v8120 = vsub.f32 %v8118, %v8119
    %v8121 = vand.u32 %v8120, 4294901760
    %8122 = vmatpush1.xpose.msra.mxu0 %v8121
    %8123 = vmatprep.subr.mxu0 0.0
    %v8124 = vand.u32 %v7945, 4294901760
    %v8125 = vsub.f32 %v7945, %v8124
    %v8126 = vand.u32 %v8125, 4294901760
    %v8127 = vsub.f32 %v8125, %v8126
    %v8128 = vand.u32 %v8127, 4294901760
    %8129 = vmatpush1.xpose.msra.mxu0 %v8128
    %8130 = vmatprep.subr.mxu0 0.0
    %v8131 = vand.u32 %v7948, 4294901760
    %v8132 = vsub.f32 %v7948, %v8131
    %v8133 = vand.u32 %v8132, 4294901760
    %v8134 = vsub.f32 %v8132, %v8133
    %v8135 = vand.u32 %v8134, 4294901760
    %8136 = vmatpush1.xpose.msra.mxu0 %v8135
    %8137 = vmatprep.subr.mxu0 0.0
    %v8138 = vand.u32 %v7951, 4294901760
    %v8139 = vsub.f32 %v7951, %v8138
    %v8140 = vand.u32 %v8139, 4294901760
    %v8141 = vsub.f32 %v8139, %v8140
    %v8142 = vand.u32 %v8141, 4294901760
    %8143 = vmatpush1.xpose.msra.mxu0 %v8142
    %8144 = vmatprep.subr.mxu0 0.0
    %v8145 = vand.u32 %v7954, 4294901760
    %v8146 = vsub.f32 %v7954, %v8145
    %v8147 = vand.u32 %v8146, 4294901760
    %v8148 = vsub.f32 %v8146, %v8147
    %v8149 = vand.u32 %v8148, 4294901760
    %8150 = vmatpush1.xpose.msra.mxu0 %v8149
    %8151 = vmatprep.subr.mxu0 0.0
    %v8152 = vand.u32 %v7957, 4294901760
    %v8153 = vsub.f32 %v7957, %v8152
    %v8154 = vand.u32 %v8153, 4294901760
    %v8155 = vsub.f32 %v8153, %v8154
    %v8156 = vand.u32 %v8155, 4294901760
    %8157 = vmatpush1.xpose.msra.mxu0 %v8156
    %8158 = vmatprep.subr.mxu0 0.0
    %v8159 = vand.u32 %v7960, 4294901760
    %v8160 = vsub.f32 %v7960, %v8159
    %v8161 = vand.u32 %v8160, 4294901760
    %v8162 = vsub.f32 %v8160, %v8161
    %v8163 = vand.u32 %v8162, 4294901760
    %8164 = vmatpush1.xpose.msra.mxu0 %v8163
    %8165 = vmatprep.subr.mxu0 0.0
    %8166 = vmatpush1.xpose.msra.mxu0 0.0
    %8167 = vmatprep.subr.mxu0 0.0
    %8168 = vmatpush1.xpose.msra.mxu0 0.0
    %8169 = vmatprep.subr.mxu0 0.0
    %8170 = vmatpush1.xpose.msra.mxu0 0.0
    %8171 = vmatprep.subr.mxu0 0.0
    %8172 = vmatpush1.xpose.msra.mxu0 0.0
    %8173 = vmatprep.subr.mxu0 0.0
    %8174 = vmatpush1.xpose.msra.mxu0 0.0
    %8175 = vmatprep.subr.mxu0 0.0
    %8176 = vmatpush1.xpose.msra.mxu0 0.0
    %8177 = vmatprep.subr.mxu0 0.0
    %8178 = vmatpush1.xpose.msra.mxu0 0.0
    %8179 = vmatprep.subr.mxu0 0.0
    %8180 = vmatpush1.xpose.msra.mxu0 0.0
    %8181 = vmatprep.subr.mxu0 0.0
    %8182 = vmatpush1.xpose.msra.mxu0 0.0
    %8183 = vmatprep.subr.mxu0 0.0
    %8184 = vmatpush1.xpose.msra.mxu0 0.0
    %8185 = vmatprep.subr.mxu0 0.0
    %8186 = vmatpush1.xpose.msra.mxu0 0.0
    %8187 = vmatprep.subr.mxu0 0.0
    %8188 = vmatpush1.xpose.msra.mxu0 0.0
    %8189 = vmatprep.subr.mxu0 0.0
    %8190 = vmatpush1.xpose.msra.mxu0 0.0
    %8191 = vmatprep.subr.mxu0 0.0
    %8192 = vmatpush1.xpose.msra.mxu0 0.0
    %8193 = vmatprep.subr.mxu0 0.0
    %8194 = vmatpush1.xpose.msra.mxu0 0.0
    %8195 = vmatprep.subr.mxu0 0.0
    %8196 = vmatpush1.xpose.msra.mxu0 0.0
    %8197 = vmatprep.mubr.f32.mxu0 0.0
    %v8198 = vand.u32 %v760, 4294901760
    %8199 = vmatmul.mubr.f32.gmra.mrb[0].mxu0 %v8198
    %v8200 = vpop.f32.mrb[0].mxu0
    %v8201 = vadd.f32 %v8050, %v8200
    %v8202 = vpop.f32.mrb[0].mxu0
    %8203 = vdwg.mxu0
    %8204 = vmatprep.subr.mxu0 0.0
    %v8205 = vand.u32 %v7915, 4294901760
    %v8206 = vsub.f32 %v7915, %v8205
    %8207 = vmatpush1.xpose.msra.mxu0 %v8206
    %8208 = vmatprep.subr.mxu0 0.0
    %v8209 = vand.u32 %v7918, 4294901760
    %v8210 = vsub.f32 %v7918, %v8209
    %8211 = vmatpush1.xpose.msra.mxu0 %v8210
    %8212 = vmatprep.subr.mxu0 0.0
    %v8213 = vand.u32 %v7921, 4294901760
    %v8214 = vsub.f32 %v7921, %v8213
    %8215 = vmatpush1.xpose.msra.mxu0 %v8214
    %8216 = vmatprep.subr.mxu0 0.0
    %v8217 = vand.u32 %v7924, 4294901760
    %v8218 = vsub.f32 %v7924, %v8217
    %8219 = vmatpush1.xpose.msra.mxu0 %v8218
    %8220 = vmatprep.subr.mxu0 0.0
    %v8221 = vand.u32 %v7927, 4294901760
    %v8222 = vsub.f32 %v7927, %v8221
    %8223 = vmatpush1.xpose.msra.mxu0 %v8222
    %8224 = vmatprep.subr.mxu0 0.0
    %v8225 = vand.u32 %v7930, 4294901760
    %v8226 = vsub.f32 %v7930, %v8225
    %8227 = vmatpush1.xpose.msra.mxu0 %v8226
    %8228 = vmatprep.subr.mxu0 0.0
    %v8229 = vand.u32 %v7933, 4294901760
    %v8230 = vsub.f32 %v7933, %v8229
    %8231 = vmatpush1.xpose.msra.mxu0 %v8230
    %8232 = vmatprep.subr.mxu0 0.0
    %v8233 = vand.u32 %v7936, 4294901760
    %v8234 = vsub.f32 %v7936, %v8233
    %8235 = vmatpush1.xpose.msra.mxu0 %v8234
    %8236 = vmatprep.subr.mxu0 0.0
    %v8237 = vand.u32 %v7939, 4294901760
    %v8238 = vsub.f32 %v7939, %v8237
    %8239 = vmatpush1.xpose.msra.mxu0 %v8238
    %8240 = vmatprep.subr.mxu0 0.0
    %v8241 = vand.u32 %v7942, 4294901760
    %v8242 = vsub.f32 %v7942, %v8241
    %8243 = vmatpush1.xpose.msra.mxu0 %v8242
    %8244 = vmatprep.subr.mxu0 0.0
    %v8245 = vand.u32 %v7945, 4294901760
    %v8246 = vsub.f32 %v7945, %v8245
    %8247 = vmatpush1.xpose.msra.mxu0 %v8246
    %8248 = vmatprep.subr.mxu0 0.0
    %v8249 = vand.u32 %v7948, 4294901760
    %v8250 = vsub.f32 %v7948, %v8249
    %8251 = vmatpush1.xpose.msra.mxu0 %v8250
    %8252 = vmatprep.subr.mxu0 0.0
    %v8253 = vand.u32 %v7951, 4294901760
    %v8254 = vsub.f32 %v7951, %v8253
    %8255 = vmatpush1.xpose.msra.mxu0 %v8254
    %8256 = vmatprep.subr.mxu0 0.0
    %v8257 = vand.u32 %v7954, 4294901760
    %v8258 = vsub.f32 %v7954, %v8257
    %8259 = vmatpush1.xpose.msra.mxu0 %v8258
    %8260 = vmatprep.subr.mxu0 0.0
    %v8261 = vand.u32 %v7957, 4294901760
    %v8262 = vsub.f32 %v7957, %v8261
    %8263 = vmatpush1.xpose.msra.mxu0 %v8262
    %8264 = vmatprep.subr.mxu0 0.0
    %v8265 = vand.u32 %v7960, 4294901760
    %v8266 = vsub.f32 %v7960, %v8265
    %8267 = vmatpush1.xpose.msra.mxu0 %v8266
    %8268 = vmatprep.subr.mxu0 0.0
    %8269 = vmatpush1.xpose.msra.mxu0 0.0
    %8270 = vmatprep.subr.mxu0 0.0
    %8271 = vmatpush1.xpose.msra.mxu0 0.0
    %8272 = vmatprep.subr.mxu0 0.0
    %8273 = vmatpush1.xpose.msra.mxu0 0.0
    %8274 = vmatprep.subr.mxu0 0.0
    %8275 = vmatpush1.xpose.msra.mxu0 0.0
    %8276 = vmatprep.subr.mxu0 0.0
    %8277 = vmatpush1.xpose.msra.mxu0 0.0
    %8278 = vmatprep.subr.mxu0 0.0
    %8279 = vmatpush1.xpose.msra.mxu0 0.0
    %8280 = vmatprep.subr.mxu0 0.0
    %8281 = vmatpush1.xpose.msra.mxu0 0.0
    %8282 = vmatprep.subr.mxu0 0.0
    %8283 = vmatpush1.xpose.msra.mxu0 0.0
    %8284 = vmatprep.subr.mxu0 0.0
    %8285 = vmatpush1.xpose.msra.mxu0 0.0
    %8286 = vmatprep.subr.mxu0 0.0
    %8287 = vmatpush1.xpose.msra.mxu0 0.0
    %8288 = vmatprep.subr.mxu0 0.0
    %8289 = vmatpush1.xpose.msra.mxu0 0.0
    %8290 = vmatprep.subr.mxu0 0.0
    %8291 = vmatpush1.xpose.msra.mxu0 0.0
    %8292 = vmatprep.subr.mxu0 0.0
    %8293 = vmatpush1.xpose.msra.mxu0 0.0
    %8294 = vmatprep.subr.mxu0 0.0
    %8295 = vmatpush1.xpose.msra.mxu0 0.0
    %8296 = vmatprep.subr.mxu0 0.0
    %8297 = vmatpush1.xpose.msra.mxu0 0.0
    %8298 = vmatprep.subr.mxu0 0.0
    %8299 = vmatpush1.xpose.msra.mxu0 0.0
    %8300 = vmatprep.mubr.f32.mxu0 0.0
    %v8301 = vand.u32 %v760, 4294901760
    %v8302 = vsub.f32 %v760, %v8301
    %8303 = vmatmul.mubr.f32.gmra.mrb[0].mxu0 %v8302
    %v8304 = vpop.f32.mrb[0].mxu0
    %v8305 = vadd.f32 %v8201, %v8304
    %v8306 = vpop.f32.mrb[0].mxu0
    %8307 = vdwg.mxu0
    %8308 = vmatprep.subr.mxu0 0.0
    %v8309 = vand.u32 %v7915, 4294901760
    %8310 = vmatpush1.xpose.msra.mxu0 %v8309
    %8311 = vmatprep.subr.mxu0 0.0
    %v8312 = vand.u32 %v7918, 4294901760
    %8313 = vmatpush1.xpose.msra.mxu0 %v8312
    %8314 = vmatprep.subr.mxu0 0.0
    %v8315 = vand.u32 %v7921, 4294901760
    %8316 = vmatpush1.xpose.msra.mxu0 %v8315
    %8317 = vmatprep.subr.mxu0 0.0
    %v8318 = vand.u32 %v7924, 4294901760
    %8319 = vmatpush1.xpose.msra.mxu0 %v8318
    %8320 = vmatprep.subr.mxu0 0.0
    %v8321 = vand.u32 %v7927, 4294901760
    %8322 = vmatpush1.xpose.msra.mxu0 %v8321
    %8323 = vmatprep.subr.mxu0 0.0
    %v8324 = vand.u32 %v7930, 4294901760
    %8325 = vmatpush1.xpose.msra.mxu0 %v8324
    %8326 = vmatprep.subr.mxu0 0.0
    %v8327 = vand.u32 %v7933, 4294901760
    %8328 = vmatpush1.xpose.msra.mxu0 %v8327
    %8329 = vmatprep.subr.mxu0 0.0
    %v8330 = vand.u32 %v7936, 4294901760
    %8331 = vmatpush1.xpose.msra.mxu0 %v8330
    %8332 = vmatprep.subr.mxu0 0.0
    %v8333 = vand.u32 %v7939, 4294901760
    %8334 = vmatpush1.xpose.msra.mxu0 %v8333
    %8335 = vmatprep.subr.mxu0 0.0
    %v8336 = vand.u32 %v7942, 4294901760
    %8337 = vmatpush1.xpose.msra.mxu0 %v8336
    %8338 = vmatprep.subr.mxu0 0.0
    %v8339 = vand.u32 %v7945, 4294901760
    %8340 = vmatpush1.xpose.msra.mxu0 %v8339
    %8341 = vmatprep.subr.mxu0 0.0
    %v8342 = vand.u32 %v7948, 4294901760
    %8343 = vmatpush1.xpose.msra.mxu0 %v8342
    %8344 = vmatprep.subr.mxu0 0.0
    %v8345 = vand.u32 %v7951, 4294901760
    %8346 = vmatpush1.xpose.msra.mxu0 %v8345
    %8347 = vmatprep.subr.mxu0 0.0
    %v8348 = vand.u32 %v7954, 4294901760
    %8349 = vmatpush1.xpose.msra.mxu0 %v8348
    %8350 = vmatprep.subr.mxu0 0.0
    %v8351 = vand.u32 %v7957, 4294901760
    %8352 = vmatpush1.xpose.msra.mxu0 %v8351
    %8353 = vmatprep.subr.mxu0 0.0
    %v8354 = vand.u32 %v7960, 4294901760
    %8355 = vmatpush1.xpose.msra.mxu0 %v8354
    %8356 = vmatprep.subr.mxu0 0.0
    %8357 = vmatpush1.xpose.msra.mxu0 0.0
    %8358 = vmatprep.subr.mxu0 0.0
    %8359 = vmatpush1.xpose.msra.mxu0 0.0
    %8360 = vmatprep.subr.mxu0 0.0
    %8361 = vmatpush1.xpose.msra.mxu0 0.0
    %8362 = vmatprep.subr.mxu0 0.0
    %8363 = vmatpush1.xpose.msra.mxu0 0.0
    %8364 = vmatprep.subr.mxu0 0.0
    %8365 = vmatpush1.xpose.msra.mxu0 0.0
    %8366 = vmatprep.subr.mxu0 0.0
    %8367 = vmatpush1.xpose.msra.mxu0 0.0
    %8368 = vmatprep.subr.mxu0 0.0
    %8369 = vmatpush1.xpose.msra.mxu0 0.0
    %8370 = vmatprep.subr.mxu0 0.0
    %8371 = vmatpush1.xpose.msra.mxu0 0.0
    %8372 = vmatprep.subr.mxu0 0.0
    %8373 = vmatpush1.xpose.msra.mxu0 0.0
    %8374 = vmatprep.subr.mxu0 0.0
    %8375 = vmatpush1.xpose.msra.mxu0 0.0
    %8376 = vmatprep.subr.mxu0 0.0
    %8377 = vmatpush1.xpose.msra.mxu0 0.0
    %8378 = vmatprep.subr.mxu0 0.0
    %8379 = vmatpush1.xpose.msra.mxu0 0.0
    %8380 = vmatprep.subr.mxu0 0.0
    %8381 = vmatpush1.xpose.msra.mxu0 0.0
    %8382 = vmatprep.subr.mxu0 0.0
    %8383 = vmatpush1.xpose.msra.mxu0 0.0
    %8384 = vmatprep.subr.mxu0 0.0
    %8385 = vmatpush1.xpose.msra.mxu0 0.0
    %8386 = vmatprep.subr.mxu0 0.0
    %8387 = vmatpush1.xpose.msra.mxu0 0.0
    %8388 = vmatprep.mubr.f32.mxu0 0.0
    %v8389 = vand.u32 %v760, 4294901760
    %v8390 = vsub.f32 %v760, %v8389
    %v8391 = vand.u32 %v8390, 4294901760
    %8392 = vmatmul.mubr.f32.gmra.mrb[0].mxu0 %v8391
    %v8393 = vpop.f32.mrb[0].mxu0
    %v8394 = vadd.f32 %v8305, %v8393
    %v8395 = vpop.f32.mrb[0].mxu0
    %8396 = vdwg.mxu0
    %8397 = vmatprep.subr.mxu0 0.0
    %v8398 = vand.u32 %v7915, 4294901760
    %v8399 = vsub.f32 %v7915, %v8398
    %v8400 = vand.u32 %v8399, 4294901760
    %8401 = vmatpush1.xpose.msra.mxu0 %v8400
    %8402 = vmatprep.subr.mxu0 0.0
    %v8403 = vand.u32 %v7918, 4294901760
    %v8404 = vsub.f32 %v7918, %v8403
    %v8405 = vand.u32 %v8404, 4294901760
    %8406 = vmatpush1.xpose.msra.mxu0 %v8405
    %8407 = vmatprep.subr.mxu0 0.0
    %v8408 = vand.u32 %v7921, 4294901760
    %v8409 = vsub.f32 %v7921, %v8408
    %v8410 = vand.u32 %v8409, 4294901760
    %8411 = vmatpush1.xpose.msra.mxu0 %v8410
    %8412 = vmatprep.subr.mxu0 0.0
    %v8413 = vand.u32 %v7924, 4294901760
    %v8414 = vsub.f32 %v7924, %v8413
    %v8415 = vand.u32 %v8414, 4294901760
    %8416 = vmatpush1.xpose.msra.mxu0 %v8415
    %8417 = vmatprep.subr.mxu0 0.0
    %v8418 = vand.u32 %v7927, 4294901760
    %v8419 = vsub.f32 %v7927, %v8418
    %v8420 = vand.u32 %v8419, 4294901760
    %8421 = vmatpush1.xpose.msra.mxu0 %v8420
    %8422 = vmatprep.subr.mxu0 0.0
    %v8423 = vand.u32 %v7930, 4294901760
    %v8424 = vsub.f32 %v7930, %v8423
    %v8425 = vand.u32 %v8424, 4294901760
    %8426 = vmatpush1.xpose.msra.mxu0 %v8425
    %8427 = vmatprep.subr.mxu0 0.0
    %v8428 = vand.u32 %v7933, 4294901760
    %v8429 = vsub.f32 %v7933, %v8428
    %v8430 = vand.u32 %v8429, 4294901760
    %8431 = vmatpush1.xpose.msra.mxu0 %v8430
    %8432 = vmatprep.subr.mxu0 0.0
    %v8433 = vand.u32 %v7936, 4294901760
    %v8434 = vsub.f32 %v7936, %v8433
    %v8435 = vand.u32 %v8434, 4294901760
    %8436 = vmatpush1.xpose.msra.mxu0 %v8435
    %8437 = vmatprep.subr.mxu0 0.0
    %v8438 = vand.u32 %v7939, 4294901760
    %v8439 = vsub.f32 %v7939, %v8438
    %v8440 = vand.u32 %v8439, 4294901760
    %8441 = vmatpush1.xpose.msra.mxu0 %v8440
    %8442 = vmatprep.subr.mxu0 0.0
    %v8443 = vand.u32 %v7942, 4294901760
    %v8444 = vsub.f32 %v7942, %v8443
    %v8445 = vand.u32 %v8444, 4294901760
    %8446 = vmatpush1.xpose.msra.mxu0 %v8445
    %8447 = vmatprep.subr.mxu0 0.0
    %v8448 = vand.u32 %v7945, 4294901760
    %v8449 = vsub.f32 %v7945, %v8448
    %v8450 = vand.u32 %v8449, 4294901760
    %8451 = vmatpush1.xpose.msra.mxu0 %v8450
    %8452 = vmatprep.subr.mxu0 0.0
    %v8453 = vand.u32 %v7948, 4294901760
    %v8454 = vsub.f32 %v7948, %v8453
    %v8455 = vand.u32 %v8454, 4294901760
    %8456 = vmatpush1.xpose.msra.mxu0 %v8455
    %8457 = vmatprep.subr.mxu0 0.0
    %v8458 = vand.u32 %v7951, 4294901760
    %v8459 = vsub.f32 %v7951, %v8458
    %v8460 = vand.u32 %v8459, 4294901760
    %8461 = vmatpush1.xpose.msra.mxu0 %v8460
    %8462 = vmatprep.subr.mxu0 0.0
    %v8463 = vand.u32 %v7954, 4294901760
    %v8464 = vsub.f32 %v7954, %v8463
    %v8465 = vand.u32 %v8464, 4294901760
    %8466 = vmatpush1.xpose.msra.mxu0 %v8465
    %8467 = vmatprep.subr.mxu0 0.0
    %v8468 = vand.u32 %v7957, 4294901760
    %v8469 = vsub.f32 %v7957, %v8468
    %v8470 = vand.u32 %v8469, 4294901760
    %8471 = vmatpush1.xpose.msra.mxu0 %v8470
    %8472 = vmatprep.subr.mxu0 0.0
    %v8473 = vand.u32 %v7960, 4294901760
    %v8474 = vsub.f32 %v7960, %v8473
    %v8475 = vand.u32 %v8474, 4294901760
    %8476 = vmatpush1.xpose.msra.mxu0 %v8475
    %8477 = vmatprep.subr.mxu0 0.0
    %8478 = vmatpush1.xpose.msra.mxu0 0.0
    %8479 = vmatprep.subr.mxu0 0.0
    %8480 = vmatpush1.xpose.msra.mxu0 0.0
    %8481 = vmatprep.subr.mxu0 0.0
    %8482 = vmatpush1.xpose.msra.mxu0 0.0
    %8483 = vmatprep.subr.mxu0 0.0
    %8484 = vmatpush1.xpose.msra.mxu0 0.0
    %8485 = vmatprep.subr.mxu0 0.0
    %8486 = vmatpush1.xpose.msra.mxu0 0.0
    %8487 = vmatprep.subr.mxu0 0.0
    %8488 = vmatpush1.xpose.msra.mxu0 0.0
    %8489 = vmatprep.subr.mxu0 0.0
    %8490 = vmatpush1.xpose.msra.mxu0 0.0
    %8491 = vmatprep.subr.mxu0 0.0
    %8492 = vmatpush1.xpose.msra.mxu0 0.0
    %8493 = vmatprep.subr.mxu0 0.0
    %8494 = vmatpush1.xpose.msra.mxu0 0.0
    %8495 = vmatprep.subr.mxu0 0.0
    %8496 = vmatpush1.xpose.msra.mxu0 0.0
    %8497 = vmatprep.subr.mxu0 0.0
    %8498 = vmatpush1.xpose.msra.mxu0 0.0
    %8499 = vmatprep.subr.mxu0 0.0
    %8500 = vmatpush1.xpose.msra.mxu0 0.0
    %8501 = vmatprep.subr.mxu0 0.0
    %8502 = vmatpush1.xpose.msra.mxu0 0.0
    %8503 = vmatprep.subr.mxu0 0.0
    %8504 = vmatpush1.xpose.msra.mxu0 0.0
    %8505 = vmatprep.subr.mxu0 0.0
    %8506 = vmatpush1.xpose.msra.mxu0 0.0
    %8507 = vmatprep.subr.mxu0 0.0
    %8508 = vmatpush1.xpose.msra.mxu0 0.0
    %8509 = vmatprep.mubr.f32.mxu0 0.0
    %v8510 = vand.u32 %v760, 4294901760
    %8511 = vmatmul.mubr.f32.gmra.mrb[0].mxu0 %v8510
    %v8512 = vpop.f32.mrb[0].mxu0
    %v8513 = vadd.f32 %v8394, %v8512
    %v8514 = vpop.f32.mrb[0].mxu0
    %8515 = vdwg.mxu0
    %8516 = vmatprep.subr.mxu0 0.0
    %v8517 = vand.u32 %v7915, 4294901760
    %8518 = vmatpush1.xpose.msra.mxu0 %v8517
    %8519 = vmatprep.subr.mxu0 0.0
    %v8520 = vand.u32 %v7918, 4294901760
    %8521 = vmatpush1.xpose.msra.mxu0 %v8520
    %8522 = vmatprep.subr.mxu0 0.0
    %v8523 = vand.u32 %v7921, 4294901760
    %8524 = vmatpush1.xpose.msra.mxu0 %v8523
    %8525 = vmatprep.subr.mxu0 0.0
    %v8526 = vand.u32 %v7924, 4294901760
    %8527 = vmatpush1.xpose.msra.mxu0 %v8526
    %8528 = vmatprep.subr.mxu0 0.0
    %v8529 = vand.u32 %v7927, 4294901760
    %8530 = vmatpush1.xpose.msra.mxu0 %v8529
    %8531 = vmatprep.subr.mxu0 0.0
    %v8532 = vand.u32 %v7930, 4294901760
    %8533 = vmatpush1.xpose.msra.mxu0 %v8532
    %8534 = vmatprep.subr.mxu0 0.0
    %v8535 = vand.u32 %v7933, 4294901760
    %8536 = vmatpush1.xpose.msra.mxu0 %v8535
    %8537 = vmatprep.subr.mxu0 0.0
    %v8538 = vand.u32 %v7936, 4294901760
    %8539 = vmatpush1.xpose.msra.mxu0 %v8538
    %8540 = vmatprep.subr.mxu0 0.0
    %v8541 = vand.u32 %v7939, 4294901760
    %8542 = vmatpush1.xpose.msra.mxu0 %v8541
    %8543 = vmatprep.subr.mxu0 0.0
    %v8544 = vand.u32 %v7942, 4294901760
    %8545 = vmatpush1.xpose.msra.mxu0 %v8544
    %8546 = vmatprep.subr.mxu0 0.0
    %v8547 = vand.u32 %v7945, 4294901760
    %8548 = vmatpush1.xpose.msra.mxu0 %v8547
    %8549 = vmatprep.subr.mxu0 0.0
    %v8550 = vand.u32 %v7948, 4294901760
    %8551 = vmatpush1.xpose.msra.mxu0 %v8550
    %8552 = vmatprep.subr.mxu0 0.0
    %v8553 = vand.u32 %v7951, 4294901760
    %8554 = vmatpush1.xpose.msra.mxu0 %v8553
    %8555 = vmatprep.subr.mxu0 0.0
    %v8556 = vand.u32 %v7954, 4294901760
    %8557 = vmatpush1.xpose.msra.mxu0 %v8556
    %8558 = vmatprep.subr.mxu0 0.0
    %v8559 = vand.u32 %v7957, 4294901760
    %8560 = vmatpush1.xpose.msra.mxu0 %v8559
    %8561 = vmatprep.subr.mxu0 0.0
    %v8562 = vand.u32 %v7960, 4294901760
    %8563 = vmatpush1.xpose.msra.mxu0 %v8562
    %8564 = vmatprep.subr.mxu0 0.0
    %8565 = vmatpush1.xpose.msra.mxu0 0.0
    %8566 = vmatprep.subr.mxu0 0.0
    %8567 = vmatpush1.xpose.msra.mxu0 0.0
    %8568 = vmatprep.subr.mxu0 0.0
    %8569 = vmatpush1.xpose.msra.mxu0 0.0
    %8570 = vmatprep.subr.mxu0 0.0
    %8571 = vmatpush1.xpose.msra.mxu0 0.0
    %8572 = vmatprep.subr.mxu0 0.0
    %8573 = vmatpush1.xpose.msra.mxu0 0.0
    %8574 = vmatprep.subr.mxu0 0.0
    %8575 = vmatpush1.xpose.msra.mxu0 0.0
    %8576 = vmatprep.subr.mxu0 0.0
    %8577 = vmatpush1.xpose.msra.mxu0 0.0
    %8578 = vmatprep.subr.mxu0 0.0
    %8579 = vmatpush1.xpose.msra.mxu0 0.0
    %8580 = vmatprep.subr.mxu0 0.0
    %8581 = vmatpush1.xpose.msra.mxu0 0.0
    %8582 = vmatprep.subr.mxu0 0.0
    %8583 = vmatpush1.xpose.msra.mxu0 0.0
    %8584 = vmatprep.subr.mxu0 0.0
    %8585 = vmatpush1.xpose.msra.mxu0 0.0
    %8586 = vmatprep.subr.mxu0 0.0
    %8587 = vmatpush1.xpose.msra.mxu0 0.0
    %8588 = vmatprep.subr.mxu0 0.0
    %8589 = vmatpush1.xpose.msra.mxu0 0.0
    %8590 = vmatprep.subr.mxu0 0.0
    %8591 = vmatpush1.xpose.msra.mxu0 0.0
    %8592 = vmatprep.subr.mxu0 0.0
    %8593 = vmatpush1.xpose.msra.mxu0 0.0
    %8594 = vmatprep.subr.mxu0 0.0
    %8595 = vmatpush1.xpose.msra.mxu0 0.0
    %8596 = vmatprep.mubr.f32.mxu0 0.0
    %v8597 = vand.u32 %v760, 4294901760
    %8598 = vmatmul.mubr.f32.gmra.mrb[0].mxu0 %v8597
    %v8599 = vpop.f32.mrb[0].mxu0
    %v8600 = vadd.f32 %v8513, %v8599
    %v8601 = vpop.f32.mrb[0].mxu0
    %8602 = vdwg.mxu0
    %v8603 = vadd.f32 %v8600, %v1454
    %v8604 = vmax.f32 %v8603, 0.0
    %v8605 = vmul.f32 %v8604, %v1461
    %v8606 = vsel %vm1464, %v8605, 0.0
    %v8607 = vrot.slane %v8606, 4
    %v8608 = vadd.f32 %v8606, %v8607
    %v8609 = vrot.slane %v8608, 2
    %v8610 = vadd.f32 %v8608, %v8609
    %v8611 = vrot.slane %v8610, 1
    %v8612 = vadd.f32 %v8610, %v8611
    %v8613 = vadd.f32 %v8612, %v1472
    %v8614 = vxor.u32 %v8613, 2147483648
    %v8615 = vmul.f32 %v8614, 1.442695
    %v8616 = vpow.pop %v8615
    %v8617 = vadd.f32 %v8616, 1.0
    %v8618 = vrcp.pop %v8617
    %v8619 = vmul.f32 1.0, %v8618
    %8620 = vst [vmem:[#allocation3 + $0x5] sm:$0x1] %v8619
    %v8621 = vld [vmem:[%s0 + $0x300] sm:$0xff]
    %v8622 = vld [vmem:[%s0 + $0x308] sm:$0xff]
    %v8623 = vld [vmem:[%s0 + $0x310] sm:$0xff]
    %v8624 = vld [vmem:[%s0 + $0x318] sm:$0xff]
    %v8625 = vld [vmem:[%s0 + $0x320] sm:$0xff]
    %v8626 = vld [vmem:[%s0 + $0x328] sm:$0xff]
    %v8627 = vld [vmem:[%s0 + $0x330] sm:$0xff]
    %v8628 = vld [vmem:[%s0 + $0x338] sm:$0xff]
    %v8629 = vld [vmem:[%s0 + $0x340] sm:$0xff]
    %v8630 = vld [vmem:[%s0 + $0x348] sm:$0xff]
    %v8631 = vld [vmem:[%s0 + $0x350] sm:$0xff]
    %v8632 = vld [vmem:[%s0 + $0x358] sm:$0xff]
    %v8633 = vld [vmem:[%s0 + $0x360] sm:$0xff]
    %v8634 = vld [vmem:[%s0 + $0x368] sm:$0xff]
    %v8635 = vld [vmem:[%s0 + $0x370] sm:$0xff]
    %v8636 = vld [vmem:[%s0 + $0x378] sm:$0xff]
    %v8637 = vld [vmem:[%s1 + $0x300] sm:$0xff]
    %v8638 = vld [vmem:[%s1 + $0x308] sm:$0xff]
    %v8639 = vld [vmem:[%s1 + $0x310] sm:$0xff]
    %v8640 = vld [vmem:[%s1 + $0x318] sm:$0xff]
    %v8641 = vld [vmem:[%s1 + $0x320] sm:$0xff]
    %v8642 = vld [vmem:[%s1 + $0x328] sm:$0xff]
    %v8643 = vld [vmem:[%s1 + $0x330] sm:$0xff]
    %v8644 = vld [vmem:[%s1 + $0x338] sm:$0xff]
    %v8645 = vld [vmem:[%s1 + $0x340] sm:$0xff]
    %v8646 = vld [vmem:[%s1 + $0x348] sm:$0xff]
    %v8647 = vld [vmem:[%s1 + $0x350] sm:$0xff]
    %v8648 = vld [vmem:[%s1 + $0x358] sm:$0xff]
    %v8649 = vld [vmem:[%s1 + $0x360] sm:$0xff]
    %v8650 = vld [vmem:[%s1 + $0x368] sm:$0xff]
    %v8651 = vld [vmem:[%s1 + $0x370] sm:$0xff]
    %v8652 = vld [vmem:[%s1 + $0x378] sm:$0xff]
    %v8654 = vsel %vm65, %v8637, 0
    %v8657 = vsel %vm65, %v8638, 0
    %v8660 = vsel %vm65, %v8639, 0
    %v8663 = vsel %vm65, %v8640, 0
    %v8666 = vsel %vm65, %v8641, 0
    %v8669 = vsel %vm65, %v8642, 0
    %v8672 = vsel %vm65, %v8643, 0
    %v8675 = vsel %vm65, %v8644, 0
    %v8678 = vsel %vm65, %v8645, 0
    %v8681 = vsel %vm65, %v8646, 0
    %v8684 = vsel %vm65, %v8647, 0
    %v8687 = vsel %vm65, %v8648, 0
    %v8690 = vsel %vm65, %v8649, 0
    %v8693 = vsel %vm65, %v8650, 0
    %v8696 = vsel %vm65, %v8651, 0
    %v8699 = vsel %vm65, %v8652, 0
    %8701 = vmatprep.subr.mxu0 0.0
    %v8702 = vand.u32 %v8654, 4294901760
    %8703 = vmatpush1.xpose.msra.mxu0 %v8702
    %8704 = vmatprep.subr.mxu0 0.0
    %v8705 = vand.u32 %v8657, 4294901760
    %8706 = vmatpush1.xpose.msra.mxu0 %v8705
    %8707 = vmatprep.subr.mxu0 0.0
    %v8708 = vand.u32 %v8660, 4294901760
    %8709 = vmatpush1.xpose.msra.mxu0 %v8708
    %8710 = vmatprep.subr.mxu0 0.0
    %v8711 = vand.u32 %v8663, 4294901760
    %8712 = vmatpush1.xpose.msra.mxu0 %v8711
    %8713 = vmatprep.subr.mxu0 0.0
    %v8714 = vand.u32 %v8666, 4294901760
    %8715 = vmatpush1.xpose.msra.mxu0 %v8714
    %8716 = vmatprep.subr.mxu0 0.0
    %v8717 = vand.u32 %v8669, 4294901760
    %8718 = vmatpush1.xpose.msra.mxu0 %v8717
    %8719 = vmatprep.subr.mxu0 0.0
    %v8720 = vand.u32 %v8672, 4294901760
    %8721 = vmatpush1.xpose.msra.mxu0 %v8720
    %8722 = vmatprep.subr.mxu0 0.0
    %v8723 = vand.u32 %v8675, 4294901760
    %8724 = vmatpush1.xpose.msra.mxu0 %v8723
    %8725 = vmatprep.subr.mxu0 0.0
    %v8726 = vand.u32 %v8678, 4294901760
    %8727 = vmatpush1.xpose.msra.mxu0 %v8726
    %8728 = vmatprep.subr.mxu0 0.0
    %v8729 = vand.u32 %v8681, 4294901760
    %8730 = vmatpush1.xpose.msra.mxu0 %v8729
    %8731 = vmatprep.subr.mxu0 0.0
    %v8732 = vand.u32 %v8684, 4294901760
    %8733 = vmatpush1.xpose.msra.mxu0 %v8732
    %8734 = vmatprep.subr.mxu0 0.0
    %v8735 = vand.u32 %v8687, 4294901760
    %8736 = vmatpush1.xpose.msra.mxu0 %v8735
    %8737 = vmatprep.subr.mxu0 0.0
    %v8738 = vand.u32 %v8690, 4294901760
    %8739 = vmatpush1.xpose.msra.mxu0 %v8738
    %8740 = vmatprep.subr.mxu0 0.0
    %v8741 = vand.u32 %v8693, 4294901760
    %8742 = vmatpush1.xpose.msra.mxu0 %v8741
    %8743 = vmatprep.subr.mxu0 0.0
    %v8744 = vand.u32 %v8696, 4294901760
    %8745 = vmatpush1.xpose.msra.mxu0 %v8744
    %8746 = vmatprep.subr.mxu0 0.0
    %v8747 = vand.u32 %v8699, 4294901760
    %8748 = vmatpush1.xpose.msra.mxu0 %v8747
    %8749 = vmatprep.subr.mxu0 0.0
    %8750 = vmatpush1.xpose.msra.mxu0 0.0
    %8751 = vmatprep.subr.mxu0 0.0
    %8752 = vmatpush1.xpose.msra.mxu0 0.0
    %8753 = vmatprep.subr.mxu0 0.0
    %8754 = vmatpush1.xpose.msra.mxu0 0.0
    %8755 = vmatprep.subr.mxu0 0.0
    %8756 = vmatpush1.xpose.msra.mxu0 0.0
    %8757 = vmatprep.subr.mxu0 0.0
    %8758 = vmatpush1.xpose.msra.mxu0 0.0
    %8759 = vmatprep.subr.mxu0 0.0
    %8760 = vmatpush1.xpose.msra.mxu0 0.0
    %8761 = vmatprep.subr.mxu0 0.0
    %8762 = vmatpush1.xpose.msra.mxu0 0.0
    %8763 = vmatprep.subr.mxu0 0.0
    %8764 = vmatpush1.xpose.msra.mxu0 0.0
    %8765 = vmatprep.subr.mxu0 0.0
    %8766 = vmatpush1.xpose.msra.mxu0 0.0
    %8767 = vmatprep.subr.mxu0 0.0
    %8768 = vmatpush1.xpose.msra.mxu0 0.0
    %8769 = vmatprep.subr.mxu0 0.0
    %8770 = vmatpush1.xpose.msra.mxu0 0.0
    %8771 = vmatprep.subr.mxu0 0.0
    %8772 = vmatpush1.xpose.msra.mxu0 0.0
    %8773 = vmatprep.subr.mxu0 0.0
    %8774 = vmatpush1.xpose.msra.mxu0 0.0
    %8775 = vmatprep.subr.mxu0 0.0
    %8776 = vmatpush1.xpose.msra.mxu0 0.0
    %8777 = vmatprep.subr.mxu0 0.0
    %8778 = vmatpush1.xpose.msra.mxu0 0.0
    %8779 = vmatprep.subr.mxu0 0.0
    %8780 = vmatpush1.xpose.msra.mxu0 0.0
    %8781 = vmatprep.mubr.f32.mxu0 0.0
    %v8782 = vand.u32 %v67, 4294901760
    %v8783 = vsub.f32 %v67, %v8782
    %v8784 = vand.u32 %v8783, 4294901760
    %v8785 = vsub.f32 %v8783, %v8784
    %v8786 = vand.u32 %v8785, 4294901760
    %8787 = vmatmul.mubr.f32.gmra.mrb[0].mxu0 %v8786
    %v8788 = vpop.f32.mrb[0].mxu0
    %v8789 = vadd.f32 0.0, %v8788
    %v8790 = vpop.f32.mrb[0].mxu0
    %8791 = vdwg.mxu0
    %8792 = vmatprep.subr.mxu0 0.0
    %v8793 = vand.u32 %v8654, 4294901760
    %v8794 = vsub.f32 %v8654, %v8793
    %v8795 = vand.u32 %v8794, 4294901760
    %v8796 = vsub.f32 %v8794, %v8795
    %v8797 = vand.u32 %v8796, 4294901760
    %8798 = vmatpush1.xpose.msra.mxu0 %v8797
    %8799 = vmatprep.subr.mxu0 0.0
    %v8800 = vand.u32 %v8657, 4294901760
    %v8801 = vsub.f32 %v8657, %v8800
    %v8802 = vand.u32 %v8801, 4294901760
    %v8803 = vsub.f32 %v8801, %v8802
    %v8804 = vand.u32 %v8803, 4294901760
    %8805 = vmatpush1.xpose.msra.mxu0 %v8804
    %8806 = vmatprep.subr.mxu0 0.0
    %v8807 = vand.u32 %v8660, 4294901760
    %v8808 = vsub.f32 %v8660, %v8807
    %v8809 = vand.u32 %v8808, 4294901760
    %v8810 = vsub.f32 %v8808, %v8809
    %v8811 = vand.u32 %v8810, 4294901760
    %8812 = vmatpush1.xpose.msra.mxu0 %v8811
    %8813 = vmatprep.subr.mxu0 0.0
    %v8814 = vand.u32 %v8663, 4294901760
    %v8815 = vsub.f32 %v8663, %v8814
    %v8816 = vand.u32 %v8815, 4294901760
    %v8817 = vsub.f32 %v8815, %v8816
    %v8818 = vand.u32 %v8817, 4294901760
    %8819 = vmatpush1.xpose.msra.mxu0 %v8818
    %8820 = vmatprep.subr.mxu0 0.0
    %v8821 = vand.u32 %v8666, 4294901760
    %v8822 = vsub.f32 %v8666, %v8821
    %v8823 = vand.u32 %v8822, 4294901760
    %v8824 = vsub.f32 %v8822, %v8823
    %v8825 = vand.u32 %v8824, 4294901760
    %8826 = vmatpush1.xpose.msra.mxu0 %v8825
    %8827 = vmatprep.subr.mxu0 0.0
    %v8828 = vand.u32 %v8669, 4294901760
    %v8829 = vsub.f32 %v8669, %v8828
    %v8830 = vand.u32 %v8829, 4294901760
    %v8831 = vsub.f32 %v8829, %v8830
    %v8832 = vand.u32 %v8831, 4294901760
    %8833 = vmatpush1.xpose.msra.mxu0 %v8832
    %8834 = vmatprep.subr.mxu0 0.0
    %v8835 = vand.u32 %v8672, 4294901760
    %v8836 = vsub.f32 %v8672, %v8835
    %v8837 = vand.u32 %v8836, 4294901760
    %v8838 = vsub.f32 %v8836, %v8837
    %v8839 = vand.u32 %v8838, 4294901760
    %8840 = vmatpush1.xpose.msra.mxu0 %v8839
    %8841 = vmatprep.subr.mxu0 0.0
    %v8842 = vand.u32 %v8675, 4294901760
    %v8843 = vsub.f32 %v8675, %v8842
    %v8844 = vand.u32 %v8843, 4294901760
    %v8845 = vsub.f32 %v8843, %v8844
    %v8846 = vand.u32 %v8845, 4294901760
    %8847 = vmatpush1.xpose.msra.mxu0 %v8846
    %8848 = vmatprep.subr.mxu0 0.0
    %v8849 = vand.u32 %v8678, 4294901760
    %v8850 = vsub.f32 %v8678, %v8849
    %v8851 = vand.u32 %v8850, 4294901760
    %v8852 = vsub.f32 %v8850, %v8851
    %v8853 = vand.u32 %v8852, 4294901760
    %8854 = vmatpush1.xpose.msra.mxu0 %v8853
    %8855 = vmatprep.subr.mxu0 0.0
    %v8856 = vand.u32 %v8681, 4294901760
    %v8857 = vsub.f32 %v8681, %v8856
    %v8858 = vand.u32 %v8857, 4294901760
    %v8859 = vsub.f32 %v8857, %v8858
    %v8860 = vand.u32 %v8859, 4294901760
    %8861 = vmatpush1.xpose.msra.mxu0 %v8860
    %8862 = vmatprep.subr.mxu0 0.0
    %v8863 = vand.u32 %v8684, 4294901760
    %v8864 = vsub.f32 %v8684, %v8863
    %v8865 = vand.u32 %v8864, 4294901760
    %v8866 = vsub.f32 %v8864, %v8865
    %v8867 = vand.u32 %v8866, 4294901760
    %8868 = vmatpush1.xpose.msra.mxu0 %v8867
    %8869 = vmatprep.subr.mxu0 0.0
    %v8870 = vand.u32 %v8687, 4294901760
    %v8871 = vsub.f32 %v8687, %v8870
    %v8872 = vand.u32 %v8871, 4294901760
    %v8873 = vsub.f32 %v8871, %v8872
    %v8874 = vand.u32 %v8873, 4294901760
    %8875 = vmatpush1.xpose.msra.mxu0 %v8874
    %8876 = vmatprep.subr.mxu0 0.0
    %v8877 = vand.u32 %v8690, 4294901760
    %v8878 = vsub.f32 %v8690, %v8877
    %v8879 = vand.u32 %v8878, 4294901760
    %v8880 = vsub.f32 %v8878, %v8879
    %v8881 = vand.u32 %v8880, 4294901760
    %8882 = vmatpush1.xpose.msra.mxu0 %v8881
    %8883 = vmatprep.subr.mxu0 0.0
    %v8884 = vand.u32 %v8693, 4294901760
    %v8885 = vsub.f32 %v8693, %v8884
    %v8886 = vand.u32 %v8885, 4294901760
    %v8887 = vsub.f32 %v8885, %v8886
    %v8888 = vand.u32 %v8887, 4294901760
    %8889 = vmatpush1.xpose.msra.mxu0 %v8888
    %8890 = vmatprep.subr.mxu0 0.0
    %v8891 = vand.u32 %v8696, 4294901760
    %v8892 = vsub.f32 %v8696, %v8891
    %v8893 = vand.u32 %v8892, 4294901760
    %v8894 = vsub.f32 %v8892, %v8893
    %v8895 = vand.u32 %v8894, 4294901760
    %8896 = vmatpush1.xpose.msra.mxu0 %v8895
    %8897 = vmatprep.subr.mxu0 0.0
    %v8898 = vand.u32 %v8699, 4294901760
    %v8899 = vsub.f32 %v8699, %v8898
    %v8900 = vand.u32 %v8899, 4294901760
    %v8901 = vsub.f32 %v8899, %v8900
    %v8902 = vand.u32 %v8901, 4294901760
    %8903 = vmatpush1.xpose.msra.mxu0 %v8902
    %8904 = vmatprep.subr.mxu0 0.0
    %8905 = vmatpush1.xpose.msra.mxu0 0.0
    %8906 = vmatprep.subr.mxu0 0.0
    %8907 = vmatpush1.xpose.msra.mxu0 0.0
    %8908 = vmatprep.subr.mxu0 0.0
    %8909 = vmatpush1.xpose.msra.mxu0 0.0
    %8910 = vmatprep.subr.mxu0 0.0
    %8911 = vmatpush1.xpose.msra.mxu0 0.0
    %8912 = vmatprep.subr.mxu0 0.0
    %8913 = vmatpush1.xpose.msra.mxu0 0.0
    %8914 = vmatprep.subr.mxu0 0.0
    %8915 = vmatpush1.xpose.msra.mxu0 0.0
    %8916 = vmatprep.subr.mxu0 0.0
    %8917 = vmatpush1.xpose.msra.mxu0 0.0
    %8918 = vmatprep.subr.mxu0 0.0
    %8919 = vmatpush1.xpose.msra.mxu0 0.0
    %8920 = vmatprep.subr.mxu0 0.0
    %8921 = vmatpush1.xpose.msra.mxu0 0.0
    %8922 = vmatprep.subr.mxu0 0.0
    %8923 = vmatpush1.xpose.msra.mxu0 0.0
    %8924 = vmatprep.subr.mxu0 0.0
    %8925 = vmatpush1.xpose.msra.mxu0 0.0
    %8926 = vmatprep.subr.mxu0 0.0
    %8927 = vmatpush1.xpose.msra.mxu0 0.0
    %8928 = vmatprep.subr.mxu0 0.0
    %8929 = vmatpush1.xpose.msra.mxu0 0.0
    %8930 = vmatprep.subr.mxu0 0.0
    %8931 = vmatpush1.xpose.msra.mxu0 0.0
    %8932 = vmatprep.subr.mxu0 0.0
    %8933 = vmatpush1.xpose.msra.mxu0 0.0
    %8934 = vmatprep.subr.mxu0 0.0
    %8935 = vmatpush1.xpose.msra.mxu0 0.0
    %8936 = vmatprep.mubr.f32.mxu0 0.0
    %v8937 = vand.u32 %v67, 4294901760
    %8938 = vmatmul.mubr.f32.gmra.mrb[0].mxu0 %v8937
    %v8939 = vpop.f32.mrb[0].mxu0
    %v8940 = vadd.f32 %v8789, %v8939
    %v8941 = vpop.f32.mrb[0].mxu0
    %8942 = vdwg.mxu0
    %8943 = vmatprep.subr.mxu0 0.0
    %v8944 = vand.u32 %v8654, 4294901760
    %v8945 = vsub.f32 %v8654, %v8944
    %8946 = vmatpush1.xpose.msra.mxu0 %v8945
    %8947 = vmatprep.subr.mxu0 0.0
    %v8948 = vand.u32 %v8657, 4294901760
    %v8949 = vsub.f32 %v8657, %v8948
    %8950 = vmatpush1.xpose.msra.mxu0 %v8949
    %8951 = vmatprep.subr.mxu0 0.0
    %v8952 = vand.u32 %v8660, 4294901760
    %v8953 = vsub.f32 %v8660, %v8952
    %8954 = vmatpush1.xpose.msra.mxu0 %v8953
    %8955 = vmatprep.subr.mxu0 0.0
    %v8956 = vand.u32 %v8663, 4294901760
    %v8957 = vsub.f32 %v8663, %v8956
    %8958 = vmatpush1.xpose.msra.mxu0 %v8957
    %8959 = vmatprep.subr.mxu0 0.0
    %v8960 = vand.u32 %v8666, 4294901760
    %v8961 = vsub.f32 %v8666, %v8960
    %8962 = vmatpush1.xpose.msra.mxu0 %v8961
    %8963 = vmatprep.subr.mxu0 0.0
    %v8964 = vand.u32 %v8669, 4294901760
    %v8965 = vsub.f32 %v8669, %v8964
    %8966 = vmatpush1.xpose.msra.mxu0 %v8965
    %8967 = vmatprep.subr.mxu0 0.0
    %v8968 = vand.u32 %v8672, 4294901760
    %v8969 = vsub.f32 %v8672, %v8968
    %8970 = vmatpush1.xpose.msra.mxu0 %v8969
    %8971 = vmatprep.subr.mxu0 0.0
    %v8972 = vand.u32 %v8675, 4294901760
    %v8973 = vsub.f32 %v8675, %v8972
    %8974 = vmatpush1.xpose.msra.mxu0 %v8973
    %8975 = vmatprep.subr.mxu0 0.0
    %v8976 = vand.u32 %v8678, 4294901760
    %v8977 = vsub.f32 %v8678, %v8976
    %8978 = vmatpush1.xpose.msra.mxu0 %v8977
    %8979 = vmatprep.subr.mxu0 0.0
    %v8980 = vand.u32 %v8681, 4294901760
    %v8981 = vsub.f32 %v8681, %v8980
    %8982 = vmatpush1.xpose.msra.mxu0 %v8981
    %8983 = vmatprep.subr.mxu0 0.0
    %v8984 = vand.u32 %v8684, 4294901760
    %v8985 = vsub.f32 %v8684, %v8984
    %8986 = vmatpush1.xpose.msra.mxu0 %v8985
    %8987 = vmatprep.subr.mxu0 0.0
    %v8988 = vand.u32 %v8687, 4294901760
    %v8989 = vsub.f32 %v8687, %v8988
    %8990 = vmatpush1.xpose.msra.mxu0 %v8989
    %8991 = vmatprep.subr.mxu0 0.0
    %v8992 = vand.u32 %v8690, 4294901760
    %v8993 = vsub.f32 %v8690, %v8992
    %8994 = vmatpush1.xpose.msra.mxu0 %v8993
    %8995 = vmatprep.subr.mxu0 0.0
    %v8996 = vand.u32 %v8693, 4294901760
    %v8997 = vsub.f32 %v8693, %v8996
    %8998 = vmatpush1.xpose.msra.mxu0 %v8997
    %8999 = vmatprep.subr.mxu0 0.0
    %v9000 = vand.u32 %v8696, 4294901760
    %v9001 = vsub.f32 %v8696, %v9000
    %9002 = vmatpush1.xpose.msra.mxu0 %v9001
    %9003 = vmatprep.subr.mxu0 0.0
    %v9004 = vand.u32 %v8699, 4294901760
    %v9005 = vsub.f32 %v8699, %v9004
    %9006 = vmatpush1.xpose.msra.mxu0 %v9005
    %9007 = vmatprep.subr.mxu0 0.0
    %9008 = vmatpush1.xpose.msra.mxu0 0.0
    %9009 = vmatprep.subr.mxu0 0.0
    %9010 = vmatpush1.xpose.msra.mxu0 0.0
    %9011 = vmatprep.subr.mxu0 0.0
    %9012 = vmatpush1.xpose.msra.mxu0 0.0
    %9013 = vmatprep.subr.mxu0 0.0
    %9014 = vmatpush1.xpose.msra.mxu0 0.0
    %9015 = vmatprep.subr.mxu0 0.0
    %9016 = vmatpush1.xpose.msra.mxu0 0.0
    %9017 = vmatprep.subr.mxu0 0.0
    %9018 = vmatpush1.xpose.msra.mxu0 0.0
    %9019 = vmatprep.subr.mxu0 0.0
    %9020 = vmatpush1.xpose.msra.mxu0 0.0
    %9021 = vmatprep.subr.mxu0 0.0
    %9022 = vmatpush1.xpose.msra.mxu0 0.0
    %9023 = vmatprep.subr.mxu0 0.0
    %9024 = vmatpush1.xpose.msra.mxu0 0.0
    %9025 = vmatprep.subr.mxu0 0.0
    %9026 = vmatpush1.xpose.msra.mxu0 0.0
    %9027 = vmatprep.subr.mxu0 0.0
    %9028 = vmatpush1.xpose.msra.mxu0 0.0
    %9029 = vmatprep.subr.mxu0 0.0
    %9030 = vmatpush1.xpose.msra.mxu0 0.0
    %9031 = vmatprep.subr.mxu0 0.0
    %9032 = vmatpush1.xpose.msra.mxu0 0.0
    %9033 = vmatprep.subr.mxu0 0.0
    %9034 = vmatpush1.xpose.msra.mxu0 0.0
    %9035 = vmatprep.subr.mxu0 0.0
    %9036 = vmatpush1.xpose.msra.mxu0 0.0
    %9037 = vmatprep.subr.mxu0 0.0
    %9038 = vmatpush1.xpose.msra.mxu0 0.0
    %9039 = vmatprep.mubr.f32.mxu0 0.0
    %v9040 = vand.u32 %v67, 4294901760
    %v9041 = vsub.f32 %v67, %v9040
    %9042 = vmatmul.mubr.f32.gmra.mrb[0].mxu0 %v9041
    %v9043 = vpop.f32.mrb[0].mxu0
    %v9044 = vadd.f32 %v8940, %v9043
    %v9045 = vpop.f32.mrb[0].mxu0
    %9046 = vdwg.mxu0
    %9047 = vmatprep.subr.mxu0 0.0
    %v9048 = vand.u32 %v8654, 4294901760
    %9049 = vmatpush1.xpose.msra.mxu0 %v9048
    %9050 = vmatprep.subr.mxu0 0.0
    %v9051 = vand.u32 %v8657, 4294901760
    %9052 = vmatpush1.xpose.msra.mxu0 %v9051
    %9053 = vmatprep.subr.mxu0 0.0
    %v9054 = vand.u32 %v8660, 4294901760
    %9055 = vmatpush1.xpose.msra.mxu0 %v9054
    %9056 = vmatprep.subr.mxu0 0.0
    %v9057 = vand.u32 %v8663, 4294901760
    %9058 = vmatpush1.xpose.msra.mxu0 %v9057
    %9059 = vmatprep.subr.mxu0 0.0
    %v9060 = vand.u32 %v8666, 4294901760
    %9061 = vmatpush1.xpose.msra.mxu0 %v9060
    %9062 = vmatprep.subr.mxu0 0.0
    %v9063 = vand.u32 %v8669, 4294901760
    %9064 = vmatpush1.xpose.msra.mxu0 %v9063
    %9065 = vmatprep.subr.mxu0 0.0
    %v9066 = vand.u32 %v8672, 4294901760
    %9067 = vmatpush1.xpose.msra.mxu0 %v9066
    %9068 = vmatprep.subr.mxu0 0.0
    %v9069 = vand.u32 %v8675, 4294901760
    %9070 = vmatpush1.xpose.msra.mxu0 %v9069
    %9071 = vmatprep.subr.mxu0 0.0
    %v9072 = vand.u32 %v8678, 4294901760
    %9073 = vmatpush1.xpose.msra.mxu0 %v9072
    %9074 = vmatprep.subr.mxu0 0.0
    %v9075 = vand.u32 %v8681, 4294901760
    %9076 = vmatpush1.xpose.msra.mxu0 %v9075
    %9077 = vmatprep.subr.mxu0 0.0
    %v9078 = vand.u32 %v8684, 4294901760
    %9079 = vmatpush1.xpose.msra.mxu0 %v9078
    %9080 = vmatprep.subr.mxu0 0.0
    %v9081 = vand.u32 %v8687, 4294901760
    %9082 = vmatpush1.xpose.msra.mxu0 %v9081
    %9083 = vmatprep.subr.mxu0 0.0
    %v9084 = vand.u32 %v8690, 4294901760
    %9085 = vmatpush1.xpose.msra.mxu0 %v9084
    %9086 = vmatprep.subr.mxu0 0.0
    %v9087 = vand.u32 %v8693, 4294901760
    %9088 = vmatpush1.xpose.msra.mxu0 %v9087
    %9089 = vmatprep.subr.mxu0 0.0
    %v9090 = vand.u32 %v8696, 4294901760
    %9091 = vmatpush1.xpose.msra.mxu0 %v9090
    %9092 = vmatprep.subr.mxu0 0.0
    %v9093 = vand.u32 %v8699, 4294901760
    %9094 = vmatpush1.xpose.msra.mxu0 %v9093
    %9095 = vmatprep.subr.mxu0 0.0
    %9096 = vmatpush1.xpose.msra.mxu0 0.0
    %9097 = vmatprep.subr.mxu0 0.0
    %9098 = vmatpush1.xpose.msra.mxu0 0.0
    %9099 = vmatprep.subr.mxu0 0.0
    %9100 = vmatpush1.xpose.msra.mxu0 0.0
    %9101 = vmatprep.subr.mxu0 0.0
    %9102 = vmatpush1.xpose.msra.mxu0 0.0
    %9103 = vmatprep.subr.mxu0 0.0
    %9104 = vmatpush1.xpose.msra.mxu0 0.0
    %9105 = vmatprep.subr.mxu0 0.0
    %9106 = vmatpush1.xpose.msra.mxu0 0.0
    %9107 = vmatprep.subr.mxu0 0.0
    %9108 = vmatpush1.xpose.msra.mxu0 0.0
    %9109 = vmatprep.subr.mxu0 0.0
    %9110 = vmatpush1.xpose.msra.mxu0 0.0
    %9111 = vmatprep.subr.mxu0 0.0
    %9112 = vmatpush1.xpose.msra.mxu0 0.0
    %9113 = vmatprep.subr.mxu0 0.0
    %9114 = vmatpush1.xpose.msra.mxu0 0.0
    %9115 = vmatprep.subr.mxu0 0.0
    %9116 = vmatpush1.xpose.msra.mxu0 0.0
    %9117 = vmatprep.subr.mxu0 0.0
    %9118 = vmatpush1.xpose.msra.mxu0 0.0
    %9119 = vmatprep.subr.mxu0 0.0
    %9120 = vmatpush1.xpose.msra.mxu0 0.0
    %9121 = vmatprep.subr.mxu0 0.0
    %9122 = vmatpush1.xpose.msra.mxu0 0.0
    %9123 = vmatprep.subr.mxu0 0.0
    %9124 = vmatpush1.xpose.msra.mxu0 0.0
    %9125 = vmatprep.subr.mxu0 0.0
    %9126 = vmatpush1.xpose.msra.mxu0 0.0
    %9127 = vmatprep.mubr.f32.mxu0 0.0
    %v9128 = vand.u32 %v67, 4294901760
    %v9129 = vsub.f32 %v67, %v9128
    %v9130 = vand.u32 %v9129, 4294901760
    %9131 = vmatmul.mubr.f32.gmra.mrb[0].mxu0 %v9130
    %v9132 = vpop.f32.mrb[0].mxu0
    %v9133 = vadd.f32 %v9044, %v9132
    %v9134 = vpop.f32.mrb[0].mxu0
    %9135 = vdwg.mxu0
    %9136 = vmatprep.subr.mxu0 0.0
    %v9137 = vand.u32 %v8654, 4294901760
    %v9138 = vsub.f32 %v8654, %v9137
    %v9139 = vand.u32 %v9138, 4294901760
    %9140 = vmatpush1.xpose.msra.mxu0 %v9139
    %9141 = vmatprep.subr.mxu0 0.0
    %v9142 = vand.u32 %v8657, 4294901760
    %v9143 = vsub.f32 %v8657, %v9142
    %v9144 = vand.u32 %v9143, 4294901760
    %9145 = vmatpush1.xpose.msra.mxu0 %v9144
    %9146 = vmatprep.subr.mxu0 0.0
    %v9147 = vand.u32 %v8660, 4294901760
    %v9148 = vsub.f32 %v8660, %v9147
    %v9149 = vand.u32 %v9148, 4294901760
    %9150 = vmatpush1.xpose.msra.mxu0 %v9149
    %9151 = vmatprep.subr.mxu0 0.0
    %v9152 = vand.u32 %v8663, 4294901760
    %v9153 = vsub.f32 %v8663, %v9152
    %v9154 = vand.u32 %v9153, 4294901760
    %9155 = vmatpush1.xpose.msra.mxu0 %v9154
    %9156 = vmatprep.subr.mxu0 0.0
    %v9157 = vand.u32 %v8666, 4294901760
    %v9158 = vsub.f32 %v8666, %v9157
    %v9159 = vand.u32 %v9158, 4294901760
    %9160 = vmatpush1.xpose.msra.mxu0 %v9159
    %9161 = vmatprep.subr.mxu0 0.0
    %v9162 = vand.u32 %v8669, 4294901760
    %v9163 = vsub.f32 %v8669, %v9162
    %v9164 = vand.u32 %v9163, 4294901760
    %9165 = vmatpush1.xpose.msra.mxu0 %v9164
    %9166 = vmatprep.subr.mxu0 0.0
    %v9167 = vand.u32 %v8672, 4294901760
    %v9168 = vsub.f32 %v8672, %v9167
    %v9169 = vand.u32 %v9168, 4294901760
    %9170 = vmatpush1.xpose.msra.mxu0 %v9169
    %9171 = vmatprep.subr.mxu0 0.0
    %v9172 = vand.u32 %v8675, 4294901760
    %v9173 = vsub.f32 %v8675, %v9172
    %v9174 = vand.u32 %v9173, 4294901760
    %9175 = vmatpush1.xpose.msra.mxu0 %v9174
    %9176 = vmatprep.subr.mxu0 0.0
    %v9177 = vand.u32 %v8678, 4294901760
    %v9178 = vsub.f32 %v8678, %v9177
    %v9179 = vand.u32 %v9178, 4294901760
    %9180 = vmatpush1.xpose.msra.mxu0 %v9179
    %9181 = vmatprep.subr.mxu0 0.0
    %v9182 = vand.u32 %v8681, 4294901760
    %v9183 = vsub.f32 %v8681, %v9182
    %v9184 = vand.u32 %v9183, 4294901760
    %9185 = vmatpush1.xpose.msra.mxu0 %v9184
    %9186 = vmatprep.subr.mxu0 0.0
    %v9187 = vand.u32 %v8684, 4294901760
    %v9188 = vsub.f32 %v8684, %v9187
    %v9189 = vand.u32 %v9188, 4294901760
    %9190 = vmatpush1.xpose.msra.mxu0 %v9189
    %9191 = vmatprep.subr.mxu0 0.0
    %v9192 = vand.u32 %v8687, 4294901760
    %v9193 = vsub.f32 %v8687, %v9192
    %v9194 = vand.u32 %v9193, 4294901760
    %9195 = vmatpush1.xpose.msra.mxu0 %v9194
    %9196 = vmatprep.subr.mxu0 0.0
    %v9197 = vand.u32 %v8690, 4294901760
    %v9198 = vsub.f32 %v8690, %v9197
    %v9199 = vand.u32 %v9198, 4294901760
    %9200 = vmatpush1.xpose.msra.mxu0 %v9199
    %9201 = vmatprep.subr.mxu0 0.0
    %v9202 = vand.u32 %v8693, 4294901760
    %v9203 = vsub.f32 %v8693, %v9202
    %v9204 = vand.u32 %v9203, 4294901760
    %9205 = vmatpush1.xpose.msra.mxu0 %v9204
    %9206 = vmatprep.subr.mxu0 0.0
    %v9207 = vand.u32 %v8696, 4294901760
    %v9208 = vsub.f32 %v8696, %v9207
    %v9209 = vand.u32 %v9208, 4294901760
    %9210 = vmatpush1.xpose.msra.mxu0 %v9209
    %9211 = vmatprep.subr.mxu0 0.0
    %v9212 = vand.u32 %v8699, 4294901760
    %v9213 = vsub.f32 %v8699, %v9212
    %v9214 = vand.u32 %v9213, 4294901760
    %9215 = vmatpush1.xpose.msra.mxu0 %v9214
    %9216 = vmatprep.subr.mxu0 0.0
    %9217 = vmatpush1.xpose.msra.mxu0 0.0
    %9218 = vmatprep.subr.mxu0 0.0
    %9219 = vmatpush1.xpose.msra.mxu0 0.0
    %9220 = vmatprep.subr.mxu0 0.0
    %9221 = vmatpush1.xpose.msra.mxu0 0.0
    %9222 = vmatprep.subr.mxu0 0.0
    %9223 = vmatpush1.xpose.msra.mxu0 0.0
    %9224 = vmatprep.subr.mxu0 0.0
    %9225 = vmatpush1.xpose.msra.mxu0 0.0
    %9226 = vmatprep.subr.mxu0 0.0
    %9227 = vmatpush1.xpose.msra.mxu0 0.0
    %9228 = vmatprep.subr.mxu0 0.0
    %9229 = vmatpush1.xpose.msra.mxu0 0.0
    %9230 = vmatprep.subr.mxu0 0.0
    %9231 = vmatpush1.xpose.msra.mxu0 0.0
    %9232 = vmatprep.subr.mxu0 0.0
    %9233 = vmatpush1.xpose.msra.mxu0 0.0
    %9234 = vmatprep.subr.mxu0 0.0
    %9235 = vmatpush1.xpose.msra.mxu0 0.0
    %9236 = vmatprep.subr.mxu0 0.0
    %9237 = vmatpush1.xpose.msra.mxu0 0.0
    %9238 = vmatprep.subr.mxu0 0.0
    %9239 = vmatpush1.xpose.msra.mxu0 0.0
    %9240 = vmatprep.subr.mxu0 0.0
    %9241 = vmatpush1.xpose.msra.mxu0 0.0
    %9242 = vmatprep.subr.mxu0 0.0
    %9243 = vmatpush1.xpose.msra.mxu0 0.0
    %9244 = vmatprep.subr.mxu0 0.0
    %9245 = vmatpush1.xpose.msra.mxu0 0.0
    %9246 = vmatprep.subr.mxu0 0.0
    %9247 = vmatpush1.xpose.msra.mxu0 0.0
    %9248 = vmatprep.mubr.f32.mxu0 0.0
    %v9249 = vand.u32 %v67, 4294901760
    %9250 = vmatmul.mubr.f32.gmra.mrb[0].mxu0 %v9249
    %v9251 = vpop.f32.mrb[0].mxu0
    %v9252 = vadd.f32 %v9133, %v9251
    %v9253 = vpop.f32.mrb[0].mxu0
    %9254 = vdwg.mxu0
    %9255 = vmatprep.subr.mxu0 0.0
    %v9256 = vand.u32 %v8654, 4294901760
    %9257 = vmatpush1.xpose.msra.mxu0 %v9256
    %9258 = vmatprep.subr.mxu0 0.0
    %v9259 = vand.u32 %v8657, 4294901760
    %9260 = vmatpush1.xpose.msra.mxu0 %v9259
    %9261 = vmatprep.subr.mxu0 0.0
    %v9262 = vand.u32 %v8660, 4294901760
    %9263 = vmatpush1.xpose.msra.mxu0 %v9262
    %9264 = vmatprep.subr.mxu0 0.0
    %v9265 = vand.u32 %v8663, 4294901760
    %9266 = vmatpush1.xpose.msra.mxu0 %v9265
    %9267 = vmatprep.subr.mxu0 0.0
    %v9268 = vand.u32 %v8666, 4294901760
    %9269 = vmatpush1.xpose.msra.mxu0 %v9268
    %9270 = vmatprep.subr.mxu0 0.0
    %v9271 = vand.u32 %v8669, 4294901760
    %9272 = vmatpush1.xpose.msra.mxu0 %v9271
    %9273 = vmatprep.subr.mxu0 0.0
    %v9274 = vand.u32 %v8672, 4294901760
    %9275 = vmatpush1.xpose.msra.mxu0 %v9274
    %9276 = vmatprep.subr.mxu0 0.0
    %v9277 = vand.u32 %v8675, 4294901760
    %9278 = vmatpush1.xpose.msra.mxu0 %v9277
    %9279 = vmatprep.subr.mxu0 0.0
    %v9280 = vand.u32 %v8678, 4294901760
    %9281 = vmatpush1.xpose.msra.mxu0 %v9280
    %9282 = vmatprep.subr.mxu0 0.0
    %v9283 = vand.u32 %v8681, 4294901760
    %9284 = vmatpush1.xpose.msra.mxu0 %v9283
    %9285 = vmatprep.subr.mxu0 0.0
    %v9286 = vand.u32 %v8684, 4294901760
    %9287 = vmatpush1.xpose.msra.mxu0 %v9286
    %9288 = vmatprep.subr.mxu0 0.0
    %v9289 = vand.u32 %v8687, 4294901760
    %9290 = vmatpush1.xpose.msra.mxu0 %v9289
    %9291 = vmatprep.subr.mxu0 0.0
    %v9292 = vand.u32 %v8690, 4294901760
    %9293 = vmatpush1.xpose.msra.mxu0 %v9292
    %9294 = vmatprep.subr.mxu0 0.0
    %v9295 = vand.u32 %v8693, 4294901760
    %9296 = vmatpush1.xpose.msra.mxu0 %v9295
    %9297 = vmatprep.subr.mxu0 0.0
    %v9298 = vand.u32 %v8696, 4294901760
    %9299 = vmatpush1.xpose.msra.mxu0 %v9298
    %9300 = vmatprep.subr.mxu0 0.0
    %v9301 = vand.u32 %v8699, 4294901760
    %9302 = vmatpush1.xpose.msra.mxu0 %v9301
    %9303 = vmatprep.subr.mxu0 0.0
    %9304 = vmatpush1.xpose.msra.mxu0 0.0
    %9305 = vmatprep.subr.mxu0 0.0
    %9306 = vmatpush1.xpose.msra.mxu0 0.0
    %9307 = vmatprep.subr.mxu0 0.0
    %9308 = vmatpush1.xpose.msra.mxu0 0.0
    %9309 = vmatprep.subr.mxu0 0.0
    %9310 = vmatpush1.xpose.msra.mxu0 0.0
    %9311 = vmatprep.subr.mxu0 0.0
    %9312 = vmatpush1.xpose.msra.mxu0 0.0
    %9313 = vmatprep.subr.mxu0 0.0
    %9314 = vmatpush1.xpose.msra.mxu0 0.0
    %9315 = vmatprep.subr.mxu0 0.0
    %9316 = vmatpush1.xpose.msra.mxu0 0.0
    %9317 = vmatprep.subr.mxu0 0.0
    %9318 = vmatpush1.xpose.msra.mxu0 0.0
    %9319 = vmatprep.subr.mxu0 0.0
    %9320 = vmatpush1.xpose.msra.mxu0 0.0
    %9321 = vmatprep.subr.mxu0 0.0
    %9322 = vmatpush1.xpose.msra.mxu0 0.0
    %9323 = vmatprep.subr.mxu0 0.0
    %9324 = vmatpush1.xpose.msra.mxu0 0.0
    %9325 = vmatprep.subr.mxu0 0.0
    %9326 = vmatpush1.xpose.msra.mxu0 0.0
    %9327 = vmatprep.subr.mxu0 0.0
    %9328 = vmatpush1.xpose.msra.mxu0 0.0
    %9329 = vmatprep.subr.mxu0 0.0
    %9330 = vmatpush1.xpose.msra.mxu0 0.0
    %9331 = vmatprep.subr.mxu0 0.0
    %9332 = vmatpush1.xpose.msra.mxu0 0.0
    %9333 = vmatprep.subr.mxu0 0.0
    %9334 = vmatpush1.xpose.msra.mxu0 0.0
    %9335 = vmatprep.mubr.f32.mxu0 0.0
    %v9336 = vand.u32 %v67, 4294901760
    %9337 = vmatmul.mubr.f32.gmra.mrb[0].mxu0 %v9336
    %v9338 = vpop.f32.mrb[0].mxu0
    %v9339 = vadd.f32 %v9252, %v9338
    %v9340 = vpop.f32.mrb[0].mxu0
    %9341 = vdwg.mxu0
    %v9343 = vsel %vm758, %v8621, 0
    %v9346 = vsel %vm758, %v8622, 0
    %v9349 = vsel %vm758, %v8623, 0
    %v9352 = vsel %vm758, %v8624, 0
    %v9355 = vsel %vm758, %v8625, 0
    %v9358 = vsel %vm758, %v8626, 0
    %v9361 = vsel %vm758, %v8627, 0
    %v9364 = vsel %vm758, %v8628, 0
    %v9367 = vsel %vm758, %v8629, 0
    %v9370 = vsel %vm758, %v8630, 0
    %v9373 = vsel %vm758, %v8631, 0
    %v9376 = vsel %vm758, %v8632, 0
    %v9379 = vsel %vm758, %v8633, 0
    %v9382 = vsel %vm758, %v8634, 0
    %v9385 = vsel %vm758, %v8635, 0
    %v9388 = vsel %vm758, %v8636, 0
    %9390 = vmatprep.subr.mxu0 0.0
    %v9391 = vand.u32 %v9343, 4294901760
    %9392 = vmatpush1.xpose.msra.mxu0 %v9391
    %9393 = vmatprep.subr.mxu0 0.0
    %v9394 = vand.u32 %v9346, 4294901760
    %9395 = vmatpush1.xpose.msra.mxu0 %v9394
    %9396 = vmatprep.subr.mxu0 0.0
    %v9397 = vand.u32 %v9349, 4294901760
    %9398 = vmatpush1.xpose.msra.mxu0 %v9397
    %9399 = vmatprep.subr.mxu0 0.0
    %v9400 = vand.u32 %v9352, 4294901760
    %9401 = vmatpush1.xpose.msra.mxu0 %v9400
    %9402 = vmatprep.subr.mxu0 0.0
    %v9403 = vand.u32 %v9355, 4294901760
    %9404 = vmatpush1.xpose.msra.mxu0 %v9403
    %9405 = vmatprep.subr.mxu0 0.0
    %v9406 = vand.u32 %v9358, 4294901760
    %9407 = vmatpush1.xpose.msra.mxu0 %v9406
    %9408 = vmatprep.subr.mxu0 0.0
    %v9409 = vand.u32 %v9361, 4294901760
    %9410 = vmatpush1.xpose.msra.mxu0 %v9409
    %9411 = vmatprep.subr.mxu0 0.0
    %v9412 = vand.u32 %v9364, 4294901760
    %9413 = vmatpush1.xpose.msra.mxu0 %v9412
    %9414 = vmatprep.subr.mxu0 0.0
    %v9415 = vand.u32 %v9367, 4294901760
    %9416 = vmatpush1.xpose.msra.mxu0 %v9415
    %9417 = vmatprep.subr.mxu0 0.0
    %v9418 = vand.u32 %v9370, 4294901760
    %9419 = vmatpush1.xpose.msra.mxu0 %v9418
    %9420 = vmatprep.subr.mxu0 0.0
    %v9421 = vand.u32 %v9373, 4294901760
    %9422 = vmatpush1.xpose.msra.mxu0 %v9421
    %9423 = vmatprep.subr.mxu0 0.0
    %v9424 = vand.u32 %v9376, 4294901760
    %9425 = vmatpush1.xpose.msra.mxu0 %v9424
    %9426 = vmatprep.subr.mxu0 0.0
    %v9427 = vand.u32 %v9379, 4294901760
    %9428 = vmatpush1.xpose.msra.mxu0 %v9427
    %9429 = vmatprep.subr.mxu0 0.0
    %v9430 = vand.u32 %v9382, 4294901760
    %9431 = vmatpush1.xpose.msra.mxu0 %v9430
    %9432 = vmatprep.subr.mxu0 0.0
    %v9433 = vand.u32 %v9385, 4294901760
    %9434 = vmatpush1.xpose.msra.mxu0 %v9433
    %9435 = vmatprep.subr.mxu0 0.0
    %v9436 = vand.u32 %v9388, 4294901760
    %9437 = vmatpush1.xpose.msra.mxu0 %v9436
    %9438 = vmatprep.subr.mxu0 0.0
    %9439 = vmatpush1.xpose.msra.mxu0 0.0
    %9440 = vmatprep.subr.mxu0 0.0
    %9441 = vmatpush1.xpose.msra.mxu0 0.0
    %9442 = vmatprep.subr.mxu0 0.0
    %9443 = vmatpush1.xpose.msra.mxu0 0.0
    %9444 = vmatprep.subr.mxu0 0.0
    %9445 = vmatpush1.xpose.msra.mxu0 0.0
    %9446 = vmatprep.subr.mxu0 0.0
    %9447 = vmatpush1.xpose.msra.mxu0 0.0
    %9448 = vmatprep.subr.mxu0 0.0
    %9449 = vmatpush1.xpose.msra.mxu0 0.0
    %9450 = vmatprep.subr.mxu0 0.0
    %9451 = vmatpush1.xpose.msra.mxu0 0.0
    %9452 = vmatprep.subr.mxu0 0.0
    %9453 = vmatpush1.xpose.msra.mxu0 0.0
    %9454 = vmatprep.subr.mxu0 0.0
    %9455 = vmatpush1.xpose.msra.mxu0 0.0
    %9456 = vmatprep.subr.mxu0 0.0
    %9457 = vmatpush1.xpose.msra.mxu0 0.0
    %9458 = vmatprep.subr.mxu0 0.0
    %9459 = vmatpush1.xpose.msra.mxu0 0.0
    %9460 = vmatprep.subr.mxu0 0.0
    %9461 = vmatpush1.xpose.msra.mxu0 0.0
    %9462 = vmatprep.subr.mxu0 0.0
    %9463 = vmatpush1.xpose.msra.mxu0 0.0
    %9464 = vmatprep.subr.mxu0 0.0
    %9465 = vmatpush1.xpose.msra.mxu0 0.0
    %9466 = vmatprep.subr.mxu0 0.0
    %9467 = vmatpush1.xpose.msra.mxu0 0.0
    %9468 = vmatprep.subr.mxu0 0.0
    %9469 = vmatpush1.xpose.msra.mxu0 0.0
    %9470 = vmatprep.mubr.f32.mxu0 0.0
    %v9471 = vand.u32 %v760, 4294901760
    %v9472 = vsub.f32 %v760, %v9471
    %v9473 = vand.u32 %v9472, 4294901760
    %v9474 = vsub.f32 %v9472, %v9473
    %v9475 = vand.u32 %v9474, 4294901760
    %9476 = vmatmul.mubr.f32.gmra.mrb[0].mxu0 %v9475
    %v9477 = vpop.f32.mrb[0].mxu0
    %v9478 = vadd.f32 %v9339, %v9477
    %v9479 = vpop.f32.mrb[0].mxu0
    %9480 = vdwg.mxu0
    %9481 = vmatprep.subr.mxu0 0.0
    %v9482 = vand.u32 %v9343, 4294901760
    %v9483 = vsub.f32 %v9343, %v9482
    %v9484 = vand.u32 %v9483, 4294901760
    %v9485 = vsub.f32 %v9483, %v9484
    %v9486 = vand.u32 %v9485, 4294901760
    %9487 = vmatpush1.xpose.msra.mxu0 %v9486
    %9488 = vmatprep.subr.mxu0 0.0
    %v9489 = vand.u32 %v9346, 4294901760
    %v9490 = vsub.f32 %v9346, %v9489
    %v9491 = vand.u32 %v9490, 4294901760
    %v9492 = vsub.f32 %v9490, %v9491
    %v9493 = vand.u32 %v9492, 4294901760
    %9494 = vmatpush1.xpose.msra.mxu0 %v9493
    %9495 = vmatprep.subr.mxu0 0.0
    %v9496 = vand.u32 %v9349, 4294901760
    %v9497 = vsub.f32 %v9349, %v9496
    %v9498 = vand.u32 %v9497, 4294901760
    %v9499 = vsub.f32 %v9497, %v9498
    %v9500 = vand.u32 %v9499, 4294901760
    %9501 = vmatpush1.xpose.msra.mxu0 %v9500
    %9502 = vmatprep.subr.mxu0 0.0
    %v9503 = vand.u32 %v9352, 4294901760
    %v9504 = vsub.f32 %v9352, %v9503
    %v9505 = vand.u32 %v9504, 4294901760
    %v9506 = vsub.f32 %v9504, %v9505
    %v9507 = vand.u32 %v9506, 4294901760
    %9508 = vmatpush1.xpose.msra.mxu0 %v9507
    %9509 = vmatprep.subr.mxu0 0.0
    %v9510 = vand.u32 %v9355, 4294901760
    %v9511 = vsub.f32 %v9355, %v9510
    %v9512 = vand.u32 %v9511, 4294901760
    %v9513 = vsub.f32 %v9511, %v9512
    %v9514 = vand.u32 %v9513, 4294901760
    %9515 = vmatpush1.xpose.msra.mxu0 %v9514
    %9516 = vmatprep.subr.mxu0 0.0
    %v9517 = vand.u32 %v9358, 4294901760
    %v9518 = vsub.f32 %v9358, %v9517
    %v9519 = vand.u32 %v9518, 4294901760
    %v9520 = vsub.f32 %v9518, %v9519
    %v9521 = vand.u32 %v9520, 4294901760
    %9522 = vmatpush1.xpose.msra.mxu0 %v9521
    %9523 = vmatprep.subr.mxu0 0.0
    %v9524 = vand.u32 %v9361, 4294901760
    %v9525 = vsub.f32 %v9361, %v9524
    %v9526 = vand.u32 %v9525, 4294901760
    %v9527 = vsub.f32 %v9525, %v9526
    %v9528 = vand.u32 %v9527, 4294901760
    %9529 = vmatpush1.xpose.msra.mxu0 %v9528
    %9530 = vmatprep.subr.mxu0 0.0
    %v9531 = vand.u32 %v9364, 4294901760
    %v9532 = vsub.f32 %v9364, %v9531
    %v9533 = vand.u32 %v9532, 4294901760
    %v9534 = vsub.f32 %v9532, %v9533
    %v9535 = vand.u32 %v9534, 4294901760
    %9536 = vmatpush1.xpose.msra.mxu0 %v9535
    %9537 = vmatprep.subr.mxu0 0.0
    %v9538 = vand.u32 %v9367, 4294901760
    %v9539 = vsub.f32 %v9367, %v9538
    %v9540 = vand.u32 %v9539, 4294901760
    %v9541 = vsub.f32 %v9539, %v9540
    %v9542 = vand.u32 %v9541, 4294901760
    %9543 = vmatpush1.xpose.msra.mxu0 %v9542
    %9544 = vmatprep.subr.mxu0 0.0
    %v9545 = vand.u32 %v9370, 4294901760
    %v9546 = vsub.f32 %v9370, %v9545
    %v9547 = vand.u32 %v9546, 4294901760
    %v9548 = vsub.f32 %v9546, %v9547
    %v9549 = vand.u32 %v9548, 4294901760
    %9550 = vmatpush1.xpose.msra.mxu0 %v9549
    %9551 = vmatprep.subr.mxu0 0.0
    %v9552 = vand.u32 %v9373, 4294901760
    %v9553 = vsub.f32 %v9373, %v9552
    %v9554 = vand.u32 %v9553, 4294901760
    %v9555 = vsub.f32 %v9553, %v9554
    %v9556 = vand.u32 %v9555, 4294901760
    %9557 = vmatpush1.xpose.msra.mxu0 %v9556
    %9558 = vmatprep.subr.mxu0 0.0
    %v9559 = vand.u32 %v9376, 4294901760
    %v9560 = vsub.f32 %v9376, %v9559
    %v9561 = vand.u32 %v9560, 4294901760
    %v9562 = vsub.f32 %v9560, %v9561
    %v9563 = vand.u32 %v9562, 4294901760
    %9564 = vmatpush1.xpose.msra.mxu0 %v9563
    %9565 = vmatprep.subr.mxu0 0.0
    %v9566 = vand.u32 %v9379, 4294901760
    %v9567 = vsub.f32 %v9379, %v9566
    %v9568 = vand.u32 %v9567, 4294901760
    %v9569 = vsub.f32 %v9567, %v9568
    %v9570 = vand.u32 %v9569, 4294901760
    %9571 = vmatpush1.xpose.msra.mxu0 %v9570
    %9572 = vmatprep.subr.mxu0 0.0
    %v9573 = vand.u32 %v9382, 4294901760
    %v9574 = vsub.f32 %v9382, %v9573
    %v9575 = vand.u32 %v9574, 4294901760
    %v9576 = vsub.f32 %v9574, %v9575
    %v9577 = vand.u32 %v9576, 4294901760
    %9578 = vmatpush1.xpose.msra.mxu0 %v9577
    %9579 = vmatprep.subr.mxu0 0.0
    %v9580 = vand.u32 %v9385, 4294901760
    %v9581 = vsub.f32 %v9385, %v9580
    %v9582 = vand.u32 %v9581, 4294901760
    %v9583 = vsub.f32 %v9581, %v9582
    %v9584 = vand.u32 %v9583, 4294901760
    %9585 = vmatpush1.xpose.msra.mxu0 %v9584
    %9586 = vmatprep.subr.mxu0 0.0
    %v9587 = vand.u32 %v9388, 4294901760
    %v9588 = vsub.f32 %v9388, %v9587
    %v9589 = vand.u32 %v9588, 4294901760
    %v9590 = vsub.f32 %v9588, %v9589
    %v9591 = vand.u32 %v9590, 4294901760
    %9592 = vmatpush1.xpose.msra.mxu0 %v9591
    %9593 = vmatprep.subr.mxu0 0.0
    %9594 = vmatpush1.xpose.msra.mxu0 0.0
    %9595 = vmatprep.subr.mxu0 0.0
    %9596 = vmatpush1.xpose.msra.mxu0 0.0
    %9597 = vmatprep.subr.mxu0 0.0
    %9598 = vmatpush1.xpose.msra.mxu0 0.0
    %9599 = vmatprep.subr.mxu0 0.0
    %9600 = vmatpush1.xpose.msra.mxu0 0.0
    %9601 = vmatprep.subr.mxu0 0.0
    %9602 = vmatpush1.xpose.msra.mxu0 0.0
    %9603 = vmatprep.subr.mxu0 0.0
    %9604 = vmatpush1.xpose.msra.mxu0 0.0
    %9605 = vmatprep.subr.mxu0 0.0
    %9606 = vmatpush1.xpose.msra.mxu0 0.0
    %9607 = vmatprep.subr.mxu0 0.0
    %9608 = vmatpush1.xpose.msra.mxu0 0.0
    %9609 = vmatprep.subr.mxu0 0.0
    %9610 = vmatpush1.xpose.msra.mxu0 0.0
    %9611 = vmatprep.subr.mxu0 0.0
    %9612 = vmatpush1.xpose.msra.mxu0 0.0
    %9613 = vmatprep.subr.mxu0 0.0
    %9614 = vmatpush1.xpose.msra.mxu0 0.0
    %9615 = vmatprep.subr.mxu0 0.0
    %9616 = vmatpush1.xpose.msra.mxu0 0.0
    %9617 = vmatprep.subr.mxu0 0.0
    %9618 = vmatpush1.xpose.msra.mxu0 0.0
    %9619 = vmatprep.subr.mxu0 0.0
    %9620 = vmatpush1.xpose.msra.mxu0 0.0
    %9621 = vmatprep.subr.mxu0 0.0
    %9622 = vmatpush1.xpose.msra.mxu0 0.0
    %9623 = vmatprep.subr.mxu0 0.0
    %9624 = vmatpush1.xpose.msra.mxu0 0.0
    %9625 = vmatprep.mubr.f32.mxu0 0.0
    %v9626 = vand.u32 %v760, 4294901760
    %9627 = vmatmul.mubr.f32.gmra.mrb[0].mxu0 %v9626
    %v9628 = vpop.f32.mrb[0].mxu0
    %v9629 = vadd.f32 %v9478, %v9628
    %v9630 = vpop.f32.mrb[0].mxu0
    %9631 = vdwg.mxu0
    %9632 = vmatprep.subr.mxu0 0.0
    %v9633 = vand.u32 %v9343, 4294901760
    %v9634 = vsub.f32 %v9343, %v9633
    %9635 = vmatpush1.xpose.msra.mxu0 %v9634
    %9636 = vmatprep.subr.mxu0 0.0
    %v9637 = vand.u32 %v9346, 4294901760
    %v9638 = vsub.f32 %v9346, %v9637
    %9639 = vmatpush1.xpose.msra.mxu0 %v9638
    %9640 = vmatprep.subr.mxu0 0.0
    %v9641 = vand.u32 %v9349, 4294901760
    %v9642 = vsub.f32 %v9349, %v9641
    %9643 = vmatpush1.xpose.msra.mxu0 %v9642
    %9644 = vmatprep.subr.mxu0 0.0
    %v9645 = vand.u32 %v9352, 4294901760
    %v9646 = vsub.f32 %v9352, %v9645
    %9647 = vmatpush1.xpose.msra.mxu0 %v9646
    %9648 = vmatprep.subr.mxu0 0.0
    %v9649 = vand.u32 %v9355, 4294901760
    %v9650 = vsub.f32 %v9355, %v9649
    %9651 = vmatpush1.xpose.msra.mxu0 %v9650
    %9652 = vmatprep.subr.mxu0 0.0
    %v9653 = vand.u32 %v9358, 4294901760
    %v9654 = vsub.f32 %v9358, %v9653
    %9655 = vmatpush1.xpose.msra.mxu0 %v9654
    %9656 = vmatprep.subr.mxu0 0.0
    %v9657 = vand.u32 %v9361, 4294901760
    %v9658 = vsub.f32 %v9361, %v9657
    %9659 = vmatpush1.xpose.msra.mxu0 %v9658
    %9660 = vmatprep.subr.mxu0 0.0
    %v9661 = vand.u32 %v9364, 4294901760
    %v9662 = vsub.f32 %v9364, %v9661
    %9663 = vmatpush1.xpose.msra.mxu0 %v9662
    %9664 = vmatprep.subr.mxu0 0.0
    %v9665 = vand.u32 %v9367, 4294901760
    %v9666 = vsub.f32 %v9367, %v9665
    %9667 = vmatpush1.xpose.msra.mxu0 %v9666
    %9668 = vmatprep.subr.mxu0 0.0
    %v9669 = vand.u32 %v9370, 4294901760
    %v9670 = vsub.f32 %v9370, %v9669
    %9671 = vmatpush1.xpose.msra.mxu0 %v9670
    %9672 = vmatprep.subr.mxu0 0.0
    %v9673 = vand.u32 %v9373, 4294901760
    %v9674 = vsub.f32 %v9373, %v9673
    %9675 = vmatpush1.xpose.msra.mxu0 %v9674
    %9676 = vmatprep.subr.mxu0 0.0
    %v9677 = vand.u32 %v9376, 4294901760
    %v9678 = vsub.f32 %v9376, %v9677
    %9679 = vmatpush1.xpose.msra.mxu0 %v9678
    %9680 = vmatprep.subr.mxu0 0.0
    %v9681 = vand.u32 %v9379, 4294901760
    %v9682 = vsub.f32 %v9379, %v9681
    %9683 = vmatpush1.xpose.msra.mxu0 %v9682
    %9684 = vmatprep.subr.mxu0 0.0
    %v9685 = vand.u32 %v9382, 4294901760
    %v9686 = vsub.f32 %v9382, %v9685
    %9687 = vmatpush1.xpose.msra.mxu0 %v9686
    %9688 = vmatprep.subr.mxu0 0.0
    %v9689 = vand.u32 %v9385, 4294901760
    %v9690 = vsub.f32 %v9385, %v9689
    %9691 = vmatpush1.xpose.msra.mxu0 %v9690
    %9692 = vmatprep.subr.mxu0 0.0
    %v9693 = vand.u32 %v9388, 4294901760
    %v9694 = vsub.f32 %v9388, %v9693
    %9695 = vmatpush1.xpose.msra.mxu0 %v9694
    %9696 = vmatprep.subr.mxu0 0.0
    %9697 = vmatpush1.xpose.msra.mxu0 0.0
    %9698 = vmatprep.subr.mxu0 0.0
    %9699 = vmatpush1.xpose.msra.mxu0 0.0
    %9700 = vmatprep.subr.mxu0 0.0
    %9701 = vmatpush1.xpose.msra.mxu0 0.0
    %9702 = vmatprep.subr.mxu0 0.0
    %9703 = vmatpush1.xpose.msra.mxu0 0.0
    %9704 = vmatprep.subr.mxu0 0.0
    %9705 = vmatpush1.xpose.msra.mxu0 0.0
    %9706 = vmatprep.subr.mxu0 0.0
    %9707 = vmatpush1.xpose.msra.mxu0 0.0
    %9708 = vmatprep.subr.mxu0 0.0
    %9709 = vmatpush1.xpose.msra.mxu0 0.0
    %9710 = vmatprep.subr.mxu0 0.0
    %9711 = vmatpush1.xpose.msra.mxu0 0.0
    %9712 = vmatprep.subr.mxu0 0.0
    %9713 = vmatpush1.xpose.msra.mxu0 0.0
    %9714 = vmatprep.subr.mxu0 0.0
    %9715 = vmatpush1.xpose.msra.mxu0 0.0
    %9716 = vmatprep.subr.mxu0 0.0
    %9717 = vmatpush1.xpose.msra.mxu0 0.0
    %9718 = vmatprep.subr.mxu0 0.0
    %9719 = vmatpush1.xpose.msra.mxu0 0.0
    %9720 = vmatprep.subr.mxu0 0.0
    %9721 = vmatpush1.xpose.msra.mxu0 0.0
    %9722 = vmatprep.subr.mxu0 0.0
    %9723 = vmatpush1.xpose.msra.mxu0 0.0
    %9724 = vmatprep.subr.mxu0 0.0
    %9725 = vmatpush1.xpose.msra.mxu0 0.0
    %9726 = vmatprep.subr.mxu0 0.0
    %9727 = vmatpush1.xpose.msra.mxu0 0.0
    %9728 = vmatprep.mubr.f32.mxu0 0.0
    %v9729 = vand.u32 %v760, 4294901760
    %v9730 = vsub.f32 %v760, %v9729
    %9731 = vmatmul.mubr.f32.gmra.mrb[0].mxu0 %v9730
    %v9732 = vpop.f32.mrb[0].mxu0
    %v9733 = vadd.f32 %v9629, %v9732
    %v9734 = vpop.f32.mrb[0].mxu0
    %9735 = vdwg.mxu0
    %9736 = vmatprep.subr.mxu0 0.0
    %v9737 = vand.u32 %v9343, 4294901760
    %9738 = vmatpush1.xpose.msra.mxu0 %v9737
    %9739 = vmatprep.subr.mxu0 0.0
    %v9740 = vand.u32 %v9346, 4294901760
    %9741 = vmatpush1.xpose.msra.mxu0 %v9740
    %9742 = vmatprep.subr.mxu0 0.0
    %v9743 = vand.u32 %v9349, 4294901760
    %9744 = vmatpush1.xpose.msra.mxu0 %v9743
    %9745 = vmatprep.subr.mxu0 0.0
    %v9746 = vand.u32 %v9352, 4294901760
    %9747 = vmatpush1.xpose.msra.mxu0 %v9746
    %9748 = vmatprep.subr.mxu0 0.0
    %v9749 = vand.u32 %v9355, 4294901760
    %9750 = vmatpush1.xpose.msra.mxu0 %v9749
    %9751 = vmatprep.subr.mxu0 0.0
    %v9752 = vand.u32 %v9358, 4294901760
    %9753 = vmatpush1.xpose.msra.mxu0 %v9752
    %9754 = vmatprep.subr.mxu0 0.0
    %v9755 = vand.u32 %v9361, 4294901760
    %9756 = vmatpush1.xpose.msra.mxu0 %v9755
    %9757 = vmatprep.subr.mxu0 0.0
    %v9758 = vand.u32 %v9364, 4294901760
    %9759 = vmatpush1.xpose.msra.mxu0 %v9758
    %9760 = vmatprep.subr.mxu0 0.0
    %v9761 = vand.u32 %v9367, 4294901760
    %9762 = vmatpush1.xpose.msra.mxu0 %v9761
    %9763 = vmatprep.subr.mxu0 0.0
    %v9764 = vand.u32 %v9370, 4294901760
    %9765 = vmatpush1.xpose.msra.mxu0 %v9764
    %9766 = vmatprep.subr.mxu0 0.0
    %v9767 = vand.u32 %v9373, 4294901760
    %9768 = vmatpush1.xpose.msra.mxu0 %v9767
    %9769 = vmatprep.subr.mxu0 0.0
    %v9770 = vand.u32 %v9376, 4294901760
    %9771 = vmatpush1.xpose.msra.mxu0 %v9770
    %9772 = vmatprep.subr.mxu0 0.0
    %v9773 = vand.u32 %v9379, 4294901760
    %9774 = vmatpush1.xpose.msra.mxu0 %v9773
    %9775 = vmatprep.subr.mxu0 0.0
    %v9776 = vand.u32 %v9382, 4294901760
    %9777 = vmatpush1.xpose.msra.mxu0 %v9776
    %9778 = vmatprep.subr.mxu0 0.0
    %v9779 = vand.u32 %v9385, 4294901760
    %9780 = vmatpush1.xpose.msra.mxu0 %v9779
    %9781 = vmatprep.subr.mxu0 0.0
    %v9782 = vand.u32 %v9388, 4294901760
    %9783 = vmatpush1.xpose.msra.mxu0 %v9782
    %9784 = vmatprep.subr.mxu0 0.0
    %9785 = vmatpush1.xpose.msra.mxu0 0.0
    %9786 = vmatprep.subr.mxu0 0.0
    %9787 = vmatpush1.xpose.msra.mxu0 0.0
    %9788 = vmatprep.subr.mxu0 0.0
    %9789 = vmatpush1.xpose.msra.mxu0 0.0
    %9790 = vmatprep.subr.mxu0 0.0
    %9791 = vmatpush1.xpose.msra.mxu0 0.0
    %9792 = vmatprep.subr.mxu0 0.0
    %9793 = vmatpush1.xpose.msra.mxu0 0.0
    %9794 = vmatprep.subr.mxu0 0.0
    %9795 = vmatpush1.xpose.msra.mxu0 0.0
    %9796 = vmatprep.subr.mxu0 0.0
    %9797 = vmatpush1.xpose.msra.mxu0 0.0
    %9798 = vmatprep.subr.mxu0 0.0
    %9799 = vmatpush1.xpose.msra.mxu0 0.0
    %9800 = vmatprep.subr.mxu0 0.0
    %9801 = vmatpush1.xpose.msra.mxu0 0.0
    %9802 = vmatprep.subr.mxu0 0.0
    %9803 = vmatpush1.xpose.msra.mxu0 0.0
    %9804 = vmatprep.subr.mxu0 0.0
    %9805 = vmatpush1.xpose.msra.mxu0 0.0
    %9806 = vmatprep.subr.mxu0 0.0
    %9807 = vmatpush1.xpose.msra.mxu0 0.0
    %9808 = vmatprep.subr.mxu0 0.0
    %9809 = vmatpush1.xpose.msra.mxu0 0.0
    %9810 = vmatprep.subr.mxu0 0.0
    %9811 = vmatpush1.xpose.msra.mxu0 0.0
    %9812 = vmatprep.subr.mxu0 0.0
    %9813 = vmatpush1.xpose.msra.mxu0 0.0
    %9814 = vmatprep.subr.mxu0 0.0
    %9815 = vmatpush1.xpose.msra.mxu0 0.0
    %9816 = vmatprep.mubr.f32.mxu0 0.0
    %v9817 = vand.u32 %v760, 4294901760
    %v9818 = vsub.f32 %v760, %v9817
    %v9819 = vand.u32 %v9818, 4294901760
    %9820 = vmatmul.mubr.f32.gmra.mrb[0].mxu0 %v9819
    %v9821 = vpop.f32.mrb[0].mxu0
    %v9822 = vadd.f32 %v9733, %v9821
    %v9823 = vpop.f32.mrb[0].mxu0
    %9824 = vdwg.mxu0
    %9825 = vmatprep.subr.mxu0 0.0
    %v9826 = vand.u32 %v9343, 4294901760
    %v9827 = vsub.f32 %v9343, %v9826
    %v9828 = vand.u32 %v9827, 4294901760
    %9829 = vmatpush1.xpose.msra.mxu0 %v9828
    %9830 = vmatprep.subr.mxu0 0.0
    %v9831 = vand.u32 %v9346, 4294901760
    %v9832 = vsub.f32 %v9346, %v9831
    %v9833 = vand.u32 %v9832, 4294901760
    %9834 = vmatpush1.xpose.msra.mxu0 %v9833
    %9835 = vmatprep.subr.mxu0 0.0
    %v9836 = vand.u32 %v9349, 4294901760
    %v9837 = vsub.f32 %v9349, %v9836
    %v9838 = vand.u32 %v9837, 4294901760
    %9839 = vmatpush1.xpose.msra.mxu0 %v9838
    %9840 = vmatprep.subr.mxu0 0.0
    %v9841 = vand.u32 %v9352, 4294901760
    %v9842 = vsub.f32 %v9352, %v9841
    %v9843 = vand.u32 %v9842, 4294901760
    %9844 = vmatpush1.xpose.msra.mxu0 %v9843
    %9845 = vmatprep.subr.mxu0 0.0
    %v9846 = vand.u32 %v9355, 4294901760
    %v9847 = vsub.f32 %v9355, %v9846
    %v9848 = vand.u32 %v9847, 4294901760
    %9849 = vmatpush1.xpose.msra.mxu0 %v9848
    %9850 = vmatprep.subr.mxu0 0.0
    %v9851 = vand.u32 %v9358, 4294901760
    %v9852 = vsub.f32 %v9358, %v9851
    %v9853 = vand.u32 %v9852, 4294901760
    %9854 = vmatpush1.xpose.msra.mxu0 %v9853
    %9855 = vmatprep.subr.mxu0 0.0
    %v9856 = vand.u32 %v9361, 4294901760
    %v9857 = vsub.f32 %v9361, %v9856
    %v9858 = vand.u32 %v9857, 4294901760
    %9859 = vmatpush1.xpose.msra.mxu0 %v9858
    %9860 = vmatprep.subr.mxu0 0.0
    %v9861 = vand.u32 %v9364, 4294901760
    %v9862 = vsub.f32 %v9364, %v9861
    %v9863 = vand.u32 %v9862, 4294901760
    %9864 = vmatpush1.xpose.msra.mxu0 %v9863
    %9865 = vmatprep.subr.mxu0 0.0
    %v9866 = vand.u32 %v9367, 4294901760
    %v9867 = vsub.f32 %v9367, %v9866
    %v9868 = vand.u32 %v9867, 4294901760
    %9869 = vmatpush1.xpose.msra.mxu0 %v9868
    %9870 = vmatprep.subr.mxu0 0.0
    %v9871 = vand.u32 %v9370, 4294901760
    %v9872 = vsub.f32 %v9370, %v9871
    %v9873 = vand.u32 %v9872, 4294901760
    %9874 = vmatpush1.xpose.msra.mxu0 %v9873
    %9875 = vmatprep.subr.mxu0 0.0
    %v9876 = vand.u32 %v9373, 4294901760
    %v9877 = vsub.f32 %v9373, %v9876
    %v9878 = vand.u32 %v9877, 4294901760
    %9879 = vmatpush1.xpose.msra.mxu0 %v9878
    %9880 = vmatprep.subr.mxu0 0.0
    %v9881 = vand.u32 %v9376, 4294901760
    %v9882 = vsub.f32 %v9376, %v9881
    %v9883 = vand.u32 %v9882, 4294901760
    %9884 = vmatpush1.xpose.msra.mxu0 %v9883
    %9885 = vmatprep.subr.mxu0 0.0
    %v9886 = vand.u32 %v9379, 4294901760
    %v9887 = vsub.f32 %v9379, %v9886
    %v9888 = vand.u32 %v9887, 4294901760
    %9889 = vmatpush1.xpose.msra.mxu0 %v9888
    %9890 = vmatprep.subr.mxu0 0.0
    %v9891 = vand.u32 %v9382, 4294901760
    %v9892 = vsub.f32 %v9382, %v9891
    %v9893 = vand.u32 %v9892, 4294901760
    %9894 = vmatpush1.xpose.msra.mxu0 %v9893
    %9895 = vmatprep.subr.mxu0 0.0
    %v9896 = vand.u32 %v9385, 4294901760
    %v9897 = vsub.f32 %v9385, %v9896
    %v9898 = vand.u32 %v9897, 4294901760
    %9899 = vmatpush1.xpose.msra.mxu0 %v9898
    %9900 = vmatprep.subr.mxu0 0.0
    %v9901 = vand.u32 %v9388, 4294901760
    %v9902 = vsub.f32 %v9388, %v9901
    %v9903 = vand.u32 %v9902, 4294901760
    %9904 = vmatpush1.xpose.msra.mxu0 %v9903
    %9905 = vmatprep.subr.mxu0 0.0
    %9906 = vmatpush1.xpose.msra.mxu0 0.0
    %9907 = vmatprep.subr.mxu0 0.0
    %9908 = vmatpush1.xpose.msra.mxu0 0.0
    %9909 = vmatprep.subr.mxu0 0.0
    %9910 = vmatpush1.xpose.msra.mxu0 0.0
    %9911 = vmatprep.subr.mxu0 0.0
    %9912 = vmatpush1.xpose.msra.mxu0 0.0
    %9913 = vmatprep.subr.mxu0 0.0
    %9914 = vmatpush1.xpose.msra.mxu0 0.0
    %9915 = vmatprep.subr.mxu0 0.0
    %9916 = vmatpush1.xpose.msra.mxu0 0.0
    %9917 = vmatprep.subr.mxu0 0.0
    %9918 = vmatpush1.xpose.msra.mxu0 0.0
    %9919 = vmatprep.subr.mxu0 0.0
    %9920 = vmatpush1.xpose.msra.mxu0 0.0
    %9921 = vmatprep.subr.mxu0 0.0
    %9922 = vmatpush1.xpose.msra.mxu0 0.0
    %9923 = vmatprep.subr.mxu0 0.0
    %9924 = vmatpush1.xpose.msra.mxu0 0.0
    %9925 = vmatprep.subr.mxu0 0.0
    %9926 = vmatpush1.xpose.msra.mxu0 0.0
    %9927 = vmatprep.subr.mxu0 0.0
    %9928 = vmatpush1.xpose.msra.mxu0 0.0
    %9929 = vmatprep.subr.mxu0 0.0
    %9930 = vmatpush1.xpose.msra.mxu0 0.0
    %9931 = vmatprep.subr.mxu0 0.0
    %9932 = vmatpush1.xpose.msra.mxu0 0.0
    %9933 = vmatprep.subr.mxu0 0.0
    %9934 = vmatpush1.xpose.msra.mxu0 0.0
    %9935 = vmatprep.subr.mxu0 0.0
    %9936 = vmatpush1.xpose.msra.mxu0 0.0
    %9937 = vmatprep.mubr.f32.mxu0 0.0
    %v9938 = vand.u32 %v760, 4294901760
    %9939 = vmatmul.mubr.f32.gmra.mrb[0].mxu0 %v9938
    %v9940 = vpop.f32.mrb[0].mxu0
    %v9941 = vadd.f32 %v9822, %v9940
    %v9942 = vpop.f32.mrb[0].mxu0
    %9943 = vdwg.mxu0
    %9944 = vmatprep.subr.mxu0 0.0
    %v9945 = vand.u32 %v9343, 4294901760
    %9946 = vmatpush1.xpose.msra.mxu0 %v9945
    %9947 = vmatprep.subr.mxu0 0.0
    %v9948 = vand.u32 %v9346, 4294901760
    %9949 = vmatpush1.xpose.msra.mxu0 %v9948
    %9950 = vmatprep.subr.mxu0 0.0
    %v9951 = vand.u32 %v9349, 4294901760
    %9952 = vmatpush1.xpose.msra.mxu0 %v9951
    %9953 = vmatprep.subr.mxu0 0.0
    %v9954 = vand.u32 %v9352, 4294901760
    %9955 = vmatpush1.xpose.msra.mxu0 %v9954
    %9956 = vmatprep.subr.mxu0 0.0
    %v9957 = vand.u32 %v9355, 4294901760
    %9958 = vmatpush1.xpose.msra.mxu0 %v9957
    %9959 = vmatprep.subr.mxu0 0.0
    %v9960 = vand.u32 %v9358, 4294901760
    %9961 = vmatpush1.xpose.msra.mxu0 %v9960
    %9962 = vmatprep.subr.mxu0 0.0
    %v9963 = vand.u32 %v9361, 4294901760
    %9964 = vmatpush1.xpose.msra.mxu0 %v9963
    %9965 = vmatprep.subr.mxu0 0.0
    %v9966 = vand.u32 %v9364, 4294901760
    %9967 = vmatpush1.xpose.msra.mxu0 %v9966
    %9968 = vmatprep.subr.mxu0 0.0
    %v9969 = vand.u32 %v9367, 4294901760
    %9970 = vmatpush1.xpose.msra.mxu0 %v9969
    %9971 = vmatprep.subr.mxu0 0.0
    %v9972 = vand.u32 %v9370, 4294901760
    %9973 = vmatpush1.xpose.msra.mxu0 %v9972
    %9974 = vmatprep.subr.mxu0 0.0
    %v9975 = vand.u32 %v9373, 4294901760
    %9976 = vmatpush1.xpose.msra.mxu0 %v9975
    %9977 = vmatprep.subr.mxu0 0.0
    %v9978 = vand.u32 %v9376, 4294901760
    %9979 = vmatpush1.xpose.msra.mxu0 %v9978
    %9980 = vmatprep.subr.mxu0 0.0
    %v9981 = vand.u32 %v9379, 4294901760
    %9982 = vmatpush1.xpose.msra.mxu0 %v9981
    %9983 = vmatprep.subr.mxu0 0.0
    %v9984 = vand.u32 %v9382, 4294901760
    %9985 = vmatpush1.xpose.msra.mxu0 %v9984
    %9986 = vmatprep.subr.mxu0 0.0
    %v9987 = vand.u32 %v9385, 4294901760
    %9988 = vmatpush1.xpose.msra.mxu0 %v9987
    %9989 = vmatprep.subr.mxu0 0.0
    %v9990 = vand.u32 %v9388, 4294901760
    %9991 = vmatpush1.xpose.msra.mxu0 %v9990
    %9992 = vmatprep.subr.mxu0 0.0
    %9993 = vmatpush1.xpose.msra.mxu0 0.0
    %9994 = vmatprep.subr.mxu0 0.0
    %9995 = vmatpush1.xpose.msra.mxu0 0.0
    %9996 = vmatprep.subr.mxu0 0.0
    %9997 = vmatpush1.xpose.msra.mxu0 0.0
    %9998 = vmatprep.subr.mxu0 0.0
    %9999 = vmatpush1.xpose.msra.mxu0 0.0
    %10000 = vmatprep.subr.mxu0 0.0
    %10001 = vmatpush1.xpose.msra.mxu0 0.0
    %10002 = vmatprep.subr.mxu0 0.0
    %10003 = vmatpush1.xpose.msra.mxu0 0.0
    %10004 = vmatprep.subr.mxu0 0.0
    %10005 = vmatpush1.xpose.msra.mxu0 0.0
    %10006 = vmatprep.subr.mxu0 0.0
    %10007 = vmatpush1.xpose.msra.mxu0 0.0
    %10008 = vmatprep.subr.mxu0 0.0
    %10009 = vmatpush1.xpose.msra.mxu0 0.0
    %10010 = vmatprep.subr.mxu0 0.0
    %10011 = vmatpush1.xpose.msra.mxu0 0.0
    %10012 = vmatprep.subr.mxu0 0.0
    %10013 = vmatpush1.xpose.msra.mxu0 0.0
    %10014 = vmatprep.subr.mxu0 0.0
    %10015 = vmatpush1.xpose.msra.mxu0 0.0
    %10016 = vmatprep.subr.mxu0 0.0
    %10017 = vmatpush1.xpose.msra.mxu0 0.0
    %10018 = vmatprep.subr.mxu0 0.0
    %10019 = vmatpush1.xpose.msra.mxu0 0.0
    %10020 = vmatprep.subr.mxu0 0.0
    %10021 = vmatpush1.xpose.msra.mxu0 0.0
    %10022 = vmatprep.subr.mxu0 0.0
    %10023 = vmatpush1.xpose.msra.mxu0 0.0
    %10024 = vmatprep.mubr.f32.mxu0 0.0
    %v10025 = vand.u32 %v760, 4294901760
    %10026 = vmatmul.mubr.f32.gmra.mrb[0].mxu0 %v10025
    %v10027 = vpop.f32.mrb[0].mxu0
    %v10028 = vadd.f32 %v9941, %v10027
    %v10029 = vpop.f32.mrb[0].mxu0
    %10030 = vdwg.mxu0
    %v10031 = vadd.f32 %v10028, %v1454
    %v10032 = vmax.f32 %v10031, 0.0
    %v10033 = vmul.f32 %v10032, %v1461
    %v10034 = vsel %vm1464, %v10033, 0.0
    %v10035 = vrot.slane %v10034, 4
    %v10036 = vadd.f32 %v10034, %v10035
    %v10037 = vrot.slane %v10036, 2
    %v10038 = vadd.f32 %v10036, %v10037
    %v10039 = vrot.slane %v10038, 1
    %v10040 = vadd.f32 %v10038, %v10039
    %v10041 = vadd.f32 %v10040, %v1472
    %v10042 = vxor.u32 %v10041, 2147483648
    %v10043 = vmul.f32 %v10042, 1.442695
    %v10044 = vpow.pop %v10043
    %v10045 = vadd.f32 %v10044, 1.0
    %v10046 = vrcp.pop %v10045
    %v10047 = vmul.f32 1.0, %v10046
    %10048 = vst [vmem:[#allocation3 + $0x6] sm:$0x1] %v10047
    %v10049 = vld [vmem:[%s0 + $0x380] sm:$0xff]
    %v10050 = vld [vmem:[%s0 + $0x388] sm:$0xff]
    %v10051 = vld [vmem:[%s0 + $0x390] sm:$0xff]
    %v10052 = vld [vmem:[%s0 + $0x398] sm:$0xff]
    %v10053 = vld [vmem:[%s0 + $0x3a0] sm:$0xff]
    %v10054 = vld [vmem:[%s0 + $0x3a8] sm:$0xff]
    %v10055 = vld [vmem:[%s0 + $0x3b0] sm:$0xff]
    %v10056 = vld [vmem:[%s0 + $0x3b8] sm:$0xff]
    %v10057 = vld [vmem:[%s0 + $0x3c0] sm:$0xff]
    %v10058 = vld [vmem:[%s0 + $0x3c8] sm:$0xff]
    %v10059 = vld [vmem:[%s0 + $0x3d0] sm:$0xff]
    %v10060 = vld [vmem:[%s0 + $0x3d8] sm:$0xff]
    %v10061 = vld [vmem:[%s0 + $0x3e0] sm:$0xff]
    %v10062 = vld [vmem:[%s0 + $0x3e8] sm:$0xff]
    %v10063 = vld [vmem:[%s0 + $0x3f0] sm:$0xff]
    %v10064 = vld [vmem:[%s0 + $0x3f8] sm:$0xff]
    %v10065 = vld [vmem:[%s1 + $0x380] sm:$0xff]
    %v10066 = vld [vmem:[%s1 + $0x388] sm:$0xff]
    %v10067 = vld [vmem:[%s1 + $0x390] sm:$0xff]
    %v10068 = vld [vmem:[%s1 + $0x398] sm:$0xff]
    %v10069 = vld [vmem:[%s1 + $0x3a0] sm:$0xff]
    %v10070 = vld [vmem:[%s1 + $0x3a8] sm:$0xff]
    %v10071 = vld [vmem:[%s1 + $0x3b0] sm:$0xff]
    %v10072 = vld [vmem:[%s1 + $0x3b8] sm:$0xff]
    %v10073 = vld [vmem:[%s1 + $0x3c0] sm:$0xff]
    %v10074 = vld [vmem:[%s1 + $0x3c8] sm:$0xff]
    %v10075 = vld [vmem:[%s1 + $0x3d0] sm:$0xff]
    %v10076 = vld [vmem:[%s1 + $0x3d8] sm:$0xff]
    %v10077 = vld [vmem:[%s1 + $0x3e0] sm:$0xff]
    %v10078 = vld [vmem:[%s1 + $0x3e8] sm:$0xff]
    %v10079 = vld [vmem:[%s1 + $0x3f0] sm:$0xff]
    %v10080 = vld [vmem:[%s1 + $0x3f8] sm:$0xff]
    %v10082 = vsel %vm65, %v10065, 0
    %v10085 = vsel %vm65, %v10066, 0
    %v10088 = vsel %vm65, %v10067, 0
    %v10091 = vsel %vm65, %v10068, 0
    %v10094 = vsel %vm65, %v10069, 0
    %v10097 = vsel %vm65, %v10070, 0
    %v10100 = vsel %vm65, %v10071, 0
    %v10103 = vsel %vm65, %v10072, 0
    %v10106 = vsel %vm65, %v10073, 0
    %v10109 = vsel %vm65, %v10074, 0
    %v10112 = vsel %vm65, %v10075, 0
    %v10115 = vsel %vm65, %v10076, 0
    %v10118 = vsel %vm65, %v10077, 0
    %v10121 = vsel %vm65, %v10078, 0
    %v10124 = vsel %vm65, %v10079, 0
    %v10127 = vsel %vm65, %v10080, 0
    %10129 = vmatprep.subr.mxu0 0.0
    %v10130 = vand.u32 %v10082, 4294901760
    %10131 = vmatpush1.xpose.msra.mxu0 %v10130
    %10132 = vmatprep.subr.mxu0 0.0
    %v10133 = vand.u32 %v10085, 4294901760
    %10134 = vmatpush1.xpose.msra.mxu0 %v10133
    %10135 = vmatprep.subr.mxu0 0.0
    %v10136 = vand.u32 %v10088, 4294901760
    %10137 = vmatpush1.xpose.msra.mxu0 %v10136
    %10138 = vmatprep.subr.mxu0 0.0
    %v10139 = vand.u32 %v10091, 4294901760
    %10140 = vmatpush1.xpose.msra.mxu0 %v10139
    %10141 = vmatprep.subr.mxu0 0.0
    %v10142 = vand.u32 %v10094, 4294901760
    %10143 = vmatpush1.xpose.msra.mxu0 %v10142
    %10144 = vmatprep.subr.mxu0 0.0
    %v10145 = vand.u32 %v10097, 4294901760
    %10146 = vmatpush1.xpose.msra.mxu0 %v10145
    %10147 = vmatprep.subr.mxu0 0.0
    %v10148 = vand.u32 %v10100, 4294901760
    %10149 = vmatpush1.xpose.msra.mxu0 %v10148
    %10150 = vmatprep.subr.mxu0 0.0
    %v10151 = vand.u32 %v10103, 4294901760
    %10152 = vmatpush1.xpose.msra.mxu0 %v10151
    %10153 = vmatprep.subr.mxu0 0.0
    %v10154 = vand.u32 %v10106, 4294901760
    %10155 = vmatpush1.xpose.msra.mxu0 %v10154
    %10156 = vmatprep.subr.mxu0 0.0
    %v10157 = vand.u32 %v10109, 4294901760
    %10158 = vmatpush1.xpose.msra.mxu0 %v10157
    %10159 = vmatprep.subr.mxu0 0.0
    %v10160 = vand.u32 %v10112, 4294901760
    %10161 = vmatpush1.xpose.msra.mxu0 %v10160
    %10162 = vmatprep.subr.mxu0 0.0
    %v10163 = vand.u32 %v10115, 4294901760
    %10164 = vmatpush1.xpose.msra.mxu0 %v10163
    %10165 = vmatprep.subr.mxu0 0.0
    %v10166 = vand.u32 %v10118, 4294901760
    %10167 = vmatpush1.xpose.msra.mxu0 %v10166
    %10168 = vmatprep.subr.mxu0 0.0
    %v10169 = vand.u32 %v10121, 4294901760
    %10170 = vmatpush1.xpose.msra.mxu0 %v10169
    %10171 = vmatprep.subr.mxu0 0.0
    %v10172 = vand.u32 %v10124, 4294901760
    %10173 = vmatpush1.xpose.msra.mxu0 %v10172
    %10174 = vmatprep.subr.mxu0 0.0
    %v10175 = vand.u32 %v10127, 4294901760
    %10176 = vmatpush1.xpose.msra.mxu0 %v10175
    %10177 = vmatprep.subr.mxu0 0.0
    %10178 = vmatpush1.xpose.msra.mxu0 0.0
    %10179 = vmatprep.subr.mxu0 0.0
    %10180 = vmatpush1.xpose.msra.mxu0 0.0
    %10181 = vmatprep.subr.mxu0 0.0
    %10182 = vmatpush1.xpose.msra.mxu0 0.0
    %10183 = vmatprep.subr.mxu0 0.0
    %10184 = vmatpush1.xpose.msra.mxu0 0.0
    %10185 = vmatprep.subr.mxu0 0.0
    %10186 = vmatpush1.xpose.msra.mxu0 0.0
    %10187 = vmatprep.subr.mxu0 0.0
    %10188 = vmatpush1.xpose.msra.mxu0 0.0
    %10189 = vmatprep.subr.mxu0 0.0
    %10190 = vmatpush1.xpose.msra.mxu0 0.0
    %10191 = vmatprep.subr.mxu0 0.0
    %10192 = vmatpush1.xpose.msra.mxu0 0.0
    %10193 = vmatprep.subr.mxu0 0.0
    %10194 = vmatpush1.xpose.msra.mxu0 0.0
    %10195 = vmatprep.subr.mxu0 0.0
    %10196 = vmatpush1.xpose.msra.mxu0 0.0
    %10197 = vmatprep.subr.mxu0 0.0
    %10198 = vmatpush1.xpose.msra.mxu0 0.0
    %10199 = vmatprep.subr.mxu0 0.0
    %10200 = vmatpush1.xpose.msra.mxu0 0.0
    %10201 = vmatprep.subr.mxu0 0.0
    %10202 = vmatpush1.xpose.msra.mxu0 0.0
    %10203 = vmatprep.subr.mxu0 0.0
    %10204 = vmatpush1.xpose.msra.mxu0 0.0
    %10205 = vmatprep.subr.mxu0 0.0
    %10206 = vmatpush1.xpose.msra.mxu0 0.0
    %10207 = vmatprep.subr.mxu0 0.0
    %10208 = vmatpush1.xpose.msra.mxu0 0.0
    %10209 = vmatprep.mubr.f32.mxu0 0.0
    %v10210 = vand.u32 %v67, 4294901760
    %v10211 = vsub.f32 %v67, %v10210
    %v10212 = vand.u32 %v10211, 4294901760
    %v10213 = vsub.f32 %v10211, %v10212
    %v10214 = vand.u32 %v10213, 4294901760
    %10215 = vmatmul.mubr.f32.gmra.mrb[0].mxu0 %v10214
    %v10216 = vpop.f32.mrb[0].mxu0
    %v10217 = vadd.f32 0.0, %v10216
    %v10218 = vpop.f32.mrb[0].mxu0
    %10219 = vdwg.mxu0
    %10220 = vmatprep.subr.mxu0 0.0
    %v10221 = vand.u32 %v10082, 4294901760
    %v10222 = vsub.f32 %v10082, %v10221
    %v10223 = vand.u32 %v10222, 4294901760
    %v10224 = vsub.f32 %v10222, %v10223
    %v10225 = vand.u32 %v10224, 4294901760
    %10226 = vmatpush1.xpose.msra.mxu0 %v10225
    %10227 = vmatprep.subr.mxu0 0.0
    %v10228 = vand.u32 %v10085, 4294901760
    %v10229 = vsub.f32 %v10085, %v10228
    %v10230 = vand.u32 %v10229, 4294901760
    %v10231 = vsub.f32 %v10229, %v10230
    %v10232 = vand.u32 %v10231, 4294901760
    %10233 = vmatpush1.xpose.msra.mxu0 %v10232
    %10234 = vmatprep.subr.mxu0 0.0
    %v10235 = vand.u32 %v10088, 4294901760
    %v10236 = vsub.f32 %v10088, %v10235
    %v10237 = vand.u32 %v10236, 4294901760
    %v10238 = vsub.f32 %v10236, %v10237
    %v10239 = vand.u32 %v10238, 4294901760
    %10240 = vmatpush1.xpose.msra.mxu0 %v10239
    %10241 = vmatprep.subr.mxu0 0.0
    %v10242 = vand.u32 %v10091, 4294901760
    %v10243 = vsub.f32 %v10091, %v10242
    %v10244 = vand.u32 %v10243, 4294901760
    %v10245 = vsub.f32 %v10243, %v10244
    %v10246 = vand.u32 %v10245, 4294901760
    %10247 = vmatpush1.xpose.msra.mxu0 %v10246
    %10248 = vmatprep.subr.mxu0 0.0
    %v10249 = vand.u32 %v10094, 4294901760
    %v10250 = vsub.f32 %v10094, %v10249
    %v10251 = vand.u32 %v10250, 4294901760
    %v10252 = vsub.f32 %v10250, %v10251
    %v10253 = vand.u32 %v10252, 4294901760
    %10254 = vmatpush1.xpose.msra.mxu0 %v10253
    %10255 = vmatprep.subr.mxu0 0.0
    %v10256 = vand.u32 %v10097, 4294901760
    %v10257 = vsub.f32 %v10097, %v10256
    %v10258 = vand.u32 %v10257, 4294901760
    %v10259 = vsub.f32 %v10257, %v10258
    %v10260 = vand.u32 %v10259, 4294901760
    %10261 = vmatpush1.xpose.msra.mxu0 %v10260
    %10262 = vmatprep.subr.mxu0 0.0
    %v10263 = vand.u32 %v10100, 4294901760
    %v10264 = vsub.f32 %v10100, %v10263
    %v10265 = vand.u32 %v10264, 4294901760
    %v10266 = vsub.f32 %v10264, %v10265
    %v10267 = vand.u32 %v10266, 4294901760
    %10268 = vmatpush1.xpose.msra.mxu0 %v10267
    %10269 = vmatprep.subr.mxu0 0.0
    %v10270 = vand.u32 %v10103, 4294901760
    %v10271 = vsub.f32 %v10103, %v10270
    %v10272 = vand.u32 %v10271, 4294901760
    %v10273 = vsub.f32 %v10271, %v10272
    %v10274 = vand.u32 %v10273, 4294901760
    %10275 = vmatpush1.xpose.msra.mxu0 %v10274
    %10276 = vmatprep.subr.mxu0 0.0
    %v10277 = vand.u32 %v10106, 4294901760
    %v10278 = vsub.f32 %v10106, %v10277
    %v10279 = vand.u32 %v10278, 4294901760
    %v10280 = vsub.f32 %v10278, %v10279
    %v10281 = vand.u32 %v10280, 4294901760
    %10282 = vmatpush1.xpose.msra.mxu0 %v10281
    %10283 = vmatprep.subr.mxu0 0.0
    %v10284 = vand.u32 %v10109, 4294901760
    %v10285 = vsub.f32 %v10109, %v10284
    %v10286 = vand.u32 %v10285, 4294901760
    %v10287 = vsub.f32 %v10285, %v10286
    %v10288 = vand.u32 %v10287, 4294901760
    %10289 = vmatpush1.xpose.msra.mxu0 %v10288
    %10290 = vmatprep.subr.mxu0 0.0
    %v10291 = vand.u32 %v10112, 4294901760
    %v10292 = vsub.f32 %v10112, %v10291
    %v10293 = vand.u32 %v10292, 4294901760
    %v10294 = vsub.f32 %v10292, %v10293
    %v10295 = vand.u32 %v10294, 4294901760
    %10296 = vmatpush1.xpose.msra.mxu0 %v10295
    %10297 = vmatprep.subr.mxu0 0.0
    %v10298 = vand.u32 %v10115, 4294901760
    %v10299 = vsub.f32 %v10115, %v10298
    %v10300 = vand.u32 %v10299, 4294901760
    %v10301 = vsub.f32 %v10299, %v10300
    %v10302 = vand.u32 %v10301, 4294901760
    %10303 = vmatpush1.xpose.msra.mxu0 %v10302
    %10304 = vmatprep.subr.mxu0 0.0
    %v10305 = vand.u32 %v10118, 4294901760
    %v10306 = vsub.f32 %v10118, %v10305
    %v10307 = vand.u32 %v10306, 4294901760
    %v10308 = vsub.f32 %v10306, %v10307
    %v10309 = vand.u32 %v10308, 4294901760
    %10310 = vmatpush1.xpose.msra.mxu0 %v10309
    %10311 = vmatprep.subr.mxu0 0.0
    %v10312 = vand.u32 %v10121, 4294901760
    %v10313 = vsub.f32 %v10121, %v10312
    %v10314 = vand.u32 %v10313, 4294901760
    %v10315 = vsub.f32 %v10313, %v10314
    %v10316 = vand.u32 %v10315, 4294901760
    %10317 = vmatpush1.xpose.msra.mxu0 %v10316
    %10318 = vmatprep.subr.mxu0 0.0
    %v10319 = vand.u32 %v10124, 4294901760
    %v10320 = vsub.f32 %v10124, %v10319
    %v10321 = vand.u32 %v10320, 4294901760
    %v10322 = vsub.f32 %v10320, %v10321
    %v10323 = vand.u32 %v10322, 4294901760
    %10324 = vmatpush1.xpose.msra.mxu0 %v10323
    %10325 = vmatprep.subr.mxu0 0.0
    %v10326 = vand.u32 %v10127, 4294901760
    %v10327 = vsub.f32 %v10127, %v10326
    %v10328 = vand.u32 %v10327, 4294901760
    %v10329 = vsub.f32 %v10327, %v10328
    %v10330 = vand.u32 %v10329, 4294901760
    %10331 = vmatpush1.xpose.msra.mxu0 %v10330
    %10332 = vmatprep.subr.mxu0 0.0
    %10333 = vmatpush1.xpose.msra.mxu0 0.0
    %10334 = vmatprep.subr.mxu0 0.0
    %10335 = vmatpush1.xpose.msra.mxu0 0.0
    %10336 = vmatprep.subr.mxu0 0.0
    %10337 = vmatpush1.xpose.msra.mxu0 0.0
    %10338 = vmatprep.subr.mxu0 0.0
    %10339 = vmatpush1.xpose.msra.mxu0 0.0
    %10340 = vmatprep.subr.mxu0 0.0
    %10341 = vmatpush1.xpose.msra.mxu0 0.0
    %10342 = vmatprep.subr.mxu0 0.0
    %10343 = vmatpush1.xpose.msra.mxu0 0.0
    %10344 = vmatprep.subr.mxu0 0.0
    %10345 = vmatpush1.xpose.msra.mxu0 0.0
    %10346 = vmatprep.subr.mxu0 0.0
    %10347 = vmatpush1.xpose.msra.mxu0 0.0
    %10348 = vmatprep.subr.mxu0 0.0
    %10349 = vmatpush1.xpose.msra.mxu0 0.0
    %10350 = vmatprep.subr.mxu0 0.0
    %10351 = vmatpush1.xpose.msra.mxu0 0.0
    %10352 = vmatprep.subr.mxu0 0.0
    %10353 = vmatpush1.xpose.msra.mxu0 0.0
    %10354 = vmatprep.subr.mxu0 0.0
    %10355 = vmatpush1.xpose.msra.mxu0 0.0
    %10356 = vmatprep.subr.mxu0 0.0
    %10357 = vmatpush1.xpose.msra.mxu0 0.0
    %10358 = vmatprep.subr.mxu0 0.0
    %10359 = vmatpush1.xpose.msra.mxu0 0.0
    %10360 = vmatprep.subr.mxu0 0.0
    %10361 = vmatpush1.xpose.msra.mxu0 0.0
    %10362 = vmatprep.subr.mxu0 0.0
    %10363 = vmatpush1.xpose.msra.mxu0 0.0
    %10364 = vmatprep.mubr.f32.mxu0 0.0
    %v10365 = vand.u32 %v67, 4294901760
    %10366 = vmatmul.mubr.f32.gmra.mrb[0].mxu0 %v10365
    %v10367 = vpop.f32.mrb[0].mxu0
    %v10368 = vadd.f32 %v10217, %v10367
    %v10369 = vpop.f32.mrb[0].mxu0
    %10370 = vdwg.mxu0
    %10371 = vmatprep.subr.mxu0 0.0
    %v10372 = vand.u32 %v10082, 4294901760
    %v10373 = vsub.f32 %v10082, %v10372
    %10374 = vmatpush1.xpose.msra.mxu0 %v10373
    %10375 = vmatprep.subr.mxu0 0.0
    %v10376 = vand.u32 %v10085, 4294901760
    %v10377 = vsub.f32 %v10085, %v10376
    %10378 = vmatpush1.xpose.msra.mxu0 %v10377
    %10379 = vmatprep.subr.mxu0 0.0
    %v10380 = vand.u32 %v10088, 4294901760
    %v10381 = vsub.f32 %v10088, %v10380
    %10382 = vmatpush1.xpose.msra.mxu0 %v10381
    %10383 = vmatprep.subr.mxu0 0.0
    %v10384 = vand.u32 %v10091, 4294901760
    %v10385 = vsub.f32 %v10091, %v10384
    %10386 = vmatpush1.xpose.msra.mxu0 %v10385
    %10387 = vmatprep.subr.mxu0 0.0
    %v10388 = vand.u32 %v10094, 4294901760
    %v10389 = vsub.f32 %v10094, %v10388
    %10390 = vmatpush1.xpose.msra.mxu0 %v10389
    %10391 = vmatprep.subr.mxu0 0.0
    %v10392 = vand.u32 %v10097, 4294901760
    %v10393 = vsub.f32 %v10097, %v10392
    %10394 = vmatpush1.xpose.msra.mxu0 %v10393
    %10395 = vmatprep.subr.mxu0 0.0
    %v10396 = vand.u32 %v10100, 4294901760
    %v10397 = vsub.f32 %v10100, %v10396
    %10398 = vmatpush1.xpose.msra.mxu0 %v10397
    %10399 = vmatprep.subr.mxu0 0.0
    %v10400 = vand.u32 %v10103, 4294901760
    %v10401 = vsub.f32 %v10103, %v10400
    %10402 = vmatpush1.xpose.msra.mxu0 %v10401
    %10403 = vmatprep.subr.mxu0 0.0
    %v10404 = vand.u32 %v10106, 4294901760
    %v10405 = vsub.f32 %v10106, %v10404
    %10406 = vmatpush1.xpose.msra.mxu0 %v10405
    %10407 = vmatprep.subr.mxu0 0.0
    %v10408 = vand.u32 %v10109, 4294901760
    %v10409 = vsub.f32 %v10109, %v10408
    %10410 = vmatpush1.xpose.msra.mxu0 %v10409
    %10411 = vmatprep.subr.mxu0 0.0
    %v10412 = vand.u32 %v10112, 4294901760
    %v10413 = vsub.f32 %v10112, %v10412
    %10414 = vmatpush1.xpose.msra.mxu0 %v10413
    %10415 = vmatprep.subr.mxu0 0.0
    %v10416 = vand.u32 %v10115, 4294901760
    %v10417 = vsub.f32 %v10115, %v10416
    %10418 = vmatpush1.xpose.msra.mxu0 %v10417
    %10419 = vmatprep.subr.mxu0 0.0
    %v10420 = vand.u32 %v10118, 4294901760
    %v10421 = vsub.f32 %v10118, %v10420
    %10422 = vmatpush1.xpose.msra.mxu0 %v10421
    %10423 = vmatprep.subr.mxu0 0.0
    %v10424 = vand.u32 %v10121, 4294901760
    %v10425 = vsub.f32 %v10121, %v10424
    %10426 = vmatpush1.xpose.msra.mxu0 %v10425
    %10427 = vmatprep.subr.mxu0 0.0
    %v10428 = vand.u32 %v10124, 4294901760
    %v10429 = vsub.f32 %v10124, %v10428
    %10430 = vmatpush1.xpose.msra.mxu0 %v10429
    %10431 = vmatprep.subr.mxu0 0.0
    %v10432 = vand.u32 %v10127, 4294901760
    %v10433 = vsub.f32 %v10127, %v10432
    %10434 = vmatpush1.xpose.msra.mxu0 %v10433
    %10435 = vmatprep.subr.mxu0 0.0
    %10436 = vmatpush1.xpose.msra.mxu0 0.0
    %10437 = vmatprep.subr.mxu0 0.0
    %10438 = vmatpush1.xpose.msra.mxu0 0.0
    %10439 = vmatprep.subr.mxu0 0.0
    %10440 = vmatpush1.xpose.msra.mxu0 0.0
    %10441 = vmatprep.subr.mxu0 0.0
    %10442 = vmatpush1.xpose.msra.mxu0 0.0
    %10443 = vmatprep.subr.mxu0 0.0
    %10444 = vmatpush1.xpose.msra.mxu0 0.0
    %10445 = vmatprep.subr.mxu0 0.0
    %10446 = vmatpush1.xpose.msra.mxu0 0.0
    %10447 = vmatprep.subr.mxu0 0.0
    %10448 = vmatpush1.xpose.msra.mxu0 0.0
    %10449 = vmatprep.subr.mxu0 0.0
    %10450 = vmatpush1.xpose.msra.mxu0 0.0
    %10451 = vmatprep.subr.mxu0 0.0
    %10452 = vmatpush1.xpose.msra.mxu0 0.0
    %10453 = vmatprep.subr.mxu0 0.0
    %10454 = vmatpush1.xpose.msra.mxu0 0.0
    %10455 = vmatprep.subr.mxu0 0.0
    %10456 = vmatpush1.xpose.msra.mxu0 0.0
    %10457 = vmatprep.subr.mxu0 0.0
    %10458 = vmatpush1.xpose.msra.mxu0 0.0
    %10459 = vmatprep.subr.mxu0 0.0
    %10460 = vmatpush1.xpose.msra.mxu0 0.0
    %10461 = vmatprep.subr.mxu0 0.0
    %10462 = vmatpush1.xpose.msra.mxu0 0.0
    %10463 = vmatprep.subr.mxu0 0.0
    %10464 = vmatpush1.xpose.msra.mxu0 0.0
    %10465 = vmatprep.subr.mxu0 0.0
    %10466 = vmatpush1.xpose.msra.mxu0 0.0
    %10467 = vmatprep.mubr.f32.mxu0 0.0
    %v10468 = vand.u32 %v67, 4294901760
    %v10469 = vsub.f32 %v67, %v10468
    %10470 = vmatmul.mubr.f32.gmra.mrb[0].mxu0 %v10469
    %v10471 = vpop.f32.mrb[0].mxu0
    %v10472 = vadd.f32 %v10368, %v10471
    %v10473 = vpop.f32.mrb[0].mxu0
    %10474 = vdwg.mxu0
    %10475 = vmatprep.subr.mxu0 0.0
    %v10476 = vand.u32 %v10082, 4294901760
    %10477 = vmatpush1.xpose.msra.mxu0 %v10476
    %10478 = vmatprep.subr.mxu0 0.0
    %v10479 = vand.u32 %v10085, 4294901760
    %10480 = vmatpush1.xpose.msra.mxu0 %v10479
    %10481 = vmatprep.subr.mxu0 0.0
    %v10482 = vand.u32 %v10088, 4294901760
    %10483 = vmatpush1.xpose.msra.mxu0 %v10482
    %10484 = vmatprep.subr.mxu0 0.0
    %v10485 = vand.u32 %v10091, 4294901760
    %10486 = vmatpush1.xpose.msra.mxu0 %v10485
    %10487 = vmatprep.subr.mxu0 0.0
    %v10488 = vand.u32 %v10094, 4294901760
    %10489 = vmatpush1.xpose.msra.mxu0 %v10488
    %10490 = vmatprep.subr.mxu0 0.0
    %v10491 = vand.u32 %v10097, 4294901760
    %10492 = vmatpush1.xpose.msra.mxu0 %v10491
    %10493 = vmatprep.subr.mxu0 0.0
    %v10494 = vand.u32 %v10100, 4294901760
    %10495 = vmatpush1.xpose.msra.mxu0 %v10494
    %10496 = vmatprep.subr.mxu0 0.0
    %v10497 = vand.u32 %v10103, 4294901760
    %10498 = vmatpush1.xpose.msra.mxu0 %v10497
    %10499 = vmatprep.subr.mxu0 0.0
    %v10500 = vand.u32 %v10106, 4294901760
    %10501 = vmatpush1.xpose.msra.mxu0 %v10500
    %10502 = vmatprep.subr.mxu0 0.0
    %v10503 = vand.u32 %v10109, 4294901760
    %10504 = vmatpush1.xpose.msra.mxu0 %v10503
    %10505 = vmatprep.subr.mxu0 0.0
    %v10506 = vand.u32 %v10112, 4294901760
    %10507 = vmatpush1.xpose.msra.mxu0 %v10506
    %10508 = vmatprep.subr.mxu0 0.0
    %v10509 = vand.u32 %v10115, 4294901760
    %10510 = vmatpush1.xpose.msra.mxu0 %v10509
    %10511 = vmatprep.subr.mxu0 0.0
    %v10512 = vand.u32 %v10118, 4294901760
    %10513 = vmatpush1.xpose.msra.mxu0 %v10512
    %10514 = vmatprep.subr.mxu0 0.0
    %v10515 = vand.u32 %v10121, 4294901760
    %10516 = vmatpush1.xpose.msra.mxu0 %v10515
    %10517 = vmatprep.subr.mxu0 0.0
    %v10518 = vand.u32 %v10124, 4294901760
    %10519 = vmatpush1.xpose.msra.mxu0 %v10518
    %10520 = vmatprep.subr.mxu0 0.0
    %v10521 = vand.u32 %v10127, 4294901760
    %10522 = vmatpush1.xpose.msra.mxu0 %v10521
    %10523 = vmatprep.subr.mxu0 0.0
    %10524 = vmatpush1.xpose.msra.mxu0 0.0
    %10525 = vmatprep.subr.mxu0 0.0
    %10526 = vmatpush1.xpose.msra.mxu0 0.0
    %10527 = vmatprep.subr.mxu0 0.0
    %10528 = vmatpush1.xpose.msra.mxu0 0.0
    %10529 = vmatprep.subr.mxu0 0.0
    %10530 = vmatpush1.xpose.msra.mxu0 0.0
    %10531 = vmatprep.subr.mxu0 0.0
    %10532 = vmatpush1.xpose.msra.mxu0 0.0
    %10533 = vmatprep.subr.mxu0 0.0
    %10534 = vmatpush1.xpose.msra.mxu0 0.0
    %10535 = vmatprep.subr.mxu0 0.0
    %10536 = vmatpush1.xpose.msra.mxu0 0.0
    %10537 = vmatprep.subr.mxu0 0.0
    %10538 = vmatpush1.xpose.msra.mxu0 0.0
    %10539 = vmatprep.subr.mxu0 0.0
    %10540 = vmatpush1.xpose.msra.mxu0 0.0
    %10541 = vmatprep.subr.mxu0 0.0
    %10542 = vmatpush1.xpose.msra.mxu0 0.0
    %10543 = vmatprep.subr.mxu0 0.0
    %10544 = vmatpush1.xpose.msra.mxu0 0.0
    %10545 = vmatprep.subr.mxu0 0.0
    %10546 = vmatpush1.xpose.msra.mxu0 0.0
    %10547 = vmatprep.subr.mxu0 0.0
    %10548 = vmatpush1.xpose.msra.mxu0 0.0
    %10549 = vmatprep.subr.mxu0 0.0
    %10550 = vmatpush1.xpose.msra.mxu0 0.0
    %10551 = vmatprep.subr.mxu0 0.0
    %10552 = vmatpush1.xpose.msra.mxu0 0.0
    %10553 = vmatprep.subr.mxu0 0.0
    %10554 = vmatpush1.xpose.msra.mxu0 0.0
    %10555 = vmatprep.mubr.f32.mxu0 0.0
    %v10556 = vand.u32 %v67, 4294901760
    %v10557 = vsub.f32 %v67, %v10556
    %v10558 = vand.u32 %v10557, 4294901760
    %10559 = vmatmul.mubr.f32.gmra.mrb[0].mxu0 %v10558
    %v10560 = vpop.f32.mrb[0].mxu0
    %v10561 = vadd.f32 %v10472, %v10560
    %v10562 = vpop.f32.mrb[0].mxu0
    %10563 = vdwg.mxu0
    %10564 = vmatprep.subr.mxu0 0.0
    %v10565 = vand.u32 %v10082, 4294901760
    %v10566 = vsub.f32 %v10082, %v10565
    %v10567 = vand.u32 %v10566, 4294901760
    %10568 = vmatpush1.xpose.msra.mxu0 %v10567
    %10569 = vmatprep.subr.mxu0 0.0
    %v10570 = vand.u32 %v10085, 4294901760
    %v10571 = vsub.f32 %v10085, %v10570
    %v10572 = vand.u32 %v10571, 4294901760
    %10573 = vmatpush1.xpose.msra.mxu0 %v10572
    %10574 = vmatprep.subr.mxu0 0.0
    %v10575 = vand.u32 %v10088, 4294901760
    %v10576 = vsub.f32 %v10088, %v10575
    %v10577 = vand.u32 %v10576, 4294901760
    %10578 = vmatpush1.xpose.msra.mxu0 %v10577
    %10579 = vmatprep.subr.mxu0 0.0
    %v10580 = vand.u32 %v10091, 4294901760
    %v10581 = vsub.f32 %v10091, %v10580
    %v10582 = vand.u32 %v10581, 4294901760
    %10583 = vmatpush1.xpose.msra.mxu0 %v10582
    %10584 = vmatprep.subr.mxu0 0.0
    %v10585 = vand.u32 %v10094, 4294901760
    %v10586 = vsub.f32 %v10094, %v10585
    %v10587 = vand.u32 %v10586, 4294901760
    %10588 = vmatpush1.xpose.msra.mxu0 %v10587
    %10589 = vmatprep.subr.mxu0 0.0
    %v10590 = vand.u32 %v10097, 4294901760
    %v10591 = vsub.f32 %v10097, %v10590
    %v10592 = vand.u32 %v10591, 4294901760
    %10593 = vmatpush1.xpose.msra.mxu0 %v10592
    %10594 = vmatprep.subr.mxu0 0.0
    %v10595 = vand.u32 %v10100, 4294901760
    %v10596 = vsub.f32 %v10100, %v10595
    %v10597 = vand.u32 %v10596, 4294901760
    %10598 = vmatpush1.xpose.msra.mxu0 %v10597
    %10599 = vmatprep.subr.mxu0 0.0
    %v10600 = vand.u32 %v10103, 4294901760
    %v10601 = vsub.f32 %v10103, %v10600
    %v10602 = vand.u32 %v10601, 4294901760
    %10603 = vmatpush1.xpose.msra.mxu0 %v10602
    %10604 = vmatprep.subr.mxu0 0.0
    %v10605 = vand.u32 %v10106, 4294901760
    %v10606 = vsub.f32 %v10106, %v10605
    %v10607 = vand.u32 %v10606, 4294901760
    %10608 = vmatpush1.xpose.msra.mxu0 %v10607
    %10609 = vmatprep.subr.mxu0 0.0
    %v10610 = vand.u32 %v10109, 4294901760
    %v10611 = vsub.f32 %v10109, %v10610
    %v10612 = vand.u32 %v10611, 4294901760
    %10613 = vmatpush1.xpose.msra.mxu0 %v10612
    %10614 = vmatprep.subr.mxu0 0.0
    %v10615 = vand.u32 %v10112, 4294901760
    %v10616 = vsub.f32 %v10112, %v10615
    %v10617 = vand.u32 %v10616, 4294901760
    %10618 = vmatpush1.xpose.msra.mxu0 %v10617
    %10619 = vmatprep.subr.mxu0 0.0
    %v10620 = vand.u32 %v10115, 4294901760
    %v10621 = vsub.f32 %v10115, %v10620
    %v10622 = vand.u32 %v10621, 4294901760
    %10623 = vmatpush1.xpose.msra.mxu0 %v10622
    %10624 = vmatprep.subr.mxu0 0.0
    %v10625 = vand.u32 %v10118, 4294901760
    %v10626 = vsub.f32 %v10118, %v10625
    %v10627 = vand.u32 %v10626, 4294901760
    %10628 = vmatpush1.xpose.msra.mxu0 %v10627
    %10629 = vmatprep.subr.mxu0 0.0
    %v10630 = vand.u32 %v10121, 4294901760
    %v10631 = vsub.f32 %v10121, %v10630
    %v10632 = vand.u32 %v10631, 4294901760
    %10633 = vmatpush1.xpose.msra.mxu0 %v10632
    %10634 = vmatprep.subr.mxu0 0.0
    %v10635 = vand.u32 %v10124, 4294901760
    %v10636 = vsub.f32 %v10124, %v10635
    %v10637 = vand.u32 %v10636, 4294901760
    %10638 = vmatpush1.xpose.msra.mxu0 %v10637
    %10639 = vmatprep.subr.mxu0 0.0
    %v10640 = vand.u32 %v10127, 4294901760
    %v10641 = vsub.f32 %v10127, %v10640
    %v10642 = vand.u32 %v10641, 4294901760
    %10643 = vmatpush1.xpose.msra.mxu0 %v10642
    %10644 = vmatprep.subr.mxu0 0.0
    %10645 = vmatpush1.xpose.msra.mxu0 0.0
    %10646 = vmatprep.subr.mxu0 0.0
    %10647 = vmatpush1.xpose.msra.mxu0 0.0
    %10648 = vmatprep.subr.mxu0 0.0
    %10649 = vmatpush1.xpose.msra.mxu0 0.0
    %10650 = vmatprep.subr.mxu0 0.0
    %10651 = vmatpush1.xpose.msra.mxu0 0.0
    %10652 = vmatprep.subr.mxu0 0.0
    %10653 = vmatpush1.xpose.msra.mxu0 0.0
    %10654 = vmatprep.subr.mxu0 0.0
    %10655 = vmatpush1.xpose.msra.mxu0 0.0
    %10656 = vmatprep.subr.mxu0 0.0
    %10657 = vmatpush1.xpose.msra.mxu0 0.0
    %10658 = vmatprep.subr.mxu0 0.0
    %10659 = vmatpush1.xpose.msra.mxu0 0.0
    %10660 = vmatprep.subr.mxu0 0.0
    %10661 = vmatpush1.xpose.msra.mxu0 0.0
    %10662 = vmatprep.subr.mxu0 0.0
    %10663 = vmatpush1.xpose.msra.mxu0 0.0
    %10664 = vmatprep.subr.mxu0 0.0
    %10665 = vmatpush1.xpose.msra.mxu0 0.0
    %10666 = vmatprep.subr.mxu0 0.0
    %10667 = vmatpush1.xpose.msra.mxu0 0.0
    %10668 = vmatprep.subr.mxu0 0.0
    %10669 = vmatpush1.xpose.msra.mxu0 0.0
    %10670 = vmatprep.subr.mxu0 0.0
    %10671 = vmatpush1.xpose.msra.mxu0 0.0
    %10672 = vmatprep.subr.mxu0 0.0
    %10673 = vmatpush1.xpose.msra.mxu0 0.0
    %10674 = vmatprep.subr.mxu0 0.0
    %10675 = vmatpush1.xpose.msra.mxu0 0.0
    %10676 = vmatprep.mubr.f32.mxu0 0.0
    %v10677 = vand.u32 %v67, 4294901760
    %10678 = vmatmul.mubr.f32.gmra.mrb[0].mxu0 %v10677
    %v10679 = vpop.f32.mrb[0].mxu0
    %v10680 = vadd.f32 %v10561, %v10679
    %v10681 = vpop.f32.mrb[0].mxu0
    %10682 = vdwg.mxu0
    %10683 = vmatprep.subr.mxu0 0.0
    %v10684 = vand.u32 %v10082, 4294901760
    %10685 = vmatpush1.xpose.msra.mxu0 %v10684
    %10686 = vmatprep.subr.mxu0 0.0
    %v10687 = vand.u32 %v10085, 4294901760
    %10688 = vmatpush1.xpose.msra.mxu0 %v10687
    %10689 = vmatprep.subr.mxu0 0.0
    %v10690 = vand.u32 %v10088, 4294901760
    %10691 = vmatpush1.xpose.msra.mxu0 %v10690
    %10692 = vmatprep.subr.mxu0 0.0
    %v10693 = vand.u32 %v10091, 4294901760
    %10694 = vmatpush1.xpose.msra.mxu0 %v10693
    %10695 = vmatprep.subr.mxu0 0.0
    %v10696 = vand.u32 %v10094, 4294901760
    %10697 = vmatpush1.xpose.msra.mxu0 %v10696
    %10698 = vmatprep.subr.mxu0 0.0
    %v10699 = vand.u32 %v10097, 4294901760
    %10700 = vmatpush1.xpose.msra.mxu0 %v10699
    %10701 = vmatprep.subr.mxu0 0.0
    %v10702 = vand.u32 %v10100, 4294901760
    %10703 = vmatpush1.xpose.msra.mxu0 %v10702
    %10704 = vmatprep.subr.mxu0 0.0
    %v10705 = vand.u32 %v10103, 4294901760
    %10706 = vmatpush1.xpose.msra.mxu0 %v10705
    %10707 = vmatprep.subr.mxu0 0.0
    %v10708 = vand.u32 %v10106, 4294901760
    %10709 = vmatpush1.xpose.msra.mxu0 %v10708
    %10710 = vmatprep.subr.mxu0 0.0
    %v10711 = vand.u32 %v10109, 4294901760
    %10712 = vmatpush1.xpose.msra.mxu0 %v10711
    %10713 = vmatprep.subr.mxu0 0.0
    %v10714 = vand.u32 %v10112, 4294901760
    %10715 = vmatpush1.xpose.msra.mxu0 %v10714
    %10716 = vmatprep.subr.mxu0 0.0
    %v10717 = vand.u32 %v10115, 4294901760
    %10718 = vmatpush1.xpose.msra.mxu0 %v10717
    %10719 = vmatprep.subr.mxu0 0.0
    %v10720 = vand.u32 %v10118, 4294901760
    %10721 = vmatpush1.xpose.msra.mxu0 %v10720
    %10722 = vmatprep.subr.mxu0 0.0
    %v10723 = vand.u32 %v10121, 4294901760
    %10724 = vmatpush1.xpose.msra.mxu0 %v10723
    %10725 = vmatprep.subr.mxu0 0.0
    %v10726 = vand.u32 %v10124, 4294901760
    %10727 = vmatpush1.xpose.msra.mxu0 %v10726
    %10728 = vmatprep.subr.mxu0 0.0
    %v10729 = vand.u32 %v10127, 4294901760
    %10730 = vmatpush1.xpose.msra.mxu0 %v10729
    %10731 = vmatprep.subr.mxu0 0.0
    %10732 = vmatpush1.xpose.msra.mxu0 0.0
    %10733 = vmatprep.subr.mxu0 0.0
    %10734 = vmatpush1.xpose.msra.mxu0 0.0
    %10735 = vmatprep.subr.mxu0 0.0
    %10736 = vmatpush1.xpose.msra.mxu0 0.0
    %10737 = vmatprep.subr.mxu0 0.0
    %10738 = vmatpush1.xpose.msra.mxu0 0.0
    %10739 = vmatprep.subr.mxu0 0.0
    %10740 = vmatpush1.xpose.msra.mxu0 0.0
    %10741 = vmatprep.subr.mxu0 0.0
    %10742 = vmatpush1.xpose.msra.mxu0 0.0
    %10743 = vmatprep.subr.mxu0 0.0
    %10744 = vmatpush1.xpose.msra.mxu0 0.0
    %10745 = vmatprep.subr.mxu0 0.0
    %10746 = vmatpush1.xpose.msra.mxu0 0.0
    %10747 = vmatprep.subr.mxu0 0.0
    %10748 = vmatpush1.xpose.msra.mxu0 0.0
    %10749 = vmatprep.subr.mxu0 0.0
    %10750 = vmatpush1.xpose.msra.mxu0 0.0
    %10751 = vmatprep.subr.mxu0 0.0
    %10752 = vmatpush1.xpose.msra.mxu0 0.0
    %10753 = vmatprep.subr.mxu0 0.0
    %10754 = vmatpush1.xpose.msra.mxu0 0.0
    %10755 = vmatprep.subr.mxu0 0.0
    %10756 = vmatpush1.xpose.msra.mxu0 0.0
    %10757 = vmatprep.subr.mxu0 0.0
    %10758 = vmatpush1.xpose.msra.mxu0 0.0
    %10759 = vmatprep.subr.mxu0 0.0
    %10760 = vmatpush1.xpose.msra.mxu0 0.0
    %10761 = vmatprep.subr.mxu0 0.0
    %10762 = vmatpush1.xpose.msra.mxu0 0.0
    %10763 = vmatprep.mubr.f32.mxu0 0.0
    %v10764 = vand.u32 %v67, 4294901760
    %10765 = vmatmul.mubr.f32.gmra.mrb[0].mxu0 %v10764
    %v10766 = vpop.f32.mrb[0].mxu0
    %v10767 = vadd.f32 %v10680, %v10766
    %v10768 = vpop.f32.mrb[0].mxu0
    %10769 = vdwg.mxu0
    %v10771 = vsel %vm758, %v10049, 0
    %v10774 = vsel %vm758, %v10050, 0
    %v10777 = vsel %vm758, %v10051, 0
    %v10780 = vsel %vm758, %v10052, 0
    %v10783 = vsel %vm758, %v10053, 0
    %v10786 = vsel %vm758, %v10054, 0
    %v10789 = vsel %vm758, %v10055, 0
    %v10792 = vsel %vm758, %v10056, 0
    %v10795 = vsel %vm758, %v10057, 0
    %v10798 = vsel %vm758, %v10058, 0
    %v10801 = vsel %vm758, %v10059, 0
    %v10804 = vsel %vm758, %v10060, 0
    %v10807 = vsel %vm758, %v10061, 0
    %v10810 = vsel %vm758, %v10062, 0
    %v10813 = vsel %vm758, %v10063, 0
    %v10816 = vsel %vm758, %v10064, 0
    %10818 = vmatprep.subr.mxu0 0.0
    %v10819 = vand.u32 %v10771, 4294901760
    %10820 = vmatpush1.xpose.msra.mxu0 %v10819
    %10821 = vmatprep.subr.mxu0 0.0
    %v10822 = vand.u32 %v10774, 4294901760
    %10823 = vmatpush1.xpose.msra.mxu0 %v10822
    %10824 = vmatprep.subr.mxu0 0.0
    %v10825 = vand.u32 %v10777, 4294901760
    %10826 = vmatpush1.xpose.msra.mxu0 %v10825
    %10827 = vmatprep.subr.mxu0 0.0
    %v10828 = vand.u32 %v10780, 4294901760
    %10829 = vmatpush1.xpose.msra.mxu0 %v10828
    %10830 = vmatprep.subr.mxu0 0.0
    %v10831 = vand.u32 %v10783, 4294901760
    %10832 = vmatpush1.xpose.msra.mxu0 %v10831
    %10833 = vmatprep.subr.mxu0 0.0
    %v10834 = vand.u32 %v10786, 4294901760
    %10835 = vmatpush1.xpose.msra.mxu0 %v10834
    %10836 = vmatprep.subr.mxu0 0.0
    %v10837 = vand.u32 %v10789, 4294901760
    %10838 = vmatpush1.xpose.msra.mxu0 %v10837
    %10839 = vmatprep.subr.mxu0 0.0
    %v10840 = vand.u32 %v10792, 4294901760
    %10841 = vmatpush1.xpose.msra.mxu0 %v10840
    %10842 = vmatprep.subr.mxu0 0.0
    %v10843 = vand.u32 %v10795, 4294901760
    %10844 = vmatpush1.xpose.msra.mxu0 %v10843
    %10845 = vmatprep.subr.mxu0 0.0
    %v10846 = vand.u32 %v10798, 4294901760
    %10847 = vmatpush1.xpose.msra.mxu0 %v10846
    %10848 = vmatprep.subr.mxu0 0.0
    %v10849 = vand.u32 %v10801, 4294901760
    %10850 = vmatpush1.xpose.msra.mxu0 %v10849
    %10851 = vmatprep.subr.mxu0 0.0
    %v10852 = vand.u32 %v10804, 4294901760
    %10853 = vmatpush1.xpose.msra.mxu0 %v10852
    %10854 = vmatprep.subr.mxu0 0.0
    %v10855 = vand.u32 %v10807, 4294901760
    %10856 = vmatpush1.xpose.msra.mxu0 %v10855
    %10857 = vmatprep.subr.mxu0 0.0
    %v10858 = vand.u32 %v10810, 4294901760
    %10859 = vmatpush1.xpose.msra.mxu0 %v10858
    %10860 = vmatprep.subr.mxu0 0.0
    %v10861 = vand.u32 %v10813, 4294901760
    %10862 = vmatpush1.xpose.msra.mxu0 %v10861
    %10863 = vmatprep.subr.mxu0 0.0
    %v10864 = vand.u32 %v10816, 4294901760
    %10865 = vmatpush1.xpose.msra.mxu0 %v10864
    %10866 = vmatprep.subr.mxu0 0.0
    %10867 = vmatpush1.xpose.msra.mxu0 0.0
    %10868 = vmatprep.subr.mxu0 0.0
    %10869 = vmatpush1.xpose.msra.mxu0 0.0
    %10870 = vmatprep.subr.mxu0 0.0
    %10871 = vmatpush1.xpose.msra.mxu0 0.0
    %10872 = vmatprep.subr.mxu0 0.0
    %10873 = vmatpush1.xpose.msra.mxu0 0.0
    %10874 = vmatprep.subr.mxu0 0.0
    %10875 = vmatpush1.xpose.msra.mxu0 0.0
    %10876 = vmatprep.subr.mxu0 0.0
    %10877 = vmatpush1.xpose.msra.mxu0 0.0
    %10878 = vmatprep.subr.mxu0 0.0
    %10879 = vmatpush1.xpose.msra.mxu0 0.0
    %10880 = vmatprep.subr.mxu0 0.0
    %10881 = vmatpush1.xpose.msra.mxu0 0.0
    %10882 = vmatprep.subr.mxu0 0.0
    %10883 = vmatpush1.xpose.msra.mxu0 0.0
    %10884 = vmatprep.subr.mxu0 0.0
    %10885 = vmatpush1.xpose.msra.mxu0 0.0
    %10886 = vmatprep.subr.mxu0 0.0
    %10887 = vmatpush1.xpose.msra.mxu0 0.0
    %10888 = vmatprep.subr.mxu0 0.0
    %10889 = vmatpush1.xpose.msra.mxu0 0.0
    %10890 = vmatprep.subr.mxu0 0.0
    %10891 = vmatpush1.xpose.msra.mxu0 0.0
    %10892 = vmatprep.subr.mxu0 0.0
    %10893 = vmatpush1.xpose.msra.mxu0 0.0
    %10894 = vmatprep.subr.mxu0 0.0
    %10895 = vmatpush1.xpose.msra.mxu0 0.0
    %10896 = vmatprep.subr.mxu0 0.0
    %10897 = vmatpush1.xpose.msra.mxu0 0.0
    %10898 = vmatprep.mubr.f32.mxu0 0.0
    %v10899 = vand.u32 %v760, 4294901760
    %v10900 = vsub.f32 %v760, %v10899
    %v10901 = vand.u32 %v10900, 4294901760
    %v10902 = vsub.f32 %v10900, %v10901
    %v10903 = vand.u32 %v10902, 4294901760
    %10904 = vmatmul.mubr.f32.gmra.mrb[0].mxu0 %v10903
    %v10905 = vpop.f32.mrb[0].mxu0
    %v10906 = vadd.f32 %v10767, %v10905
    %v10907 = vpop.f32.mrb[0].mxu0
    %10908 = vdwg.mxu0
    %10909 = vmatprep.subr.mxu0 0.0
    %v10910 = vand.u32 %v10771, 4294901760
    %v10911 = vsub.f32 %v10771, %v10910
    %v10912 = vand.u32 %v10911, 4294901760
    %v10913 = vsub.f32 %v10911, %v10912
    %v10914 = vand.u32 %v10913, 4294901760
    %10915 = vmatpush1.xpose.msra.mxu0 %v10914
    %10916 = vmatprep.subr.mxu0 0.0
    %v10917 = vand.u32 %v10774, 4294901760
    %v10918 = vsub.f32 %v10774, %v10917
    %v10919 = vand.u32 %v10918, 4294901760
    %v10920 = vsub.f32 %v10918, %v10919
    %v10921 = vand.u32 %v10920, 4294901760
    %10922 = vmatpush1.xpose.msra.mxu0 %v10921
    %10923 = vmatprep.subr.mxu0 0.0
    %v10924 = vand.u32 %v10777, 4294901760
    %v10925 = vsub.f32 %v10777, %v10924
    %v10926 = vand.u32 %v10925, 4294901760
    %v10927 = vsub.f32 %v10925, %v10926
    %v10928 = vand.u32 %v10927, 4294901760
    %10929 = vmatpush1.xpose.msra.mxu0 %v10928
    %10930 = vmatprep.subr.mxu0 0.0
    %v10931 = vand.u32 %v10780, 4294901760
    %v10932 = vsub.f32 %v10780, %v10931
    %v10933 = vand.u32 %v10932, 4294901760
    %v10934 = vsub.f32 %v10932, %v10933
    %v10935 = vand.u32 %v10934, 4294901760
    %10936 = vmatpush1.xpose.msra.mxu0 %v10935
    %10937 = vmatprep.subr.mxu0 0.0
    %v10938 = vand.u32 %v10783, 4294901760
    %v10939 = vsub.f32 %v10783, %v10938
    %v10940 = vand.u32 %v10939, 4294901760
    %v10941 = vsub.f32 %v10939, %v10940
    %v10942 = vand.u32 %v10941, 4294901760
    %10943 = vmatpush1.xpose.msra.mxu0 %v10942
    %10944 = vmatprep.subr.mxu0 0.0
    %v10945 = vand.u32 %v10786, 4294901760
    %v10946 = vsub.f32 %v10786, %v10945
    %v10947 = vand.u32 %v10946, 4294901760
    %v10948 = vsub.f32 %v10946, %v10947
    %v10949 = vand.u32 %v10948, 4294901760
    %10950 = vmatpush1.xpose.msra.mxu0 %v10949
    %10951 = vmatprep.subr.mxu0 0.0
    %v10952 = vand.u32 %v10789, 4294901760
    %v10953 = vsub.f32 %v10789, %v10952
    %v10954 = vand.u32 %v10953, 4294901760
    %v10955 = vsub.f32 %v10953, %v10954
    %v10956 = vand.u32 %v10955, 4294901760
    %10957 = vmatpush1.xpose.msra.mxu0 %v10956
    %10958 = vmatprep.subr.mxu0 0.0
    %v10959 = vand.u32 %v10792, 4294901760
    %v10960 = vsub.f32 %v10792, %v10959
    %v10961 = vand.u32 %v10960, 4294901760
    %v10962 = vsub.f32 %v10960, %v10961
    %v10963 = vand.u32 %v10962, 4294901760
    %10964 = vmatpush1.xpose.msra.mxu0 %v10963
    %10965 = vmatprep.subr.mxu0 0.0
    %v10966 = vand.u32 %v10795, 4294901760
    %v10967 = vsub.f32 %v10795, %v10966
    %v10968 = vand.u32 %v10967, 4294901760
    %v10969 = vsub.f32 %v10967, %v10968
    %v10970 = vand.u32 %v10969, 4294901760
    %10971 = vmatpush1.xpose.msra.mxu0 %v10970
    %10972 = vmatprep.subr.mxu0 0.0
    %v10973 = vand.u32 %v10798, 4294901760
    %v10974 = vsub.f32 %v10798, %v10973
    %v10975 = vand.u32 %v10974, 4294901760
    %v10976 = vsub.f32 %v10974, %v10975
    %v10977 = vand.u32 %v10976, 4294901760
    %10978 = vmatpush1.xpose.msra.mxu0 %v10977
    %10979 = vmatprep.subr.mxu0 0.0
    %v10980 = vand.u32 %v10801, 4294901760
    %v10981 = vsub.f32 %v10801, %v10980
    %v10982 = vand.u32 %v10981, 4294901760
    %v10983 = vsub.f32 %v10981, %v10982
    %v10984 = vand.u32 %v10983, 4294901760
    %10985 = vmatpush1.xpose.msra.mxu0 %v10984
    %10986 = vmatprep.subr.mxu0 0.0
    %v10987 = vand.u32 %v10804, 4294901760
    %v10988 = vsub.f32 %v10804, %v10987
    %v10989 = vand.u32 %v10988, 4294901760
    %v10990 = vsub.f32 %v10988, %v10989
    %v10991 = vand.u32 %v10990, 4294901760
    %10992 = vmatpush1.xpose.msra.mxu0 %v10991
    %10993 = vmatprep.subr.mxu0 0.0
    %v10994 = vand.u32 %v10807, 4294901760
    %v10995 = vsub.f32 %v10807, %v10994
    %v10996 = vand.u32 %v10995, 4294901760
    %v10997 = vsub.f32 %v10995, %v10996
    %v10998 = vand.u32 %v10997, 4294901760
    %10999 = vmatpush1.xpose.msra.mxu0 %v10998
    %11000 = vmatprep.subr.mxu0 0.0
    %v11001 = vand.u32 %v10810, 4294901760
    %v11002 = vsub.f32 %v10810, %v11001
    %v11003 = vand.u32 %v11002, 4294901760
    %v11004 = vsub.f32 %v11002, %v11003
    %v11005 = vand.u32 %v11004, 4294901760
    %11006 = vmatpush1.xpose.msra.mxu0 %v11005
    %11007 = vmatprep.subr.mxu0 0.0
    %v11008 = vand.u32 %v10813, 4294901760
    %v11009 = vsub.f32 %v10813, %v11008
    %v11010 = vand.u32 %v11009, 4294901760
    %v11011 = vsub.f32 %v11009, %v11010
    %v11012 = vand.u32 %v11011, 4294901760
    %11013 = vmatpush1.xpose.msra.mxu0 %v11012
    %11014 = vmatprep.subr.mxu0 0.0
    %v11015 = vand.u32 %v10816, 4294901760
    %v11016 = vsub.f32 %v10816, %v11015
    %v11017 = vand.u32 %v11016, 4294901760
    %v11018 = vsub.f32 %v11016, %v11017
    %v11019 = vand.u32 %v11018, 4294901760
    %11020 = vmatpush1.xpose.msra.mxu0 %v11019
    %11021 = vmatprep.subr.mxu0 0.0
    %11022 = vmatpush1.xpose.msra.mxu0 0.0
    %11023 = vmatprep.subr.mxu0 0.0
    %11024 = vmatpush1.xpose.msra.mxu0 0.0
    %11025 = vmatprep.subr.mxu0 0.0
    %11026 = vmatpush1.xpose.msra.mxu0 0.0
    %11027 = vmatprep.subr.mxu0 0.0
    %11028 = vmatpush1.xpose.msra.mxu0 0.0
    %11029 = vmatprep.subr.mxu0 0.0
    %11030 = vmatpush1.xpose.msra.mxu0 0.0
    %11031 = vmatprep.subr.mxu0 0.0
    %11032 = vmatpush1.xpose.msra.mxu0 0.0
    %11033 = vmatprep.subr.mxu0 0.0
    %11034 = vmatpush1.xpose.msra.mxu0 0.0
    %11035 = vmatprep.subr.mxu0 0.0
    %11036 = vmatpush1.xpose.msra.mxu0 0.0
    %11037 = vmatprep.subr.mxu0 0.0
    %11038 = vmatpush1.xpose.msra.mxu0 0.0
    %11039 = vmatprep.subr.mxu0 0.0
    %11040 = vmatpush1.xpose.msra.mxu0 0.0
    %11041 = vmatprep.subr.mxu0 0.0
    %11042 = vmatpush1.xpose.msra.mxu0 0.0
    %11043 = vmatprep.subr.mxu0 0.0
    %11044 = vmatpush1.xpose.msra.mxu0 0.0
    %11045 = vmatprep.subr.mxu0 0.0
    %11046 = vmatpush1.xpose.msra.mxu0 0.0
    %11047 = vmatprep.subr.mxu0 0.0
    %11048 = vmatpush1.xpose.msra.mxu0 0.0
    %11049 = vmatprep.subr.mxu0 0.0
    %11050 = vmatpush1.xpose.msra.mxu0 0.0
    %11051 = vmatprep.subr.mxu0 0.0
    %11052 = vmatpush1.xpose.msra.mxu0 0.0
    %11053 = vmatprep.mubr.f32.mxu0 0.0
    %v11054 = vand.u32 %v760, 4294901760
    %11055 = vmatmul.mubr.f32.gmra.mrb[0].mxu0 %v11054
    %v11056 = vpop.f32.mrb[0].mxu0
    %v11057 = vadd.f32 %v10906, %v11056
    %v11058 = vpop.f32.mrb[0].mxu0
    %11059 = vdwg.mxu0
    %11060 = vmatprep.subr.mxu0 0.0
    %v11061 = vand.u32 %v10771, 4294901760
    %v11062 = vsub.f32 %v10771, %v11061
    %11063 = vmatpush1.xpose.msra.mxu0 %v11062
    %11064 = vmatprep.subr.mxu0 0.0
    %v11065 = vand.u32 %v10774, 4294901760
    %v11066 = vsub.f32 %v10774, %v11065
    %11067 = vmatpush1.xpose.msra.mxu0 %v11066
    %11068 = vmatprep.subr.mxu0 0.0
    %v11069 = vand.u32 %v10777, 4294901760
    %v11070 = vsub.f32 %v10777, %v11069
    %11071 = vmatpush1.xpose.msra.mxu0 %v11070
    %11072 = vmatprep.subr.mxu0 0.0
    %v11073 = vand.u32 %v10780, 4294901760
    %v11074 = vsub.f32 %v10780, %v11073
    %11075 = vmatpush1.xpose.msra.mxu0 %v11074
    %11076 = vmatprep.subr.mxu0 0.0
    %v11077 = vand.u32 %v10783, 4294901760
    %v11078 = vsub.f32 %v10783, %v11077
    %11079 = vmatpush1.xpose.msra.mxu0 %v11078
    %11080 = vmatprep.subr.mxu0 0.0
    %v11081 = vand.u32 %v10786, 4294901760
    %v11082 = vsub.f32 %v10786, %v11081
    %11083 = vmatpush1.xpose.msra.mxu0 %v11082
    %11084 = vmatprep.subr.mxu0 0.0
    %v11085 = vand.u32 %v10789, 4294901760
    %v11086 = vsub.f32 %v10789, %v11085
    %11087 = vmatpush1.xpose.msra.mxu0 %v11086
    %11088 = vmatprep.subr.mxu0 0.0
    %v11089 = vand.u32 %v10792, 4294901760
    %v11090 = vsub.f32 %v10792, %v11089
    %11091 = vmatpush1.xpose.msra.mxu0 %v11090
    %11092 = vmatprep.subr.mxu0 0.0
    %v11093 = vand.u32 %v10795, 4294901760
    %v11094 = vsub.f32 %v10795, %v11093
    %11095 = vmatpush1.xpose.msra.mxu0 %v11094
    %11096 = vmatprep.subr.mxu0 0.0
    %v11097 = vand.u32 %v10798, 4294901760
    %v11098 = vsub.f32 %v10798, %v11097
    %11099 = vmatpush1.xpose.msra.mxu0 %v11098
    %11100 = vmatprep.subr.mxu0 0.0
    %v11101 = vand.u32 %v10801, 4294901760
    %v11102 = vsub.f32 %v10801, %v11101
    %11103 = vmatpush1.xpose.msra.mxu0 %v11102
    %11104 = vmatprep.subr.mxu0 0.0
    %v11105 = vand.u32 %v10804, 4294901760
    %v11106 = vsub.f32 %v10804, %v11105
    %11107 = vmatpush1.xpose.msra.mxu0 %v11106
    %11108 = vmatprep.subr.mxu0 0.0
    %v11109 = vand.u32 %v10807, 4294901760
    %v11110 = vsub.f32 %v10807, %v11109
    %11111 = vmatpush1.xpose.msra.mxu0 %v11110
    %11112 = vmatprep.subr.mxu0 0.0
    %v11113 = vand.u32 %v10810, 4294901760
    %v11114 = vsub.f32 %v10810, %v11113
    %11115 = vmatpush1.xpose.msra.mxu0 %v11114
    %11116 = vmatprep.subr.mxu0 0.0
    %v11117 = vand.u32 %v10813, 4294901760
    %v11118 = vsub.f32 %v10813, %v11117
    %11119 = vmatpush1.xpose.msra.mxu0 %v11118
    %11120 = vmatprep.subr.mxu0 0.0
    %v11121 = vand.u32 %v10816, 4294901760
    %v11122 = vsub.f32 %v10816, %v11121
    %11123 = vmatpush1.xpose.msra.mxu0 %v11122
    %11124 = vmatprep.subr.mxu0 0.0
    %11125 = vmatpush1.xpose.msra.mxu0 0.0
    %11126 = vmatprep.subr.mxu0 0.0
    %11127 = vmatpush1.xpose.msra.mxu0 0.0
    %11128 = vmatprep.subr.mxu0 0.0
    %11129 = vmatpush1.xpose.msra.mxu0 0.0
    %11130 = vmatprep.subr.mxu0 0.0
    %11131 = vmatpush1.xpose.msra.mxu0 0.0
    %11132 = vmatprep.subr.mxu0 0.0
    %11133 = vmatpush1.xpose.msra.mxu0 0.0
    %11134 = vmatprep.subr.mxu0 0.0
    %11135 = vmatpush1.xpose.msra.mxu0 0.0
    %11136 = vmatprep.subr.mxu0 0.0
    %11137 = vmatpush1.xpose.msra.mxu0 0.0
    %11138 = vmatprep.subr.mxu0 0.0
    %11139 = vmatpush1.xpose.msra.mxu0 0.0
    %11140 = vmatprep.subr.mxu0 0.0
    %11141 = vmatpush1.xpose.msra.mxu0 0.0
    %11142 = vmatprep.subr.mxu0 0.0
    %11143 = vmatpush1.xpose.msra.mxu0 0.0
    %11144 = vmatprep.subr.mxu0 0.0
    %11145 = vmatpush1.xpose.msra.mxu0 0.0
    %11146 = vmatprep.subr.mxu0 0.0
    %11147 = vmatpush1.xpose.msra.mxu0 0.0
    %11148 = vmatprep.subr.mxu0 0.0
    %11149 = vmatpush1.xpose.msra.mxu0 0.0
    %11150 = vmatprep.subr.mxu0 0.0
    %11151 = vmatpush1.xpose.msra.mxu0 0.0
    %11152 = vmatprep.subr.mxu0 0.0
    %11153 = vmatpush1.xpose.msra.mxu0 0.0
    %11154 = vmatprep.subr.mxu0 0.0
    %11155 = vmatpush1.xpose.msra.mxu0 0.0
    %11156 = vmatprep.mubr.f32.mxu0 0.0
    %v11157 = vand.u32 %v760, 4294901760
    %v11158 = vsub.f32 %v760, %v11157
    %11159 = vmatmul.mubr.f32.gmra.mrb[0].mxu0 %v11158
    %v11160 = vpop.f32.mrb[0].mxu0
    %v11161 = vadd.f32 %v11057, %v11160
    %v11162 = vpop.f32.mrb[0].mxu0
    %11163 = vdwg.mxu0
    %11164 = vmatprep.subr.mxu0 0.0
    %v11165 = vand.u32 %v10771, 4294901760
    %11166 = vmatpush1.xpose.msra.mxu0 %v11165
    %11167 = vmatprep.subr.mxu0 0.0
    %v11168 = vand.u32 %v10774, 4294901760
    %11169 = vmatpush1.xpose.msra.mxu0 %v11168
    %11170 = vmatprep.subr.mxu0 0.0
    %v11171 = vand.u32 %v10777, 4294901760
    %11172 = vmatpush1.xpose.msra.mxu0 %v11171
    %11173 = vmatprep.subr.mxu0 0.0
    %v11174 = vand.u32 %v10780, 4294901760
    %11175 = vmatpush1.xpose.msra.mxu0 %v11174
    %11176 = vmatprep.subr.mxu0 0.0
    %v11177 = vand.u32 %v10783, 4294901760
    %11178 = vmatpush1.xpose.msra.mxu0 %v11177
    %11179 = vmatprep.subr.mxu0 0.0
    %v11180 = vand.u32 %v10786, 4294901760
    %11181 = vmatpush1.xpose.msra.mxu0 %v11180
    %11182 = vmatprep.subr.mxu0 0.0
    %v11183 = vand.u32 %v10789, 4294901760
    %11184 = vmatpush1.xpose.msra.mxu0 %v11183
    %11185 = vmatprep.subr.mxu0 0.0
    %v11186 = vand.u32 %v10792, 4294901760
    %11187 = vmatpush1.xpose.msra.mxu0 %v11186
    %11188 = vmatprep.subr.mxu0 0.0
    %v11189 = vand.u32 %v10795, 4294901760
    %11190 = vmatpush1.xpose.msra.mxu0 %v11189
    %11191 = vmatprep.subr.mxu0 0.0
    %v11192 = vand.u32 %v10798, 4294901760
    %11193 = vmatpush1.xpose.msra.mxu0 %v11192
    %11194 = vmatprep.subr.mxu0 0.0
    %v11195 = vand.u32 %v10801, 4294901760
    %11196 = vmatpush1.xpose.msra.mxu0 %v11195
    %11197 = vmatprep.subr.mxu0 0.0
    %v11198 = vand.u32 %v10804, 4294901760
    %11199 = vmatpush1.xpose.msra.mxu0 %v11198
    %11200 = vmatprep.subr.mxu0 0.0
    %v11201 = vand.u32 %v10807, 4294901760
    %11202 = vmatpush1.xpose.msra.mxu0 %v11201
    %11203 = vmatprep.subr.mxu0 0.0
    %v11204 = vand.u32 %v10810, 4294901760
    %11205 = vmatpush1.xpose.msra.mxu0 %v11204
    %11206 = vmatprep.subr.mxu0 0.0
    %v11207 = vand.u32 %v10813, 4294901760
    %11208 = vmatpush1.xpose.msra.mxu0 %v11207
    %11209 = vmatprep.subr.mxu0 0.0
    %v11210 = vand.u32 %v10816, 4294901760
    %11211 = vmatpush1.xpose.msra.mxu0 %v11210
    %11212 = vmatprep.subr.mxu0 0.0
    %11213 = vmatpush1.xpose.msra.mxu0 0.0
    %11214 = vmatprep.subr.mxu0 0.0
    %11215 = vmatpush1.xpose.msra.mxu0 0.0
    %11216 = vmatprep.subr.mxu0 0.0
    %11217 = vmatpush1.xpose.msra.mxu0 0.0
    %11218 = vmatprep.subr.mxu0 0.0
    %11219 = vmatpush1.xpose.msra.mxu0 0.0
    %11220 = vmatprep.subr.mxu0 0.0
    %11221 = vmatpush1.xpose.msra.mxu0 0.0
    %11222 = vmatprep.subr.mxu0 0.0
    %11223 = vmatpush1.xpose.msra.mxu0 0.0
    %11224 = vmatprep.subr.mxu0 0.0
    %11225 = vmatpush1.xpose.msra.mxu0 0.0
    %11226 = vmatprep.subr.mxu0 0.0
    %11227 = vmatpush1.xpose.msra.mxu0 0.0
    %11228 = vmatprep.subr.mxu0 0.0
    %11229 = vmatpush1.xpose.msra.mxu0 0.0
    %11230 = vmatprep.subr.mxu0 0.0
    %11231 = vmatpush1.xpose.msra.mxu0 0.0
    %11232 = vmatprep.subr.mxu0 0.0
    %11233 = vmatpush1.xpose.msra.mxu0 0.0
    %11234 = vmatprep.subr.mxu0 0.0
    %11235 = vmatpush1.xpose.msra.mxu0 0.0
    %11236 = vmatprep.subr.mxu0 0.0
    %11237 = vmatpush1.xpose.msra.mxu0 0.0
    %11238 = vmatprep.subr.mxu0 0.0
    %11239 = vmatpush1.xpose.msra.mxu0 0.0
    %11240 = vmatprep.subr.mxu0 0.0
    %11241 = vmatpush1.xpose.msra.mxu0 0.0
    %11242 = vmatprep.subr.mxu0 0.0
    %11243 = vmatpush1.xpose.msra.mxu0 0.0
    %11244 = vmatprep.mubr.f32.mxu0 0.0
    %v11245 = vand.u32 %v760, 4294901760
    %v11246 = vsub.f32 %v760, %v11245
    %v11247 = vand.u32 %v11246, 4294901760
    %11248 = vmatmul.mubr.f32.gmra.mrb[0].mxu0 %v11247
    %v11249 = vpop.f32.mrb[0].mxu0
    %v11250 = vadd.f32 %v11161, %v11249
    %v11251 = vpop.f32.mrb[0].mxu0
    %11252 = vdwg.mxu0
    %11253 = vmatprep.subr.mxu0 0.0
    %v11254 = vand.u32 %v10771, 4294901760
    %v11255 = vsub.f32 %v10771, %v11254
    %v11256 = vand.u32 %v11255, 4294901760
    %11257 = vmatpush1.xpose.msra.mxu0 %v11256
    %11258 = vmatprep.subr.mxu0 0.0
    %v11259 = vand.u32 %v10774, 4294901760
    %v11260 = vsub.f32 %v10774, %v11259
    %v11261 = vand.u32 %v11260, 4294901760
    %11262 = vmatpush1.xpose.msra.mxu0 %v11261
    %11263 = vmatprep.subr.mxu0 0.0
    %v11264 = vand.u32 %v10777, 4294901760
    %v11265 = vsub.f32 %v10777, %v11264
    %v11266 = vand.u32 %v11265, 4294901760
    %11267 = vmatpush1.xpose.msra.mxu0 %v11266
    %11268 = vmatprep.subr.mxu0 0.0
    %v11269 = vand.u32 %v10780, 4294901760
    %v11270 = vsub.f32 %v10780, %v11269
    %v11271 = vand.u32 %v11270, 4294901760
    %11272 = vmatpush1.xpose.msra.mxu0 %v11271
    %11273 = vmatprep.subr.mxu0 0.0
    %v11274 = vand.u32 %v10783, 4294901760
    %v11275 = vsub.f32 %v10783, %v11274
    %v11276 = vand.u32 %v11275, 4294901760
    %11277 = vmatpush1.xpose.msra.mxu0 %v11276
    %11278 = vmatprep.subr.mxu0 0.0
    %v11279 = vand.u32 %v10786, 4294901760
    %v11280 = vsub.f32 %v10786, %v11279
    %v11281 = vand.u32 %v11280, 4294901760
    %11282 = vmatpush1.xpose.msra.mxu0 %v11281
    %11283 = vmatprep.subr.mxu0 0.0
    %v11284 = vand.u32 %v10789, 4294901760
    %v11285 = vsub.f32 %v10789, %v11284
    %v11286 = vand.u32 %v11285, 4294901760
    %11287 = vmatpush1.xpose.msra.mxu0 %v11286
    %11288 = vmatprep.subr.mxu0 0.0
    %v11289 = vand.u32 %v10792, 4294901760
    %v11290 = vsub.f32 %v10792, %v11289
    %v11291 = vand.u32 %v11290, 4294901760
    %11292 = vmatpush1.xpose.msra.mxu0 %v11291
    %11293 = vmatprep.subr.mxu0 0.0
    %v11294 = vand.u32 %v10795, 4294901760
    %v11295 = vsub.f32 %v10795, %v11294
    %v11296 = vand.u32 %v11295, 4294901760
    %11297 = vmatpush1.xpose.msra.mxu0 %v11296
    %11298 = vmatprep.subr.mxu0 0.0
    %v11299 = vand.u32 %v10798, 4294901760
    %v11300 = vsub.f32 %v10798, %v11299
    %v11301 = vand.u32 %v11300, 4294901760
    %11302 = vmatpush1.xpose.msra.mxu0 %v11301
    %11303 = vmatprep.subr.mxu0 0.0
    %v11304 = vand.u32 %v10801, 4294901760
    %v11305 = vsub.f32 %v10801, %v11304
    %v11306 = vand.u32 %v11305, 4294901760
    %11307 = vmatpush1.xpose.msra.mxu0 %v11306
    %11308 = vmatprep.subr.mxu0 0.0
    %v11309 = vand.u32 %v10804, 4294901760
    %v11310 = vsub.f32 %v10804, %v11309
    %v11311 = vand.u32 %v11310, 4294901760
    %11312 = vmatpush1.xpose.msra.mxu0 %v11311
    %11313 = vmatprep.subr.mxu0 0.0
    %v11314 = vand.u32 %v10807, 4294901760
    %v11315 = vsub.f32 %v10807, %v11314
    %v11316 = vand.u32 %v11315, 4294901760
    %11317 = vmatpush1.xpose.msra.mxu0 %v11316
    %11318 = vmatprep.subr.mxu0 0.0
    %v11319 = vand.u32 %v10810, 4294901760
    %v11320 = vsub.f32 %v10810, %v11319
    %v11321 = vand.u32 %v11320, 4294901760
    %11322 = vmatpush1.xpose.msra.mxu0 %v11321
    %11323 = vmatprep.subr.mxu0 0.0
    %v11324 = vand.u32 %v10813, 4294901760
    %v11325 = vsub.f32 %v10813, %v11324
    %v11326 = vand.u32 %v11325, 4294901760
    %11327 = vmatpush1.xpose.msra.mxu0 %v11326
    %11328 = vmatprep.subr.mxu0 0.0
    %v11329 = vand.u32 %v10816, 4294901760
    %v11330 = vsub.f32 %v10816, %v11329
    %v11331 = vand.u32 %v11330, 4294901760
    %11332 = vmatpush1.xpose.msra.mxu0 %v11331
    %11333 = vmatprep.subr.mxu0 0.0
    %11334 = vmatpush1.xpose.msra.mxu0 0.0
    %11335 = vmatprep.subr.mxu0 0.0
    %11336 = vmatpush1.xpose.msra.mxu0 0.0
    %11337 = vmatprep.subr.mxu0 0.0
    %11338 = vmatpush1.xpose.msra.mxu0 0.0
    %11339 = vmatprep.subr.mxu0 0.0
    %11340 = vmatpush1.xpose.msra.mxu0 0.0
    %11341 = vmatprep.subr.mxu0 0.0
    %11342 = vmatpush1.xpose.msra.mxu0 0.0
    %11343 = vmatprep.subr.mxu0 0.0
    %11344 = vmatpush1.xpose.msra.mxu0 0.0
    %11345 = vmatprep.subr.mxu0 0.0
    %11346 = vmatpush1.xpose.msra.mxu0 0.0
    %11347 = vmatprep.subr.mxu0 0.0
    %11348 = vmatpush1.xpose.msra.mxu0 0.0
    %11349 = vmatprep.subr.mxu0 0.0
    %11350 = vmatpush1.xpose.msra.mxu0 0.0
    %11351 = vmatprep.subr.mxu0 0.0
    %11352 = vmatpush1.xpose.msra.mxu0 0.0
    %11353 = vmatprep.subr.mxu0 0.0
    %11354 = vmatpush1.xpose.msra.mxu0 0.0
    %11355 = vmatprep.subr.mxu0 0.0
    %11356 = vmatpush1.xpose.msra.mxu0 0.0
    %11357 = vmatprep.subr.mxu0 0.0
    %11358 = vmatpush1.xpose.msra.mxu0 0.0
    %11359 = vmatprep.subr.mxu0 0.0
    %11360 = vmatpush1.xpose.msra.mxu0 0.0
    %11361 = vmatprep.subr.mxu0 0.0
    %11362 = vmatpush1.xpose.msra.mxu0 0.0
    %11363 = vmatprep.subr.mxu0 0.0
    %11364 = vmatpush1.xpose.msra.mxu0 0.0
    %11365 = vmatprep.mubr.f32.mxu0 0.0
    %v11366 = vand.u32 %v760, 4294901760
    %11367 = vmatmul.mubr.f32.gmra.mrb[0].mxu0 %v11366
    %v11368 = vpop.f32.mrb[0].mxu0
    %v11369 = vadd.f32 %v11250, %v11368
    %v11370 = vpop.f32.mrb[0].mxu0
    %11371 = vdwg.mxu0
    %11372 = vmatprep.subr.mxu0 0.0
    %v11373 = vand.u32 %v10771, 4294901760
    %11374 = vmatpush1.xpose.msra.mxu0 %v11373
    %11375 = vmatprep.subr.mxu0 0.0
    %v11376 = vand.u32 %v10774, 4294901760
    %11377 = vmatpush1.xpose.msra.mxu0 %v11376
    %11378 = vmatprep.subr.mxu0 0.0
    %v11379 = vand.u32 %v10777, 4294901760
    %11380 = vmatpush1.xpose.msra.mxu0 %v11379
    %11381 = vmatprep.subr.mxu0 0.0
    %v11382 = vand.u32 %v10780, 4294901760
    %11383 = vmatpush1.xpose.msra.mxu0 %v11382
    %11384 = vmatprep.subr.mxu0 0.0
    %v11385 = vand.u32 %v10783, 4294901760
    %11386 = vmatpush1.xpose.msra.mxu0 %v11385
    %11387 = vmatprep.subr.mxu0 0.0
    %v11388 = vand.u32 %v10786, 4294901760
    %11389 = vmatpush1.xpose.msra.mxu0 %v11388
    %11390 = vmatprep.subr.mxu0 0.0
    %v11391 = vand.u32 %v10789, 4294901760
    %11392 = vmatpush1.xpose.msra.mxu0 %v11391
    %11393 = vmatprep.subr.mxu0 0.0
    %v11394 = vand.u32 %v10792, 4294901760
    %11395 = vmatpush1.xpose.msra.mxu0 %v11394
    %11396 = vmatprep.subr.mxu0 0.0
    %v11397 = vand.u32 %v10795, 4294901760
    %11398 = vmatpush1.xpose.msra.mxu0 %v11397
    %11399 = vmatprep.subr.mxu0 0.0
    %v11400 = vand.u32 %v10798, 4294901760
    %11401 = vmatpush1.xpose.msra.mxu0 %v11400
    %11402 = vmatprep.subr.mxu0 0.0
    %v11403 = vand.u32 %v10801, 4294901760
    %11404 = vmatpush1.xpose.msra.mxu0 %v11403
    %11405 = vmatprep.subr.mxu0 0.0
    %v11406 = vand.u32 %v10804, 4294901760
    %11407 = vmatpush1.xpose.msra.mxu0 %v11406
    %11408 = vmatprep.subr.mxu0 0.0
    %v11409 = vand.u32 %v10807, 4294901760
    %11410 = vmatpush1.xpose.msra.mxu0 %v11409
    %11411 = vmatprep.subr.mxu0 0.0
    %v11412 = vand.u32 %v10810, 4294901760
    %11413 = vmatpush1.xpose.msra.mxu0 %v11412
    %11414 = vmatprep.subr.mxu0 0.0
    %v11415 = vand.u32 %v10813, 4294901760
    %11416 = vmatpush1.xpose.msra.mxu0 %v11415
    %11417 = vmatprep.subr.mxu0 0.0
    %v11418 = vand.u32 %v10816, 4294901760
    %11419 = vmatpush1.xpose.msra.mxu0 %v11418
    %11420 = vmatprep.subr.mxu0 0.0
    %11421 = vmatpush1.xpose.msra.mxu0 0.0
    %11422 = vmatprep.subr.mxu0 0.0
    %11423 = vmatpush1.xpose.msra.mxu0 0.0
    %11424 = vmatprep.subr.mxu0 0.0
    %11425 = vmatpush1.xpose.msra.mxu0 0.0
    %11426 = vmatprep.subr.mxu0 0.0
    %11427 = vmatpush1.xpose.msra.mxu0 0.0
    %11428 = vmatprep.subr.mxu0 0.0
    %11429 = vmatpush1.xpose.msra.mxu0 0.0
    %11430 = vmatprep.subr.mxu0 0.0
    %11431 = vmatpush1.xpose.msra.mxu0 0.0
    %11432 = vmatprep.subr.mxu0 0.0
    %11433 = vmatpush1.xpose.msra.mxu0 0.0
    %11434 = vmatprep.subr.mxu0 0.0
    %11435 = vmatpush1.xpose.msra.mxu0 0.0
    %11436 = vmatprep.subr.mxu0 0.0
    %11437 = vmatpush1.xpose.msra.mxu0 0.0
    %11438 = vmatprep.subr.mxu0 0.0
    %11439 = vmatpush1.xpose.msra.mxu0 0.0
    %11440 = vmatprep.subr.mxu0 0.0
    %11441 = vmatpush1.xpose.msra.mxu0 0.0
    %11442 = vmatprep.subr.mxu0 0.0
    %11443 = vmatpush1.xpose.msra.mxu0 0.0
    %11444 = vmatprep.subr.mxu0 0.0
    %11445 = vmatpush1.xpose.msra.mxu0 0.0
    %11446 = vmatprep.subr.mxu0 0.0
    %11447 = vmatpush1.xpose.msra.mxu0 0.0
    %11448 = vmatprep.subr.mxu0 0.0
    %11449 = vmatpush1.xpose.msra.mxu0 0.0
    %11450 = vmatprep.subr.mxu0 0.0
    %11451 = vmatpush1.xpose.msra.mxu0 0.0
    %11452 = vmatprep.mubr.f32.mxu0 0.0
    %v11453 = vand.u32 %v760, 4294901760
    %11454 = vmatmul.mubr.f32.gmra.mrb[0].mxu0 %v11453
    %v11455 = vpop.f32.mrb[0].mxu0
    %v11456 = vadd.f32 %v11369, %v11455
    %v11457 = vpop.f32.mrb[0].mxu0
    %11458 = vdwg.mxu0
    %v11459 = vadd.f32 %v11456, %v1454
    %v11460 = vmax.f32 %v11459, 0.0
    %v11461 = vmul.f32 %v11460, %v1461
    %v11462 = vsel %vm1464, %v11461, 0.0
    %v11463 = vrot.slane %v11462, 4
    %v11464 = vadd.f32 %v11462, %v11463
    %v11465 = vrot.slane %v11464, 2
    %v11466 = vadd.f32 %v11464, %v11465
    %v11467 = vrot.slane %v11466, 1
    %v11468 = vadd.f32 %v11466, %v11467
    %v11469 = vadd.f32 %v11468, %v1472
    %v11470 = vxor.u32 %v11469, 2147483648
    %v11471 = vmul.f32 %v11470, 1.442695
    %v11472 = vpow.pop %v11471
    %v11473 = vadd.f32 %v11472, 1.0
    %v11474 = vrcp.pop %v11473
    %v11475 = vmul.f32 1.0, %v11474
    %11476 = vst [vmem:[#allocation3 + $0x7] sm:$0x1] %v11475
    // Predicated region
    $region30: #{tpu_custom_call.1} parent=1 // pred_check
      _
    $region31: #{tpu_custom_call.1} parent=1 // pred_check_branch
      %11478 = sbr.rel (0) target = $region33
    $region32: #{tpu_custom_call.1} parent=1 // pred_region
      %s11480 = ssub.s32 128, 128
      %11481 = vsyncadd [#allocation4], %s11480
      %s11483 = sshll.u32 [#allocation3], 4
      %s11484 = int_to_ptr.vmem [resolvable:$true] %s11483
      %11486 = dma.vmem_to_hbm [thread:$0]  %s11484, 128, %s7, [#allocation4]
    $region33: #{tpu_custom_call.1} parent=1 // pred_fallthru
      _
    // Predicated region
    $region34: #{tpu_custom_call.1} parent=1 // pred_check
      _
    $region35: #{tpu_custom_call.1} parent=1 // pred_check_branch
      %11488 = sbr.rel (0) target = $region37
    $region36: #{tpu_custom_call.1} parent=1 // pred_region
      %11489 = dma.done [#allocation4], 128
    $region37: #{tpu_custom_call.1} parent=1 // pred_fallthru
      _
    %11490 = vsyncpa [#allocation4], 1

</llo_original>
